<compile_context>
chip_gen: v6e
topology: v6e:2x2x1
jax: 0.10.0
libtpu: 0.0.40
codegen_flags: <defaults>
</compile_context>

<pallas_src>
import jax
import jax.numpy as jnp
from jax.experimental import pallas as pl
from jax.experimental.pallas import tpu as pltpu

IN_FEATURES = 49152
OUT_FEATURES = 10


def _default_num_splits():
    """2-way K split only on v7x (2 TensorCores/chip).  On single-TC v5e/v6e a
    multi-step grid is a serial loop: pure overhead for a ~2 MB weight stream."""
    try:
        kind = jax.devices()[0].device_kind.lower()
    except Exception:
        return 1
    return 2 if "v7" in kind else 1


def _gemv_rows(x_ref, w_ref):
    """VPU GEMV on one K-slice: out[b, n] = sum_k x[b, k] * w[n, k].

    K stays on the lane axis for both operands (no MXU, no weight relayout).
    The tiny batch is statically unrolled; each row is a sublane broadcast of
    x against the (N, Kc) weight tile followed by a lane reduce.  Accumulation
    is f32 regardless of storage dtype (so the weight may be stored bf16).
    """
    w = w_ref[...].astype(jnp.float32)                       # (N, Kc), K on lanes
    rows = []
    for r in range(x_ref.shape[0]):                          # B is tiny (e.g. 2)
        x_row = x_ref[r:r + 1, :].astype(jnp.float32)        # (1, Kc)
        rows.append(jnp.sum(w * x_row, axis=-1)[None, :])    # (1, N)
    return jnp.concatenate(rows, axis=0)                     # (B, N) f32


def _linear_kernel_fused(x_ref, w_ref, b_ref, o_ref):
    # Single grid step: full (B, K) x, full (N, K) weight, bias added here.
    o_ref[...] = (_gemv_rows(x_ref, w_ref) + b_ref[...]).astype(o_ref.dtype)


def _linear_kernel_partial(x_ref, w_ref, o_ref):
    # One independent K-slice per grid step ("parallel" -> one per TensorCore
    # on v7x).  Bias and the 2-element reduce live in the wrapper.
    o_ref[0, :, :] = _gemv_rows(x_ref, w_ref).astype(o_ref.dtype)


def linear_pallas(x, w, b, *, num_splits=None):
    """x: (B, K), w: (N, K) PyTorch-native layout, b: (N,)  ->  (B, N) f32.

    `w` may be f32 or bf16 (bf16 halves the dominant HBM stream); the kernel
    accumulates in f32 either way.
    """
    B, K = x.shape
    N, Kw = w.shape
    assert K == Kw, "weight in_features must match input features"
    if num_splits is None:
        num_splits = _default_num_splits()
    assert K % num_splits == 0, "K must be divisible by the number of K splits"
    kc = K // num_splits
    assert kc % 128 == 0, "per-split K slice must stay lane-aligned (128)"

    # Tiny memory-bound op: tell XLA so it schedules neighbours around it.
    cost = pl.CostEstimate(
        flops=2 * B * K * N,
        transcendentals=0,
        bytes_accessed=int(x.size * x.dtype.itemsize
                           + w.size * w.dtype.itemsize
                           + b.size * b.dtype.itemsize
                           + B * N * 4),
    )

    if num_splits == 1:
        # v5e / v6e: one grid step, everything (including bias) in-kernel.
        return pl.pallas_call(
            _linear_kernel_fused,
            out_shape=jax.ShapeDtypeStruct((B, N), jnp.float32),
            grid_spec=pltpu.PrefetchScalarGridSpec(
                num_scalar_prefetch=0,
                grid=(1,),
                in_specs=[
                    pl.BlockSpec((B, K), lambda c: (0, 0)),   # x, full-resident
                    pl.BlockSpec((N, K), lambda c: (0, 0)),   # weight, (N, K) native
                    pl.BlockSpec((1, N), lambda c: (0, 0)),   # bias
                ],
                out_specs=pl.BlockSpec((B, N), lambda c: (0, 0)),
            ),
            compiler_params=pltpu.CompilerParams(
                dimension_semantics=("arbitrary",),
                vmem_limit_bytes=64 * 1024 * 1024,  # headroom for full-resident f32 tiles
            ),
            cost_estimate=cost,
        )(x, w, b.reshape(1, N))

    # v7x: split K across the two TensorCores; bias-free partials per split.
    partials = pl.pallas_call(
        _linear_kernel_partial,
        out_shape=jax.ShapeDtypeStruct((num_splits, B, N), jnp.float32),
        grid_spec=pltpu.PrefetchScalarGridSpec(
            num_scalar_prefetch=0,
            grid=(num_splits,),
            in_specs=[
                pl.BlockSpec((B, kc), lambda c: (0, c)),      # x K-slice
                pl.BlockSpec((N, kc), lambda c: (0, c)),      # weight K-slice
            ],
            out_specs=pl.BlockSpec((1, B, N), lambda c: (c, 0, 0)),
        ),
        compiler_params=pltpu.CompilerParams(
            dimension_semantics=("parallel",),   # one split per TensorCore
        ),
        cost_estimate=cost,
    )(x, w)

    # Tiny (num_splits, B, N) reduce + bias: one fused wrapper expression.
    if num_splits == 2:
        return partials[0] + partials[1] + b
    return partials.sum(axis=0) + b


if __name__ == "__main__":
    key = jax.random.PRNGKey(0)
    kx, kw, kb = jax.random.split(key, 3)

    B = 2
    x = jax.random.normal(kx, (B, IN_FEATURES), dtype=jnp.float32)

    # PyTorch-style init; weight kept in native (out_features, in_features) layout.
    bound = 1.0 / jnp.sqrt(jnp.float32(IN_FEATURES))
    w = jax.random.uniform(kw, (OUT_FEATURES, IN_FEATURES),
                           minval=-bound, maxval=bound, dtype=jnp.float32)
    b = jax.random.uniform(kb, (OUT_FEATURES,),
                           minval=-bound, maxval=bound, dtype=jnp.float32)

    # f32 path: exact forward-pass semantics of nn.Linear(49152, 10).
    out = jax.block_until_ready(linear_pallas(x, w, b))
    ref = x @ w.T + b
    assert out.shape == (B, OUT_FEATURES)
    assert jnp.allclose(out, ref, atol=1e-3, rtol=1e-3), (
        f"max err {jnp.max(jnp.abs(out - ref))}")

    # Optional bf16 weight storage (halves the dominant HBM stream); kernel
    # still accumulates in f32.  Checked against the matching bf16-weight ref.
    w_bf16 = w.astype(jnp.bfloat16)
    out_bf16 = jax.block_until_ready(linear_pallas(x, w_bf16, b))
    ref_bf16 = x @ w_bf16.astype(jnp.float32).T + b
    assert jnp.allclose(out_bf16, ref_bf16, atol=2e-3, rtol=2e-3)

    # TODO(synk): inside a larger model, prefetch the (bf16) weight into VMEM
    # across calls (P10 cross-call DMA) instead of re-reading ~2 MB from HBM
    # on every invocation.

    print("KERNEL_OK")
</pallas_src>

<mosaic_0001>
module attributes {stable_mosaic.version = 11 : i64} {
  func.func @_linear_kernel_fused(%arg0: i32, %arg1: memref<2x49152xf32, #tpu.memory_space<vmem>>, %arg2: memref<10x49152xf32, #tpu.memory_space<vmem>>, %arg3: memref<1x10xf32, #tpu.memory_space<vmem>>, %arg4: memref<2x10xf32, #tpu.memory_space<vmem>>) attributes {dimension_semantics = [#tpu.dimension_semantics<arbitrary>], iteration_bounds = array<i64: 1>, scalar_prefetch = 0 : i64, scratch_operands = 0 : i64, tpu.core_type = #tpu.core_type<tc>, window_params = [{pipeline_mode = #tpu.pipeline_mode<synchronous>, transform_indices = @transform_0, window_bounds = array<i64: 2, 49152>}, {pipeline_mode = #tpu.pipeline_mode<synchronous>, transform_indices = @transform_1, window_bounds = array<i64: 10, 49152>}, {pipeline_mode = #tpu.pipeline_mode<synchronous>, transform_indices = @transform_2, window_bounds = array<i64: 1, 10>}, {pipeline_mode = #tpu.pipeline_mode<synchronous>, transform_indices = @transform_3, window_bounds = array<i64: 2, 10>}]} {
    %c0 = arith.constant 0 : index
    %c0_0 = arith.constant 0 : index
    %0 = vector.load %arg2[%c0, %c0_0] : memref<10x49152xf32, #tpu.memory_space<vmem>>, vector<10x49152xf32>
    %c0_1 = arith.constant 0 : index
    %c0_2 = arith.constant 0 : index
    %1 = vector.load %arg1[%c0_1, %c0_2] : memref<2x49152xf32, #tpu.memory_space<vmem>>, vector<1x49152xf32>
    %2 = vector.broadcast %1 : vector<1x49152xf32> to vector<10x49152xf32>
    %3 = arith.mulf %0, %2 : vector<10x49152xf32>
    %cst = arith.constant dense<0.000000e+00> : vector<10xf32>
    %4 = vector.multi_reduction <add>, %3, %cst [1] : vector<10x49152xf32> to vector<10xf32>
    %5 = vector.shape_cast %4 : vector<10xf32> to vector<1x10xf32>
    %c1 = arith.constant 1 : index
    %c0_3 = arith.constant 0 : index
    %6 = vector.load %arg1[%c1, %c0_3] : memref<2x49152xf32, #tpu.memory_space<vmem>>, vector<1x49152xf32>
    %7 = vector.broadcast %6 : vector<1x49152xf32> to vector<10x49152xf32>
    %8 = arith.mulf %0, %7 : vector<10x49152xf32>
    %cst_4 = arith.constant dense<0.000000e+00> : vector<10xf32>
    %9 = vector.multi_reduction <add>, %8, %cst_4 [1] : vector<10x49152xf32> to vector<10xf32>
    %10 = vector.shape_cast %9 : vector<10xf32> to vector<1x10xf32>
    %11 = tpu.concatenate %5, %10 in 0 : vector<1x10xf32>, vector<1x10xf32> -> vector<2x10xf32>
    %c0_5 = arith.constant 0 : index
    %c0_6 = arith.constant 0 : index
    %12 = vector.load %arg3[%c0_5, %c0_6] : memref<1x10xf32, #tpu.memory_space<vmem>>, vector<1x10xf32>
    %13 = vector.broadcast %12 : vector<1x10xf32> to vector<2x10xf32>
    %14 = arith.addf %11, %13 : vector<2x10xf32>
    %c0_7 = arith.constant 0 : index
    %c0_8 = arith.constant 0 : index
    %15 = vector.load %arg4[%c0_7, %c0_8] : memref<2x10xf32, #tpu.memory_space<vmem>>, vector<2x10xf32>
    tpu.vector_store %arg4[%c0_7, %c0_8], %14 {strides = array<i32>} : memref<2x10xf32, #tpu.memory_space<vmem>>, vector<2x10xf32>,
    return
  }
  func.func @transform_0(%arg0: i32) -> (i32, i32) {
    %c0_i32 = arith.constant 0 : i32
    %c0_i32_0 = arith.constant 0 : i32
    %c0_i32_1 = arith.constant 0 : i32
    return %c0_i32, %c0_i32_0 : i32, i32
  }
  func.func @transform_1(%arg0: i32) -> (i32, i32) {
    %c0_i32 = arith.constant 0 : i32
    %c0_i32_0 = arith.constant 0 : i32
    %c0_i32_1 = arith.constant 0 : i32
    return %c0_i32, %c0_i32_0 : i32, i32
  }
  func.func @transform_2(%arg0: i32) -> (i32, i32) {
    %c0_i32 = arith.constant 0 : i32
    %c0_i32_0 = arith.constant 0 : i32
    %c0_i32_1 = arith.constant 0 : i32
    return %c0_i32, %c0_i32_0 : i32, i32
  }
  func.func @transform_3(%arg0: i32) -> (i32, i32) {
    %c0_i32 = arith.constant 0 : i32
    %c0_i32_0 = arith.constant 0 : i32
    %c0_i32_1 = arith.constant 0 : i32
    return %c0_i32, %c0_i32_0 : i32, i32
  }
}

</mosaic_0001>

<llo_original>
// kernel: tpu_custom_call.1
$region0: #{tpu_custom_call.1}
  #allocation0 [shape = 'u32[]', space=smem, size = 0x4, offset = 0x4, fixed_abs, tag = 'smem constant byte address 0x4 - core index']
  #allocation1 [shape = 'u32[144,128]{1,0:T(1,128)}', space=vmem, size = 0x12000, scoped, tag = 'internal scratch']
  %s0 = inlined_call_operand.hbm [shape: f32[2,49152], index: 0, kind: input, shape index: {}]
  %s1 = inlined_call_operand.hbm [shape: f32[10,49152], index: 1, kind: input, shape index: {}]
  %s2 = inlined_call_operand.hbm [shape: f32[1,10], index: 2, kind: input, shape index: {}]
  %s3 = inlined_call_operand.hbm [shape: f32[2,10], index: 3, kind: output, shape index: {}]
  %s4 = sld [smem:[#allocation0]]
  $region34: #{tpu_custom_call.1} parent=0
    _
  %s6 = ssub.s32 1, %s4
  %s7 = scalar_select 0, %s6, %s4
  $region1: #{tpu_custom_call.1} parent=0
    #allocation2 [shape = 'u8[393216]{0}', space=vmem, size = 0x60000, scoped, tag = 'input window, operand 0, single buffered']
    #allocation3 [shape = 's32[1]{0}', space=sflag, size = 0x4, scoped, tag = 'scoped memory for tpu_custom_call.1']
    #allocation4 [shape = 's32[1]{0}', space=sflag, size = 0x4, scoped, tag = 'scoped memory for tpu_custom_call.1']
    #allocation5 [shape = 'u8[3145728]{0}', space=vmem, size = 0x300000, scoped, tag = 'input window, operand 1, single buffered']
    #allocation6 [shape = 's32[1]{0}', space=sflag, size = 0x4, scoped, tag = 'scoped memory for tpu_custom_call.1']
    #allocation7 [shape = 'u8[512]{0}', space=vmem, size = 0x400, scoped, tag = 'input window, operand 2, single buffered']
    #allocation8 [shape = 'u8[1024]{0}', space=vmem, size = 0x400, scoped, tag = 'output window, operand 0, single buffered']
    %8 = vsyncpa [#allocation3], 0
    %9 = vsyncpa [#allocation6], 0
    %10 = vsyncpa [#allocation4], 0
    // Predicated region
    $region2: #{tpu_custom_call.1} parent=1 // pred_check
      _
    $region3: #{tpu_custom_call.1} parent=1 // pred_check_branch
      %12 = sbr.rel (0) target = $region5
    $region4: #{tpu_custom_call.1} parent=1 // pred_region
      %s14 = ssub.s32 12288, 12288
      %15 = vsyncadd [#allocation3], %s14
      %s17 = sshll.u32 [#allocation2], 4
      %s18 = int_to_ptr.vmem [resolvable:$true] %s17
      %20 = dma.hbm_to_vmem [thread:$0]  %s0, 12288, %s18, [#allocation3]
    $region5: #{tpu_custom_call.1} parent=1 // pred_fallthru
      _
    // Predicated region
    $region6: #{tpu_custom_call.1} parent=1 // pred_check
      _
    $region7: #{tpu_custom_call.1} parent=1 // pred_check_branch
      %22 = sbr.rel (0) target = $region9
    $region8: #{tpu_custom_call.1} parent=1 // pred_region
      %s24 = ssub.s32 98304, 98304
      %25 = vsyncadd [#allocation6], %s24
      %s26 = sshll.u32 [#allocation5], 4
      %s27 = int_to_ptr.vmem [resolvable:$true] %s26
      %32 = dma.hbm_to_vmem [thread:$0]  %s1, 98304, %s27, [#allocation6], 49152, 49152, 3072
    $region9: #{tpu_custom_call.1} parent=1 // pred_fallthru
      _
    // Predicated region
    $region10: #{tpu_custom_call.1} parent=1 // pred_check
      _
    $region11: #{tpu_custom_call.1} parent=1 // pred_check_branch
      %34 = sbr.rel (0) target = $region13
    $region12: #{tpu_custom_call.1} parent=1 // pred_region
      %s36 = ssub.s32 16, 16
      %37 = vsyncadd [#allocation6], %s36
      %s39 = sshll.u32 [#allocation7], 4
      %s40 = int_to_ptr.vmem [resolvable:$true] %s39
      %42 = dma.hbm_to_vmem [thread:$0]  %s2, 16, %s40, [#allocation6]
    $region13: #{tpu_custom_call.1} parent=1 // pred_fallthru
      _
    // Predicated region
    $region14: #{tpu_custom_call.1} parent=1 // pred_check
      _
    $region15: #{tpu_custom_call.1} parent=1 // pred_check_branch
      %44 = sbr.rel (0) target = $region17
    $region16: #{tpu_custom_call.1} parent=1 // pred_region
      %45 = dma.done [#allocation3], 12288
    $region17: #{tpu_custom_call.1} parent=1 // pred_fallthru
      _
    // Predicated region
    $region18: #{tpu_custom_call.1} parent=1 // pred_check
      _
    $region19: #{tpu_custom_call.1} parent=1 // pred_check_branch
      %47 = sbr.rel (0) target = $region21
    $region20: #{tpu_custom_call.1} parent=1 // pred_region
      %48 = dma.done [#allocation6], 98304
    $region21: #{tpu_custom_call.1} parent=1 // pred_fallthru
      _
    // Predicated region
    $region22: #{tpu_custom_call.1} parent=1 // pred_check
      _
    $region23: #{tpu_custom_call.1} parent=1 // pred_check_branch
      %50 = sbr.rel (0) target = $region25
    $region24: #{tpu_custom_call.1} parent=1 // pred_region
      %51 = dma.done [#allocation6], 16
    $region25: #{tpu_custom_call.1} parent=1 // pred_fallthru
      _
    %v52 = vld [vmem:[#allocation5] sm:$0xff]
    %v53 = vld [vmem:[#allocation5 + $0x8] sm:$0xff]
    %v54 = vld [vmem:[#allocation5 + $0x10] sm:$0xff]
    %v55 = vld [vmem:[#allocation5 + $0x18] sm:$0xff]
    %v56 = vld [vmem:[#allocation5 + $0x20] sm:$0xff]
    %v57 = vld [vmem:[#allocation5 + $0x28] sm:$0xff]
    %v58 = vld [vmem:[#allocation5 + $0x30] sm:$0xff]
    %v59 = vld [vmem:[#allocation5 + $0x38] sm:$0xff]
    %v60 = vld [vmem:[#allocation5 + $0x40] sm:$0xff]
    %v61 = vld [vmem:[#allocation5 + $0x48] sm:$0xff]
    %v62 = vld [vmem:[#allocation5 + $0x50] sm:$0xff]
    %v63 = vld [vmem:[#allocation5 + $0x58] sm:$0xff]
    %v64 = vld [vmem:[#allocation5 + $0x60] sm:$0xff]
    %v65 = vld [vmem:[#allocation5 + $0x68] sm:$0xff]
    %v66 = vld [vmem:[#allocation5 + $0x70] sm:$0xff]
    %v67 = vld [vmem:[#allocation5 + $0x78] sm:$0xff]
    %v68 = vld [vmem:[#allocation5 + $0x80] sm:$0xff]
    %v69 = vld [vmem:[#allocation5 + $0x88] sm:$0xff]
    %v70 = vld [vmem:[#allocation5 + $0x90] sm:$0xff]
    %v71 = vld [vmem:[#allocation5 + $0x98] sm:$0xff]
    %v72 = vld [vmem:[#allocation5 + $0xa0] sm:$0xff]
    %v73 = vld [vmem:[#allocation5 + $0xa8] sm:$0xff]
    %v74 = vld [vmem:[#allocation5 + $0xb0] sm:$0xff]
    %v75 = vld [vmem:[#allocation5 + $0xb8] sm:$0xff]
    %v76 = vld [vmem:[#allocation5 + $0xc0] sm:$0xff]
    %v77 = vld [vmem:[#allocation5 + $0xc8] sm:$0xff]
    %v78 = vld [vmem:[#allocation5 + $0xd0] sm:$0xff]
    %v79 = vld [vmem:[#allocation5 + $0xd8] sm:$0xff]
    %v80 = vld [vmem:[#allocation5 + $0xe0] sm:$0xff]
    %v81 = vld [vmem:[#allocation5 + $0xe8] sm:$0xff]
    %v82 = vld [vmem:[#allocation5 + $0xf0] sm:$0xff]
    %v83 = vld [vmem:[#allocation5 + $0xf8] sm:$0xff]
    %v84 = vld [vmem:[#allocation5 + $0x100] sm:$0xff]
    %v85 = vld [vmem:[#allocation5 + $0x108] sm:$0xff]
    %v86 = vld [vmem:[#allocation5 + $0x110] sm:$0xff]
    %v87 = vld [vmem:[#allocation5 + $0x118] sm:$0xff]
    %v88 = vld [vmem:[#allocation5 + $0x120] sm:$0xff]
    %v89 = vld [vmem:[#allocation5 + $0x128] sm:$0xff]
    %v90 = vld [vmem:[#allocation5 + $0x130] sm:$0xff]
    %v91 = vld [vmem:[#allocation5 + $0x138] sm:$0xff]
    %v92 = vld [vmem:[#allocation5 + $0x140] sm:$0xff]
    %v93 = vld [vmem:[#allocation5 + $0x148] sm:$0xff]
    %v94 = vld [vmem:[#allocation5 + $0x150] sm:$0xff]
    %v95 = vld [vmem:[#allocation5 + $0x158] sm:$0xff]
    %v96 = vld [vmem:[#allocation5 + $0x160] sm:$0xff]
    %v97 = vld [vmem:[#allocation5 + $0x168] sm:$0xff]
    %v98 = vld [vmem:[#allocation5 + $0x170] sm:$0xff]
    %v99 = vld [vmem:[#allocation5 + $0x178] sm:$0xff]
    %v100 = vld [vmem:[#allocation5 + $0x180] sm:$0xff]
    %v101 = vld [vmem:[#allocation5 + $0x188] sm:$0xff]
    %v102 = vld [vmem:[#allocation5 + $0x190] sm:$0xff]
    %v103 = vld [vmem:[#allocation5 + $0x198] sm:$0xff]
    %v104 = vld [vmem:[#allocation5 + $0x1a0] sm:$0xff]
    %v105 = vld [vmem:[#allocation5 + $0x1a8] sm:$0xff]
    %v106 = vld [vmem:[#allocation5 + $0x1b0] sm:$0xff]
    %v107 = vld [vmem:[#allocation5 + $0x1b8] sm:$0xff]
    %v108 = vld [vmem:[#allocation5 + $0x1c0] sm:$0xff]
    %v109 = vld [vmem:[#allocation5 + $0x1c8] sm:$0xff]
    %v110 = vld [vmem:[#allocation5 + $0x1d0] sm:$0xff]
    %v111 = vld [vmem:[#allocation5 + $0x1d8] sm:$0xff]
    %v112 = vld [vmem:[#allocation5 + $0x1e0] sm:$0xff]
    %v113 = vld [vmem:[#allocation5 + $0x1e8] sm:$0xff]
    %v114 = vld [vmem:[#allocation5 + $0x1f0] sm:$0xff]
    %v115 = vld [vmem:[#allocation5 + $0x1f8] sm:$0xff]
    %v116 = vld [vmem:[#allocation5 + $0x200] sm:$0xff]
    %v117 = vld [vmem:[#allocation5 + $0x208] sm:$0xff]
    %v118 = vld [vmem:[#allocation5 + $0x210] sm:$0xff]
    %v119 = vld [vmem:[#allocation5 + $0x218] sm:$0xff]
    %v120 = vld [vmem:[#allocation5 + $0x220] sm:$0xff]
    %v121 = vld [vmem:[#allocation5 + $0x228] sm:$0xff]
    %v122 = vld [vmem:[#allocation5 + $0x230] sm:$0xff]
    %v123 = vld [vmem:[#allocation5 + $0x238] sm:$0xff]
    %v124 = vld [vmem:[#allocation5 + $0x240] sm:$0xff]
    %v125 = vld [vmem:[#allocation5 + $0x248] sm:$0xff]
    %v126 = vld [vmem:[#allocation5 + $0x250] sm:$0xff]
    %v127 = vld [vmem:[#allocation5 + $0x258] sm:$0xff]
    %v128 = vld [vmem:[#allocation5 + $0x260] sm:$0xff]
    %v129 = vld [vmem:[#allocation5 + $0x268] sm:$0xff]
    %v130 = vld [vmem:[#allocation5 + $0x270] sm:$0xff]
    %v131 = vld [vmem:[#allocation5 + $0x278] sm:$0xff]
    %v132 = vld [vmem:[#allocation5 + $0x280] sm:$0xff]
    %v133 = vld [vmem:[#allocation5 + $0x288] sm:$0xff]
    %v134 = vld [vmem:[#allocation5 + $0x290] sm:$0xff]
    %v135 = vld [vmem:[#allocation5 + $0x298] sm:$0xff]
    %v136 = vld [vmem:[#allocation5 + $0x2a0] sm:$0xff]
    %v137 = vld [vmem:[#allocation5 + $0x2a8] sm:$0xff]
    %v138 = vld [vmem:[#allocation5 + $0x2b0] sm:$0xff]
    %v139 = vld [vmem:[#allocation5 + $0x2b8] sm:$0xff]
    %v140 = vld [vmem:[#allocation5 + $0x2c0] sm:$0xff]
    %v141 = vld [vmem:[#allocation5 + $0x2c8] sm:$0xff]
    %v142 = vld [vmem:[#allocation5 + $0x2d0] sm:$0xff]
    %v143 = vld [vmem:[#allocation5 + $0x2d8] sm:$0xff]
    %v144 = vld [vmem:[#allocation5 + $0x2e0] sm:$0xff]
    %v145 = vld [vmem:[#allocation5 + $0x2e8] sm:$0xff]
    %v146 = vld [vmem:[#allocation5 + $0x2f0] sm:$0xff]
    %v147 = vld [vmem:[#allocation5 + $0x2f8] sm:$0xff]
    %v148 = vld [vmem:[#allocation5 + $0x300] sm:$0xff]
    %v149 = vld [vmem:[#allocation5 + $0x308] sm:$0xff]
    %v150 = vld [vmem:[#allocation5 + $0x310] sm:$0xff]
    %v151 = vld [vmem:[#allocation5 + $0x318] sm:$0xff]
    %v152 = vld [vmem:[#allocation5 + $0x320] sm:$0xff]
    %v153 = vld [vmem:[#allocation5 + $0x328] sm:$0xff]
    %v154 = vld [vmem:[#allocation5 + $0x330] sm:$0xff]
    %v155 = vld [vmem:[#allocation5 + $0x338] sm:$0xff]
    %v156 = vld [vmem:[#allocation5 + $0x340] sm:$0xff]
    %v157 = vld [vmem:[#allocation5 + $0x348] sm:$0xff]
    %v158 = vld [vmem:[#allocation5 + $0x350] sm:$0xff]
    %v159 = vld [vmem:[#allocation5 + $0x358] sm:$0xff]
    %v160 = vld [vmem:[#allocation5 + $0x360] sm:$0xff]
    %v161 = vld [vmem:[#allocation5 + $0x368] sm:$0xff]
    %v162 = vld [vmem:[#allocation5 + $0x370] sm:$0xff]
    %v163 = vld [vmem:[#allocation5 + $0x378] sm:$0xff]
    %v164 = vld [vmem:[#allocation5 + $0x380] sm:$0xff]
    %v165 = vld [vmem:[#allocation5 + $0x388] sm:$0xff]
    %v166 = vld [vmem:[#allocation5 + $0x390] sm:$0xff]
    %v167 = vld [vmem:[#allocation5 + $0x398] sm:$0xff]
    %v168 = vld [vmem:[#allocation5 + $0x3a0] sm:$0xff]
    %v169 = vld [vmem:[#allocation5 + $0x3a8] sm:$0xff]
    %v170 = vld [vmem:[#allocation5 + $0x3b0] sm:$0xff]
    %v171 = vld [vmem:[#allocation5 + $0x3b8] sm:$0xff]
    %v172 = vld [vmem:[#allocation5 + $0x3c0] sm:$0xff]
    %v173 = vld [vmem:[#allocation5 + $0x3c8] sm:$0xff]
    %v174 = vld [vmem:[#allocation5 + $0x3d0] sm:$0xff]
    %v175 = vld [vmem:[#allocation5 + $0x3d8] sm:$0xff]
    %v176 = vld [vmem:[#allocation5 + $0x3e0] sm:$0xff]
    %v177 = vld [vmem:[#allocation5 + $0x3e8] sm:$0xff]
    %v178 = vld [vmem:[#allocation5 + $0x3f0] sm:$0xff]
    %v179 = vld [vmem:[#allocation5 + $0x3f8] sm:$0xff]
    %v180 = vld [vmem:[#allocation5 + $0x400] sm:$0xff]
    %v181 = vld [vmem:[#allocation5 + $0x408] sm:$0xff]
    %v182 = vld [vmem:[#allocation5 + $0x410] sm:$0xff]
    %v183 = vld [vmem:[#allocation5 + $0x418] sm:$0xff]
    %v184 = vld [vmem:[#allocation5 + $0x420] sm:$0xff]
    %v185 = vld [vmem:[#allocation5 + $0x428] sm:$0xff]
    %v186 = vld [vmem:[#allocation5 + $0x430] sm:$0xff]
    %v187 = vld [vmem:[#allocation5 + $0x438] sm:$0xff]
    %v188 = vld [vmem:[#allocation5 + $0x440] sm:$0xff]
    %v189 = vld [vmem:[#allocation5 + $0x448] sm:$0xff]
    %v190 = vld [vmem:[#allocation5 + $0x450] sm:$0xff]
    %v191 = vld [vmem:[#allocation5 + $0x458] sm:$0xff]
    %v192 = vld [vmem:[#allocation5 + $0x460] sm:$0xff]
    %v193 = vld [vmem:[#allocation5 + $0x468] sm:$0xff]
    %v194 = vld [vmem:[#allocation5 + $0x470] sm:$0xff]
    %v195 = vld [vmem:[#allocation5 + $0x478] sm:$0xff]
    %v196 = vld [vmem:[#allocation5 + $0x480] sm:$0xff]
    %v197 = vld [vmem:[#allocation5 + $0x488] sm:$0xff]
    %v198 = vld [vmem:[#allocation5 + $0x490] sm:$0xff]
    %v199 = vld [vmem:[#allocation5 + $0x498] sm:$0xff]
    %v200 = vld [vmem:[#allocation5 + $0x4a0] sm:$0xff]
    %v201 = vld [vmem:[#allocation5 + $0x4a8] sm:$0xff]
    %v202 = vld [vmem:[#allocation5 + $0x4b0] sm:$0xff]
    %v203 = vld [vmem:[#allocation5 + $0x4b8] sm:$0xff]
    %v204 = vld [vmem:[#allocation5 + $0x4c0] sm:$0xff]
    %v205 = vld [vmem:[#allocation5 + $0x4c8] sm:$0xff]
    %v206 = vld [vmem:[#allocation5 + $0x4d0] sm:$0xff]
    %v207 = vld [vmem:[#allocation5 + $0x4d8] sm:$0xff]
    %v208 = vld [vmem:[#allocation5 + $0x4e0] sm:$0xff]
    %v209 = vld [vmem:[#allocation5 + $0x4e8] sm:$0xff]
    %v210 = vld [vmem:[#allocation5 + $0x4f0] sm:$0xff]
    %v211 = vld [vmem:[#allocation5 + $0x4f8] sm:$0xff]
    %v212 = vld [vmem:[#allocation5 + $0x500] sm:$0xff]
    %v213 = vld [vmem:[#allocation5 + $0x508] sm:$0xff]
    %v214 = vld [vmem:[#allocation5 + $0x510] sm:$0xff]
    %v215 = vld [vmem:[#allocation5 + $0x518] sm:$0xff]
    %v216 = vld [vmem:[#allocation5 + $0x520] sm:$0xff]
    %v217 = vld [vmem:[#allocation5 + $0x528] sm:$0xff]
    %v218 = vld [vmem:[#allocation5 + $0x530] sm:$0xff]
    %v219 = vld [vmem:[#allocation5 + $0x538] sm:$0xff]
    %v220 = vld [vmem:[#allocation5 + $0x540] sm:$0xff]
    %v221 = vld [vmem:[#allocation5 + $0x548] sm:$0xff]
    %v222 = vld [vmem:[#allocation5 + $0x550] sm:$0xff]
    %v223 = vld [vmem:[#allocation5 + $0x558] sm:$0xff]
    %v224 = vld [vmem:[#allocation5 + $0x560] sm:$0xff]
    %v225 = vld [vmem:[#allocation5 + $0x568] sm:$0xff]
    %v226 = vld [vmem:[#allocation5 + $0x570] sm:$0xff]
    %v227 = vld [vmem:[#allocation5 + $0x578] sm:$0xff]
    %v228 = vld [vmem:[#allocation5 + $0x580] sm:$0xff]
    %v229 = vld [vmem:[#allocation5 + $0x588] sm:$0xff]
    %v230 = vld [vmem:[#allocation5 + $0x590] sm:$0xff]
    %v231 = vld [vmem:[#allocation5 + $0x598] sm:$0xff]
    %v232 = vld [vmem:[#allocation5 + $0x5a0] sm:$0xff]
    %v233 = vld [vmem:[#allocation5 + $0x5a8] sm:$0xff]
    %v234 = vld [vmem:[#allocation5 + $0x5b0] sm:$0xff]
    %v235 = vld [vmem:[#allocation5 + $0x5b8] sm:$0xff]
    %v236 = vld [vmem:[#allocation5 + $0x5c0] sm:$0xff]
    %v237 = vld [vmem:[#allocation5 + $0x5c8] sm:$0xff]
    %v238 = vld [vmem:[#allocation5 + $0x5d0] sm:$0xff]
    %v239 = vld [vmem:[#allocation5 + $0x5d8] sm:$0xff]
    %v240 = vld [vmem:[#allocation5 + $0x5e0] sm:$0xff]
    %v241 = vld [vmem:[#allocation5 + $0x5e8] sm:$0xff]
    %v242 = vld [vmem:[#allocation5 + $0x5f0] sm:$0xff]
    %v243 = vld [vmem:[#allocation5 + $0x5f8] sm:$0xff]
    %v244 = vld [vmem:[#allocation5 + $0x600] sm:$0xff]
    %v245 = vld [vmem:[#allocation5 + $0x608] sm:$0xff]
    %v246 = vld [vmem:[#allocation5 + $0x610] sm:$0xff]
    %v247 = vld [vmem:[#allocation5 + $0x618] sm:$0xff]
    %v248 = vld [vmem:[#allocation5 + $0x620] sm:$0xff]
    %v249 = vld [vmem:[#allocation5 + $0x628] sm:$0xff]
    %v250 = vld [vmem:[#allocation5 + $0x630] sm:$0xff]
    %v251 = vld [vmem:[#allocation5 + $0x638] sm:$0xff]
    %v252 = vld [vmem:[#allocation5 + $0x640] sm:$0xff]
    %v253 = vld [vmem:[#allocation5 + $0x648] sm:$0xff]
    %v254 = vld [vmem:[#allocation5 + $0x650] sm:$0xff]
    %v255 = vld [vmem:[#allocation5 + $0x658] sm:$0xff]
    %v256 = vld [vmem:[#allocation5 + $0x660] sm:$0xff]
    %v257 = vld [vmem:[#allocation5 + $0x668] sm:$0xff]
    %v258 = vld [vmem:[#allocation5 + $0x670] sm:$0xff]
    %v259 = vld [vmem:[#allocation5 + $0x678] sm:$0xff]
    %v260 = vld [vmem:[#allocation5 + $0x680] sm:$0xff]
    %v261 = vld [vmem:[#allocation5 + $0x688] sm:$0xff]
    %v262 = vld [vmem:[#allocation5 + $0x690] sm:$0xff]
    %v263 = vld [vmem:[#allocation5 + $0x698] sm:$0xff]
    %v264 = vld [vmem:[#allocation5 + $0x6a0] sm:$0xff]
    %v265 = vld [vmem:[#allocation5 + $0x6a8] sm:$0xff]
    %v266 = vld [vmem:[#allocation5 + $0x6b0] sm:$0xff]
    %v267 = vld [vmem:[#allocation5 + $0x6b8] sm:$0xff]
    %v268 = vld [vmem:[#allocation5 + $0x6c0] sm:$0xff]
    %v269 = vld [vmem:[#allocation5 + $0x6c8] sm:$0xff]
    %v270 = vld [vmem:[#allocation5 + $0x6d0] sm:$0xff]
    %v271 = vld [vmem:[#allocation5 + $0x6d8] sm:$0xff]
    %v272 = vld [vmem:[#allocation5 + $0x6e0] sm:$0xff]
    %v273 = vld [vmem:[#allocation5 + $0x6e8] sm:$0xff]
    %v274 = vld [vmem:[#allocation5 + $0x6f0] sm:$0xff]
    %v275 = vld [vmem:[#allocation5 + $0x6f8] sm:$0xff]
    %v276 = vld [vmem:[#allocation5 + $0x700] sm:$0xff]
    %v277 = vld [vmem:[#allocation5 + $0x708] sm:$0xff]
    %v278 = vld [vmem:[#allocation5 + $0x710] sm:$0xff]
    %v279 = vld [vmem:[#allocation5 + $0x718] sm:$0xff]
    %v280 = vld [vmem:[#allocation5 + $0x720] sm:$0xff]
    %v281 = vld [vmem:[#allocation5 + $0x728] sm:$0xff]
    %v282 = vld [vmem:[#allocation5 + $0x730] sm:$0xff]
    %v283 = vld [vmem:[#allocation5 + $0x738] sm:$0xff]
    %v284 = vld [vmem:[#allocation5 + $0x740] sm:$0xff]
    %v285 = vld [vmem:[#allocation5 + $0x748] sm:$0xff]
    %v286 = vld [vmem:[#allocation5 + $0x750] sm:$0xff]
    %v287 = vld [vmem:[#allocation5 + $0x758] sm:$0xff]
    %v288 = vld [vmem:[#allocation5 + $0x760] sm:$0xff]
    %v289 = vld [vmem:[#allocation5 + $0x768] sm:$0xff]
    %v290 = vld [vmem:[#allocation5 + $0x770] sm:$0xff]
    %v291 = vld [vmem:[#allocation5 + $0x778] sm:$0xff]
    %v292 = vld [vmem:[#allocation5 + $0x780] sm:$0xff]
    %v293 = vld [vmem:[#allocation5 + $0x788] sm:$0xff]
    %v294 = vld [vmem:[#allocation5 + $0x790] sm:$0xff]
    %v295 = vld [vmem:[#allocation5 + $0x798] sm:$0xff]
    %v296 = vld [vmem:[#allocation5 + $0x7a0] sm:$0xff]
    %v297 = vld [vmem:[#allocation5 + $0x7a8] sm:$0xff]
    %v298 = vld [vmem:[#allocation5 + $0x7b0] sm:$0xff]
    %v299 = vld [vmem:[#allocation5 + $0x7b8] sm:$0xff]
    %v300 = vld [vmem:[#allocation5 + $0x7c0] sm:$0xff]
    %v301 = vld [vmem:[#allocation5 + $0x7c8] sm:$0xff]
    %v302 = vld [vmem:[#allocation5 + $0x7d0] sm:$0xff]
    %v303 = vld [vmem:[#allocation5 + $0x7d8] sm:$0xff]
    %v304 = vld [vmem:[#allocation5 + $0x7e0] sm:$0xff]
    %v305 = vld [vmem:[#allocation5 + $0x7e8] sm:$0xff]
    %v306 = vld [vmem:[#allocation5 + $0x7f0] sm:$0xff]
    %v307 = vld [vmem:[#allocation5 + $0x7f8] sm:$0xff]
    %v308 = vld [vmem:[#allocation5 + $0x800] sm:$0xff]
    %v309 = vld [vmem:[#allocation5 + $0x808] sm:$0xff]
    %v310 = vld [vmem:[#allocation5 + $0x810] sm:$0xff]
    %v311 = vld [vmem:[#allocation5 + $0x818] sm:$0xff]
    %v312 = vld [vmem:[#allocation5 + $0x820] sm:$0xff]
    %v313 = vld [vmem:[#allocation5 + $0x828] sm:$0xff]
    %v314 = vld [vmem:[#allocation5 + $0x830] sm:$0xff]
    %v315 = vld [vmem:[#allocation5 + $0x838] sm:$0xff]
    %v316 = vld [vmem:[#allocation5 + $0x840] sm:$0xff]
    %v317 = vld [vmem:[#allocation5 + $0x848] sm:$0xff]
    %v318 = vld [vmem:[#allocation5 + $0x850] sm:$0xff]
    %v319 = vld [vmem:[#allocation5 + $0x858] sm:$0xff]
    %v320 = vld [vmem:[#allocation5 + $0x860] sm:$0xff]
    %v321 = vld [vmem:[#allocation5 + $0x868] sm:$0xff]
    %v322 = vld [vmem:[#allocation5 + $0x870] sm:$0xff]
    %v323 = vld [vmem:[#allocation5 + $0x878] sm:$0xff]
    %v324 = vld [vmem:[#allocation5 + $0x880] sm:$0xff]
    %v325 = vld [vmem:[#allocation5 + $0x888] sm:$0xff]
    %v326 = vld [vmem:[#allocation5 + $0x890] sm:$0xff]
    %v327 = vld [vmem:[#allocation5 + $0x898] sm:$0xff]
    %v328 = vld [vmem:[#allocation5 + $0x8a0] sm:$0xff]
    %v329 = vld [vmem:[#allocation5 + $0x8a8] sm:$0xff]
    %v330 = vld [vmem:[#allocation5 + $0x8b0] sm:$0xff]
    %v331 = vld [vmem:[#allocation5 + $0x8b8] sm:$0xff]
    %v332 = vld [vmem:[#allocation5 + $0x8c0] sm:$0xff]
    %v333 = vld [vmem:[#allocation5 + $0x8c8] sm:$0xff]
    %v334 = vld [vmem:[#allocation5 + $0x8d0] sm:$0xff]
    %v335 = vld [vmem:[#allocation5 + $0x8d8] sm:$0xff]
    %v336 = vld [vmem:[#allocation5 + $0x8e0] sm:$0xff]
    %v337 = vld [vmem:[#allocation5 + $0x8e8] sm:$0xff]
    %v338 = vld [vmem:[#allocation5 + $0x8f0] sm:$0xff]
    %v339 = vld [vmem:[#allocation5 + $0x8f8] sm:$0xff]
    %v340 = vld [vmem:[#allocation5 + $0x900] sm:$0xff]
    %v341 = vld [vmem:[#allocation5 + $0x908] sm:$0xff]
    %v342 = vld [vmem:[#allocation5 + $0x910] sm:$0xff]
    %v343 = vld [vmem:[#allocation5 + $0x918] sm:$0xff]
    %v344 = vld [vmem:[#allocation5 + $0x920] sm:$0xff]
    %v345 = vld [vmem:[#allocation5 + $0x928] sm:$0xff]
    %v346 = vld [vmem:[#allocation5 + $0x930] sm:$0xff]
    %v347 = vld [vmem:[#allocation5 + $0x938] sm:$0xff]
    %v348 = vld [vmem:[#allocation5 + $0x940] sm:$0xff]
    %v349 = vld [vmem:[#allocation5 + $0x948] sm:$0xff]
    %v350 = vld [vmem:[#allocation5 + $0x950] sm:$0xff]
    %v351 = vld [vmem:[#allocation5 + $0x958] sm:$0xff]
    %v352 = vld [vmem:[#allocation5 + $0x960] sm:$0xff]
    %v353 = vld [vmem:[#allocation5 + $0x968] sm:$0xff]
    %v354 = vld [vmem:[#allocation5 + $0x970] sm:$0xff]
    %v355 = vld [vmem:[#allocation5 + $0x978] sm:$0xff]
    %v356 = vld [vmem:[#allocation5 + $0x980] sm:$0xff]
    %v357 = vld [vmem:[#allocation5 + $0x988] sm:$0xff]
    %v358 = vld [vmem:[#allocation5 + $0x990] sm:$0xff]
    %v359 = vld [vmem:[#allocation5 + $0x998] sm:$0xff]
    %v360 = vld [vmem:[#allocation5 + $0x9a0] sm:$0xff]
    %v361 = vld [vmem:[#allocation5 + $0x9a8] sm:$0xff]
    %v362 = vld [vmem:[#allocation5 + $0x9b0] sm:$0xff]
    %v363 = vld [vmem:[#allocation5 + $0x9b8] sm:$0xff]
    %v364 = vld [vmem:[#allocation5 + $0x9c0] sm:$0xff]
    %v365 = vld [vmem:[#allocation5 + $0x9c8] sm:$0xff]
    %v366 = vld [vmem:[#allocation5 + $0x9d0] sm:$0xff]
    %v367 = vld [vmem:[#allocation5 + $0x9d8] sm:$0xff]
    %v368 = vld [vmem:[#allocation5 + $0x9e0] sm:$0xff]
    %v369 = vld [vmem:[#allocation5 + $0x9e8] sm:$0xff]
    %v370 = vld [vmem:[#allocation5 + $0x9f0] sm:$0xff]
    %v371 = vld [vmem:[#allocation5 + $0x9f8] sm:$0xff]
    %v372 = vld [vmem:[#allocation5 + $0xa00] sm:$0xff]
    %v373 = vld [vmem:[#allocation5 + $0xa08] sm:$0xff]
    %v374 = vld [vmem:[#allocation5 + $0xa10] sm:$0xff]
    %v375 = vld [vmem:[#allocation5 + $0xa18] sm:$0xff]
    %v376 = vld [vmem:[#allocation5 + $0xa20] sm:$0xff]
    %v377 = vld [vmem:[#allocation5 + $0xa28] sm:$0xff]
    %v378 = vld [vmem:[#allocation5 + $0xa30] sm:$0xff]
    %v379 = vld [vmem:[#allocation5 + $0xa38] sm:$0xff]
    %v380 = vld [vmem:[#allocation5 + $0xa40] sm:$0xff]
    %v381 = vld [vmem:[#allocation5 + $0xa48] sm:$0xff]
    %v382 = vld [vmem:[#allocation5 + $0xa50] sm:$0xff]
    %v383 = vld [vmem:[#allocation5 + $0xa58] sm:$0xff]
    %v384 = vld [vmem:[#allocation5 + $0xa60] sm:$0xff]
    %v385 = vld [vmem:[#allocation5 + $0xa68] sm:$0xff]
    %v386 = vld [vmem:[#allocation5 + $0xa70] sm:$0xff]
    %v387 = vld [vmem:[#allocation5 + $0xa78] sm:$0xff]
    %v388 = vld [vmem:[#allocation5 + $0xa80] sm:$0xff]
    %v389 = vld [vmem:[#allocation5 + $0xa88] sm:$0xff]
    %v390 = vld [vmem:[#allocation5 + $0xa90] sm:$0xff]
    %v391 = vld [vmem:[#allocation5 + $0xa98] sm:$0xff]
    %v392 = vld [vmem:[#allocation5 + $0xaa0] sm:$0xff]
    %v393 = vld [vmem:[#allocation5 + $0xaa8] sm:$0xff]
    %v394 = vld [vmem:[#allocation5 + $0xab0] sm:$0xff]
    %v395 = vld [vmem:[#allocation5 + $0xab8] sm:$0xff]
    %v396 = vld [vmem:[#allocation5 + $0xac0] sm:$0xff]
    %v397 = vld [vmem:[#allocation5 + $0xac8] sm:$0xff]
    %v398 = vld [vmem:[#allocation5 + $0xad0] sm:$0xff]
    %v399 = vld [vmem:[#allocation5 + $0xad8] sm:$0xff]
    %v400 = vld [vmem:[#allocation5 + $0xae0] sm:$0xff]
    %v401 = vld [vmem:[#allocation5 + $0xae8] sm:$0xff]
    %v402 = vld [vmem:[#allocation5 + $0xaf0] sm:$0xff]
    %v403 = vld [vmem:[#allocation5 + $0xaf8] sm:$0xff]
    %v404 = vld [vmem:[#allocation5 + $0xb00] sm:$0xff]
    %v405 = vld [vmem:[#allocation5 + $0xb08] sm:$0xff]
    %v406 = vld [vmem:[#allocation5 + $0xb10] sm:$0xff]
    %v407 = vld [vmem:[#allocation5 + $0xb18] sm:$0xff]
    %v408 = vld [vmem:[#allocation5 + $0xb20] sm:$0xff]
    %v409 = vld [vmem:[#allocation5 + $0xb28] sm:$0xff]
    %v410 = vld [vmem:[#allocation5 + $0xb30] sm:$0xff]
    %v411 = vld [vmem:[#allocation5 + $0xb38] sm:$0xff]
    %v412 = vld [vmem:[#allocation5 + $0xb40] sm:$0xff]
    %v413 = vld [vmem:[#allocation5 + $0xb48] sm:$0xff]
    %v414 = vld [vmem:[#allocation5 + $0xb50] sm:$0xff]
    %v415 = vld [vmem:[#allocation5 + $0xb58] sm:$0xff]
    %v416 = vld [vmem:[#allocation5 + $0xb60] sm:$0xff]
    %v417 = vld [vmem:[#allocation5 + $0xb68] sm:$0xff]
    %v418 = vld [vmem:[#allocation5 + $0xb70] sm:$0xff]
    %v419 = vld [vmem:[#allocation5 + $0xb78] sm:$0xff]
    %v420 = vld [vmem:[#allocation5 + $0xb80] sm:$0xff]
    %v421 = vld [vmem:[#allocation5 + $0xb88] sm:$0xff]
    %v422 = vld [vmem:[#allocation5 + $0xb90] sm:$0xff]
    %v423 = vld [vmem:[#allocation5 + $0xb98] sm:$0xff]
    %v424 = vld [vmem:[#allocation5 + $0xba0] sm:$0xff]
    %v425 = vld [vmem:[#allocation5 + $0xba8] sm:$0xff]
    %v426 = vld [vmem:[#allocation5 + $0xbb0] sm:$0xff]
    %v427 = vld [vmem:[#allocation5 + $0xbb8] sm:$0xff]
    %v428 = vld [vmem:[#allocation5 + $0xbc0] sm:$0xff]
    %v429 = vld [vmem:[#allocation5 + $0xbc8] sm:$0xff]
    %v430 = vld [vmem:[#allocation5 + $0xbd0] sm:$0xff]
    %v431 = vld [vmem:[#allocation5 + $0xbd8] sm:$0xff]
    %v432 = vld [vmem:[#allocation5 + $0xbe0] sm:$0xff]
    %v433 = vld [vmem:[#allocation5 + $0xbe8] sm:$0xff]
    %v434 = vld [vmem:[#allocation5 + $0xbf0] sm:$0xff]
    %v435 = vld [vmem:[#allocation5 + $0xbf8] sm:$0xff]
    %v436 = vld [vmem:[#allocation5 + $0xc00] sm:$0x3]
    %v437 = vld [vmem:[#allocation5 + $0xc08] sm:$0x3]
    %v438 = vld [vmem:[#allocation5 + $0xc10] sm:$0x3]
    %v439 = vld [vmem:[#allocation5 + $0xc18] sm:$0x3]
    %v440 = vld [vmem:[#allocation5 + $0xc20] sm:$0x3]
    %v441 = vld [vmem:[#allocation5 + $0xc28] sm:$0x3]
    %v442 = vld [vmem:[#allocation5 + $0xc30] sm:$0x3]
    %v443 = vld [vmem:[#allocation5 + $0xc38] sm:$0x3]
    %v444 = vld [vmem:[#allocation5 + $0xc40] sm:$0x3]
    %v445 = vld [vmem:[#allocation5 + $0xc48] sm:$0x3]
    %v446 = vld [vmem:[#allocation5 + $0xc50] sm:$0x3]
    %v447 = vld [vmem:[#allocation5 + $0xc58] sm:$0x3]
    %v448 = vld [vmem:[#allocation5 + $0xc60] sm:$0x3]
    %v449 = vld [vmem:[#allocation5 + $0xc68] sm:$0x3]
    %v450 = vld [vmem:[#allocation5 + $0xc70] sm:$0x3]
    %v451 = vld [vmem:[#allocation5 + $0xc78] sm:$0x3]
    %v452 = vld [vmem:[#allocation5 + $0xc80] sm:$0x3]
    %v453 = vld [vmem:[#allocation5 + $0xc88] sm:$0x3]
    %v454 = vld [vmem:[#allocation5 + $0xc90] sm:$0x3]
    %v455 = vld [vmem:[#allocation5 + $0xc98] sm:$0x3]
    %v456 = vld [vmem:[#allocation5 + $0xca0] sm:$0x3]
    %v457 = vld [vmem:[#allocation5 + $0xca8] sm:$0x3]
    %v458 = vld [vmem:[#allocation5 + $0xcb0] sm:$0x3]
    %v459 = vld [vmem:[#allocation5 + $0xcb8] sm:$0x3]
    %v460 = vld [vmem:[#allocation5 + $0xcc0] sm:$0x3]
    %v461 = vld [vmem:[#allocation5 + $0xcc8] sm:$0x3]
    %v462 = vld [vmem:[#allocation5 + $0xcd0] sm:$0x3]
    %v463 = vld [vmem:[#allocation5 + $0xcd8] sm:$0x3]
    %v464 = vld [vmem:[#allocation5 + $0xce0] sm:$0x3]
    %v465 = vld [vmem:[#allocation5 + $0xce8] sm:$0x3]
    %v466 = vld [vmem:[#allocation5 + $0xcf0] sm:$0x3]
    %v467 = vld [vmem:[#allocation5 + $0xcf8] sm:$0x3]
    %v468 = vld [vmem:[#allocation5 + $0xd00] sm:$0x3]
    %v469 = vld [vmem:[#allocation5 + $0xd08] sm:$0x3]
    %v470 = vld [vmem:[#allocation5 + $0xd10] sm:$0x3]
    %v471 = vld [vmem:[#allocation5 + $0xd18] sm:$0x3]
    %v472 = vld [vmem:[#allocation5 + $0xd20] sm:$0x3]
    %v473 = vld [vmem:[#allocation5 + $0xd28] sm:$0x3]
    %v474 = vld [vmem:[#allocation5 + $0xd30] sm:$0x3]
    %v475 = vld [vmem:[#allocation5 + $0xd38] sm:$0x3]
    %v476 = vld [vmem:[#allocation5 + $0xd40] sm:$0x3]
    %v477 = vld [vmem:[#allocation5 + $0xd48] sm:$0x3]
    %v478 = vld [vmem:[#allocation5 + $0xd50] sm:$0x3]
    %v479 = vld [vmem:[#allocation5 + $0xd58] sm:$0x3]
    %v480 = vld [vmem:[#allocation5 + $0xd60] sm:$0x3]
    %v481 = vld [vmem:[#allocation5 + $0xd68] sm:$0x3]
    %v482 = vld [vmem:[#allocation5 + $0xd70] sm:$0x3]
    %v483 = vld [vmem:[#allocation5 + $0xd78] sm:$0x3]
    %v484 = vld [vmem:[#allocation5 + $0xd80] sm:$0x3]
    %v485 = vld [vmem:[#allocation5 + $0xd88] sm:$0x3]
    %v486 = vld [vmem:[#allocation5 + $0xd90] sm:$0x3]
    %v487 = vld [vmem:[#allocation5 + $0xd98] sm:$0x3]
    %v488 = vld [vmem:[#allocation5 + $0xda0] sm:$0x3]
    %v489 = vld [vmem:[#allocation5 + $0xda8] sm:$0x3]
    %v490 = vld [vmem:[#allocation5 + $0xdb0] sm:$0x3]
    %v491 = vld [vmem:[#allocation5 + $0xdb8] sm:$0x3]
    %v492 = vld [vmem:[#allocation5 + $0xdc0] sm:$0x3]
    %v493 = vld [vmem:[#allocation5 + $0xdc8] sm:$0x3]
    %v494 = vld [vmem:[#allocation5 + $0xdd0] sm:$0x3]
    %v495 = vld [vmem:[#allocation5 + $0xdd8] sm:$0x3]
    %v496 = vld [vmem:[#allocation5 + $0xde0] sm:$0x3]
    %v497 = vld [vmem:[#allocation5 + $0xde8] sm:$0x3]
    %v498 = vld [vmem:[#allocation5 + $0xdf0] sm:$0x3]
    %v499 = vld [vmem:[#allocation5 + $0xdf8] sm:$0x3]
    %v500 = vld [vmem:[#allocation5 + $0xe00] sm:$0x3]
    %v501 = vld [vmem:[#allocation5 + $0xe08] sm:$0x3]
    %v502 = vld [vmem:[#allocation5 + $0xe10] sm:$0x3]
    %v503 = vld [vmem:[#allocation5 + $0xe18] sm:$0x3]
    %v504 = vld [vmem:[#allocation5 + $0xe20] sm:$0x3]
    %v505 = vld [vmem:[#allocation5 + $0xe28] sm:$0x3]
    %v506 = vld [vmem:[#allocation5 + $0xe30] sm:$0x3]
    %v507 = vld [vmem:[#allocation5 + $0xe38] sm:$0x3]
    %v508 = vld [vmem:[#allocation5 + $0xe40] sm:$0x3]
    %v509 = vld [vmem:[#allocation5 + $0xe48] sm:$0x3]
    %v510 = vld [vmem:[#allocation5 + $0xe50] sm:$0x3]
    %v511 = vld [vmem:[#allocation5 + $0xe58] sm:$0x3]
    %v512 = vld [vmem:[#allocation5 + $0xe60] sm:$0x3]
    %v513 = vld [vmem:[#allocation5 + $0xe68] sm:$0x3]
    %v514 = vld [vmem:[#allocation5 + $0xe70] sm:$0x3]
    %v515 = vld [vmem:[#allocation5 + $0xe78] sm:$0x3]
    %v516 = vld [vmem:[#allocation5 + $0xe80] sm:$0x3]
    %v517 = vld [vmem:[#allocation5 + $0xe88] sm:$0x3]
    %v518 = vld [vmem:[#allocation5 + $0xe90] sm:$0x3]
    %v519 = vld [vmem:[#allocation5 + $0xe98] sm:$0x3]
    %v520 = vld [vmem:[#allocation5 + $0xea0] sm:$0x3]
    %v521 = vld [vmem:[#allocation5 + $0xea8] sm:$0x3]
    %v522 = vld [vmem:[#allocation5 + $0xeb0] sm:$0x3]
    %v523 = vld [vmem:[#allocation5 + $0xeb8] sm:$0x3]
    %v524 = vld [vmem:[#allocation5 + $0xec0] sm:$0x3]
    %v525 = vld [vmem:[#allocation5 + $0xec8] sm:$0x3]
    %v526 = vld [vmem:[#allocation5 + $0xed0] sm:$0x3]
    %v527 = vld [vmem:[#allocation5 + $0xed8] sm:$0x3]
    %v528 = vld [vmem:[#allocation5 + $0xee0] sm:$0x3]
    %v529 = vld [vmem:[#allocation5 + $0xee8] sm:$0x3]
    %v530 = vld [vmem:[#allocation5 + $0xef0] sm:$0x3]
    %v531 = vld [vmem:[#allocation5 + $0xef8] sm:$0x3]
    %v532 = vld [vmem:[#allocation5 + $0xf00] sm:$0x3]
    %v533 = vld [vmem:[#allocation5 + $0xf08] sm:$0x3]
    %v534 = vld [vmem:[#allocation5 + $0xf10] sm:$0x3]
    %v535 = vld [vmem:[#allocation5 + $0xf18] sm:$0x3]
    %v536 = vld [vmem:[#allocation5 + $0xf20] sm:$0x3]
    %v537 = vld [vmem:[#allocation5 + $0xf28] sm:$0x3]
    %v538 = vld [vmem:[#allocation5 + $0xf30] sm:$0x3]
    %v539 = vld [vmem:[#allocation5 + $0xf38] sm:$0x3]
    %v540 = vld [vmem:[#allocation5 + $0xf40] sm:$0x3]
    %v541 = vld [vmem:[#allocation5 + $0xf48] sm:$0x3]
    %v542 = vld [vmem:[#allocation5 + $0xf50] sm:$0x3]
    %v543 = vld [vmem:[#allocation5 + $0xf58] sm:$0x3]
    %v544 = vld [vmem:[#allocation5 + $0xf60] sm:$0x3]
    %v545 = vld [vmem:[#allocation5 + $0xf68] sm:$0x3]
    %v546 = vld [vmem:[#allocation5 + $0xf70] sm:$0x3]
    %v547 = vld [vmem:[#allocation5 + $0xf78] sm:$0x3]
    %v548 = vld [vmem:[#allocation5 + $0xf80] sm:$0x3]
    %v549 = vld [vmem:[#allocation5 + $0xf88] sm:$0x3]
    %v550 = vld [vmem:[#allocation5 + $0xf90] sm:$0x3]
    %v551 = vld [vmem:[#allocation5 + $0xf98] sm:$0x3]
    %v552 = vld [vmem:[#allocation5 + $0xfa0] sm:$0x3]
    %v553 = vld [vmem:[#allocation5 + $0xfa8] sm:$0x3]
    %v554 = vld [vmem:[#allocation5 + $0xfb0] sm:$0x3]
    %v555 = vld [vmem:[#allocation5 + $0xfb8] sm:$0x3]
    %v556 = vld [vmem:[#allocation5 + $0xfc0] sm:$0x3]
    %v557 = vld [vmem:[#allocation5 + $0xfc8] sm:$0x3]
    %v558 = vld [vmem:[#allocation5 + $0xfd0] sm:$0x3]
    %v559 = vld [vmem:[#allocation5 + $0xfd8] sm:$0x3]
    %v560 = vld [vmem:[#allocation5 + $0xfe0] sm:$0x3]
    %v561 = vld [vmem:[#allocation5 + $0xfe8] sm:$0x3]
    %v562 = vld [vmem:[#allocation5 + $0xff0] sm:$0x3]
    %v563 = vld [vmem:[#allocation5 + $0xff8] sm:$0x3]
    %v564 = vld [vmem:[#allocation5 + $0x1000] sm:$0x3]
    %v565 = vld [vmem:[#allocation5 + $0x1008] sm:$0x3]
    %v566 = vld [vmem:[#allocation5 + $0x1010] sm:$0x3]
    %v567 = vld [vmem:[#allocation5 + $0x1018] sm:$0x3]
    %v568 = vld [vmem:[#allocation5 + $0x1020] sm:$0x3]
    %v569 = vld [vmem:[#allocation5 + $0x1028] sm:$0x3]
    %v570 = vld [vmem:[#allocation5 + $0x1030] sm:$0x3]
    %v571 = vld [vmem:[#allocation5 + $0x1038] sm:$0x3]
    %v572 = vld [vmem:[#allocation5 + $0x1040] sm:$0x3]
    %v573 = vld [vmem:[#allocation5 + $0x1048] sm:$0x3]
    %v574 = vld [vmem:[#allocation5 + $0x1050] sm:$0x3]
    %v575 = vld [vmem:[#allocation5 + $0x1058] sm:$0x3]
    %v576 = vld [vmem:[#allocation5 + $0x1060] sm:$0x3]
    %v577 = vld [vmem:[#allocation5 + $0x1068] sm:$0x3]
    %v578 = vld [vmem:[#allocation5 + $0x1070] sm:$0x3]
    %v579 = vld [vmem:[#allocation5 + $0x1078] sm:$0x3]
    %v580 = vld [vmem:[#allocation5 + $0x1080] sm:$0x3]
    %v581 = vld [vmem:[#allocation5 + $0x1088] sm:$0x3]
    %v582 = vld [vmem:[#allocation5 + $0x1090] sm:$0x3]
    %v583 = vld [vmem:[#allocation5 + $0x1098] sm:$0x3]
    %v584 = vld [vmem:[#allocation5 + $0x10a0] sm:$0x3]
    %v585 = vld [vmem:[#allocation5 + $0x10a8] sm:$0x3]
    %v586 = vld [vmem:[#allocation5 + $0x10b0] sm:$0x3]
    %v587 = vld [vmem:[#allocation5 + $0x10b8] sm:$0x3]
    %v588 = vld [vmem:[#allocation5 + $0x10c0] sm:$0x3]
    %v589 = vld [vmem:[#allocation5 + $0x10c8] sm:$0x3]
    %v590 = vld [vmem:[#allocation5 + $0x10d0] sm:$0x3]
    %v591 = vld [vmem:[#allocation5 + $0x10d8] sm:$0x3]
    %v592 = vld [vmem:[#allocation5 + $0x10e0] sm:$0x3]
    %v593 = vld [vmem:[#allocation5 + $0x10e8] sm:$0x3]
    %v594 = vld [vmem:[#allocation5 + $0x10f0] sm:$0x3]
    %v595 = vld [vmem:[#allocation5 + $0x10f8] sm:$0x3]
    %v596 = vld [vmem:[#allocation5 + $0x1100] sm:$0x3]
    %v597 = vld [vmem:[#allocation5 + $0x1108] sm:$0x3]
    %v598 = vld [vmem:[#allocation5 + $0x1110] sm:$0x3]
    %v599 = vld [vmem:[#allocation5 + $0x1118] sm:$0x3]
    %v600 = vld [vmem:[#allocation5 + $0x1120] sm:$0x3]
    %v601 = vld [vmem:[#allocation5 + $0x1128] sm:$0x3]
    %v602 = vld [vmem:[#allocation5 + $0x1130] sm:$0x3]
    %v603 = vld [vmem:[#allocation5 + $0x1138] sm:$0x3]
    %v604 = vld [vmem:[#allocation5 + $0x1140] sm:$0x3]
    %v605 = vld [vmem:[#allocation5 + $0x1148] sm:$0x3]
    %v606 = vld [vmem:[#allocation5 + $0x1150] sm:$0x3]
    %v607 = vld [vmem:[#allocation5 + $0x1158] sm:$0x3]
    %v608 = vld [vmem:[#allocation5 + $0x1160] sm:$0x3]
    %v609 = vld [vmem:[#allocation5 + $0x1168] sm:$0x3]
    %v610 = vld [vmem:[#allocation5 + $0x1170] sm:$0x3]
    %v611 = vld [vmem:[#allocation5 + $0x1178] sm:$0x3]
    %v612 = vld [vmem:[#allocation5 + $0x1180] sm:$0x3]
    %v613 = vld [vmem:[#allocation5 + $0x1188] sm:$0x3]
    %v614 = vld [vmem:[#allocation5 + $0x1190] sm:$0x3]
    %v615 = vld [vmem:[#allocation5 + $0x1198] sm:$0x3]
    %v616 = vld [vmem:[#allocation5 + $0x11a0] sm:$0x3]
    %v617 = vld [vmem:[#allocation5 + $0x11a8] sm:$0x3]
    %v618 = vld [vmem:[#allocation5 + $0x11b0] sm:$0x3]
    %v619 = vld [vmem:[#allocation5 + $0x11b8] sm:$0x3]
    %v620 = vld [vmem:[#allocation5 + $0x11c0] sm:$0x3]
    %v621 = vld [vmem:[#allocation5 + $0x11c8] sm:$0x3]
    %v622 = vld [vmem:[#allocation5 + $0x11d0] sm:$0x3]
    %v623 = vld [vmem:[#allocation5 + $0x11d8] sm:$0x3]
    %v624 = vld [vmem:[#allocation5 + $0x11e0] sm:$0x3]
    %v625 = vld [vmem:[#allocation5 + $0x11e8] sm:$0x3]
    %v626 = vld [vmem:[#allocation5 + $0x11f0] sm:$0x3]
    %v627 = vld [vmem:[#allocation5 + $0x11f8] sm:$0x3]
    %v628 = vld [vmem:[#allocation5 + $0x1200] sm:$0x3]
    %v629 = vld [vmem:[#allocation5 + $0x1208] sm:$0x3]
    %v630 = vld [vmem:[#allocation5 + $0x1210] sm:$0x3]
    %v631 = vld [vmem:[#allocation5 + $0x1218] sm:$0x3]
    %v632 = vld [vmem:[#allocation5 + $0x1220] sm:$0x3]
    %v633 = vld [vmem:[#allocation5 + $0x1228] sm:$0x3]
    %v634 = vld [vmem:[#allocation5 + $0x1230] sm:$0x3]
    %v635 = vld [vmem:[#allocation5 + $0x1238] sm:$0x3]
    %v636 = vld [vmem:[#allocation5 + $0x1240] sm:$0x3]
    %v637 = vld [vmem:[#allocation5 + $0x1248] sm:$0x3]
    %v638 = vld [vmem:[#allocation5 + $0x1250] sm:$0x3]
    %v639 = vld [vmem:[#allocation5 + $0x1258] sm:$0x3]
    %v640 = vld [vmem:[#allocation5 + $0x1260] sm:$0x3]
    %v641 = vld [vmem:[#allocation5 + $0x1268] sm:$0x3]
    %v642 = vld [vmem:[#allocation5 + $0x1270] sm:$0x3]
    %v643 = vld [vmem:[#allocation5 + $0x1278] sm:$0x3]
    %v644 = vld [vmem:[#allocation5 + $0x1280] sm:$0x3]
    %v645 = vld [vmem:[#allocation5 + $0x1288] sm:$0x3]
    %v646 = vld [vmem:[#allocation5 + $0x1290] sm:$0x3]
    %v647 = vld [vmem:[#allocation5 + $0x1298] sm:$0x3]
    %v648 = vld [vmem:[#allocation5 + $0x12a0] sm:$0x3]
    %v649 = vld [vmem:[#allocation5 + $0x12a8] sm:$0x3]
    %v650 = vld [vmem:[#allocation5 + $0x12b0] sm:$0x3]
    %v651 = vld [vmem:[#allocation5 + $0x12b8] sm:$0x3]
    %v652 = vld [vmem:[#allocation5 + $0x12c0] sm:$0x3]
    %v653 = vld [vmem:[#allocation5 + $0x12c8] sm:$0x3]
    %v654 = vld [vmem:[#allocation5 + $0x12d0] sm:$0x3]
    %v655 = vld [vmem:[#allocation5 + $0x12d8] sm:$0x3]
    %v656 = vld [vmem:[#allocation5 + $0x12e0] sm:$0x3]
    %v657 = vld [vmem:[#allocation5 + $0x12e8] sm:$0x3]
    %v658 = vld [vmem:[#allocation5 + $0x12f0] sm:$0x3]
    %v659 = vld [vmem:[#allocation5 + $0x12f8] sm:$0x3]
    %v660 = vld [vmem:[#allocation5 + $0x1300] sm:$0x3]
    %v661 = vld [vmem:[#allocation5 + $0x1308] sm:$0x3]
    %v662 = vld [vmem:[#allocation5 + $0x1310] sm:$0x3]
    %v663 = vld [vmem:[#allocation5 + $0x1318] sm:$0x3]
    %v664 = vld [vmem:[#allocation5 + $0x1320] sm:$0x3]
    %v665 = vld [vmem:[#allocation5 + $0x1328] sm:$0x3]
    %v666 = vld [vmem:[#allocation5 + $0x1330] sm:$0x3]
    %v667 = vld [vmem:[#allocation5 + $0x1338] sm:$0x3]
    %v668 = vld [vmem:[#allocation5 + $0x1340] sm:$0x3]
    %v669 = vld [vmem:[#allocation5 + $0x1348] sm:$0x3]
    %v670 = vld [vmem:[#allocation5 + $0x1350] sm:$0x3]
    %v671 = vld [vmem:[#allocation5 + $0x1358] sm:$0x3]
    %v672 = vld [vmem:[#allocation5 + $0x1360] sm:$0x3]
    %v673 = vld [vmem:[#allocation5 + $0x1368] sm:$0x3]
    %v674 = vld [vmem:[#allocation5 + $0x1370] sm:$0x3]
    %v675 = vld [vmem:[#allocation5 + $0x1378] sm:$0x3]
    %v676 = vld [vmem:[#allocation5 + $0x1380] sm:$0x3]
    %v677 = vld [vmem:[#allocation5 + $0x1388] sm:$0x3]
    %v678 = vld [vmem:[#allocation5 + $0x1390] sm:$0x3]
    %v679 = vld [vmem:[#allocation5 + $0x1398] sm:$0x3]
    %v680 = vld [vmem:[#allocation5 + $0x13a0] sm:$0x3]
    %v681 = vld [vmem:[#allocation5 + $0x13a8] sm:$0x3]
    %v682 = vld [vmem:[#allocation5 + $0x13b0] sm:$0x3]
    %v683 = vld [vmem:[#allocation5 + $0x13b8] sm:$0x3]
    %v684 = vld [vmem:[#allocation5 + $0x13c0] sm:$0x3]
    %v685 = vld [vmem:[#allocation5 + $0x13c8] sm:$0x3]
    %v686 = vld [vmem:[#allocation5 + $0x13d0] sm:$0x3]
    %v687 = vld [vmem:[#allocation5 + $0x13d8] sm:$0x3]
    %v688 = vld [vmem:[#allocation5 + $0x13e0] sm:$0x3]
    %v689 = vld [vmem:[#allocation5 + $0x13e8] sm:$0x3]
    %v690 = vld [vmem:[#allocation5 + $0x13f0] sm:$0x3]
    %v691 = vld [vmem:[#allocation5 + $0x13f8] sm:$0x3]
    %v692 = vld [vmem:[#allocation5 + $0x1400] sm:$0x3]
    %v693 = vld [vmem:[#allocation5 + $0x1408] sm:$0x3]
    %v694 = vld [vmem:[#allocation5 + $0x1410] sm:$0x3]
    %v695 = vld [vmem:[#allocation5 + $0x1418] sm:$0x3]
    %v696 = vld [vmem:[#allocation5 + $0x1420] sm:$0x3]
    %v697 = vld [vmem:[#allocation5 + $0x1428] sm:$0x3]
    %v698 = vld [vmem:[#allocation5 + $0x1430] sm:$0x3]
    %v699 = vld [vmem:[#allocation5 + $0x1438] sm:$0x3]
    %v700 = vld [vmem:[#allocation5 + $0x1440] sm:$0x3]
    %v701 = vld [vmem:[#allocation5 + $0x1448] sm:$0x3]
    %v702 = vld [vmem:[#allocation5 + $0x1450] sm:$0x3]
    %v703 = vld [vmem:[#allocation5 + $0x1458] sm:$0x3]
    %v704 = vld [vmem:[#allocation5 + $0x1460] sm:$0x3]
    %v705 = vld [vmem:[#allocation5 + $0x1468] sm:$0x3]
    %v706 = vld [vmem:[#allocation5 + $0x1470] sm:$0x3]
    %v707 = vld [vmem:[#allocation5 + $0x1478] sm:$0x3]
    %v708 = vld [vmem:[#allocation5 + $0x1480] sm:$0x3]
    %v709 = vld [vmem:[#allocation5 + $0x1488] sm:$0x3]
    %v710 = vld [vmem:[#allocation5 + $0x1490] sm:$0x3]
    %v711 = vld [vmem:[#allocation5 + $0x1498] sm:$0x3]
    %v712 = vld [vmem:[#allocation5 + $0x14a0] sm:$0x3]
    %v713 = vld [vmem:[#allocation5 + $0x14a8] sm:$0x3]
    %v714 = vld [vmem:[#allocation5 + $0x14b0] sm:$0x3]
    %v715 = vld [vmem:[#allocation5 + $0x14b8] sm:$0x3]
    %v716 = vld [vmem:[#allocation5 + $0x14c0] sm:$0x3]
    %v717 = vld [vmem:[#allocation5 + $0x14c8] sm:$0x3]
    %v718 = vld [vmem:[#allocation5 + $0x14d0] sm:$0x3]
    %v719 = vld [vmem:[#allocation5 + $0x14d8] sm:$0x3]
    %v720 = vld [vmem:[#allocation5 + $0x14e0] sm:$0x3]
    %v721 = vld [vmem:[#allocation5 + $0x14e8] sm:$0x3]
    %v722 = vld [vmem:[#allocation5 + $0x14f0] sm:$0x3]
    %v723 = vld [vmem:[#allocation5 + $0x14f8] sm:$0x3]
    %v724 = vld [vmem:[#allocation5 + $0x1500] sm:$0x3]
    %v725 = vld [vmem:[#allocation5 + $0x1508] sm:$0x3]
    %v726 = vld [vmem:[#allocation5 + $0x1510] sm:$0x3]
    %v727 = vld [vmem:[#allocation5 + $0x1518] sm:$0x3]
    %v728 = vld [vmem:[#allocation5 + $0x1520] sm:$0x3]
    %v729 = vld [vmem:[#allocation5 + $0x1528] sm:$0x3]
    %v730 = vld [vmem:[#allocation5 + $0x1530] sm:$0x3]
    %v731 = vld [vmem:[#allocation5 + $0x1538] sm:$0x3]
    %v732 = vld [vmem:[#allocation5 + $0x1540] sm:$0x3]
    %v733 = vld [vmem:[#allocation5 + $0x1548] sm:$0x3]
    %v734 = vld [vmem:[#allocation5 + $0x1550] sm:$0x3]
    %v735 = vld [vmem:[#allocation5 + $0x1558] sm:$0x3]
    %v736 = vld [vmem:[#allocation5 + $0x1560] sm:$0x3]
    %v737 = vld [vmem:[#allocation5 + $0x1568] sm:$0x3]
    %v738 = vld [vmem:[#allocation5 + $0x1570] sm:$0x3]
    %v739 = vld [vmem:[#allocation5 + $0x1578] sm:$0x3]
    %v740 = vld [vmem:[#allocation5 + $0x1580] sm:$0x3]
    %v741 = vld [vmem:[#allocation5 + $0x1588] sm:$0x3]
    %v742 = vld [vmem:[#allocation5 + $0x1590] sm:$0x3]
    %v743 = vld [vmem:[#allocation5 + $0x1598] sm:$0x3]
    %v744 = vld [vmem:[#allocation5 + $0x15a0] sm:$0x3]
    %v745 = vld [vmem:[#allocation5 + $0x15a8] sm:$0x3]
    %v746 = vld [vmem:[#allocation5 + $0x15b0] sm:$0x3]
    %v747 = vld [vmem:[#allocation5 + $0x15b8] sm:$0x3]
    %v748 = vld [vmem:[#allocation5 + $0x15c0] sm:$0x3]
    %v749 = vld [vmem:[#allocation5 + $0x15c8] sm:$0x3]
    %v750 = vld [vmem:[#allocation5 + $0x15d0] sm:$0x3]
    %v751 = vld [vmem:[#allocation5 + $0x15d8] sm:$0x3]
    %v752 = vld [vmem:[#allocation5 + $0x15e0] sm:$0x3]
    %v753 = vld [vmem:[#allocation5 + $0x15e8] sm:$0x3]
    %v754 = vld [vmem:[#allocation5 + $0x15f0] sm:$0x3]
    %v755 = vld [vmem:[#allocation5 + $0x15f8] sm:$0x3]
    %v756 = vld [vmem:[#allocation5 + $0x1600] sm:$0x3]
    %v757 = vld [vmem:[#allocation5 + $0x1608] sm:$0x3]
    %v758 = vld [vmem:[#allocation5 + $0x1610] sm:$0x3]
    %v759 = vld [vmem:[#allocation5 + $0x1618] sm:$0x3]
    %v760 = vld [vmem:[#allocation5 + $0x1620] sm:$0x3]
    %v761 = vld [vmem:[#allocation5 + $0x1628] sm:$0x3]
    %v762 = vld [vmem:[#allocation5 + $0x1630] sm:$0x3]
    %v763 = vld [vmem:[#allocation5 + $0x1638] sm:$0x3]
    %v764 = vld [vmem:[#allocation5 + $0x1640] sm:$0x3]
    %v765 = vld [vmem:[#allocation5 + $0x1648] sm:$0x3]
    %v766 = vld [vmem:[#allocation5 + $0x1650] sm:$0x3]
    %v767 = vld [vmem:[#allocation5 + $0x1658] sm:$0x3]
    %v768 = vld [vmem:[#allocation5 + $0x1660] sm:$0x3]
    %v769 = vld [vmem:[#allocation5 + $0x1668] sm:$0x3]
    %v770 = vld [vmem:[#allocation5 + $0x1670] sm:$0x3]
    %v771 = vld [vmem:[#allocation5 + $0x1678] sm:$0x3]
    %v772 = vld [vmem:[#allocation5 + $0x1680] sm:$0x3]
    %v773 = vld [vmem:[#allocation5 + $0x1688] sm:$0x3]
    %v774 = vld [vmem:[#allocation5 + $0x1690] sm:$0x3]
    %v775 = vld [vmem:[#allocation5 + $0x1698] sm:$0x3]
    %v776 = vld [vmem:[#allocation5 + $0x16a0] sm:$0x3]
    %v777 = vld [vmem:[#allocation5 + $0x16a8] sm:$0x3]
    %v778 = vld [vmem:[#allocation5 + $0x16b0] sm:$0x3]
    %v779 = vld [vmem:[#allocation5 + $0x16b8] sm:$0x3]
    %v780 = vld [vmem:[#allocation5 + $0x16c0] sm:$0x3]
    %v781 = vld [vmem:[#allocation5 + $0x16c8] sm:$0x3]
    %v782 = vld [vmem:[#allocation5 + $0x16d0] sm:$0x3]
    %v783 = vld [vmem:[#allocation5 + $0x16d8] sm:$0x3]
    %v784 = vld [vmem:[#allocation5 + $0x16e0] sm:$0x3]
    %v785 = vld [vmem:[#allocation5 + $0x16e8] sm:$0x3]
    %v786 = vld [vmem:[#allocation5 + $0x16f0] sm:$0x3]
    %v787 = vld [vmem:[#allocation5 + $0x16f8] sm:$0x3]
    %v788 = vld [vmem:[#allocation5 + $0x1700] sm:$0x3]
    %v789 = vld [vmem:[#allocation5 + $0x1708] sm:$0x3]
    %v790 = vld [vmem:[#allocation5 + $0x1710] sm:$0x3]
    %v791 = vld [vmem:[#allocation5 + $0x1718] sm:$0x3]
    %v792 = vld [vmem:[#allocation5 + $0x1720] sm:$0x3]
    %v793 = vld [vmem:[#allocation5 + $0x1728] sm:$0x3]
    %v794 = vld [vmem:[#allocation5 + $0x1730] sm:$0x3]
    %v795 = vld [vmem:[#allocation5 + $0x1738] sm:$0x3]
    %v796 = vld [vmem:[#allocation5 + $0x1740] sm:$0x3]
    %v797 = vld [vmem:[#allocation5 + $0x1748] sm:$0x3]
    %v798 = vld [vmem:[#allocation5 + $0x1750] sm:$0x3]
    %v799 = vld [vmem:[#allocation5 + $0x1758] sm:$0x3]
    %v800 = vld [vmem:[#allocation5 + $0x1760] sm:$0x3]
    %v801 = vld [vmem:[#allocation5 + $0x1768] sm:$0x3]
    %v802 = vld [vmem:[#allocation5 + $0x1770] sm:$0x3]
    %v803 = vld [vmem:[#allocation5 + $0x1778] sm:$0x3]
    %v804 = vld [vmem:[#allocation5 + $0x1780] sm:$0x3]
    %v805 = vld [vmem:[#allocation5 + $0x1788] sm:$0x3]
    %v806 = vld [vmem:[#allocation5 + $0x1790] sm:$0x3]
    %v807 = vld [vmem:[#allocation5 + $0x1798] sm:$0x3]
    %v808 = vld [vmem:[#allocation5 + $0x17a0] sm:$0x3]
    %v809 = vld [vmem:[#allocation5 + $0x17a8] sm:$0x3]
    %v810 = vld [vmem:[#allocation5 + $0x17b0] sm:$0x3]
    %v811 = vld [vmem:[#allocation5 + $0x17b8] sm:$0x3]
    %v812 = vld [vmem:[#allocation5 + $0x17c0] sm:$0x3]
    %v813 = vld [vmem:[#allocation5 + $0x17c8] sm:$0x3]
    %v814 = vld [vmem:[#allocation5 + $0x17d0] sm:$0x3]
    %v815 = vld [vmem:[#allocation5 + $0x17d8] sm:$0x3]
    %v816 = vld [vmem:[#allocation5 + $0x17e0] sm:$0x3]
    %v817 = vld [vmem:[#allocation5 + $0x17e8] sm:$0x3]
    %v818 = vld [vmem:[#allocation5 + $0x17f0] sm:$0x3]
    %v819 = vld [vmem:[#allocation5 + $0x17f8] sm:$0x3]
    %v820 = vld [vmem:[#allocation2] ss:$2 sm:$0xff]
    %s821 = scalar_lea.vmem [#allocation2], 16
    %v822 = vld [vmem:[%s821] ss:$2 sm:$0xff]
    %s823 = scalar_lea.vmem [#allocation2], 32
    %v824 = vld [vmem:[%s823] ss:$2 sm:$0xff]
    %s825 = scalar_lea.vmem [#allocation2], 48
    %v826 = vld [vmem:[%s825] ss:$2 sm:$0xff]
    %s827 = scalar_lea.vmem [#allocation2], 64
    %v828 = vld [vmem:[%s827] ss:$2 sm:$0xff]
    %s829 = scalar_lea.vmem [#allocation2], 80
    %v830 = vld [vmem:[%s829] ss:$2 sm:$0xff]
    %s831 = scalar_lea.vmem [#allocation2], 96
    %v832 = vld [vmem:[%s831] ss:$2 sm:$0xff]
    %s833 = scalar_lea.vmem [#allocation2], 112
    %v834 = vld [vmem:[%s833] ss:$2 sm:$0xff]
    %s835 = scalar_lea.vmem [#allocation2], 128
    %v836 = vld [vmem:[%s835] ss:$2 sm:$0xff]
    %s837 = scalar_lea.vmem [#allocation2], 144
    %v838 = vld [vmem:[%s837] ss:$2 sm:$0xff]
    %s839 = scalar_lea.vmem [#allocation2], 160
    %v840 = vld [vmem:[%s839] ss:$2 sm:$0xff]
    %s841 = scalar_lea.vmem [#allocation2], 176
    %v842 = vld [vmem:[%s841] ss:$2 sm:$0xff]
    %s843 = scalar_lea.vmem [#allocation2], 192
    %v844 = vld [vmem:[%s843] ss:$2 sm:$0xff]
    %s845 = scalar_lea.vmem [#allocation2], 208
    %v846 = vld [vmem:[%s845] ss:$2 sm:$0xff]
    %s847 = scalar_lea.vmem [#allocation2], 224
    %v848 = vld [vmem:[%s847] ss:$2 sm:$0xff]
    %s849 = scalar_lea.vmem [#allocation2], 240
    %v850 = vld [vmem:[%s849] ss:$2 sm:$0xff]
    %s851 = scalar_lea.vmem [#allocation2], 256
    %v852 = vld [vmem:[%s851] ss:$2 sm:$0xff]
    %s853 = scalar_lea.vmem [#allocation2], 272
    %v854 = vld [vmem:[%s853] ss:$2 sm:$0xff]
    %s855 = scalar_lea.vmem [#allocation2], 288
    %v856 = vld [vmem:[%s855] ss:$2 sm:$0xff]
    %s857 = scalar_lea.vmem [#allocation2], 304
    %v858 = vld [vmem:[%s857] ss:$2 sm:$0xff]
    %s859 = scalar_lea.vmem [#allocation2], 320
    %v860 = vld [vmem:[%s859] ss:$2 sm:$0xff]
    %s861 = scalar_lea.vmem [#allocation2], 336
    %v862 = vld [vmem:[%s861] ss:$2 sm:$0xff]
    %s863 = scalar_lea.vmem [#allocation2], 352
    %v864 = vld [vmem:[%s863] ss:$2 sm:$0xff]
    %s865 = scalar_lea.vmem [#allocation2], 368
    %v866 = vld [vmem:[%s865] ss:$2 sm:$0xff]
    %s867 = scalar_lea.vmem [#allocation2], 384
    %v868 = vld [vmem:[%s867] ss:$2 sm:$0xff]
    %s869 = scalar_lea.vmem [#allocation2], 400
    %v870 = vld [vmem:[%s869] ss:$2 sm:$0xff]
    %s871 = scalar_lea.vmem [#allocation2], 416
    %v872 = vld [vmem:[%s871] ss:$2 sm:$0xff]
    %s873 = scalar_lea.vmem [#allocation2], 432
    %v874 = vld [vmem:[%s873] ss:$2 sm:$0xff]
    %s875 = scalar_lea.vmem [#allocation2], 448
    %v876 = vld [vmem:[%s875] ss:$2 sm:$0xff]
    %s877 = scalar_lea.vmem [#allocation2], 464
    %v878 = vld [vmem:[%s877] ss:$2 sm:$0xff]
    %s879 = scalar_lea.vmem [#allocation2], 480
    %v880 = vld [vmem:[%s879] ss:$2 sm:$0xff]
    %s881 = scalar_lea.vmem [#allocation2], 496
    %v882 = vld [vmem:[%s881] ss:$2 sm:$0xff]
    %s883 = scalar_lea.vmem [#allocation2], 512
    %v884 = vld [vmem:[%s883] ss:$2 sm:$0xff]
    %s885 = scalar_lea.vmem [#allocation2], 528
    %v886 = vld [vmem:[%s885] ss:$2 sm:$0xff]
    %s887 = scalar_lea.vmem [#allocation2], 544
    %v888 = vld [vmem:[%s887] ss:$2 sm:$0xff]
    %s889 = scalar_lea.vmem [#allocation2], 560
    %v890 = vld [vmem:[%s889] ss:$2 sm:$0xff]
    %s891 = scalar_lea.vmem [#allocation2], 576
    %v892 = vld [vmem:[%s891] ss:$2 sm:$0xff]
    %s893 = scalar_lea.vmem [#allocation2], 592
    %v894 = vld [vmem:[%s893] ss:$2 sm:$0xff]
    %s895 = scalar_lea.vmem [#allocation2], 608
    %v896 = vld [vmem:[%s895] ss:$2 sm:$0xff]
    %s897 = scalar_lea.vmem [#allocation2], 624
    %v898 = vld [vmem:[%s897] ss:$2 sm:$0xff]
    %s899 = scalar_lea.vmem [#allocation2], 640
    %v900 = vld [vmem:[%s899] ss:$2 sm:$0xff]
    %s901 = scalar_lea.vmem [#allocation2], 656
    %v902 = vld [vmem:[%s901] ss:$2 sm:$0xff]
    %s903 = scalar_lea.vmem [#allocation2], 672
    %v904 = vld [vmem:[%s903] ss:$2 sm:$0xff]
    %s905 = scalar_lea.vmem [#allocation2], 688
    %v906 = vld [vmem:[%s905] ss:$2 sm:$0xff]
    %s907 = scalar_lea.vmem [#allocation2], 704
    %v908 = vld [vmem:[%s907] ss:$2 sm:$0xff]
    %s909 = scalar_lea.vmem [#allocation2], 720
    %v910 = vld [vmem:[%s909] ss:$2 sm:$0xff]
    %s911 = scalar_lea.vmem [#allocation2], 736
    %v912 = vld [vmem:[%s911] ss:$2 sm:$0xff]
    %s913 = scalar_lea.vmem [#allocation2], 752
    %v914 = vld [vmem:[%s913] ss:$2 sm:$0xff]
    %v963 = vlaneseq
    %v964 = vshrl.u32 %v963, 7
    %v965 = vsub.s32 0, %v964
    %v966 = vrot.slane %v820, %v965
    %v967 = vlaneseq
    %v968 = vshrl.u32 %v967, 7
    %v969 = vsub.s32 1, %v968
    %v970 = vrot.slane %v820, %v969
    %v971 = vlaneseq
    %v972 = vshrl.u32 %v971, 7
    %v973 = vsub.s32 2, %v972
    %v974 = vrot.slane %v820, %v973
    %v975 = vlaneseq
    %v976 = vshrl.u32 %v975, 7
    %v977 = vsub.s32 3, %v976
    %v978 = vrot.slane %v820, %v977
    %v979 = vlaneseq
    %v980 = vshrl.u32 %v979, 7
    %v981 = vsub.s32 4, %v980
    %v982 = vrot.slane %v820, %v981
    %v983 = vlaneseq
    %v984 = vshrl.u32 %v983, 7
    %v985 = vsub.s32 5, %v984
    %v986 = vrot.slane %v820, %v985
    %v987 = vlaneseq
    %v988 = vshrl.u32 %v987, 7
    %v989 = vsub.s32 6, %v988
    %v990 = vrot.slane %v820, %v989
    %v991 = vlaneseq
    %v992 = vshrl.u32 %v991, 7
    %v993 = vsub.s32 7, %v992
    %v994 = vrot.slane %v820, %v993
    %v995 = vlaneseq
    %v996 = vshrl.u32 %v995, 7
    %v997 = vsub.s32 0, %v996
    %v998 = vrot.slane %v822, %v997
    %v999 = vlaneseq
    %v1000 = vshrl.u32 %v999, 7
    %v1001 = vsub.s32 1, %v1000
    %v1002 = vrot.slane %v822, %v1001
    %v1003 = vlaneseq
    %v1004 = vshrl.u32 %v1003, 7
    %v1005 = vsub.s32 2, %v1004
    %v1006 = vrot.slane %v822, %v1005
    %v1007 = vlaneseq
    %v1008 = vshrl.u32 %v1007, 7
    %v1009 = vsub.s32 3, %v1008
    %v1010 = vrot.slane %v822, %v1009
    %v1011 = vlaneseq
    %v1012 = vshrl.u32 %v1011, 7
    %v1013 = vsub.s32 4, %v1012
    %v1014 = vrot.slane %v822, %v1013
    %v1015 = vlaneseq
    %v1016 = vshrl.u32 %v1015, 7
    %v1017 = vsub.s32 5, %v1016
    %v1018 = vrot.slane %v822, %v1017
    %v1019 = vlaneseq
    %v1020 = vshrl.u32 %v1019, 7
    %v1021 = vsub.s32 6, %v1020
    %v1022 = vrot.slane %v822, %v1021
    %v1023 = vlaneseq
    %v1024 = vshrl.u32 %v1023, 7
    %v1025 = vsub.s32 7, %v1024
    %v1026 = vrot.slane %v822, %v1025
    %v1027 = vlaneseq
    %v1028 = vshrl.u32 %v1027, 7
    %v1029 = vsub.s32 0, %v1028
    %v1030 = vrot.slane %v824, %v1029
    %v1031 = vlaneseq
    %v1032 = vshrl.u32 %v1031, 7
    %v1033 = vsub.s32 1, %v1032
    %v1034 = vrot.slane %v824, %v1033
    %v1035 = vlaneseq
    %v1036 = vshrl.u32 %v1035, 7
    %v1037 = vsub.s32 2, %v1036
    %v1038 = vrot.slane %v824, %v1037
    %v1039 = vlaneseq
    %v1040 = vshrl.u32 %v1039, 7
    %v1041 = vsub.s32 3, %v1040
    %v1042 = vrot.slane %v824, %v1041
    %v1043 = vlaneseq
    %v1044 = vshrl.u32 %v1043, 7
    %v1045 = vsub.s32 4, %v1044
    %v1046 = vrot.slane %v824, %v1045
    %v1047 = vlaneseq
    %v1048 = vshrl.u32 %v1047, 7
    %v1049 = vsub.s32 5, %v1048
    %v1050 = vrot.slane %v824, %v1049
    %v1051 = vlaneseq
    %v1052 = vshrl.u32 %v1051, 7
    %v1053 = vsub.s32 6, %v1052
    %v1054 = vrot.slane %v824, %v1053
    %v1055 = vlaneseq
    %v1056 = vshrl.u32 %v1055, 7
    %v1057 = vsub.s32 7, %v1056
    %v1058 = vrot.slane %v824, %v1057
    %v1059 = vlaneseq
    %v1060 = vshrl.u32 %v1059, 7
    %v1061 = vsub.s32 0, %v1060
    %v1062 = vrot.slane %v826, %v1061
    %v1063 = vlaneseq
    %v1064 = vshrl.u32 %v1063, 7
    %v1065 = vsub.s32 1, %v1064
    %v1066 = vrot.slane %v826, %v1065
    %v1067 = vlaneseq
    %v1068 = vshrl.u32 %v1067, 7
    %v1069 = vsub.s32 2, %v1068
    %v1070 = vrot.slane %v826, %v1069
    %v1071 = vlaneseq
    %v1072 = vshrl.u32 %v1071, 7
    %v1073 = vsub.s32 3, %v1072
    %v1074 = vrot.slane %v826, %v1073
    %v1075 = vlaneseq
    %v1076 = vshrl.u32 %v1075, 7
    %v1077 = vsub.s32 4, %v1076
    %v1078 = vrot.slane %v826, %v1077
    %v1079 = vlaneseq
    %v1080 = vshrl.u32 %v1079, 7
    %v1081 = vsub.s32 5, %v1080
    %v1082 = vrot.slane %v826, %v1081
    %v1083 = vlaneseq
    %v1084 = vshrl.u32 %v1083, 7
    %v1085 = vsub.s32 6, %v1084
    %v1086 = vrot.slane %v826, %v1085
    %v1087 = vlaneseq
    %v1088 = vshrl.u32 %v1087, 7
    %v1089 = vsub.s32 7, %v1088
    %v1090 = vrot.slane %v826, %v1089
    %v1091 = vlaneseq
    %v1092 = vshrl.u32 %v1091, 7
    %v1093 = vsub.s32 0, %v1092
    %v1094 = vrot.slane %v828, %v1093
    %v1095 = vlaneseq
    %v1096 = vshrl.u32 %v1095, 7
    %v1097 = vsub.s32 1, %v1096
    %v1098 = vrot.slane %v828, %v1097
    %v1099 = vlaneseq
    %v1100 = vshrl.u32 %v1099, 7
    %v1101 = vsub.s32 2, %v1100
    %v1102 = vrot.slane %v828, %v1101
    %v1103 = vlaneseq
    %v1104 = vshrl.u32 %v1103, 7
    %v1105 = vsub.s32 3, %v1104
    %v1106 = vrot.slane %v828, %v1105
    %v1107 = vlaneseq
    %v1108 = vshrl.u32 %v1107, 7
    %v1109 = vsub.s32 4, %v1108
    %v1110 = vrot.slane %v828, %v1109
    %v1111 = vlaneseq
    %v1112 = vshrl.u32 %v1111, 7
    %v1113 = vsub.s32 5, %v1112
    %v1114 = vrot.slane %v828, %v1113
    %v1115 = vlaneseq
    %v1116 = vshrl.u32 %v1115, 7
    %v1117 = vsub.s32 6, %v1116
    %v1118 = vrot.slane %v828, %v1117
    %v1119 = vlaneseq
    %v1120 = vshrl.u32 %v1119, 7
    %v1121 = vsub.s32 7, %v1120
    %v1122 = vrot.slane %v828, %v1121
    %v1123 = vlaneseq
    %v1124 = vshrl.u32 %v1123, 7
    %v1125 = vsub.s32 0, %v1124
    %v1126 = vrot.slane %v830, %v1125
    %v1127 = vlaneseq
    %v1128 = vshrl.u32 %v1127, 7
    %v1129 = vsub.s32 1, %v1128
    %v1130 = vrot.slane %v830, %v1129
    %v1131 = vlaneseq
    %v1132 = vshrl.u32 %v1131, 7
    %v1133 = vsub.s32 2, %v1132
    %v1134 = vrot.slane %v830, %v1133
    %v1135 = vlaneseq
    %v1136 = vshrl.u32 %v1135, 7
    %v1137 = vsub.s32 3, %v1136
    %v1138 = vrot.slane %v830, %v1137
    %v1139 = vlaneseq
    %v1140 = vshrl.u32 %v1139, 7
    %v1141 = vsub.s32 4, %v1140
    %v1142 = vrot.slane %v830, %v1141
    %v1143 = vlaneseq
    %v1144 = vshrl.u32 %v1143, 7
    %v1145 = vsub.s32 5, %v1144
    %v1146 = vrot.slane %v830, %v1145
    %v1147 = vlaneseq
    %v1148 = vshrl.u32 %v1147, 7
    %v1149 = vsub.s32 6, %v1148
    %v1150 = vrot.slane %v830, %v1149
    %v1151 = vlaneseq
    %v1152 = vshrl.u32 %v1151, 7
    %v1153 = vsub.s32 7, %v1152
    %v1154 = vrot.slane %v830, %v1153
    %v1155 = vlaneseq
    %v1156 = vshrl.u32 %v1155, 7
    %v1157 = vsub.s32 0, %v1156
    %v1158 = vrot.slane %v832, %v1157
    %v1159 = vlaneseq
    %v1160 = vshrl.u32 %v1159, 7
    %v1161 = vsub.s32 1, %v1160
    %v1162 = vrot.slane %v832, %v1161
    %v1163 = vlaneseq
    %v1164 = vshrl.u32 %v1163, 7
    %v1165 = vsub.s32 2, %v1164
    %v1166 = vrot.slane %v832, %v1165
    %v1167 = vlaneseq
    %v1168 = vshrl.u32 %v1167, 7
    %v1169 = vsub.s32 3, %v1168
    %v1170 = vrot.slane %v832, %v1169
    %v1171 = vlaneseq
    %v1172 = vshrl.u32 %v1171, 7
    %v1173 = vsub.s32 4, %v1172
    %v1174 = vrot.slane %v832, %v1173
    %v1175 = vlaneseq
    %v1176 = vshrl.u32 %v1175, 7
    %v1177 = vsub.s32 5, %v1176
    %v1178 = vrot.slane %v832, %v1177
    %v1179 = vlaneseq
    %v1180 = vshrl.u32 %v1179, 7
    %v1181 = vsub.s32 6, %v1180
    %v1182 = vrot.slane %v832, %v1181
    %v1183 = vlaneseq
    %v1184 = vshrl.u32 %v1183, 7
    %v1185 = vsub.s32 7, %v1184
    %v1186 = vrot.slane %v832, %v1185
    %v1187 = vlaneseq
    %v1188 = vshrl.u32 %v1187, 7
    %v1189 = vsub.s32 0, %v1188
    %v1190 = vrot.slane %v834, %v1189
    %v1191 = vlaneseq
    %v1192 = vshrl.u32 %v1191, 7
    %v1193 = vsub.s32 1, %v1192
    %v1194 = vrot.slane %v834, %v1193
    %v1195 = vlaneseq
    %v1196 = vshrl.u32 %v1195, 7
    %v1197 = vsub.s32 2, %v1196
    %v1198 = vrot.slane %v834, %v1197
    %v1199 = vlaneseq
    %v1200 = vshrl.u32 %v1199, 7
    %v1201 = vsub.s32 3, %v1200
    %v1202 = vrot.slane %v834, %v1201
    %v1203 = vlaneseq
    %v1204 = vshrl.u32 %v1203, 7
    %v1205 = vsub.s32 4, %v1204
    %v1206 = vrot.slane %v834, %v1205
    %v1207 = vlaneseq
    %v1208 = vshrl.u32 %v1207, 7
    %v1209 = vsub.s32 5, %v1208
    %v1210 = vrot.slane %v834, %v1209
    %v1211 = vlaneseq
    %v1212 = vshrl.u32 %v1211, 7
    %v1213 = vsub.s32 6, %v1212
    %v1214 = vrot.slane %v834, %v1213
    %v1215 = vlaneseq
    %v1216 = vshrl.u32 %v1215, 7
    %v1217 = vsub.s32 7, %v1216
    %v1218 = vrot.slane %v834, %v1217
    %v1219 = vlaneseq
    %v1220 = vshrl.u32 %v1219, 7
    %v1221 = vsub.s32 0, %v1220
    %v1222 = vrot.slane %v836, %v1221
    %v1223 = vlaneseq
    %v1224 = vshrl.u32 %v1223, 7
    %v1225 = vsub.s32 1, %v1224
    %v1226 = vrot.slane %v836, %v1225
    %v1227 = vlaneseq
    %v1228 = vshrl.u32 %v1227, 7
    %v1229 = vsub.s32 2, %v1228
    %v1230 = vrot.slane %v836, %v1229
    %v1231 = vlaneseq
    %v1232 = vshrl.u32 %v1231, 7
    %v1233 = vsub.s32 3, %v1232
    %v1234 = vrot.slane %v836, %v1233
    %v1235 = vlaneseq
    %v1236 = vshrl.u32 %v1235, 7
    %v1237 = vsub.s32 4, %v1236
    %v1238 = vrot.slane %v836, %v1237
    %v1239 = vlaneseq
    %v1240 = vshrl.u32 %v1239, 7
    %v1241 = vsub.s32 5, %v1240
    %v1242 = vrot.slane %v836, %v1241
    %v1243 = vlaneseq
    %v1244 = vshrl.u32 %v1243, 7
    %v1245 = vsub.s32 6, %v1244
    %v1246 = vrot.slane %v836, %v1245
    %v1247 = vlaneseq
    %v1248 = vshrl.u32 %v1247, 7
    %v1249 = vsub.s32 7, %v1248
    %v1250 = vrot.slane %v836, %v1249
    %v1251 = vlaneseq
    %v1252 = vshrl.u32 %v1251, 7
    %v1253 = vsub.s32 0, %v1252
    %v1254 = vrot.slane %v838, %v1253
    %v1255 = vlaneseq
    %v1256 = vshrl.u32 %v1255, 7
    %v1257 = vsub.s32 1, %v1256
    %v1258 = vrot.slane %v838, %v1257
    %v1259 = vlaneseq
    %v1260 = vshrl.u32 %v1259, 7
    %v1261 = vsub.s32 2, %v1260
    %v1262 = vrot.slane %v838, %v1261
    %v1263 = vlaneseq
    %v1264 = vshrl.u32 %v1263, 7
    %v1265 = vsub.s32 3, %v1264
    %v1266 = vrot.slane %v838, %v1265
    %v1267 = vlaneseq
    %v1268 = vshrl.u32 %v1267, 7
    %v1269 = vsub.s32 4, %v1268
    %v1270 = vrot.slane %v838, %v1269
    %v1271 = vlaneseq
    %v1272 = vshrl.u32 %v1271, 7
    %v1273 = vsub.s32 5, %v1272
    %v1274 = vrot.slane %v838, %v1273
    %v1275 = vlaneseq
    %v1276 = vshrl.u32 %v1275, 7
    %v1277 = vsub.s32 6, %v1276
    %v1278 = vrot.slane %v838, %v1277
    %v1279 = vlaneseq
    %v1280 = vshrl.u32 %v1279, 7
    %v1281 = vsub.s32 7, %v1280
    %v1282 = vrot.slane %v838, %v1281
    %v1283 = vlaneseq
    %v1284 = vshrl.u32 %v1283, 7
    %v1285 = vsub.s32 0, %v1284
    %v1286 = vrot.slane %v840, %v1285
    %v1287 = vlaneseq
    %v1288 = vshrl.u32 %v1287, 7
    %v1289 = vsub.s32 1, %v1288
    %v1290 = vrot.slane %v840, %v1289
    %v1291 = vlaneseq
    %v1292 = vshrl.u32 %v1291, 7
    %v1293 = vsub.s32 2, %v1292
    %v1294 = vrot.slane %v840, %v1293
    %v1295 = vlaneseq
    %v1296 = vshrl.u32 %v1295, 7
    %v1297 = vsub.s32 3, %v1296
    %v1298 = vrot.slane %v840, %v1297
    %v1299 = vlaneseq
    %v1300 = vshrl.u32 %v1299, 7
    %v1301 = vsub.s32 4, %v1300
    %v1302 = vrot.slane %v840, %v1301
    %v1303 = vlaneseq
    %v1304 = vshrl.u32 %v1303, 7
    %v1305 = vsub.s32 5, %v1304
    %v1306 = vrot.slane %v840, %v1305
    %v1307 = vlaneseq
    %v1308 = vshrl.u32 %v1307, 7
    %v1309 = vsub.s32 6, %v1308
    %v1310 = vrot.slane %v840, %v1309
    %v1311 = vlaneseq
    %v1312 = vshrl.u32 %v1311, 7
    %v1313 = vsub.s32 7, %v1312
    %v1314 = vrot.slane %v840, %v1313
    %v1315 = vlaneseq
    %v1316 = vshrl.u32 %v1315, 7
    %v1317 = vsub.s32 0, %v1316
    %v1318 = vrot.slane %v842, %v1317
    %v1319 = vlaneseq
    %v1320 = vshrl.u32 %v1319, 7
    %v1321 = vsub.s32 1, %v1320
    %v1322 = vrot.slane %v842, %v1321
    %v1323 = vlaneseq
    %v1324 = vshrl.u32 %v1323, 7
    %v1325 = vsub.s32 2, %v1324
    %v1326 = vrot.slane %v842, %v1325
    %v1327 = vlaneseq
    %v1328 = vshrl.u32 %v1327, 7
    %v1329 = vsub.s32 3, %v1328
    %v1330 = vrot.slane %v842, %v1329
    %v1331 = vlaneseq
    %v1332 = vshrl.u32 %v1331, 7
    %v1333 = vsub.s32 4, %v1332
    %v1334 = vrot.slane %v842, %v1333
    %v1335 = vlaneseq
    %v1336 = vshrl.u32 %v1335, 7
    %v1337 = vsub.s32 5, %v1336
    %v1338 = vrot.slane %v842, %v1337
    %v1339 = vlaneseq
    %v1340 = vshrl.u32 %v1339, 7
    %v1341 = vsub.s32 6, %v1340
    %v1342 = vrot.slane %v842, %v1341
    %v1343 = vlaneseq
    %v1344 = vshrl.u32 %v1343, 7
    %v1345 = vsub.s32 7, %v1344
    %v1346 = vrot.slane %v842, %v1345
    %v1347 = vlaneseq
    %v1348 = vshrl.u32 %v1347, 7
    %v1349 = vsub.s32 0, %v1348
    %v1350 = vrot.slane %v844, %v1349
    %v1351 = vlaneseq
    %v1352 = vshrl.u32 %v1351, 7
    %v1353 = vsub.s32 1, %v1352
    %v1354 = vrot.slane %v844, %v1353
    %v1355 = vlaneseq
    %v1356 = vshrl.u32 %v1355, 7
    %v1357 = vsub.s32 2, %v1356
    %v1358 = vrot.slane %v844, %v1357
    %v1359 = vlaneseq
    %v1360 = vshrl.u32 %v1359, 7
    %v1361 = vsub.s32 3, %v1360
    %v1362 = vrot.slane %v844, %v1361
    %v1363 = vlaneseq
    %v1364 = vshrl.u32 %v1363, 7
    %v1365 = vsub.s32 4, %v1364
    %v1366 = vrot.slane %v844, %v1365
    %v1367 = vlaneseq
    %v1368 = vshrl.u32 %v1367, 7
    %v1369 = vsub.s32 5, %v1368
    %v1370 = vrot.slane %v844, %v1369
    %v1371 = vlaneseq
    %v1372 = vshrl.u32 %v1371, 7
    %v1373 = vsub.s32 6, %v1372
    %v1374 = vrot.slane %v844, %v1373
    %v1375 = vlaneseq
    %v1376 = vshrl.u32 %v1375, 7
    %v1377 = vsub.s32 7, %v1376
    %v1378 = vrot.slane %v844, %v1377
    %v1379 = vlaneseq
    %v1380 = vshrl.u32 %v1379, 7
    %v1381 = vsub.s32 0, %v1380
    %v1382 = vrot.slane %v846, %v1381
    %v1383 = vlaneseq
    %v1384 = vshrl.u32 %v1383, 7
    %v1385 = vsub.s32 1, %v1384
    %v1386 = vrot.slane %v846, %v1385
    %v1387 = vlaneseq
    %v1388 = vshrl.u32 %v1387, 7
    %v1389 = vsub.s32 2, %v1388
    %v1390 = vrot.slane %v846, %v1389
    %v1391 = vlaneseq
    %v1392 = vshrl.u32 %v1391, 7
    %v1393 = vsub.s32 3, %v1392
    %v1394 = vrot.slane %v846, %v1393
    %v1395 = vlaneseq
    %v1396 = vshrl.u32 %v1395, 7
    %v1397 = vsub.s32 4, %v1396
    %v1398 = vrot.slane %v846, %v1397
    %v1399 = vlaneseq
    %v1400 = vshrl.u32 %v1399, 7
    %v1401 = vsub.s32 5, %v1400
    %v1402 = vrot.slane %v846, %v1401
    %v1403 = vlaneseq
    %v1404 = vshrl.u32 %v1403, 7
    %v1405 = vsub.s32 6, %v1404
    %v1406 = vrot.slane %v846, %v1405
    %v1407 = vlaneseq
    %v1408 = vshrl.u32 %v1407, 7
    %v1409 = vsub.s32 7, %v1408
    %v1410 = vrot.slane %v846, %v1409
    %v1411 = vlaneseq
    %v1412 = vshrl.u32 %v1411, 7
    %v1413 = vsub.s32 0, %v1412
    %v1414 = vrot.slane %v848, %v1413
    %v1415 = vlaneseq
    %v1416 = vshrl.u32 %v1415, 7
    %v1417 = vsub.s32 1, %v1416
    %v1418 = vrot.slane %v848, %v1417
    %v1419 = vlaneseq
    %v1420 = vshrl.u32 %v1419, 7
    %v1421 = vsub.s32 2, %v1420
    %v1422 = vrot.slane %v848, %v1421
    %v1423 = vlaneseq
    %v1424 = vshrl.u32 %v1423, 7
    %v1425 = vsub.s32 3, %v1424
    %v1426 = vrot.slane %v848, %v1425
    %v1427 = vlaneseq
    %v1428 = vshrl.u32 %v1427, 7
    %v1429 = vsub.s32 4, %v1428
    %v1430 = vrot.slane %v848, %v1429
    %v1431 = vlaneseq
    %v1432 = vshrl.u32 %v1431, 7
    %v1433 = vsub.s32 5, %v1432
    %v1434 = vrot.slane %v848, %v1433
    %v1435 = vlaneseq
    %v1436 = vshrl.u32 %v1435, 7
    %v1437 = vsub.s32 6, %v1436
    %v1438 = vrot.slane %v848, %v1437
    %v1439 = vlaneseq
    %v1440 = vshrl.u32 %v1439, 7
    %v1441 = vsub.s32 7, %v1440
    %v1442 = vrot.slane %v848, %v1441
    %v1443 = vlaneseq
    %v1444 = vshrl.u32 %v1443, 7
    %v1445 = vsub.s32 0, %v1444
    %v1446 = vrot.slane %v850, %v1445
    %v1447 = vlaneseq
    %v1448 = vshrl.u32 %v1447, 7
    %v1449 = vsub.s32 1, %v1448
    %v1450 = vrot.slane %v850, %v1449
    %v1451 = vlaneseq
    %v1452 = vshrl.u32 %v1451, 7
    %v1453 = vsub.s32 2, %v1452
    %v1454 = vrot.slane %v850, %v1453
    %v1455 = vlaneseq
    %v1456 = vshrl.u32 %v1455, 7
    %v1457 = vsub.s32 3, %v1456
    %v1458 = vrot.slane %v850, %v1457
    %v1459 = vlaneseq
    %v1460 = vshrl.u32 %v1459, 7
    %v1461 = vsub.s32 4, %v1460
    %v1462 = vrot.slane %v850, %v1461
    %v1463 = vlaneseq
    %v1464 = vshrl.u32 %v1463, 7
    %v1465 = vsub.s32 5, %v1464
    %v1466 = vrot.slane %v850, %v1465
    %v1467 = vlaneseq
    %v1468 = vshrl.u32 %v1467, 7
    %v1469 = vsub.s32 6, %v1468
    %v1470 = vrot.slane %v850, %v1469
    %v1471 = vlaneseq
    %v1472 = vshrl.u32 %v1471, 7
    %v1473 = vsub.s32 7, %v1472
    %v1474 = vrot.slane %v850, %v1473
    %v1475 = vlaneseq
    %v1476 = vshrl.u32 %v1475, 7
    %v1477 = vsub.s32 0, %v1476
    %v1478 = vrot.slane %v852, %v1477
    %v1479 = vlaneseq
    %v1480 = vshrl.u32 %v1479, 7
    %v1481 = vsub.s32 1, %v1480
    %v1482 = vrot.slane %v852, %v1481
    %v1483 = vlaneseq
    %v1484 = vshrl.u32 %v1483, 7
    %v1485 = vsub.s32 2, %v1484
    %v1486 = vrot.slane %v852, %v1485
    %v1487 = vlaneseq
    %v1488 = vshrl.u32 %v1487, 7
    %v1489 = vsub.s32 3, %v1488
    %v1490 = vrot.slane %v852, %v1489
    %v1491 = vlaneseq
    %v1492 = vshrl.u32 %v1491, 7
    %v1493 = vsub.s32 4, %v1492
    %v1494 = vrot.slane %v852, %v1493
    %v1495 = vlaneseq
    %v1496 = vshrl.u32 %v1495, 7
    %v1497 = vsub.s32 5, %v1496
    %v1498 = vrot.slane %v852, %v1497
    %v1499 = vlaneseq
    %v1500 = vshrl.u32 %v1499, 7
    %v1501 = vsub.s32 6, %v1500
    %v1502 = vrot.slane %v852, %v1501
    %v1503 = vlaneseq
    %v1504 = vshrl.u32 %v1503, 7
    %v1505 = vsub.s32 7, %v1504
    %v1506 = vrot.slane %v852, %v1505
    %v1507 = vlaneseq
    %v1508 = vshrl.u32 %v1507, 7
    %v1509 = vsub.s32 0, %v1508
    %v1510 = vrot.slane %v854, %v1509
    %v1511 = vlaneseq
    %v1512 = vshrl.u32 %v1511, 7
    %v1513 = vsub.s32 1, %v1512
    %v1514 = vrot.slane %v854, %v1513
    %v1515 = vlaneseq
    %v1516 = vshrl.u32 %v1515, 7
    %v1517 = vsub.s32 2, %v1516
    %v1518 = vrot.slane %v854, %v1517
    %v1519 = vlaneseq
    %v1520 = vshrl.u32 %v1519, 7
    %v1521 = vsub.s32 3, %v1520
    %v1522 = vrot.slane %v854, %v1521
    %v1523 = vlaneseq
    %v1524 = vshrl.u32 %v1523, 7
    %v1525 = vsub.s32 4, %v1524
    %v1526 = vrot.slane %v854, %v1525
    %v1527 = vlaneseq
    %v1528 = vshrl.u32 %v1527, 7
    %v1529 = vsub.s32 5, %v1528
    %v1530 = vrot.slane %v854, %v1529
    %v1531 = vlaneseq
    %v1532 = vshrl.u32 %v1531, 7
    %v1533 = vsub.s32 6, %v1532
    %v1534 = vrot.slane %v854, %v1533
    %v1535 = vlaneseq
    %v1536 = vshrl.u32 %v1535, 7
    %v1537 = vsub.s32 7, %v1536
    %v1538 = vrot.slane %v854, %v1537
    %v1539 = vlaneseq
    %v1540 = vshrl.u32 %v1539, 7
    %v1541 = vsub.s32 0, %v1540
    %v1542 = vrot.slane %v856, %v1541
    %v1543 = vlaneseq
    %v1544 = vshrl.u32 %v1543, 7
    %v1545 = vsub.s32 1, %v1544
    %v1546 = vrot.slane %v856, %v1545
    %v1547 = vlaneseq
    %v1548 = vshrl.u32 %v1547, 7
    %v1549 = vsub.s32 2, %v1548
    %v1550 = vrot.slane %v856, %v1549
    %v1551 = vlaneseq
    %v1552 = vshrl.u32 %v1551, 7
    %v1553 = vsub.s32 3, %v1552
    %v1554 = vrot.slane %v856, %v1553
    %v1555 = vlaneseq
    %v1556 = vshrl.u32 %v1555, 7
    %v1557 = vsub.s32 4, %v1556
    %v1558 = vrot.slane %v856, %v1557
    %v1559 = vlaneseq
    %v1560 = vshrl.u32 %v1559, 7
    %v1561 = vsub.s32 5, %v1560
    %v1562 = vrot.slane %v856, %v1561
    %v1563 = vlaneseq
    %v1564 = vshrl.u32 %v1563, 7
    %v1565 = vsub.s32 6, %v1564
    %v1566 = vrot.slane %v856, %v1565
    %v1567 = vlaneseq
    %v1568 = vshrl.u32 %v1567, 7
    %v1569 = vsub.s32 7, %v1568
    %v1570 = vrot.slane %v856, %v1569
    %v1571 = vlaneseq
    %v1572 = vshrl.u32 %v1571, 7
    %v1573 = vsub.s32 0, %v1572
    %v1574 = vrot.slane %v858, %v1573
    %v1575 = vlaneseq
    %v1576 = vshrl.u32 %v1575, 7
    %v1577 = vsub.s32 1, %v1576
    %v1578 = vrot.slane %v858, %v1577
    %v1579 = vlaneseq
    %v1580 = vshrl.u32 %v1579, 7
    %v1581 = vsub.s32 2, %v1580
    %v1582 = vrot.slane %v858, %v1581
    %v1583 = vlaneseq
    %v1584 = vshrl.u32 %v1583, 7
    %v1585 = vsub.s32 3, %v1584
    %v1586 = vrot.slane %v858, %v1585
    %v1587 = vlaneseq
    %v1588 = vshrl.u32 %v1587, 7
    %v1589 = vsub.s32 4, %v1588
    %v1590 = vrot.slane %v858, %v1589
    %v1591 = vlaneseq
    %v1592 = vshrl.u32 %v1591, 7
    %v1593 = vsub.s32 5, %v1592
    %v1594 = vrot.slane %v858, %v1593
    %v1595 = vlaneseq
    %v1596 = vshrl.u32 %v1595, 7
    %v1597 = vsub.s32 6, %v1596
    %v1598 = vrot.slane %v858, %v1597
    %v1599 = vlaneseq
    %v1600 = vshrl.u32 %v1599, 7
    %v1601 = vsub.s32 7, %v1600
    %v1602 = vrot.slane %v858, %v1601
    %v1603 = vlaneseq
    %v1604 = vshrl.u32 %v1603, 7
    %v1605 = vsub.s32 0, %v1604
    %v1606 = vrot.slane %v860, %v1605
    %v1607 = vlaneseq
    %v1608 = vshrl.u32 %v1607, 7
    %v1609 = vsub.s32 1, %v1608
    %v1610 = vrot.slane %v860, %v1609
    %v1611 = vlaneseq
    %v1612 = vshrl.u32 %v1611, 7
    %v1613 = vsub.s32 2, %v1612
    %v1614 = vrot.slane %v860, %v1613
    %v1615 = vlaneseq
    %v1616 = vshrl.u32 %v1615, 7
    %v1617 = vsub.s32 3, %v1616
    %v1618 = vrot.slane %v860, %v1617
    %v1619 = vlaneseq
    %v1620 = vshrl.u32 %v1619, 7
    %v1621 = vsub.s32 4, %v1620
    %v1622 = vrot.slane %v860, %v1621
    %v1623 = vlaneseq
    %v1624 = vshrl.u32 %v1623, 7
    %v1625 = vsub.s32 5, %v1624
    %v1626 = vrot.slane %v860, %v1625
    %v1627 = vlaneseq
    %v1628 = vshrl.u32 %v1627, 7
    %v1629 = vsub.s32 6, %v1628
    %v1630 = vrot.slane %v860, %v1629
    %v1631 = vlaneseq
    %v1632 = vshrl.u32 %v1631, 7
    %v1633 = vsub.s32 7, %v1632
    %v1634 = vrot.slane %v860, %v1633
    %v1635 = vlaneseq
    %v1636 = vshrl.u32 %v1635, 7
    %v1637 = vsub.s32 0, %v1636
    %v1638 = vrot.slane %v862, %v1637
    %v1639 = vlaneseq
    %v1640 = vshrl.u32 %v1639, 7
    %v1641 = vsub.s32 1, %v1640
    %v1642 = vrot.slane %v862, %v1641
    %v1643 = vlaneseq
    %v1644 = vshrl.u32 %v1643, 7
    %v1645 = vsub.s32 2, %v1644
    %v1646 = vrot.slane %v862, %v1645
    %v1647 = vlaneseq
    %v1648 = vshrl.u32 %v1647, 7
    %v1649 = vsub.s32 3, %v1648
    %v1650 = vrot.slane %v862, %v1649
    %v1651 = vlaneseq
    %v1652 = vshrl.u32 %v1651, 7
    %v1653 = vsub.s32 4, %v1652
    %v1654 = vrot.slane %v862, %v1653
    %v1655 = vlaneseq
    %v1656 = vshrl.u32 %v1655, 7
    %v1657 = vsub.s32 5, %v1656
    %v1658 = vrot.slane %v862, %v1657
    %v1659 = vlaneseq
    %v1660 = vshrl.u32 %v1659, 7
    %v1661 = vsub.s32 6, %v1660
    %v1662 = vrot.slane %v862, %v1661
    %v1663 = vlaneseq
    %v1664 = vshrl.u32 %v1663, 7
    %v1665 = vsub.s32 7, %v1664
    %v1666 = vrot.slane %v862, %v1665
    %v1667 = vlaneseq
    %v1668 = vshrl.u32 %v1667, 7
    %v1669 = vsub.s32 0, %v1668
    %v1670 = vrot.slane %v864, %v1669
    %v1671 = vlaneseq
    %v1672 = vshrl.u32 %v1671, 7
    %v1673 = vsub.s32 1, %v1672
    %v1674 = vrot.slane %v864, %v1673
    %v1675 = vlaneseq
    %v1676 = vshrl.u32 %v1675, 7
    %v1677 = vsub.s32 2, %v1676
    %v1678 = vrot.slane %v864, %v1677
    %v1679 = vlaneseq
    %v1680 = vshrl.u32 %v1679, 7
    %v1681 = vsub.s32 3, %v1680
    %v1682 = vrot.slane %v864, %v1681
    %v1683 = vlaneseq
    %v1684 = vshrl.u32 %v1683, 7
    %v1685 = vsub.s32 4, %v1684
    %v1686 = vrot.slane %v864, %v1685
    %v1687 = vlaneseq
    %v1688 = vshrl.u32 %v1687, 7
    %v1689 = vsub.s32 5, %v1688
    %v1690 = vrot.slane %v864, %v1689
    %v1691 = vlaneseq
    %v1692 = vshrl.u32 %v1691, 7
    %v1693 = vsub.s32 6, %v1692
    %v1694 = vrot.slane %v864, %v1693
    %v1695 = vlaneseq
    %v1696 = vshrl.u32 %v1695, 7
    %v1697 = vsub.s32 7, %v1696
    %v1698 = vrot.slane %v864, %v1697
    %v1699 = vlaneseq
    %v1700 = vshrl.u32 %v1699, 7
    %v1701 = vsub.s32 0, %v1700
    %v1702 = vrot.slane %v866, %v1701
    %v1703 = vlaneseq
    %v1704 = vshrl.u32 %v1703, 7
    %v1705 = vsub.s32 1, %v1704
    %v1706 = vrot.slane %v866, %v1705
    %v1707 = vlaneseq
    %v1708 = vshrl.u32 %v1707, 7
    %v1709 = vsub.s32 2, %v1708
    %v1710 = vrot.slane %v866, %v1709
    %v1711 = vlaneseq
    %v1712 = vshrl.u32 %v1711, 7
    %v1713 = vsub.s32 3, %v1712
    %v1714 = vrot.slane %v866, %v1713
    %v1715 = vlaneseq
    %v1716 = vshrl.u32 %v1715, 7
    %v1717 = vsub.s32 4, %v1716
    %v1718 = vrot.slane %v866, %v1717
    %v1719 = vlaneseq
    %v1720 = vshrl.u32 %v1719, 7
    %v1721 = vsub.s32 5, %v1720
    %v1722 = vrot.slane %v866, %v1721
    %v1723 = vlaneseq
    %v1724 = vshrl.u32 %v1723, 7
    %v1725 = vsub.s32 6, %v1724
    %v1726 = vrot.slane %v866, %v1725
    %v1727 = vlaneseq
    %v1728 = vshrl.u32 %v1727, 7
    %v1729 = vsub.s32 7, %v1728
    %v1730 = vrot.slane %v866, %v1729
    %v1731 = vlaneseq
    %v1732 = vshrl.u32 %v1731, 7
    %v1733 = vsub.s32 0, %v1732
    %v1734 = vrot.slane %v868, %v1733
    %v1735 = vlaneseq
    %v1736 = vshrl.u32 %v1735, 7
    %v1737 = vsub.s32 1, %v1736
    %v1738 = vrot.slane %v868, %v1737
    %v1739 = vlaneseq
    %v1740 = vshrl.u32 %v1739, 7
    %v1741 = vsub.s32 2, %v1740
    %v1742 = vrot.slane %v868, %v1741
    %v1743 = vlaneseq
    %v1744 = vshrl.u32 %v1743, 7
    %v1745 = vsub.s32 3, %v1744
    %v1746 = vrot.slane %v868, %v1745
    %v1747 = vlaneseq
    %v1748 = vshrl.u32 %v1747, 7
    %v1749 = vsub.s32 4, %v1748
    %v1750 = vrot.slane %v868, %v1749
    %v1751 = vlaneseq
    %v1752 = vshrl.u32 %v1751, 7
    %v1753 = vsub.s32 5, %v1752
    %v1754 = vrot.slane %v868, %v1753
    %v1755 = vlaneseq
    %v1756 = vshrl.u32 %v1755, 7
    %v1757 = vsub.s32 6, %v1756
    %v1758 = vrot.slane %v868, %v1757
    %v1759 = vlaneseq
    %v1760 = vshrl.u32 %v1759, 7
    %v1761 = vsub.s32 7, %v1760
    %v1762 = vrot.slane %v868, %v1761
    %v1763 = vlaneseq
    %v1764 = vshrl.u32 %v1763, 7
    %v1765 = vsub.s32 0, %v1764
    %v1766 = vrot.slane %v870, %v1765
    %v1767 = vlaneseq
    %v1768 = vshrl.u32 %v1767, 7
    %v1769 = vsub.s32 1, %v1768
    %v1770 = vrot.slane %v870, %v1769
    %v1771 = vlaneseq
    %v1772 = vshrl.u32 %v1771, 7
    %v1773 = vsub.s32 2, %v1772
    %v1774 = vrot.slane %v870, %v1773
    %v1775 = vlaneseq
    %v1776 = vshrl.u32 %v1775, 7
    %v1777 = vsub.s32 3, %v1776
    %v1778 = vrot.slane %v870, %v1777
    %v1779 = vlaneseq
    %v1780 = vshrl.u32 %v1779, 7
    %v1781 = vsub.s32 4, %v1780
    %v1782 = vrot.slane %v870, %v1781
    %v1783 = vlaneseq
    %v1784 = vshrl.u32 %v1783, 7
    %v1785 = vsub.s32 5, %v1784
    %v1786 = vrot.slane %v870, %v1785
    %v1787 = vlaneseq
    %v1788 = vshrl.u32 %v1787, 7
    %v1789 = vsub.s32 6, %v1788
    %v1790 = vrot.slane %v870, %v1789
    %v1791 = vlaneseq
    %v1792 = vshrl.u32 %v1791, 7
    %v1793 = vsub.s32 7, %v1792
    %v1794 = vrot.slane %v870, %v1793
    %v1795 = vlaneseq
    %v1796 = vshrl.u32 %v1795, 7
    %v1797 = vsub.s32 0, %v1796
    %v1798 = vrot.slane %v872, %v1797
    %v1799 = vlaneseq
    %v1800 = vshrl.u32 %v1799, 7
    %v1801 = vsub.s32 1, %v1800
    %v1802 = vrot.slane %v872, %v1801
    %v1803 = vlaneseq
    %v1804 = vshrl.u32 %v1803, 7
    %v1805 = vsub.s32 2, %v1804
    %v1806 = vrot.slane %v872, %v1805
    %v1807 = vlaneseq
    %v1808 = vshrl.u32 %v1807, 7
    %v1809 = vsub.s32 3, %v1808
    %v1810 = vrot.slane %v872, %v1809
    %v1811 = vlaneseq
    %v1812 = vshrl.u32 %v1811, 7
    %v1813 = vsub.s32 4, %v1812
    %v1814 = vrot.slane %v872, %v1813
    %v1815 = vlaneseq
    %v1816 = vshrl.u32 %v1815, 7
    %v1817 = vsub.s32 5, %v1816
    %v1818 = vrot.slane %v872, %v1817
    %v1819 = vlaneseq
    %v1820 = vshrl.u32 %v1819, 7
    %v1821 = vsub.s32 6, %v1820
    %v1822 = vrot.slane %v872, %v1821
    %v1823 = vlaneseq
    %v1824 = vshrl.u32 %v1823, 7
    %v1825 = vsub.s32 7, %v1824
    %v1826 = vrot.slane %v872, %v1825
    %v1827 = vlaneseq
    %v1828 = vshrl.u32 %v1827, 7
    %v1829 = vsub.s32 0, %v1828
    %v1830 = vrot.slane %v874, %v1829
    %v1831 = vlaneseq
    %v1832 = vshrl.u32 %v1831, 7
    %v1833 = vsub.s32 1, %v1832
    %v1834 = vrot.slane %v874, %v1833
    %v1835 = vlaneseq
    %v1836 = vshrl.u32 %v1835, 7
    %v1837 = vsub.s32 2, %v1836
    %v1838 = vrot.slane %v874, %v1837
    %v1839 = vlaneseq
    %v1840 = vshrl.u32 %v1839, 7
    %v1841 = vsub.s32 3, %v1840
    %v1842 = vrot.slane %v874, %v1841
    %v1843 = vlaneseq
    %v1844 = vshrl.u32 %v1843, 7
    %v1845 = vsub.s32 4, %v1844
    %v1846 = vrot.slane %v874, %v1845
    %v1847 = vlaneseq
    %v1848 = vshrl.u32 %v1847, 7
    %v1849 = vsub.s32 5, %v1848
    %v1850 = vrot.slane %v874, %v1849
    %v1851 = vlaneseq
    %v1852 = vshrl.u32 %v1851, 7
    %v1853 = vsub.s32 6, %v1852
    %v1854 = vrot.slane %v874, %v1853
    %v1855 = vlaneseq
    %v1856 = vshrl.u32 %v1855, 7
    %v1857 = vsub.s32 7, %v1856
    %v1858 = vrot.slane %v874, %v1857
    %v1859 = vlaneseq
    %v1860 = vshrl.u32 %v1859, 7
    %v1861 = vsub.s32 0, %v1860
    %v1862 = vrot.slane %v876, %v1861
    %v1863 = vlaneseq
    %v1864 = vshrl.u32 %v1863, 7
    %v1865 = vsub.s32 1, %v1864
    %v1866 = vrot.slane %v876, %v1865
    %v1867 = vlaneseq
    %v1868 = vshrl.u32 %v1867, 7
    %v1869 = vsub.s32 2, %v1868
    %v1870 = vrot.slane %v876, %v1869
    %v1871 = vlaneseq
    %v1872 = vshrl.u32 %v1871, 7
    %v1873 = vsub.s32 3, %v1872
    %v1874 = vrot.slane %v876, %v1873
    %v1875 = vlaneseq
    %v1876 = vshrl.u32 %v1875, 7
    %v1877 = vsub.s32 4, %v1876
    %v1878 = vrot.slane %v876, %v1877
    %v1879 = vlaneseq
    %v1880 = vshrl.u32 %v1879, 7
    %v1881 = vsub.s32 5, %v1880
    %v1882 = vrot.slane %v876, %v1881
    %v1883 = vlaneseq
    %v1884 = vshrl.u32 %v1883, 7
    %v1885 = vsub.s32 6, %v1884
    %v1886 = vrot.slane %v876, %v1885
    %v1887 = vlaneseq
    %v1888 = vshrl.u32 %v1887, 7
    %v1889 = vsub.s32 7, %v1888
    %v1890 = vrot.slane %v876, %v1889
    %v1891 = vlaneseq
    %v1892 = vshrl.u32 %v1891, 7
    %v1893 = vsub.s32 0, %v1892
    %v1894 = vrot.slane %v878, %v1893
    %v1895 = vlaneseq
    %v1896 = vshrl.u32 %v1895, 7
    %v1897 = vsub.s32 1, %v1896
    %v1898 = vrot.slane %v878, %v1897
    %v1899 = vlaneseq
    %v1900 = vshrl.u32 %v1899, 7
    %v1901 = vsub.s32 2, %v1900
    %v1902 = vrot.slane %v878, %v1901
    %v1903 = vlaneseq
    %v1904 = vshrl.u32 %v1903, 7
    %v1905 = vsub.s32 3, %v1904
    %v1906 = vrot.slane %v878, %v1905
    %v1907 = vlaneseq
    %v1908 = vshrl.u32 %v1907, 7
    %v1909 = vsub.s32 4, %v1908
    %v1910 = vrot.slane %v878, %v1909
    %v1911 = vlaneseq
    %v1912 = vshrl.u32 %v1911, 7
    %v1913 = vsub.s32 5, %v1912
    %v1914 = vrot.slane %v878, %v1913
    %v1915 = vlaneseq
    %v1916 = vshrl.u32 %v1915, 7
    %v1917 = vsub.s32 6, %v1916
    %v1918 = vrot.slane %v878, %v1917
    %v1919 = vlaneseq
    %v1920 = vshrl.u32 %v1919, 7
    %v1921 = vsub.s32 7, %v1920
    %v1922 = vrot.slane %v878, %v1921
    %v1923 = vlaneseq
    %v1924 = vshrl.u32 %v1923, 7
    %v1925 = vsub.s32 0, %v1924
    %v1926 = vrot.slane %v880, %v1925
    %v1927 = vlaneseq
    %v1928 = vshrl.u32 %v1927, 7
    %v1929 = vsub.s32 1, %v1928
    %v1930 = vrot.slane %v880, %v1929
    %v1931 = vlaneseq
    %v1932 = vshrl.u32 %v1931, 7
    %v1933 = vsub.s32 2, %v1932
    %v1934 = vrot.slane %v880, %v1933
    %v1935 = vlaneseq
    %v1936 = vshrl.u32 %v1935, 7
    %v1937 = vsub.s32 3, %v1936
    %v1938 = vrot.slane %v880, %v1937
    %v1939 = vlaneseq
    %v1940 = vshrl.u32 %v1939, 7
    %v1941 = vsub.s32 4, %v1940
    %v1942 = vrot.slane %v880, %v1941
    %v1943 = vlaneseq
    %v1944 = vshrl.u32 %v1943, 7
    %v1945 = vsub.s32 5, %v1944
    %v1946 = vrot.slane %v880, %v1945
    %v1947 = vlaneseq
    %v1948 = vshrl.u32 %v1947, 7
    %v1949 = vsub.s32 6, %v1948
    %v1950 = vrot.slane %v880, %v1949
    %v1951 = vlaneseq
    %v1952 = vshrl.u32 %v1951, 7
    %v1953 = vsub.s32 7, %v1952
    %v1954 = vrot.slane %v880, %v1953
    %v1955 = vlaneseq
    %v1956 = vshrl.u32 %v1955, 7
    %v1957 = vsub.s32 0, %v1956
    %v1958 = vrot.slane %v882, %v1957
    %v1959 = vlaneseq
    %v1960 = vshrl.u32 %v1959, 7
    %v1961 = vsub.s32 1, %v1960
    %v1962 = vrot.slane %v882, %v1961
    %v1963 = vlaneseq
    %v1964 = vshrl.u32 %v1963, 7
    %v1965 = vsub.s32 2, %v1964
    %v1966 = vrot.slane %v882, %v1965
    %v1967 = vlaneseq
    %v1968 = vshrl.u32 %v1967, 7
    %v1969 = vsub.s32 3, %v1968
    %v1970 = vrot.slane %v882, %v1969
    %v1971 = vlaneseq
    %v1972 = vshrl.u32 %v1971, 7
    %v1973 = vsub.s32 4, %v1972
    %v1974 = vrot.slane %v882, %v1973
    %v1975 = vlaneseq
    %v1976 = vshrl.u32 %v1975, 7
    %v1977 = vsub.s32 5, %v1976
    %v1978 = vrot.slane %v882, %v1977
    %v1979 = vlaneseq
    %v1980 = vshrl.u32 %v1979, 7
    %v1981 = vsub.s32 6, %v1980
    %v1982 = vrot.slane %v882, %v1981
    %v1983 = vlaneseq
    %v1984 = vshrl.u32 %v1983, 7
    %v1985 = vsub.s32 7, %v1984
    %v1986 = vrot.slane %v882, %v1985
    %v1987 = vlaneseq
    %v1988 = vshrl.u32 %v1987, 7
    %v1989 = vsub.s32 0, %v1988
    %v1990 = vrot.slane %v884, %v1989
    %v1991 = vlaneseq
    %v1992 = vshrl.u32 %v1991, 7
    %v1993 = vsub.s32 1, %v1992
    %v1994 = vrot.slane %v884, %v1993
    %v1995 = vlaneseq
    %v1996 = vshrl.u32 %v1995, 7
    %v1997 = vsub.s32 2, %v1996
    %v1998 = vrot.slane %v884, %v1997
    %v1999 = vlaneseq
    %v2000 = vshrl.u32 %v1999, 7
    %v2001 = vsub.s32 3, %v2000
    %v2002 = vrot.slane %v884, %v2001
    %v2003 = vlaneseq
    %v2004 = vshrl.u32 %v2003, 7
    %v2005 = vsub.s32 4, %v2004
    %v2006 = vrot.slane %v884, %v2005
    %v2007 = vlaneseq
    %v2008 = vshrl.u32 %v2007, 7
    %v2009 = vsub.s32 5, %v2008
    %v2010 = vrot.slane %v884, %v2009
    %v2011 = vlaneseq
    %v2012 = vshrl.u32 %v2011, 7
    %v2013 = vsub.s32 6, %v2012
    %v2014 = vrot.slane %v884, %v2013
    %v2015 = vlaneseq
    %v2016 = vshrl.u32 %v2015, 7
    %v2017 = vsub.s32 7, %v2016
    %v2018 = vrot.slane %v884, %v2017
    %v2019 = vlaneseq
    %v2020 = vshrl.u32 %v2019, 7
    %v2021 = vsub.s32 0, %v2020
    %v2022 = vrot.slane %v886, %v2021
    %v2023 = vlaneseq
    %v2024 = vshrl.u32 %v2023, 7
    %v2025 = vsub.s32 1, %v2024
    %v2026 = vrot.slane %v886, %v2025
    %v2027 = vlaneseq
    %v2028 = vshrl.u32 %v2027, 7
    %v2029 = vsub.s32 2, %v2028
    %v2030 = vrot.slane %v886, %v2029
    %v2031 = vlaneseq
    %v2032 = vshrl.u32 %v2031, 7
    %v2033 = vsub.s32 3, %v2032
    %v2034 = vrot.slane %v886, %v2033
    %v2035 = vlaneseq
    %v2036 = vshrl.u32 %v2035, 7
    %v2037 = vsub.s32 4, %v2036
    %v2038 = vrot.slane %v886, %v2037
    %v2039 = vlaneseq
    %v2040 = vshrl.u32 %v2039, 7
    %v2041 = vsub.s32 5, %v2040
    %v2042 = vrot.slane %v886, %v2041
    %v2043 = vlaneseq
    %v2044 = vshrl.u32 %v2043, 7
    %v2045 = vsub.s32 6, %v2044
    %v2046 = vrot.slane %v886, %v2045
    %v2047 = vlaneseq
    %v2048 = vshrl.u32 %v2047, 7
    %v2049 = vsub.s32 7, %v2048
    %v2050 = vrot.slane %v886, %v2049
    %v2051 = vlaneseq
    %v2052 = vshrl.u32 %v2051, 7
    %v2053 = vsub.s32 0, %v2052
    %v2054 = vrot.slane %v888, %v2053
    %v2055 = vlaneseq
    %v2056 = vshrl.u32 %v2055, 7
    %v2057 = vsub.s32 1, %v2056
    %v2058 = vrot.slane %v888, %v2057
    %v2059 = vlaneseq
    %v2060 = vshrl.u32 %v2059, 7
    %v2061 = vsub.s32 2, %v2060
    %v2062 = vrot.slane %v888, %v2061
    %v2063 = vlaneseq
    %v2064 = vshrl.u32 %v2063, 7
    %v2065 = vsub.s32 3, %v2064
    %v2066 = vrot.slane %v888, %v2065
    %v2067 = vlaneseq
    %v2068 = vshrl.u32 %v2067, 7
    %v2069 = vsub.s32 4, %v2068
    %v2070 = vrot.slane %v888, %v2069
    %v2071 = vlaneseq
    %v2072 = vshrl.u32 %v2071, 7
    %v2073 = vsub.s32 5, %v2072
    %v2074 = vrot.slane %v888, %v2073
    %v2075 = vlaneseq
    %v2076 = vshrl.u32 %v2075, 7
    %v2077 = vsub.s32 6, %v2076
    %v2078 = vrot.slane %v888, %v2077
    %v2079 = vlaneseq
    %v2080 = vshrl.u32 %v2079, 7
    %v2081 = vsub.s32 7, %v2080
    %v2082 = vrot.slane %v888, %v2081
    %v2083 = vlaneseq
    %v2084 = vshrl.u32 %v2083, 7
    %v2085 = vsub.s32 0, %v2084
    %v2086 = vrot.slane %v890, %v2085
    %v2087 = vlaneseq
    %v2088 = vshrl.u32 %v2087, 7
    %v2089 = vsub.s32 1, %v2088
    %v2090 = vrot.slane %v890, %v2089
    %v2091 = vlaneseq
    %v2092 = vshrl.u32 %v2091, 7
    %v2093 = vsub.s32 2, %v2092
    %v2094 = vrot.slane %v890, %v2093
    %v2095 = vlaneseq
    %v2096 = vshrl.u32 %v2095, 7
    %v2097 = vsub.s32 3, %v2096
    %v2098 = vrot.slane %v890, %v2097
    %v2099 = vlaneseq
    %v2100 = vshrl.u32 %v2099, 7
    %v2101 = vsub.s32 4, %v2100
    %v2102 = vrot.slane %v890, %v2101
    %v2103 = vlaneseq
    %v2104 = vshrl.u32 %v2103, 7
    %v2105 = vsub.s32 5, %v2104
    %v2106 = vrot.slane %v890, %v2105
    %v2107 = vlaneseq
    %v2108 = vshrl.u32 %v2107, 7
    %v2109 = vsub.s32 6, %v2108
    %v2110 = vrot.slane %v890, %v2109
    %v2111 = vlaneseq
    %v2112 = vshrl.u32 %v2111, 7
    %v2113 = vsub.s32 7, %v2112
    %v2114 = vrot.slane %v890, %v2113
    %v2115 = vlaneseq
    %v2116 = vshrl.u32 %v2115, 7
    %v2117 = vsub.s32 0, %v2116
    %v2118 = vrot.slane %v892, %v2117
    %v2119 = vlaneseq
    %v2120 = vshrl.u32 %v2119, 7
    %v2121 = vsub.s32 1, %v2120
    %v2122 = vrot.slane %v892, %v2121
    %v2123 = vlaneseq
    %v2124 = vshrl.u32 %v2123, 7
    %v2125 = vsub.s32 2, %v2124
    %v2126 = vrot.slane %v892, %v2125
    %v2127 = vlaneseq
    %v2128 = vshrl.u32 %v2127, 7
    %v2129 = vsub.s32 3, %v2128
    %v2130 = vrot.slane %v892, %v2129
    %v2131 = vlaneseq
    %v2132 = vshrl.u32 %v2131, 7
    %v2133 = vsub.s32 4, %v2132
    %v2134 = vrot.slane %v892, %v2133
    %v2135 = vlaneseq
    %v2136 = vshrl.u32 %v2135, 7
    %v2137 = vsub.s32 5, %v2136
    %v2138 = vrot.slane %v892, %v2137
    %v2139 = vlaneseq
    %v2140 = vshrl.u32 %v2139, 7
    %v2141 = vsub.s32 6, %v2140
    %v2142 = vrot.slane %v892, %v2141
    %v2143 = vlaneseq
    %v2144 = vshrl.u32 %v2143, 7
    %v2145 = vsub.s32 7, %v2144
    %v2146 = vrot.slane %v892, %v2145
    %v2147 = vlaneseq
    %v2148 = vshrl.u32 %v2147, 7
    %v2149 = vsub.s32 0, %v2148
    %v2150 = vrot.slane %v894, %v2149
    %v2151 = vlaneseq
    %v2152 = vshrl.u32 %v2151, 7
    %v2153 = vsub.s32 1, %v2152
    %v2154 = vrot.slane %v894, %v2153
    %v2155 = vlaneseq
    %v2156 = vshrl.u32 %v2155, 7
    %v2157 = vsub.s32 2, %v2156
    %v2158 = vrot.slane %v894, %v2157
    %v2159 = vlaneseq
    %v2160 = vshrl.u32 %v2159, 7
    %v2161 = vsub.s32 3, %v2160
    %v2162 = vrot.slane %v894, %v2161
    %v2163 = vlaneseq
    %v2164 = vshrl.u32 %v2163, 7
    %v2165 = vsub.s32 4, %v2164
    %v2166 = vrot.slane %v894, %v2165
    %v2167 = vlaneseq
    %v2168 = vshrl.u32 %v2167, 7
    %v2169 = vsub.s32 5, %v2168
    %v2170 = vrot.slane %v894, %v2169
    %v2171 = vlaneseq
    %v2172 = vshrl.u32 %v2171, 7
    %v2173 = vsub.s32 6, %v2172
    %v2174 = vrot.slane %v894, %v2173
    %v2175 = vlaneseq
    %v2176 = vshrl.u32 %v2175, 7
    %v2177 = vsub.s32 7, %v2176
    %v2178 = vrot.slane %v894, %v2177
    %v2179 = vlaneseq
    %v2180 = vshrl.u32 %v2179, 7
    %v2181 = vsub.s32 0, %v2180
    %v2182 = vrot.slane %v896, %v2181
    %v2183 = vlaneseq
    %v2184 = vshrl.u32 %v2183, 7
    %v2185 = vsub.s32 1, %v2184
    %v2186 = vrot.slane %v896, %v2185
    %v2187 = vlaneseq
    %v2188 = vshrl.u32 %v2187, 7
    %v2189 = vsub.s32 2, %v2188
    %v2190 = vrot.slane %v896, %v2189
    %v2191 = vlaneseq
    %v2192 = vshrl.u32 %v2191, 7
    %v2193 = vsub.s32 3, %v2192
    %v2194 = vrot.slane %v896, %v2193
    %v2195 = vlaneseq
    %v2196 = vshrl.u32 %v2195, 7
    %v2197 = vsub.s32 4, %v2196
    %v2198 = vrot.slane %v896, %v2197
    %v2199 = vlaneseq
    %v2200 = vshrl.u32 %v2199, 7
    %v2201 = vsub.s32 5, %v2200
    %v2202 = vrot.slane %v896, %v2201
    %v2203 = vlaneseq
    %v2204 = vshrl.u32 %v2203, 7
    %v2205 = vsub.s32 6, %v2204
    %v2206 = vrot.slane %v896, %v2205
    %v2207 = vlaneseq
    %v2208 = vshrl.u32 %v2207, 7
    %v2209 = vsub.s32 7, %v2208
    %v2210 = vrot.slane %v896, %v2209
    %v2211 = vlaneseq
    %v2212 = vshrl.u32 %v2211, 7
    %v2213 = vsub.s32 0, %v2212
    %v2214 = vrot.slane %v898, %v2213
    %v2215 = vlaneseq
    %v2216 = vshrl.u32 %v2215, 7
    %v2217 = vsub.s32 1, %v2216
    %v2218 = vrot.slane %v898, %v2217
    %v2219 = vlaneseq
    %v2220 = vshrl.u32 %v2219, 7
    %v2221 = vsub.s32 2, %v2220
    %v2222 = vrot.slane %v898, %v2221
    %v2223 = vlaneseq
    %v2224 = vshrl.u32 %v2223, 7
    %v2225 = vsub.s32 3, %v2224
    %v2226 = vrot.slane %v898, %v2225
    %v2227 = vlaneseq
    %v2228 = vshrl.u32 %v2227, 7
    %v2229 = vsub.s32 4, %v2228
    %v2230 = vrot.slane %v898, %v2229
    %v2231 = vlaneseq
    %v2232 = vshrl.u32 %v2231, 7
    %v2233 = vsub.s32 5, %v2232
    %v2234 = vrot.slane %v898, %v2233
    %v2235 = vlaneseq
    %v2236 = vshrl.u32 %v2235, 7
    %v2237 = vsub.s32 6, %v2236
    %v2238 = vrot.slane %v898, %v2237
    %v2239 = vlaneseq
    %v2240 = vshrl.u32 %v2239, 7
    %v2241 = vsub.s32 7, %v2240
    %v2242 = vrot.slane %v898, %v2241
    %v2243 = vlaneseq
    %v2244 = vshrl.u32 %v2243, 7
    %v2245 = vsub.s32 0, %v2244
    %v2246 = vrot.slane %v900, %v2245
    %v2247 = vlaneseq
    %v2248 = vshrl.u32 %v2247, 7
    %v2249 = vsub.s32 1, %v2248
    %v2250 = vrot.slane %v900, %v2249
    %v2251 = vlaneseq
    %v2252 = vshrl.u32 %v2251, 7
    %v2253 = vsub.s32 2, %v2252
    %v2254 = vrot.slane %v900, %v2253
    %v2255 = vlaneseq
    %v2256 = vshrl.u32 %v2255, 7
    %v2257 = vsub.s32 3, %v2256
    %v2258 = vrot.slane %v900, %v2257
    %v2259 = vlaneseq
    %v2260 = vshrl.u32 %v2259, 7
    %v2261 = vsub.s32 4, %v2260
    %v2262 = vrot.slane %v900, %v2261
    %v2263 = vlaneseq
    %v2264 = vshrl.u32 %v2263, 7
    %v2265 = vsub.s32 5, %v2264
    %v2266 = vrot.slane %v900, %v2265
    %v2267 = vlaneseq
    %v2268 = vshrl.u32 %v2267, 7
    %v2269 = vsub.s32 6, %v2268
    %v2270 = vrot.slane %v900, %v2269
    %v2271 = vlaneseq
    %v2272 = vshrl.u32 %v2271, 7
    %v2273 = vsub.s32 7, %v2272
    %v2274 = vrot.slane %v900, %v2273
    %v2275 = vlaneseq
    %v2276 = vshrl.u32 %v2275, 7
    %v2277 = vsub.s32 0, %v2276
    %v2278 = vrot.slane %v902, %v2277
    %v2279 = vlaneseq
    %v2280 = vshrl.u32 %v2279, 7
    %v2281 = vsub.s32 1, %v2280
    %v2282 = vrot.slane %v902, %v2281
    %v2283 = vlaneseq
    %v2284 = vshrl.u32 %v2283, 7
    %v2285 = vsub.s32 2, %v2284
    %v2286 = vrot.slane %v902, %v2285
    %v2287 = vlaneseq
    %v2288 = vshrl.u32 %v2287, 7
    %v2289 = vsub.s32 3, %v2288
    %v2290 = vrot.slane %v902, %v2289
    %v2291 = vlaneseq
    %v2292 = vshrl.u32 %v2291, 7
    %v2293 = vsub.s32 4, %v2292
    %v2294 = vrot.slane %v902, %v2293
    %v2295 = vlaneseq
    %v2296 = vshrl.u32 %v2295, 7
    %v2297 = vsub.s32 5, %v2296
    %v2298 = vrot.slane %v902, %v2297
    %v2299 = vlaneseq
    %v2300 = vshrl.u32 %v2299, 7
    %v2301 = vsub.s32 6, %v2300
    %v2302 = vrot.slane %v902, %v2301
    %v2303 = vlaneseq
    %v2304 = vshrl.u32 %v2303, 7
    %v2305 = vsub.s32 7, %v2304
    %v2306 = vrot.slane %v902, %v2305
    %v2307 = vlaneseq
    %v2308 = vshrl.u32 %v2307, 7
    %v2309 = vsub.s32 0, %v2308
    %v2310 = vrot.slane %v904, %v2309
    %v2311 = vlaneseq
    %v2312 = vshrl.u32 %v2311, 7
    %v2313 = vsub.s32 1, %v2312
    %v2314 = vrot.slane %v904, %v2313
    %v2315 = vlaneseq
    %v2316 = vshrl.u32 %v2315, 7
    %v2317 = vsub.s32 2, %v2316
    %v2318 = vrot.slane %v904, %v2317
    %v2319 = vlaneseq
    %v2320 = vshrl.u32 %v2319, 7
    %v2321 = vsub.s32 3, %v2320
    %v2322 = vrot.slane %v904, %v2321
    %v2323 = vlaneseq
    %v2324 = vshrl.u32 %v2323, 7
    %v2325 = vsub.s32 4, %v2324
    %v2326 = vrot.slane %v904, %v2325
    %v2327 = vlaneseq
    %v2328 = vshrl.u32 %v2327, 7
    %v2329 = vsub.s32 5, %v2328
    %v2330 = vrot.slane %v904, %v2329
    %v2331 = vlaneseq
    %v2332 = vshrl.u32 %v2331, 7
    %v2333 = vsub.s32 6, %v2332
    %v2334 = vrot.slane %v904, %v2333
    %v2335 = vlaneseq
    %v2336 = vshrl.u32 %v2335, 7
    %v2337 = vsub.s32 7, %v2336
    %v2338 = vrot.slane %v904, %v2337
    %v2339 = vlaneseq
    %v2340 = vshrl.u32 %v2339, 7
    %v2341 = vsub.s32 0, %v2340
    %v2342 = vrot.slane %v906, %v2341
    %v2343 = vlaneseq
    %v2344 = vshrl.u32 %v2343, 7
    %v2345 = vsub.s32 1, %v2344
    %v2346 = vrot.slane %v906, %v2345
    %v2347 = vlaneseq
    %v2348 = vshrl.u32 %v2347, 7
    %v2349 = vsub.s32 2, %v2348
    %v2350 = vrot.slane %v906, %v2349
    %v2351 = vlaneseq
    %v2352 = vshrl.u32 %v2351, 7
    %v2353 = vsub.s32 3, %v2352
    %v2354 = vrot.slane %v906, %v2353
    %v2355 = vlaneseq
    %v2356 = vshrl.u32 %v2355, 7
    %v2357 = vsub.s32 4, %v2356
    %v2358 = vrot.slane %v906, %v2357
    %v2359 = vlaneseq
    %v2360 = vshrl.u32 %v2359, 7
    %v2361 = vsub.s32 5, %v2360
    %v2362 = vrot.slane %v906, %v2361
    %v2363 = vlaneseq
    %v2364 = vshrl.u32 %v2363, 7
    %v2365 = vsub.s32 6, %v2364
    %v2366 = vrot.slane %v906, %v2365
    %v2367 = vlaneseq
    %v2368 = vshrl.u32 %v2367, 7
    %v2369 = vsub.s32 7, %v2368
    %v2370 = vrot.slane %v906, %v2369
    %v2371 = vlaneseq
    %v2372 = vshrl.u32 %v2371, 7
    %v2373 = vsub.s32 0, %v2372
    %v2374 = vrot.slane %v908, %v2373
    %v2375 = vlaneseq
    %v2376 = vshrl.u32 %v2375, 7
    %v2377 = vsub.s32 1, %v2376
    %v2378 = vrot.slane %v908, %v2377
    %v2379 = vlaneseq
    %v2380 = vshrl.u32 %v2379, 7
    %v2381 = vsub.s32 2, %v2380
    %v2382 = vrot.slane %v908, %v2381
    %v2383 = vlaneseq
    %v2384 = vshrl.u32 %v2383, 7
    %v2385 = vsub.s32 3, %v2384
    %v2386 = vrot.slane %v908, %v2385
    %v2387 = vlaneseq
    %v2388 = vshrl.u32 %v2387, 7
    %v2389 = vsub.s32 4, %v2388
    %v2390 = vrot.slane %v908, %v2389
    %v2391 = vlaneseq
    %v2392 = vshrl.u32 %v2391, 7
    %v2393 = vsub.s32 5, %v2392
    %v2394 = vrot.slane %v908, %v2393
    %v2395 = vlaneseq
    %v2396 = vshrl.u32 %v2395, 7
    %v2397 = vsub.s32 6, %v2396
    %v2398 = vrot.slane %v908, %v2397
    %v2399 = vlaneseq
    %v2400 = vshrl.u32 %v2399, 7
    %v2401 = vsub.s32 7, %v2400
    %v2402 = vrot.slane %v908, %v2401
    %v2403 = vlaneseq
    %v2404 = vshrl.u32 %v2403, 7
    %v2405 = vsub.s32 0, %v2404
    %v2406 = vrot.slane %v910, %v2405
    %v2407 = vlaneseq
    %v2408 = vshrl.u32 %v2407, 7
    %v2409 = vsub.s32 1, %v2408
    %v2410 = vrot.slane %v910, %v2409
    %v2411 = vlaneseq
    %v2412 = vshrl.u32 %v2411, 7
    %v2413 = vsub.s32 2, %v2412
    %v2414 = vrot.slane %v910, %v2413
    %v2415 = vlaneseq
    %v2416 = vshrl.u32 %v2415, 7
    %v2417 = vsub.s32 3, %v2416
    %v2418 = vrot.slane %v910, %v2417
    %v2419 = vlaneseq
    %v2420 = vshrl.u32 %v2419, 7
    %v2421 = vsub.s32 4, %v2420
    %v2422 = vrot.slane %v910, %v2421
    %v2423 = vlaneseq
    %v2424 = vshrl.u32 %v2423, 7
    %v2425 = vsub.s32 5, %v2424
    %v2426 = vrot.slane %v910, %v2425
    %v2427 = vlaneseq
    %v2428 = vshrl.u32 %v2427, 7
    %v2429 = vsub.s32 6, %v2428
    %v2430 = vrot.slane %v910, %v2429
    %v2431 = vlaneseq
    %v2432 = vshrl.u32 %v2431, 7
    %v2433 = vsub.s32 7, %v2432
    %v2434 = vrot.slane %v910, %v2433
    %v2435 = vlaneseq
    %v2436 = vshrl.u32 %v2435, 7
    %v2437 = vsub.s32 0, %v2436
    %v2438 = vrot.slane %v912, %v2437
    %v2439 = vlaneseq
    %v2440 = vshrl.u32 %v2439, 7
    %v2441 = vsub.s32 1, %v2440
    %v2442 = vrot.slane %v912, %v2441
    %v2443 = vlaneseq
    %v2444 = vshrl.u32 %v2443, 7
    %v2445 = vsub.s32 2, %v2444
    %v2446 = vrot.slane %v912, %v2445
    %v2447 = vlaneseq
    %v2448 = vshrl.u32 %v2447, 7
    %v2449 = vsub.s32 3, %v2448
    %v2450 = vrot.slane %v912, %v2449
    %v2451 = vlaneseq
    %v2452 = vshrl.u32 %v2451, 7
    %v2453 = vsub.s32 4, %v2452
    %v2454 = vrot.slane %v912, %v2453
    %v2455 = vlaneseq
    %v2456 = vshrl.u32 %v2455, 7
    %v2457 = vsub.s32 5, %v2456
    %v2458 = vrot.slane %v912, %v2457
    %v2459 = vlaneseq
    %v2460 = vshrl.u32 %v2459, 7
    %v2461 = vsub.s32 6, %v2460
    %v2462 = vrot.slane %v912, %v2461
    %v2463 = vlaneseq
    %v2464 = vshrl.u32 %v2463, 7
    %v2465 = vsub.s32 7, %v2464
    %v2466 = vrot.slane %v912, %v2465
    %v2467 = vlaneseq
    %v2468 = vshrl.u32 %v2467, 7
    %v2469 = vsub.s32 0, %v2468
    %v2470 = vrot.slane %v914, %v2469
    %v2471 = vlaneseq
    %v2472 = vshrl.u32 %v2471, 7
    %v2473 = vsub.s32 1, %v2472
    %v2474 = vrot.slane %v914, %v2473
    %v2475 = vlaneseq
    %v2476 = vshrl.u32 %v2475, 7
    %v2477 = vsub.s32 2, %v2476
    %v2478 = vrot.slane %v914, %v2477
    %v2479 = vlaneseq
    %v2480 = vshrl.u32 %v2479, 7
    %v2481 = vsub.s32 3, %v2480
    %v2482 = vrot.slane %v914, %v2481
    %v2483 = vlaneseq
    %v2484 = vshrl.u32 %v2483, 7
    %v2485 = vsub.s32 4, %v2484
    %v2486 = vrot.slane %v914, %v2485
    %v2487 = vlaneseq
    %v2488 = vshrl.u32 %v2487, 7
    %v2489 = vsub.s32 5, %v2488
    %v2490 = vrot.slane %v914, %v2489
    %v2491 = vlaneseq
    %v2492 = vshrl.u32 %v2491, 7
    %v2493 = vsub.s32 6, %v2492
    %v2494 = vrot.slane %v914, %v2493
    %v2495 = vlaneseq
    %v2496 = vshrl.u32 %v2495, 7
    %v2497 = vsub.s32 7, %v2496
    %v2498 = vrot.slane %v914, %v2497
    %v2883 = vmul.f32 %v52, %v966
    %v2884 = vmul.f32 %v53, %v970
    %v2885 = vmul.f32 %v54, %v974
    %v2886 = vmul.f32 %v55, %v978
    %v2887 = vmul.f32 %v56, %v982
    %v2888 = vmul.f32 %v57, %v986
    %v2889 = vmul.f32 %v58, %v990
    %v2890 = vmul.f32 %v59, %v994
    %v2891 = vmul.f32 %v60, %v998
    %v2892 = vmul.f32 %v61, %v1002
    %v2893 = vmul.f32 %v62, %v1006
    %v2894 = vmul.f32 %v63, %v1010
    %v2895 = vmul.f32 %v64, %v1014
    %v2896 = vmul.f32 %v65, %v1018
    %v2897 = vmul.f32 %v66, %v1022
    %v2898 = vmul.f32 %v67, %v1026
    %v2899 = vmul.f32 %v68, %v1030
    %v2900 = vmul.f32 %v69, %v1034
    %v2901 = vmul.f32 %v70, %v1038
    %v2902 = vmul.f32 %v71, %v1042
    %v2903 = vmul.f32 %v72, %v1046
    %v2904 = vmul.f32 %v73, %v1050
    %v2905 = vmul.f32 %v74, %v1054
    %v2906 = vmul.f32 %v75, %v1058
    %v2907 = vmul.f32 %v76, %v1062
    %v2908 = vmul.f32 %v77, %v1066
    %v2909 = vmul.f32 %v78, %v1070
    %v2910 = vmul.f32 %v79, %v1074
    %v2911 = vmul.f32 %v80, %v1078
    %v2912 = vmul.f32 %v81, %v1082
    %v2913 = vmul.f32 %v82, %v1086
    %v2914 = vmul.f32 %v83, %v1090
    %v2915 = vmul.f32 %v84, %v1094
    %v2916 = vmul.f32 %v85, %v1098
    %v2917 = vmul.f32 %v86, %v1102
    %v2918 = vmul.f32 %v87, %v1106
    %v2919 = vmul.f32 %v88, %v1110
    %v2920 = vmul.f32 %v89, %v1114
    %v2921 = vmul.f32 %v90, %v1118
    %v2922 = vmul.f32 %v91, %v1122
    %v2923 = vmul.f32 %v92, %v1126
    %v2924 = vmul.f32 %v93, %v1130
    %v2925 = vmul.f32 %v94, %v1134
    %v2926 = vmul.f32 %v95, %v1138
    %v2927 = vmul.f32 %v96, %v1142
    %v2928 = vmul.f32 %v97, %v1146
    %v2929 = vmul.f32 %v98, %v1150
    %v2930 = vmul.f32 %v99, %v1154
    %v2931 = vmul.f32 %v100, %v1158
    %v2932 = vmul.f32 %v101, %v1162
    %v2933 = vmul.f32 %v102, %v1166
    %v2934 = vmul.f32 %v103, %v1170
    %v2935 = vmul.f32 %v104, %v1174
    %v2936 = vmul.f32 %v105, %v1178
    %v2937 = vmul.f32 %v106, %v1182
    %v2938 = vmul.f32 %v107, %v1186
    %v2939 = vmul.f32 %v108, %v1190
    %v2940 = vmul.f32 %v109, %v1194
    %v2941 = vmul.f32 %v110, %v1198
    %v2942 = vmul.f32 %v111, %v1202
    %v2943 = vmul.f32 %v112, %v1206
    %v2944 = vmul.f32 %v113, %v1210
    %v2945 = vmul.f32 %v114, %v1214
    %v2946 = vmul.f32 %v115, %v1218
    %v2947 = vmul.f32 %v116, %v1222
    %v2948 = vmul.f32 %v117, %v1226
    %v2949 = vmul.f32 %v118, %v1230
    %v2950 = vmul.f32 %v119, %v1234
    %v2951 = vmul.f32 %v120, %v1238
    %v2952 = vmul.f32 %v121, %v1242
    %v2953 = vmul.f32 %v122, %v1246
    %v2954 = vmul.f32 %v123, %v1250
    %v2955 = vmul.f32 %v124, %v1254
    %v2956 = vmul.f32 %v125, %v1258
    %v2957 = vmul.f32 %v126, %v1262
    %v2958 = vmul.f32 %v127, %v1266
    %v2959 = vmul.f32 %v128, %v1270
    %v2960 = vmul.f32 %v129, %v1274
    %v2961 = vmul.f32 %v130, %v1278
    %v2962 = vmul.f32 %v131, %v1282
    %v2963 = vmul.f32 %v132, %v1286
    %v2964 = vmul.f32 %v133, %v1290
    %v2965 = vmul.f32 %v134, %v1294
    %v2966 = vmul.f32 %v135, %v1298
    %v2967 = vmul.f32 %v136, %v1302
    %v2968 = vmul.f32 %v137, %v1306
    %v2969 = vmul.f32 %v138, %v1310
    %v2970 = vmul.f32 %v139, %v1314
    %v2971 = vmul.f32 %v140, %v1318
    %v2972 = vmul.f32 %v141, %v1322
    %v2973 = vmul.f32 %v142, %v1326
    %v2974 = vmul.f32 %v143, %v1330
    %v2975 = vmul.f32 %v144, %v1334
    %v2976 = vmul.f32 %v145, %v1338
    %v2977 = vmul.f32 %v146, %v1342
    %v2978 = vmul.f32 %v147, %v1346
    %v2979 = vmul.f32 %v148, %v1350
    %v2980 = vmul.f32 %v149, %v1354
    %v2981 = vmul.f32 %v150, %v1358
    %v2982 = vmul.f32 %v151, %v1362
    %v2983 = vmul.f32 %v152, %v1366
    %v2984 = vmul.f32 %v153, %v1370
    %v2985 = vmul.f32 %v154, %v1374
    %v2986 = vmul.f32 %v155, %v1378
    %v2987 = vmul.f32 %v156, %v1382
    %v2988 = vmul.f32 %v157, %v1386
    %v2989 = vmul.f32 %v158, %v1390
    %v2990 = vmul.f32 %v159, %v1394
    %v2991 = vmul.f32 %v160, %v1398
    %v2992 = vmul.f32 %v161, %v1402
    %v2993 = vmul.f32 %v162, %v1406
    %v2994 = vmul.f32 %v163, %v1410
    %v2995 = vmul.f32 %v164, %v1414
    %v2996 = vmul.f32 %v165, %v1418
    %v2997 = vmul.f32 %v166, %v1422
    %v2998 = vmul.f32 %v167, %v1426
    %v2999 = vmul.f32 %v168, %v1430
    %v3000 = vmul.f32 %v169, %v1434
    %v3001 = vmul.f32 %v170, %v1438
    %v3002 = vmul.f32 %v171, %v1442
    %v3003 = vmul.f32 %v172, %v1446
    %v3004 = vmul.f32 %v173, %v1450
    %v3005 = vmul.f32 %v174, %v1454
    %v3006 = vmul.f32 %v175, %v1458
    %v3007 = vmul.f32 %v176, %v1462
    %v3008 = vmul.f32 %v177, %v1466
    %v3009 = vmul.f32 %v178, %v1470
    %v3010 = vmul.f32 %v179, %v1474
    %v3011 = vmul.f32 %v180, %v1478
    %v3012 = vmul.f32 %v181, %v1482
    %v3013 = vmul.f32 %v182, %v1486
    %v3014 = vmul.f32 %v183, %v1490
    %v3015 = vmul.f32 %v184, %v1494
    %v3016 = vmul.f32 %v185, %v1498
    %v3017 = vmul.f32 %v186, %v1502
    %v3018 = vmul.f32 %v187, %v1506
    %v3019 = vmul.f32 %v188, %v1510
    %v3020 = vmul.f32 %v189, %v1514
    %v3021 = vmul.f32 %v190, %v1518
    %v3022 = vmul.f32 %v191, %v1522
    %v3023 = vmul.f32 %v192, %v1526
    %v3024 = vmul.f32 %v193, %v1530
    %v3025 = vmul.f32 %v194, %v1534
    %v3026 = vmul.f32 %v195, %v1538
    %v3027 = vmul.f32 %v196, %v1542
    %v3028 = vmul.f32 %v197, %v1546
    %v3029 = vmul.f32 %v198, %v1550
    %v3030 = vmul.f32 %v199, %v1554
    %v3031 = vmul.f32 %v200, %v1558
    %v3032 = vmul.f32 %v201, %v1562
    %v3033 = vmul.f32 %v202, %v1566
    %v3034 = vmul.f32 %v203, %v1570
    %v3035 = vmul.f32 %v204, %v1574
    %v3036 = vmul.f32 %v205, %v1578
    %v3037 = vmul.f32 %v206, %v1582
    %v3038 = vmul.f32 %v207, %v1586
    %v3039 = vmul.f32 %v208, %v1590
    %v3040 = vmul.f32 %v209, %v1594
    %v3041 = vmul.f32 %v210, %v1598
    %v3042 = vmul.f32 %v211, %v1602
    %v3043 = vmul.f32 %v212, %v1606
    %v3044 = vmul.f32 %v213, %v1610
    %v3045 = vmul.f32 %v214, %v1614
    %v3046 = vmul.f32 %v215, %v1618
    %v3047 = vmul.f32 %v216, %v1622
    %v3048 = vmul.f32 %v217, %v1626
    %v3049 = vmul.f32 %v218, %v1630
    %v3050 = vmul.f32 %v219, %v1634
    %v3051 = vmul.f32 %v220, %v1638
    %v3052 = vmul.f32 %v221, %v1642
    %v3053 = vmul.f32 %v222, %v1646
    %v3054 = vmul.f32 %v223, %v1650
    %v3055 = vmul.f32 %v224, %v1654
    %v3056 = vmul.f32 %v225, %v1658
    %v3057 = vmul.f32 %v226, %v1662
    %v3058 = vmul.f32 %v227, %v1666
    %v3059 = vmul.f32 %v228, %v1670
    %v3060 = vmul.f32 %v229, %v1674
    %v3061 = vmul.f32 %v230, %v1678
    %v3062 = vmul.f32 %v231, %v1682
    %v3063 = vmul.f32 %v232, %v1686
    %v3064 = vmul.f32 %v233, %v1690
    %v3065 = vmul.f32 %v234, %v1694
    %v3066 = vmul.f32 %v235, %v1698
    %v3067 = vmul.f32 %v236, %v1702
    %v3068 = vmul.f32 %v237, %v1706
    %v3069 = vmul.f32 %v238, %v1710
    %v3070 = vmul.f32 %v239, %v1714
    %v3071 = vmul.f32 %v240, %v1718
    %v3072 = vmul.f32 %v241, %v1722
    %v3073 = vmul.f32 %v242, %v1726
    %v3074 = vmul.f32 %v243, %v1730
    %v3075 = vmul.f32 %v244, %v1734
    %v3076 = vmul.f32 %v245, %v1738
    %v3077 = vmul.f32 %v246, %v1742
    %v3078 = vmul.f32 %v247, %v1746
    %v3079 = vmul.f32 %v248, %v1750
    %v3080 = vmul.f32 %v249, %v1754
    %v3081 = vmul.f32 %v250, %v1758
    %v3082 = vmul.f32 %v251, %v1762
    %v3083 = vmul.f32 %v252, %v1766
    %v3084 = vmul.f32 %v253, %v1770
    %v3085 = vmul.f32 %v254, %v1774
    %v3086 = vmul.f32 %v255, %v1778
    %v3087 = vmul.f32 %v256, %v1782
    %v3088 = vmul.f32 %v257, %v1786
    %v3089 = vmul.f32 %v258, %v1790
    %v3090 = vmul.f32 %v259, %v1794
    %v3091 = vmul.f32 %v260, %v1798
    %v3092 = vmul.f32 %v261, %v1802
    %v3093 = vmul.f32 %v262, %v1806
    %v3094 = vmul.f32 %v263, %v1810
    %v3095 = vmul.f32 %v264, %v1814
    %v3096 = vmul.f32 %v265, %v1818
    %v3097 = vmul.f32 %v266, %v1822
    %v3098 = vmul.f32 %v267, %v1826
    %v3099 = vmul.f32 %v268, %v1830
    %v3100 = vmul.f32 %v269, %v1834
    %v3101 = vmul.f32 %v270, %v1838
    %v3102 = vmul.f32 %v271, %v1842
    %v3103 = vmul.f32 %v272, %v1846
    %v3104 = vmul.f32 %v273, %v1850
    %v3105 = vmul.f32 %v274, %v1854
    %v3106 = vmul.f32 %v275, %v1858
    %v3107 = vmul.f32 %v276, %v1862
    %v3108 = vmul.f32 %v277, %v1866
    %v3109 = vmul.f32 %v278, %v1870
    %v3110 = vmul.f32 %v279, %v1874
    %v3111 = vmul.f32 %v280, %v1878
    %v3112 = vmul.f32 %v281, %v1882
    %v3113 = vmul.f32 %v282, %v1886
    %v3114 = vmul.f32 %v283, %v1890
    %v3115 = vmul.f32 %v284, %v1894
    %v3116 = vmul.f32 %v285, %v1898
    %v3117 = vmul.f32 %v286, %v1902
    %v3118 = vmul.f32 %v287, %v1906
    %v3119 = vmul.f32 %v288, %v1910
    %v3120 = vmul.f32 %v289, %v1914
    %v3121 = vmul.f32 %v290, %v1918
    %v3122 = vmul.f32 %v291, %v1922
    %v3123 = vmul.f32 %v292, %v1926
    %v3124 = vmul.f32 %v293, %v1930
    %v3125 = vmul.f32 %v294, %v1934
    %v3126 = vmul.f32 %v295, %v1938
    %v3127 = vmul.f32 %v296, %v1942
    %v3128 = vmul.f32 %v297, %v1946
    %v3129 = vmul.f32 %v298, %v1950
    %v3130 = vmul.f32 %v299, %v1954
    %v3131 = vmul.f32 %v300, %v1958
    %v3132 = vmul.f32 %v301, %v1962
    %v3133 = vmul.f32 %v302, %v1966
    %v3134 = vmul.f32 %v303, %v1970
    %v3135 = vmul.f32 %v304, %v1974
    %v3136 = vmul.f32 %v305, %v1978
    %v3137 = vmul.f32 %v306, %v1982
    %v3138 = vmul.f32 %v307, %v1986
    %v3139 = vmul.f32 %v308, %v1990
    %v3140 = vmul.f32 %v309, %v1994
    %v3141 = vmul.f32 %v310, %v1998
    %v3142 = vmul.f32 %v311, %v2002
    %v3143 = vmul.f32 %v312, %v2006
    %v3144 = vmul.f32 %v313, %v2010
    %v3145 = vmul.f32 %v314, %v2014
    %v3146 = vmul.f32 %v315, %v2018
    %v3147 = vmul.f32 %v316, %v2022
    %v3148 = vmul.f32 %v317, %v2026
    %v3149 = vmul.f32 %v318, %v2030
    %v3150 = vmul.f32 %v319, %v2034
    %v3151 = vmul.f32 %v320, %v2038
    %v3152 = vmul.f32 %v321, %v2042
    %v3153 = vmul.f32 %v322, %v2046
    %v3154 = vmul.f32 %v323, %v2050
    %v3155 = vmul.f32 %v324, %v2054
    %v3156 = vmul.f32 %v325, %v2058
    %v3157 = vmul.f32 %v326, %v2062
    %v3158 = vmul.f32 %v327, %v2066
    %v3159 = vmul.f32 %v328, %v2070
    %v3160 = vmul.f32 %v329, %v2074
    %v3161 = vmul.f32 %v330, %v2078
    %v3162 = vmul.f32 %v331, %v2082
    %v3163 = vmul.f32 %v332, %v2086
    %v3164 = vmul.f32 %v333, %v2090
    %v3165 = vmul.f32 %v334, %v2094
    %v3166 = vmul.f32 %v335, %v2098
    %v3167 = vmul.f32 %v336, %v2102
    %v3168 = vmul.f32 %v337, %v2106
    %v3169 = vmul.f32 %v338, %v2110
    %v3170 = vmul.f32 %v339, %v2114
    %v3171 = vmul.f32 %v340, %v2118
    %v3172 = vmul.f32 %v341, %v2122
    %v3173 = vmul.f32 %v342, %v2126
    %v3174 = vmul.f32 %v343, %v2130
    %v3175 = vmul.f32 %v344, %v2134
    %v3176 = vmul.f32 %v345, %v2138
    %v3177 = vmul.f32 %v346, %v2142
    %v3178 = vmul.f32 %v347, %v2146
    %v3179 = vmul.f32 %v348, %v2150
    %v3180 = vmul.f32 %v349, %v2154
    %v3181 = vmul.f32 %v350, %v2158
    %v3182 = vmul.f32 %v351, %v2162
    %v3183 = vmul.f32 %v352, %v2166
    %v3184 = vmul.f32 %v353, %v2170
    %v3185 = vmul.f32 %v354, %v2174
    %v3186 = vmul.f32 %v355, %v2178
    %v3187 = vmul.f32 %v356, %v2182
    %v3188 = vmul.f32 %v357, %v2186
    %v3189 = vmul.f32 %v358, %v2190
    %v3190 = vmul.f32 %v359, %v2194
    %v3191 = vmul.f32 %v360, %v2198
    %v3192 = vmul.f32 %v361, %v2202
    %v3193 = vmul.f32 %v362, %v2206
    %v3194 = vmul.f32 %v363, %v2210
    %v3195 = vmul.f32 %v364, %v2214
    %v3196 = vmul.f32 %v365, %v2218
    %v3197 = vmul.f32 %v366, %v2222
    %v3198 = vmul.f32 %v367, %v2226
    %v3199 = vmul.f32 %v368, %v2230
    %v3200 = vmul.f32 %v369, %v2234
    %v3201 = vmul.f32 %v370, %v2238
    %v3202 = vmul.f32 %v371, %v2242
    %v3203 = vmul.f32 %v372, %v2246
    %v3204 = vmul.f32 %v373, %v2250
    %v3205 = vmul.f32 %v374, %v2254
    %v3206 = vmul.f32 %v375, %v2258
    %v3207 = vmul.f32 %v376, %v2262
    %v3208 = vmul.f32 %v377, %v2266
    %v3209 = vmul.f32 %v378, %v2270
    %v3210 = vmul.f32 %v379, %v2274
    %v3211 = vmul.f32 %v380, %v2278
    %v3212 = vmul.f32 %v381, %v2282
    %v3213 = vmul.f32 %v382, %v2286
    %v3214 = vmul.f32 %v383, %v2290
    %v3215 = vmul.f32 %v384, %v2294
    %v3216 = vmul.f32 %v385, %v2298
    %v3217 = vmul.f32 %v386, %v2302
    %v3218 = vmul.f32 %v387, %v2306
    %v3219 = vmul.f32 %v388, %v2310
    %v3220 = vmul.f32 %v389, %v2314
    %v3221 = vmul.f32 %v390, %v2318
    %v3222 = vmul.f32 %v391, %v2322
    %v3223 = vmul.f32 %v392, %v2326
    %v3224 = vmul.f32 %v393, %v2330
    %v3225 = vmul.f32 %v394, %v2334
    %v3226 = vmul.f32 %v395, %v2338
    %v3227 = vmul.f32 %v396, %v2342
    %v3228 = vmul.f32 %v397, %v2346
    %v3229 = vmul.f32 %v398, %v2350
    %v3230 = vmul.f32 %v399, %v2354
    %v3231 = vmul.f32 %v400, %v2358
    %v3232 = vmul.f32 %v401, %v2362
    %v3233 = vmul.f32 %v402, %v2366
    %v3234 = vmul.f32 %v403, %v2370
    %v3235 = vmul.f32 %v404, %v2374
    %v3236 = vmul.f32 %v405, %v2378
    %v3237 = vmul.f32 %v406, %v2382
    %v3238 = vmul.f32 %v407, %v2386
    %v3239 = vmul.f32 %v408, %v2390
    %v3240 = vmul.f32 %v409, %v2394
    %v3241 = vmul.f32 %v410, %v2398
    %v3242 = vmul.f32 %v411, %v2402
    %v3243 = vmul.f32 %v412, %v2406
    %v3244 = vmul.f32 %v413, %v2410
    %v3245 = vmul.f32 %v414, %v2414
    %v3246 = vmul.f32 %v415, %v2418
    %v3247 = vmul.f32 %v416, %v2422
    %v3248 = vmul.f32 %v417, %v2426
    %v3249 = vmul.f32 %v418, %v2430
    %v3250 = vmul.f32 %v419, %v2434
    %v3251 = vmul.f32 %v420, %v2438
    %v3252 = vmul.f32 %v421, %v2442
    %v3253 = vmul.f32 %v422, %v2446
    %v3254 = vmul.f32 %v423, %v2450
    %v3255 = vmul.f32 %v424, %v2454
    %v3256 = vmul.f32 %v425, %v2458
    %v3257 = vmul.f32 %v426, %v2462
    %v3258 = vmul.f32 %v427, %v2466
    %v3259 = vmul.f32 %v428, %v2470
    %v3260 = vmul.f32 %v429, %v2474
    %v3261 = vmul.f32 %v430, %v2478
    %v3262 = vmul.f32 %v431, %v2482
    %v3263 = vmul.f32 %v432, %v2486
    %v3264 = vmul.f32 %v433, %v2490
    %v3265 = vmul.f32 %v434, %v2494
    %v3266 = vmul.f32 %v435, %v2498
    %v3267 = vmul.f32 %v436, %v966
    %v3268 = vmul.f32 %v437, %v970
    %v3269 = vmul.f32 %v438, %v974
    %v3270 = vmul.f32 %v439, %v978
    %v3271 = vmul.f32 %v440, %v982
    %v3272 = vmul.f32 %v441, %v986
    %v3273 = vmul.f32 %v442, %v990
    %v3274 = vmul.f32 %v443, %v994
    %v3275 = vmul.f32 %v444, %v998
    %v3276 = vmul.f32 %v445, %v1002
    %v3277 = vmul.f32 %v446, %v1006
    %v3278 = vmul.f32 %v447, %v1010
    %v3279 = vmul.f32 %v448, %v1014
    %v3280 = vmul.f32 %v449, %v1018
    %v3281 = vmul.f32 %v450, %v1022
    %v3282 = vmul.f32 %v451, %v1026
    %v3283 = vmul.f32 %v452, %v1030
    %v3284 = vmul.f32 %v453, %v1034
    %v3285 = vmul.f32 %v454, %v1038
    %v3286 = vmul.f32 %v455, %v1042
    %v3287 = vmul.f32 %v456, %v1046
    %v3288 = vmul.f32 %v457, %v1050
    %v3289 = vmul.f32 %v458, %v1054
    %v3290 = vmul.f32 %v459, %v1058
    %v3291 = vmul.f32 %v460, %v1062
    %v3292 = vmul.f32 %v461, %v1066
    %v3293 = vmul.f32 %v462, %v1070
    %v3294 = vmul.f32 %v463, %v1074
    %v3295 = vmul.f32 %v464, %v1078
    %v3296 = vmul.f32 %v465, %v1082
    %v3297 = vmul.f32 %v466, %v1086
    %v3298 = vmul.f32 %v467, %v1090
    %v3299 = vmul.f32 %v468, %v1094
    %v3300 = vmul.f32 %v469, %v1098
    %v3301 = vmul.f32 %v470, %v1102
    %v3302 = vmul.f32 %v471, %v1106
    %v3303 = vmul.f32 %v472, %v1110
    %v3304 = vmul.f32 %v473, %v1114
    %v3305 = vmul.f32 %v474, %v1118
    %v3306 = vmul.f32 %v475, %v1122
    %v3307 = vmul.f32 %v476, %v1126
    %v3308 = vmul.f32 %v477, %v1130
    %v3309 = vmul.f32 %v478, %v1134
    %v3310 = vmul.f32 %v479, %v1138
    %v3311 = vmul.f32 %v480, %v1142
    %v3312 = vmul.f32 %v481, %v1146
    %v3313 = vmul.f32 %v482, %v1150
    %v3314 = vmul.f32 %v483, %v1154
    %v3315 = vmul.f32 %v484, %v1158
    %v3316 = vmul.f32 %v485, %v1162
    %v3317 = vmul.f32 %v486, %v1166
    %v3318 = vmul.f32 %v487, %v1170
    %v3319 = vmul.f32 %v488, %v1174
    %v3320 = vmul.f32 %v489, %v1178
    %v3321 = vmul.f32 %v490, %v1182
    %v3322 = vmul.f32 %v491, %v1186
    %v3323 = vmul.f32 %v492, %v1190
    %v3324 = vmul.f32 %v493, %v1194
    %v3325 = vmul.f32 %v494, %v1198
    %v3326 = vmul.f32 %v495, %v1202
    %v3327 = vmul.f32 %v496, %v1206
    %v3328 = vmul.f32 %v497, %v1210
    %v3329 = vmul.f32 %v498, %v1214
    %v3330 = vmul.f32 %v499, %v1218
    %v3331 = vmul.f32 %v500, %v1222
    %v3332 = vmul.f32 %v501, %v1226
    %v3333 = vmul.f32 %v502, %v1230
    %v3334 = vmul.f32 %v503, %v1234
    %v3335 = vmul.f32 %v504, %v1238
    %v3336 = vmul.f32 %v505, %v1242
    %v3337 = vmul.f32 %v506, %v1246
    %v3338 = vmul.f32 %v507, %v1250
    %v3339 = vmul.f32 %v508, %v1254
    %v3340 = vmul.f32 %v509, %v1258
    %v3341 = vmul.f32 %v510, %v1262
    %v3342 = vmul.f32 %v511, %v1266
    %v3343 = vmul.f32 %v512, %v1270
    %v3344 = vmul.f32 %v513, %v1274
    %v3345 = vmul.f32 %v514, %v1278
    %v3346 = vmul.f32 %v515, %v1282
    %v3347 = vmul.f32 %v516, %v1286
    %v3348 = vmul.f32 %v517, %v1290
    %v3349 = vmul.f32 %v518, %v1294
    %v3350 = vmul.f32 %v519, %v1298
    %v3351 = vmul.f32 %v520, %v1302
    %v3352 = vmul.f32 %v521, %v1306
    %v3353 = vmul.f32 %v522, %v1310
    %v3354 = vmul.f32 %v523, %v1314
    %v3355 = vmul.f32 %v524, %v1318
    %v3356 = vmul.f32 %v525, %v1322
    %v3357 = vmul.f32 %v526, %v1326
    %v3358 = vmul.f32 %v527, %v1330
    %v3359 = vmul.f32 %v528, %v1334
    %v3360 = vmul.f32 %v529, %v1338
    %v3361 = vmul.f32 %v530, %v1342
    %v3362 = vmul.f32 %v531, %v1346
    %v3363 = vmul.f32 %v532, %v1350
    %v3364 = vmul.f32 %v533, %v1354
    %v3365 = vmul.f32 %v534, %v1358
    %v3366 = vmul.f32 %v535, %v1362
    %v3367 = vmul.f32 %v536, %v1366
    %v3368 = vmul.f32 %v537, %v1370
    %v3369 = vmul.f32 %v538, %v1374
    %v3370 = vmul.f32 %v539, %v1378
    %v3371 = vmul.f32 %v540, %v1382
    %v3372 = vmul.f32 %v541, %v1386
    %v3373 = vmul.f32 %v542, %v1390
    %v3374 = vmul.f32 %v543, %v1394
    %v3375 = vmul.f32 %v544, %v1398
    %v3376 = vmul.f32 %v545, %v1402
    %v3377 = vmul.f32 %v546, %v1406
    %v3378 = vmul.f32 %v547, %v1410
    %v3379 = vmul.f32 %v548, %v1414
    %v3380 = vmul.f32 %v549, %v1418
    %v3381 = vmul.f32 %v550, %v1422
    %v3382 = vmul.f32 %v551, %v1426
    %v3383 = vmul.f32 %v552, %v1430
    %v3384 = vmul.f32 %v553, %v1434
    %v3385 = vmul.f32 %v554, %v1438
    %v3386 = vmul.f32 %v555, %v1442
    %v3387 = vmul.f32 %v556, %v1446
    %v3388 = vmul.f32 %v557, %v1450
    %v3389 = vmul.f32 %v558, %v1454
    %v3390 = vmul.f32 %v559, %v1458
    %v3391 = vmul.f32 %v560, %v1462
    %v3392 = vmul.f32 %v561, %v1466
    %v3393 = vmul.f32 %v562, %v1470
    %v3394 = vmul.f32 %v563, %v1474
    %v3395 = vmul.f32 %v564, %v1478
    %v3396 = vmul.f32 %v565, %v1482
    %v3397 = vmul.f32 %v566, %v1486
    %v3398 = vmul.f32 %v567, %v1490
    %v3399 = vmul.f32 %v568, %v1494
    %v3400 = vmul.f32 %v569, %v1498
    %v3401 = vmul.f32 %v570, %v1502
    %v3402 = vmul.f32 %v571, %v1506
    %v3403 = vmul.f32 %v572, %v1510
    %v3404 = vmul.f32 %v573, %v1514
    %v3405 = vmul.f32 %v574, %v1518
    %v3406 = vmul.f32 %v575, %v1522
    %v3407 = vmul.f32 %v576, %v1526
    %v3408 = vmul.f32 %v577, %v1530
    %v3409 = vmul.f32 %v578, %v1534
    %v3410 = vmul.f32 %v579, %v1538
    %v3411 = vmul.f32 %v580, %v1542
    %v3412 = vmul.f32 %v581, %v1546
    %v3413 = vmul.f32 %v582, %v1550
    %v3414 = vmul.f32 %v583, %v1554
    %v3415 = vmul.f32 %v584, %v1558
    %v3416 = vmul.f32 %v585, %v1562
    %v3417 = vmul.f32 %v586, %v1566
    %v3418 = vmul.f32 %v587, %v1570
    %v3419 = vmul.f32 %v588, %v1574
    %v3420 = vmul.f32 %v589, %v1578
    %v3421 = vmul.f32 %v590, %v1582
    %v3422 = vmul.f32 %v591, %v1586
    %v3423 = vmul.f32 %v592, %v1590
    %v3424 = vmul.f32 %v593, %v1594
    %v3425 = vmul.f32 %v594, %v1598
    %v3426 = vmul.f32 %v595, %v1602
    %v3427 = vmul.f32 %v596, %v1606
    %v3428 = vmul.f32 %v597, %v1610
    %v3429 = vmul.f32 %v598, %v1614
    %v3430 = vmul.f32 %v599, %v1618
    %v3431 = vmul.f32 %v600, %v1622
    %v3432 = vmul.f32 %v601, %v1626
    %v3433 = vmul.f32 %v602, %v1630
    %v3434 = vmul.f32 %v603, %v1634
    %v3435 = vmul.f32 %v604, %v1638
    %v3436 = vmul.f32 %v605, %v1642
    %v3437 = vmul.f32 %v606, %v1646
    %v3438 = vmul.f32 %v607, %v1650
    %v3439 = vmul.f32 %v608, %v1654
    %v3440 = vmul.f32 %v609, %v1658
    %v3441 = vmul.f32 %v610, %v1662
    %v3442 = vmul.f32 %v611, %v1666
    %v3443 = vmul.f32 %v612, %v1670
    %v3444 = vmul.f32 %v613, %v1674
    %v3445 = vmul.f32 %v614, %v1678
    %v3446 = vmul.f32 %v615, %v1682
    %v3447 = vmul.f32 %v616, %v1686
    %v3448 = vmul.f32 %v617, %v1690
    %v3449 = vmul.f32 %v618, %v1694
    %v3450 = vmul.f32 %v619, %v1698
    %v3451 = vmul.f32 %v620, %v1702
    %v3452 = vmul.f32 %v621, %v1706
    %v3453 = vmul.f32 %v622, %v1710
    %v3454 = vmul.f32 %v623, %v1714
    %v3455 = vmul.f32 %v624, %v1718
    %v3456 = vmul.f32 %v625, %v1722
    %v3457 = vmul.f32 %v626, %v1726
    %v3458 = vmul.f32 %v627, %v1730
    %v3459 = vmul.f32 %v628, %v1734
    %v3460 = vmul.f32 %v629, %v1738
    %v3461 = vmul.f32 %v630, %v1742
    %v3462 = vmul.f32 %v631, %v1746
    %v3463 = vmul.f32 %v632, %v1750
    %v3464 = vmul.f32 %v633, %v1754
    %v3465 = vmul.f32 %v634, %v1758
    %v3466 = vmul.f32 %v635, %v1762
    %v3467 = vmul.f32 %v636, %v1766
    %v3468 = vmul.f32 %v637, %v1770
    %v3469 = vmul.f32 %v638, %v1774
    %v3470 = vmul.f32 %v639, %v1778
    %v3471 = vmul.f32 %v640, %v1782
    %v3472 = vmul.f32 %v641, %v1786
    %v3473 = vmul.f32 %v642, %v1790
    %v3474 = vmul.f32 %v643, %v1794
    %v3475 = vmul.f32 %v644, %v1798
    %v3476 = vmul.f32 %v645, %v1802
    %v3477 = vmul.f32 %v646, %v1806
    %v3478 = vmul.f32 %v647, %v1810
    %v3479 = vmul.f32 %v648, %v1814
    %v3480 = vmul.f32 %v649, %v1818
    %v3481 = vmul.f32 %v650, %v1822
    %v3482 = vmul.f32 %v651, %v1826
    %v3483 = vmul.f32 %v652, %v1830
    %v3484 = vmul.f32 %v653, %v1834
    %v3485 = vmul.f32 %v654, %v1838
    %v3486 = vmul.f32 %v655, %v1842
    %v3487 = vmul.f32 %v656, %v1846
    %v3488 = vmul.f32 %v657, %v1850
    %v3489 = vmul.f32 %v658, %v1854
    %v3490 = vmul.f32 %v659, %v1858
    %v3491 = vmul.f32 %v660, %v1862
    %v3492 = vmul.f32 %v661, %v1866
    %v3493 = vmul.f32 %v662, %v1870
    %v3494 = vmul.f32 %v663, %v1874
    %v3495 = vmul.f32 %v664, %v1878
    %v3496 = vmul.f32 %v665, %v1882
    %v3497 = vmul.f32 %v666, %v1886
    %v3498 = vmul.f32 %v667, %v1890
    %v3499 = vmul.f32 %v668, %v1894
    %v3500 = vmul.f32 %v669, %v1898
    %v3501 = vmul.f32 %v670, %v1902
    %v3502 = vmul.f32 %v671, %v1906
    %v3503 = vmul.f32 %v672, %v1910
    %v3504 = vmul.f32 %v673, %v1914
    %v3505 = vmul.f32 %v674, %v1918
    %v3506 = vmul.f32 %v675, %v1922
    %v3507 = vmul.f32 %v676, %v1926
    %v3508 = vmul.f32 %v677, %v1930
    %v3509 = vmul.f32 %v678, %v1934
    %v3510 = vmul.f32 %v679, %v1938
    %v3511 = vmul.f32 %v680, %v1942
    %v3512 = vmul.f32 %v681, %v1946
    %v3513 = vmul.f32 %v682, %v1950
    %v3514 = vmul.f32 %v683, %v1954
    %v3515 = vmul.f32 %v684, %v1958
    %v3516 = vmul.f32 %v685, %v1962
    %v3517 = vmul.f32 %v686, %v1966
    %v3518 = vmul.f32 %v687, %v1970
    %v3519 = vmul.f32 %v688, %v1974
    %v3520 = vmul.f32 %v689, %v1978
    %v3521 = vmul.f32 %v690, %v1982
    %v3522 = vmul.f32 %v691, %v1986
    %v3523 = vmul.f32 %v692, %v1990
    %v3524 = vmul.f32 %v693, %v1994
    %v3525 = vmul.f32 %v694, %v1998
    %v3526 = vmul.f32 %v695, %v2002
    %v3527 = vmul.f32 %v696, %v2006
    %v3528 = vmul.f32 %v697, %v2010
    %v3529 = vmul.f32 %v698, %v2014
    %v3530 = vmul.f32 %v699, %v2018
    %v3531 = vmul.f32 %v700, %v2022
    %v3532 = vmul.f32 %v701, %v2026
    %v3533 = vmul.f32 %v702, %v2030
    %v3534 = vmul.f32 %v703, %v2034
    %v3535 = vmul.f32 %v704, %v2038
    %v3536 = vmul.f32 %v705, %v2042
    %v3537 = vmul.f32 %v706, %v2046
    %v3538 = vmul.f32 %v707, %v2050
    %v3539 = vmul.f32 %v708, %v2054
    %v3540 = vmul.f32 %v709, %v2058
    %v3541 = vmul.f32 %v710, %v2062
    %v3542 = vmul.f32 %v711, %v2066
    %v3543 = vmul.f32 %v712, %v2070
    %v3544 = vmul.f32 %v713, %v2074
    %v3545 = vmul.f32 %v714, %v2078
    %v3546 = vmul.f32 %v715, %v2082
    %v3547 = vmul.f32 %v716, %v2086
    %v3548 = vmul.f32 %v717, %v2090
    %v3549 = vmul.f32 %v718, %v2094
    %v3550 = vmul.f32 %v719, %v2098
    %v3551 = vmul.f32 %v720, %v2102
    %v3552 = vmul.f32 %v721, %v2106
    %v3553 = vmul.f32 %v722, %v2110
    %v3554 = vmul.f32 %v723, %v2114
    %v3555 = vmul.f32 %v724, %v2118
    %v3556 = vmul.f32 %v725, %v2122
    %v3557 = vmul.f32 %v726, %v2126
    %v3558 = vmul.f32 %v727, %v2130
    %v3559 = vmul.f32 %v728, %v2134
    %v3560 = vmul.f32 %v729, %v2138
    %v3561 = vmul.f32 %v730, %v2142
    %v3562 = vmul.f32 %v731, %v2146
    %v3563 = vmul.f32 %v732, %v2150
    %v3564 = vmul.f32 %v733, %v2154
    %v3565 = vmul.f32 %v734, %v2158
    %v3566 = vmul.f32 %v735, %v2162
    %v3567 = vmul.f32 %v736, %v2166
    %v3568 = vmul.f32 %v737, %v2170
    %v3569 = vmul.f32 %v738, %v2174
    %v3570 = vmul.f32 %v739, %v2178
    %v3571 = vmul.f32 %v740, %v2182
    %v3572 = vmul.f32 %v741, %v2186
    %v3573 = vmul.f32 %v742, %v2190
    %v3574 = vmul.f32 %v743, %v2194
    %v3575 = vmul.f32 %v744, %v2198
    %v3576 = vmul.f32 %v745, %v2202
    %v3577 = vmul.f32 %v746, %v2206
    %v3578 = vmul.f32 %v747, %v2210
    %v3579 = vmul.f32 %v748, %v2214
    %v3580 = vmul.f32 %v749, %v2218
    %v3581 = vmul.f32 %v750, %v2222
    %v3582 = vmul.f32 %v751, %v2226
    %v3583 = vmul.f32 %v752, %v2230
    %v3584 = vmul.f32 %v753, %v2234
    %v3585 = vmul.f32 %v754, %v2238
    %v3586 = vmul.f32 %v755, %v2242
    %v3587 = vmul.f32 %v756, %v2246
    %v3588 = vmul.f32 %v757, %v2250
    %v3589 = vmul.f32 %v758, %v2254
    %v3590 = vmul.f32 %v759, %v2258
    %v3591 = vmul.f32 %v760, %v2262
    %v3592 = vmul.f32 %v761, %v2266
    %v3593 = vmul.f32 %v762, %v2270
    %v3594 = vmul.f32 %v763, %v2274
    %v3595 = vmul.f32 %v764, %v2278
    %v3596 = vmul.f32 %v765, %v2282
    %v3597 = vmul.f32 %v766, %v2286
    %v3598 = vmul.f32 %v767, %v2290
    %v3599 = vmul.f32 %v768, %v2294
    %v3600 = vmul.f32 %v769, %v2298
    %v3601 = vmul.f32 %v770, %v2302
    %v3602 = vmul.f32 %v771, %v2306
    %v3603 = vmul.f32 %v772, %v2310
    %v3604 = vmul.f32 %v773, %v2314
    %v3605 = vmul.f32 %v774, %v2318
    %v3606 = vmul.f32 %v775, %v2322
    %v3607 = vmul.f32 %v776, %v2326
    %v3608 = vmul.f32 %v777, %v2330
    %v3609 = vmul.f32 %v778, %v2334
    %v3610 = vmul.f32 %v779, %v2338
    %v3611 = vmul.f32 %v780, %v2342
    %v3612 = vmul.f32 %v781, %v2346
    %v3613 = vmul.f32 %v782, %v2350
    %v3614 = vmul.f32 %v783, %v2354
    %v3615 = vmul.f32 %v784, %v2358
    %v3616 = vmul.f32 %v785, %v2362
    %v3617 = vmul.f32 %v786, %v2366
    %v3618 = vmul.f32 %v787, %v2370
    %v3619 = vmul.f32 %v788, %v2374
    %v3620 = vmul.f32 %v789, %v2378
    %v3621 = vmul.f32 %v790, %v2382
    %v3622 = vmul.f32 %v791, %v2386
    %v3623 = vmul.f32 %v792, %v2390
    %v3624 = vmul.f32 %v793, %v2394
    %v3625 = vmul.f32 %v794, %v2398
    %v3626 = vmul.f32 %v795, %v2402
    %v3627 = vmul.f32 %v796, %v2406
    %v3628 = vmul.f32 %v797, %v2410
    %v3629 = vmul.f32 %v798, %v2414
    %v3630 = vmul.f32 %v799, %v2418
    %v3631 = vmul.f32 %v800, %v2422
    %v3632 = vmul.f32 %v801, %v2426
    %v3633 = vmul.f32 %v802, %v2430
    %v3634 = vmul.f32 %v803, %v2434
    %v3635 = vmul.f32 %v804, %v2438
    %v3636 = vmul.f32 %v805, %v2442
    %v3637 = vmul.f32 %v806, %v2446
    %v3638 = vmul.f32 %v807, %v2450
    %v3639 = vmul.f32 %v808, %v2454
    %v3640 = vmul.f32 %v809, %v2458
    %v3641 = vmul.f32 %v810, %v2462
    %v3642 = vmul.f32 %v811, %v2466
    %v3643 = vmul.f32 %v812, %v2470
    %v3644 = vmul.f32 %v813, %v2474
    %v3645 = vmul.f32 %v814, %v2478
    %v3646 = vmul.f32 %v815, %v2482
    %v3647 = vmul.f32 %v816, %v2486
    %v3648 = vmul.f32 %v817, %v2490
    %v3649 = vmul.f32 %v818, %v2494
    %v3650 = vmul.f32 %v819, %v2498
    %v3651 = vadd.f32 %v2883, %v2884
    %v3652 = vadd.f32 %v3651, %v2885
    %v3653 = vadd.f32 %v3652, %v2886
    %v3654 = vadd.f32 %v3653, %v2887
    %v3655 = vadd.f32 %v3654, %v2888
    %v3656 = vadd.f32 %v3655, %v2889
    %v3657 = vadd.f32 %v3656, %v2890
    %v3658 = vadd.f32 %v3657, %v2891
    %v3659 = vadd.f32 %v3658, %v2892
    %v3660 = vadd.f32 %v3659, %v2893
    %v3661 = vadd.f32 %v3660, %v2894
    %v3662 = vadd.f32 %v3661, %v2895
    %v3663 = vadd.f32 %v3662, %v2896
    %v3664 = vadd.f32 %v3663, %v2897
    %v3665 = vadd.f32 %v3664, %v2898
    %v3666 = vadd.f32 %v3665, %v2899
    %v3667 = vadd.f32 %v3666, %v2900
    %v3668 = vadd.f32 %v3667, %v2901
    %v3669 = vadd.f32 %v3668, %v2902
    %v3670 = vadd.f32 %v3669, %v2903
    %v3671 = vadd.f32 %v3670, %v2904
    %v3672 = vadd.f32 %v3671, %v2905
    %v3673 = vadd.f32 %v3672, %v2906
    %v3674 = vadd.f32 %v3673, %v2907
    %v3675 = vadd.f32 %v3674, %v2908
    %v3676 = vadd.f32 %v3675, %v2909
    %v3677 = vadd.f32 %v3676, %v2910
    %v3678 = vadd.f32 %v3677, %v2911
    %v3679 = vadd.f32 %v3678, %v2912
    %v3680 = vadd.f32 %v3679, %v2913
    %v3681 = vadd.f32 %v3680, %v2914
    %v3682 = vadd.f32 %v3681, %v2915
    %v3683 = vadd.f32 %v3682, %v2916
    %v3684 = vadd.f32 %v3683, %v2917
    %v3685 = vadd.f32 %v3684, %v2918
    %v3686 = vadd.f32 %v3685, %v2919
    %v3687 = vadd.f32 %v3686, %v2920
    %v3688 = vadd.f32 %v3687, %v2921
    %v3689 = vadd.f32 %v3688, %v2922
    %v3690 = vadd.f32 %v3689, %v2923
    %v3691 = vadd.f32 %v3690, %v2924
    %v3692 = vadd.f32 %v3691, %v2925
    %v3693 = vadd.f32 %v3692, %v2926
    %v3694 = vadd.f32 %v3693, %v2927
    %v3695 = vadd.f32 %v3694, %v2928
    %v3696 = vadd.f32 %v3695, %v2929
    %v3697 = vadd.f32 %v3696, %v2930
    %v3698 = vadd.f32 %v3697, %v2931
    %v3699 = vadd.f32 %v3698, %v2932
    %v3700 = vadd.f32 %v3699, %v2933
    %v3701 = vadd.f32 %v3700, %v2934
    %v3702 = vadd.f32 %v3701, %v2935
    %v3703 = vadd.f32 %v3702, %v2936
    %v3704 = vadd.f32 %v3703, %v2937
    %v3705 = vadd.f32 %v3704, %v2938
    %v3706 = vadd.f32 %v3705, %v2939
    %v3707 = vadd.f32 %v3706, %v2940
    %v3708 = vadd.f32 %v3707, %v2941
    %v3709 = vadd.f32 %v3708, %v2942
    %v3710 = vadd.f32 %v3709, %v2943
    %v3711 = vadd.f32 %v3710, %v2944
    %v3712 = vadd.f32 %v3711, %v2945
    %v3713 = vadd.f32 %v3712, %v2946
    %v3714 = vadd.f32 %v3713, %v2947
    %v3715 = vadd.f32 %v3714, %v2948
    %v3716 = vadd.f32 %v3715, %v2949
    %v3717 = vadd.f32 %v3716, %v2950
    %v3718 = vadd.f32 %v3717, %v2951
    %v3719 = vadd.f32 %v3718, %v2952
    %v3720 = vadd.f32 %v3719, %v2953
    %v3721 = vadd.f32 %v3720, %v2954
    %v3722 = vadd.f32 %v3721, %v2955
    %v3723 = vadd.f32 %v3722, %v2956
    %v3724 = vadd.f32 %v3723, %v2957
    %v3725 = vadd.f32 %v3724, %v2958
    %v3726 = vadd.f32 %v3725, %v2959
    %v3727 = vadd.f32 %v3726, %v2960
    %v3728 = vadd.f32 %v3727, %v2961
    %v3729 = vadd.f32 %v3728, %v2962
    %v3730 = vadd.f32 %v3729, %v2963
    %v3731 = vadd.f32 %v3730, %v2964
    %v3732 = vadd.f32 %v3731, %v2965
    %v3733 = vadd.f32 %v3732, %v2966
    %v3734 = vadd.f32 %v3733, %v2967
    %v3735 = vadd.f32 %v3734, %v2968
    %v3736 = vadd.f32 %v3735, %v2969
    %v3737 = vadd.f32 %v3736, %v2970
    %v3738 = vadd.f32 %v3737, %v2971
    %v3739 = vadd.f32 %v3738, %v2972
    %v3740 = vadd.f32 %v3739, %v2973
    %v3741 = vadd.f32 %v3740, %v2974
    %v3742 = vadd.f32 %v3741, %v2975
    %v3743 = vadd.f32 %v3742, %v2976
    %v3744 = vadd.f32 %v3743, %v2977
    %v3745 = vadd.f32 %v3744, %v2978
    %v3746 = vadd.f32 %v3745, %v2979
    %v3747 = vadd.f32 %v3746, %v2980
    %v3748 = vadd.f32 %v3747, %v2981
    %v3749 = vadd.f32 %v3748, %v2982
    %v3750 = vadd.f32 %v3749, %v2983
    %v3751 = vadd.f32 %v3750, %v2984
    %v3752 = vadd.f32 %v3751, %v2985
    %v3753 = vadd.f32 %v3752, %v2986
    %v3754 = vadd.f32 %v3753, %v2987
    %v3755 = vadd.f32 %v3754, %v2988
    %v3756 = vadd.f32 %v3755, %v2989
    %v3757 = vadd.f32 %v3756, %v2990
    %v3758 = vadd.f32 %v3757, %v2991
    %v3759 = vadd.f32 %v3758, %v2992
    %v3760 = vadd.f32 %v3759, %v2993
    %v3761 = vadd.f32 %v3760, %v2994
    %v3762 = vadd.f32 %v3761, %v2995
    %v3763 = vadd.f32 %v3762, %v2996
    %v3764 = vadd.f32 %v3763, %v2997
    %v3765 = vadd.f32 %v3764, %v2998
    %v3766 = vadd.f32 %v3765, %v2999
    %v3767 = vadd.f32 %v3766, %v3000
    %v3768 = vadd.f32 %v3767, %v3001
    %v3769 = vadd.f32 %v3768, %v3002
    %v3770 = vadd.f32 %v3769, %v3003
    %v3771 = vadd.f32 %v3770, %v3004
    %v3772 = vadd.f32 %v3771, %v3005
    %v3773 = vadd.f32 %v3772, %v3006
    %v3774 = vadd.f32 %v3773, %v3007
    %v3775 = vadd.f32 %v3774, %v3008
    %v3776 = vadd.f32 %v3775, %v3009
    %v3777 = vadd.f32 %v3776, %v3010
    %v3778 = vadd.f32 %v3777, %v3011
    %v3779 = vadd.f32 %v3778, %v3012
    %v3780 = vadd.f32 %v3779, %v3013
    %v3781 = vadd.f32 %v3780, %v3014
    %v3782 = vadd.f32 %v3781, %v3015
    %v3783 = vadd.f32 %v3782, %v3016
    %v3784 = vadd.f32 %v3783, %v3017
    %v3785 = vadd.f32 %v3784, %v3018
    %v3786 = vadd.f32 %v3785, %v3019
    %v3787 = vadd.f32 %v3786, %v3020
    %v3788 = vadd.f32 %v3787, %v3021
    %v3789 = vadd.f32 %v3788, %v3022
    %v3790 = vadd.f32 %v3789, %v3023
    %v3791 = vadd.f32 %v3790, %v3024
    %v3792 = vadd.f32 %v3791, %v3025
    %v3793 = vadd.f32 %v3792, %v3026
    %v3794 = vadd.f32 %v3793, %v3027
    %v3795 = vadd.f32 %v3794, %v3028
    %v3796 = vadd.f32 %v3795, %v3029
    %v3797 = vadd.f32 %v3796, %v3030
    %v3798 = vadd.f32 %v3797, %v3031
    %v3799 = vadd.f32 %v3798, %v3032
    %v3800 = vadd.f32 %v3799, %v3033
    %v3801 = vadd.f32 %v3800, %v3034
    %v3802 = vadd.f32 %v3801, %v3035
    %v3803 = vadd.f32 %v3802, %v3036
    %v3804 = vadd.f32 %v3803, %v3037
    %v3805 = vadd.f32 %v3804, %v3038
    %v3806 = vadd.f32 %v3805, %v3039
    %v3807 = vadd.f32 %v3806, %v3040
    %v3808 = vadd.f32 %v3807, %v3041
    %v3809 = vadd.f32 %v3808, %v3042
    %v3810 = vadd.f32 %v3809, %v3043
    %v3811 = vadd.f32 %v3810, %v3044
    %v3812 = vadd.f32 %v3811, %v3045
    %v3813 = vadd.f32 %v3812, %v3046
    %v3814 = vadd.f32 %v3813, %v3047
    %v3815 = vadd.f32 %v3814, %v3048
    %v3816 = vadd.f32 %v3815, %v3049
    %v3817 = vadd.f32 %v3816, %v3050
    %v3818 = vadd.f32 %v3817, %v3051
    %v3819 = vadd.f32 %v3818, %v3052
    %v3820 = vadd.f32 %v3819, %v3053
    %v3821 = vadd.f32 %v3820, %v3054
    %v3822 = vadd.f32 %v3821, %v3055
    %v3823 = vadd.f32 %v3822, %v3056
    %v3824 = vadd.f32 %v3823, %v3057
    %v3825 = vadd.f32 %v3824, %v3058
    %v3826 = vadd.f32 %v3825, %v3059
    %v3827 = vadd.f32 %v3826, %v3060
    %v3828 = vadd.f32 %v3827, %v3061
    %v3829 = vadd.f32 %v3828, %v3062
    %v3830 = vadd.f32 %v3829, %v3063
    %v3831 = vadd.f32 %v3830, %v3064
    %v3832 = vadd.f32 %v3831, %v3065
    %v3833 = vadd.f32 %v3832, %v3066
    %v3834 = vadd.f32 %v3833, %v3067
    %v3835 = vadd.f32 %v3834, %v3068
    %v3836 = vadd.f32 %v3835, %v3069
    %v3837 = vadd.f32 %v3836, %v3070
    %v3838 = vadd.f32 %v3837, %v3071
    %v3839 = vadd.f32 %v3838, %v3072
    %v3840 = vadd.f32 %v3839, %v3073
    %v3841 = vadd.f32 %v3840, %v3074
    %v3842 = vadd.f32 %v3841, %v3075
    %v3843 = vadd.f32 %v3842, %v3076
    %v3844 = vadd.f32 %v3843, %v3077
    %v3845 = vadd.f32 %v3844, %v3078
    %v3846 = vadd.f32 %v3845, %v3079
    %v3847 = vadd.f32 %v3846, %v3080
    %v3848 = vadd.f32 %v3847, %v3081
    %v3849 = vadd.f32 %v3848, %v3082
    %v3850 = vadd.f32 %v3849, %v3083
    %v3851 = vadd.f32 %v3850, %v3084
    %v3852 = vadd.f32 %v3851, %v3085
    %v3853 = vadd.f32 %v3852, %v3086
    %v3854 = vadd.f32 %v3853, %v3087
    %v3855 = vadd.f32 %v3854, %v3088
    %v3856 = vadd.f32 %v3855, %v3089
    %v3857 = vadd.f32 %v3856, %v3090
    %v3858 = vadd.f32 %v3857, %v3091
    %v3859 = vadd.f32 %v3858, %v3092
    %v3860 = vadd.f32 %v3859, %v3093
    %v3861 = vadd.f32 %v3860, %v3094
    %v3862 = vadd.f32 %v3861, %v3095
    %v3863 = vadd.f32 %v3862, %v3096
    %v3864 = vadd.f32 %v3863, %v3097
    %v3865 = vadd.f32 %v3864, %v3098
    %v3866 = vadd.f32 %v3865, %v3099
    %v3867 = vadd.f32 %v3866, %v3100
    %v3868 = vadd.f32 %v3867, %v3101
    %v3869 = vadd.f32 %v3868, %v3102
    %v3870 = vadd.f32 %v3869, %v3103
    %v3871 = vadd.f32 %v3870, %v3104
    %v3872 = vadd.f32 %v3871, %v3105
    %v3873 = vadd.f32 %v3872, %v3106
    %v3874 = vadd.f32 %v3873, %v3107
    %v3875 = vadd.f32 %v3874, %v3108
    %v3876 = vadd.f32 %v3875, %v3109
    %v3877 = vadd.f32 %v3876, %v3110
    %v3878 = vadd.f32 %v3877, %v3111
    %v3879 = vadd.f32 %v3878, %v3112
    %v3880 = vadd.f32 %v3879, %v3113
    %v3881 = vadd.f32 %v3880, %v3114
    %v3882 = vadd.f32 %v3881, %v3115
    %v3883 = vadd.f32 %v3882, %v3116
    %v3884 = vadd.f32 %v3883, %v3117
    %v3885 = vadd.f32 %v3884, %v3118
    %v3886 = vadd.f32 %v3885, %v3119
    %v3887 = vadd.f32 %v3886, %v3120
    %v3888 = vadd.f32 %v3887, %v3121
    %v3889 = vadd.f32 %v3888, %v3122
    %v3890 = vadd.f32 %v3889, %v3123
    %v3891 = vadd.f32 %v3890, %v3124
    %v3892 = vadd.f32 %v3891, %v3125
    %v3893 = vadd.f32 %v3892, %v3126
    %v3894 = vadd.f32 %v3893, %v3127
    %v3895 = vadd.f32 %v3894, %v3128
    %v3896 = vadd.f32 %v3895, %v3129
    %v3897 = vadd.f32 %v3896, %v3130
    %v3898 = vadd.f32 %v3897, %v3131
    %v3899 = vadd.f32 %v3898, %v3132
    %v3900 = vadd.f32 %v3899, %v3133
    %v3901 = vadd.f32 %v3900, %v3134
    %v3902 = vadd.f32 %v3901, %v3135
    %v3903 = vadd.f32 %v3902, %v3136
    %v3904 = vadd.f32 %v3903, %v3137
    %v3905 = vadd.f32 %v3904, %v3138
    %v3906 = vadd.f32 %v3905, %v3139
    %v3907 = vadd.f32 %v3906, %v3140
    %v3908 = vadd.f32 %v3907, %v3141
    %v3909 = vadd.f32 %v3908, %v3142
    %v3910 = vadd.f32 %v3909, %v3143
    %v3911 = vadd.f32 %v3910, %v3144
    %v3912 = vadd.f32 %v3911, %v3145
    %v3913 = vadd.f32 %v3912, %v3146
    %v3914 = vadd.f32 %v3913, %v3147
    %v3915 = vadd.f32 %v3914, %v3148
    %v3916 = vadd.f32 %v3915, %v3149
    %v3917 = vadd.f32 %v3916, %v3150
    %v3918 = vadd.f32 %v3917, %v3151
    %v3919 = vadd.f32 %v3918, %v3152
    %v3920 = vadd.f32 %v3919, %v3153
    %v3921 = vadd.f32 %v3920, %v3154
    %v3922 = vadd.f32 %v3921, %v3155
    %v3923 = vadd.f32 %v3922, %v3156
    %v3924 = vadd.f32 %v3923, %v3157
    %v3925 = vadd.f32 %v3924, %v3158
    %v3926 = vadd.f32 %v3925, %v3159
    %v3927 = vadd.f32 %v3926, %v3160
    %v3928 = vadd.f32 %v3927, %v3161
    %v3929 = vadd.f32 %v3928, %v3162
    %v3930 = vadd.f32 %v3929, %v3163
    %v3931 = vadd.f32 %v3930, %v3164
    %v3932 = vadd.f32 %v3931, %v3165
    %v3933 = vadd.f32 %v3932, %v3166
    %v3934 = vadd.f32 %v3933, %v3167
    %v3935 = vadd.f32 %v3934, %v3168
    %v3936 = vadd.f32 %v3935, %v3169
    %v3937 = vadd.f32 %v3936, %v3170
    %v3938 = vadd.f32 %v3937, %v3171
    %v3939 = vadd.f32 %v3938, %v3172
    %v3940 = vadd.f32 %v3939, %v3173
    %v3941 = vadd.f32 %v3940, %v3174
    %v3942 = vadd.f32 %v3941, %v3175
    %v3943 = vadd.f32 %v3942, %v3176
    %v3944 = vadd.f32 %v3943, %v3177
    %v3945 = vadd.f32 %v3944, %v3178
    %v3946 = vadd.f32 %v3945, %v3179
    %v3947 = vadd.f32 %v3946, %v3180
    %v3948 = vadd.f32 %v3947, %v3181
    %v3949 = vadd.f32 %v3948, %v3182
    %v3950 = vadd.f32 %v3949, %v3183
    %v3951 = vadd.f32 %v3950, %v3184
    %v3952 = vadd.f32 %v3951, %v3185
    %v3953 = vadd.f32 %v3952, %v3186
    %v3954 = vadd.f32 %v3953, %v3187
    %v3955 = vadd.f32 %v3954, %v3188
    %v3956 = vadd.f32 %v3955, %v3189
    %v3957 = vadd.f32 %v3956, %v3190
    %v3958 = vadd.f32 %v3957, %v3191
    %v3959 = vadd.f32 %v3958, %v3192
    %v3960 = vadd.f32 %v3959, %v3193
    %v3961 = vadd.f32 %v3960, %v3194
    %v3962 = vadd.f32 %v3961, %v3195
    %v3963 = vadd.f32 %v3962, %v3196
    %v3964 = vadd.f32 %v3963, %v3197
    %v3965 = vadd.f32 %v3964, %v3198
    %v3966 = vadd.f32 %v3965, %v3199
    %v3967 = vadd.f32 %v3966, %v3200
    %v3968 = vadd.f32 %v3967, %v3201
    %v3969 = vadd.f32 %v3968, %v3202
    %v3970 = vadd.f32 %v3969, %v3203
    %v3971 = vadd.f32 %v3970, %v3204
    %v3972 = vadd.f32 %v3971, %v3205
    %v3973 = vadd.f32 %v3972, %v3206
    %v3974 = vadd.f32 %v3973, %v3207
    %v3975 = vadd.f32 %v3974, %v3208
    %v3976 = vadd.f32 %v3975, %v3209
    %v3977 = vadd.f32 %v3976, %v3210
    %v3978 = vadd.f32 %v3977, %v3211
    %v3979 = vadd.f32 %v3978, %v3212
    %v3980 = vadd.f32 %v3979, %v3213
    %v3981 = vadd.f32 %v3980, %v3214
    %v3982 = vadd.f32 %v3981, %v3215
    %v3983 = vadd.f32 %v3982, %v3216
    %v3984 = vadd.f32 %v3983, %v3217
    %v3985 = vadd.f32 %v3984, %v3218
    %v3986 = vadd.f32 %v3985, %v3219
    %v3987 = vadd.f32 %v3986, %v3220
    %v3988 = vadd.f32 %v3987, %v3221
    %v3989 = vadd.f32 %v3988, %v3222
    %v3990 = vadd.f32 %v3989, %v3223
    %v3991 = vadd.f32 %v3990, %v3224
    %v3992 = vadd.f32 %v3991, %v3225
    %v3993 = vadd.f32 %v3992, %v3226
    %v3994 = vadd.f32 %v3993, %v3227
    %v3995 = vadd.f32 %v3994, %v3228
    %v3996 = vadd.f32 %v3995, %v3229
    %v3997 = vadd.f32 %v3996, %v3230
    %v3998 = vadd.f32 %v3997, %v3231
    %v3999 = vadd.f32 %v3998, %v3232
    %v4000 = vadd.f32 %v3999, %v3233
    %v4001 = vadd.f32 %v4000, %v3234
    %v4002 = vadd.f32 %v4001, %v3235
    %v4003 = vadd.f32 %v4002, %v3236
    %v4004 = vadd.f32 %v4003, %v3237
    %v4005 = vadd.f32 %v4004, %v3238
    %v4006 = vadd.f32 %v4005, %v3239
    %v4007 = vadd.f32 %v4006, %v3240
    %v4008 = vadd.f32 %v4007, %v3241
    %v4009 = vadd.f32 %v4008, %v3242
    %v4010 = vadd.f32 %v4009, %v3243
    %v4011 = vadd.f32 %v4010, %v3244
    %v4012 = vadd.f32 %v4011, %v3245
    %v4013 = vadd.f32 %v4012, %v3246
    %v4014 = vadd.f32 %v4013, %v3247
    %v4015 = vadd.f32 %v4014, %v3248
    %v4016 = vadd.f32 %v4015, %v3249
    %v4017 = vadd.f32 %v4016, %v3250
    %v4018 = vadd.f32 %v4017, %v3251
    %v4019 = vadd.f32 %v4018, %v3252
    %v4020 = vadd.f32 %v4019, %v3253
    %v4021 = vadd.f32 %v4020, %v3254
    %v4022 = vadd.f32 %v4021, %v3255
    %v4023 = vadd.f32 %v4022, %v3256
    %v4024 = vadd.f32 %v4023, %v3257
    %v4025 = vadd.f32 %v4024, %v3258
    %v4026 = vadd.f32 %v4025, %v3259
    %v4027 = vadd.f32 %v4026, %v3260
    %v4028 = vadd.f32 %v4027, %v3261
    %v4029 = vadd.f32 %v4028, %v3262
    %v4030 = vadd.f32 %v4029, %v3263
    %v4031 = vadd.f32 %v4030, %v3264
    %v4032 = vadd.f32 %v4031, %v3265
    %v4033 = vadd.f32 %v4032, %v3266
    %4034 = vadd.xlane.f32.xlu0 %v4033
    %v4035 = vpop.xlane.xlu0 %4034
    %vm4036 = vcmask 1041408
    %v4037 = vsel %vm4036, %v3267, 0.0
    %v4038 = vsel %vm4036, %v3268, 0.0
    %v4039 = vadd.f32 %v4037, %v4038
    %v4040 = vsel %vm4036, %v3269, 0.0
    %v4041 = vadd.f32 %v4039, %v4040
    %v4042 = vsel %vm4036, %v3270, 0.0
    %v4043 = vadd.f32 %v4041, %v4042
    %v4044 = vsel %vm4036, %v3271, 0.0
    %v4045 = vadd.f32 %v4043, %v4044
    %v4046 = vsel %vm4036, %v3272, 0.0
    %v4047 = vadd.f32 %v4045, %v4046
    %v4048 = vsel %vm4036, %v3273, 0.0
    %v4049 = vadd.f32 %v4047, %v4048
    %v4050 = vsel %vm4036, %v3274, 0.0
    %v4051 = vadd.f32 %v4049, %v4050
    %v4052 = vsel %vm4036, %v3275, 0.0
    %v4053 = vadd.f32 %v4051, %v4052
    %v4054 = vsel %vm4036, %v3276, 0.0
    %v4055 = vadd.f32 %v4053, %v4054
    %v4056 = vsel %vm4036, %v3277, 0.0
    %v4057 = vadd.f32 %v4055, %v4056
    %v4058 = vsel %vm4036, %v3278, 0.0
    %v4059 = vadd.f32 %v4057, %v4058
    %v4060 = vsel %vm4036, %v3279, 0.0
    %v4061 = vadd.f32 %v4059, %v4060
    %v4062 = vsel %vm4036, %v3280, 0.0
    %v4063 = vadd.f32 %v4061, %v4062
    %v4064 = vsel %vm4036, %v3281, 0.0
    %v4065 = vadd.f32 %v4063, %v4064
    %v4066 = vsel %vm4036, %v3282, 0.0
    %v4067 = vadd.f32 %v4065, %v4066
    %v4068 = vsel %vm4036, %v3283, 0.0
    %v4069 = vadd.f32 %v4067, %v4068
    %v4070 = vsel %vm4036, %v3284, 0.0
    %v4071 = vadd.f32 %v4069, %v4070
    %v4072 = vsel %vm4036, %v3285, 0.0
    %v4073 = vadd.f32 %v4071, %v4072
    %v4074 = vsel %vm4036, %v3286, 0.0
    %v4075 = vadd.f32 %v4073, %v4074
    %v4076 = vsel %vm4036, %v3287, 0.0
    %v4077 = vadd.f32 %v4075, %v4076
    %v4078 = vsel %vm4036, %v3288, 0.0
    %v4079 = vadd.f32 %v4077, %v4078
    %v4080 = vsel %vm4036, %v3289, 0.0
    %v4081 = vadd.f32 %v4079, %v4080
    %v4082 = vsel %vm4036, %v3290, 0.0
    %v4083 = vadd.f32 %v4081, %v4082
    %v4084 = vsel %vm4036, %v3291, 0.0
    %v4085 = vadd.f32 %v4083, %v4084
    %v4086 = vsel %vm4036, %v3292, 0.0
    %v4087 = vadd.f32 %v4085, %v4086
    %v4088 = vsel %vm4036, %v3293, 0.0
    %v4089 = vadd.f32 %v4087, %v4088
    %v4090 = vsel %vm4036, %v3294, 0.0
    %v4091 = vadd.f32 %v4089, %v4090
    %v4092 = vsel %vm4036, %v3295, 0.0
    %v4093 = vadd.f32 %v4091, %v4092
    %v4094 = vsel %vm4036, %v3296, 0.0
    %v4095 = vadd.f32 %v4093, %v4094
    %v4096 = vsel %vm4036, %v3297, 0.0
    %v4097 = vadd.f32 %v4095, %v4096
    %v4098 = vsel %vm4036, %v3298, 0.0
    %v4099 = vadd.f32 %v4097, %v4098
    %v4100 = vsel %vm4036, %v3299, 0.0
    %v4101 = vadd.f32 %v4099, %v4100
    %v4102 = vsel %vm4036, %v3300, 0.0
    %v4103 = vadd.f32 %v4101, %v4102
    %v4104 = vsel %vm4036, %v3301, 0.0
    %v4105 = vadd.f32 %v4103, %v4104
    %v4106 = vsel %vm4036, %v3302, 0.0
    %v4107 = vadd.f32 %v4105, %v4106
    %v4108 = vsel %vm4036, %v3303, 0.0
    %v4109 = vadd.f32 %v4107, %v4108
    %v4110 = vsel %vm4036, %v3304, 0.0
    %v4111 = vadd.f32 %v4109, %v4110
    %v4112 = vsel %vm4036, %v3305, 0.0
    %v4113 = vadd.f32 %v4111, %v4112
    %v4114 = vsel %vm4036, %v3306, 0.0
    %v4115 = vadd.f32 %v4113, %v4114
    %v4116 = vsel %vm4036, %v3307, 0.0
    %v4117 = vadd.f32 %v4115, %v4116
    %v4118 = vsel %vm4036, %v3308, 0.0
    %v4119 = vadd.f32 %v4117, %v4118
    %v4120 = vsel %vm4036, %v3309, 0.0
    %v4121 = vadd.f32 %v4119, %v4120
    %v4122 = vsel %vm4036, %v3310, 0.0
    %v4123 = vadd.f32 %v4121, %v4122
    %v4124 = vsel %vm4036, %v3311, 0.0
    %v4125 = vadd.f32 %v4123, %v4124
    %v4126 = vsel %vm4036, %v3312, 0.0
    %v4127 = vadd.f32 %v4125, %v4126
    %v4128 = vsel %vm4036, %v3313, 0.0
    %v4129 = vadd.f32 %v4127, %v4128
    %v4130 = vsel %vm4036, %v3314, 0.0
    %v4131 = vadd.f32 %v4129, %v4130
    %v4132 = vsel %vm4036, %v3315, 0.0
    %v4133 = vadd.f32 %v4131, %v4132
    %v4134 = vsel %vm4036, %v3316, 0.0
    %v4135 = vadd.f32 %v4133, %v4134
    %v4136 = vsel %vm4036, %v3317, 0.0
    %v4137 = vadd.f32 %v4135, %v4136
    %v4138 = vsel %vm4036, %v3318, 0.0
    %v4139 = vadd.f32 %v4137, %v4138
    %v4140 = vsel %vm4036, %v3319, 0.0
    %v4141 = vadd.f32 %v4139, %v4140
    %v4142 = vsel %vm4036, %v3320, 0.0
    %v4143 = vadd.f32 %v4141, %v4142
    %v4144 = vsel %vm4036, %v3321, 0.0
    %v4145 = vadd.f32 %v4143, %v4144
    %v4146 = vsel %vm4036, %v3322, 0.0
    %v4147 = vadd.f32 %v4145, %v4146
    %v4148 = vsel %vm4036, %v3323, 0.0
    %v4149 = vadd.f32 %v4147, %v4148
    %v4150 = vsel %vm4036, %v3324, 0.0
    %v4151 = vadd.f32 %v4149, %v4150
    %v4152 = vsel %vm4036, %v3325, 0.0
    %v4153 = vadd.f32 %v4151, %v4152
    %v4154 = vsel %vm4036, %v3326, 0.0
    %v4155 = vadd.f32 %v4153, %v4154
    %v4156 = vsel %vm4036, %v3327, 0.0
    %v4157 = vadd.f32 %v4155, %v4156
    %v4158 = vsel %vm4036, %v3328, 0.0
    %v4159 = vadd.f32 %v4157, %v4158
    %v4160 = vsel %vm4036, %v3329, 0.0
    %v4161 = vadd.f32 %v4159, %v4160
    %v4162 = vsel %vm4036, %v3330, 0.0
    %v4163 = vadd.f32 %v4161, %v4162
    %v4164 = vsel %vm4036, %v3331, 0.0
    %v4165 = vadd.f32 %v4163, %v4164
    %v4166 = vsel %vm4036, %v3332, 0.0
    %v4167 = vadd.f32 %v4165, %v4166
    %v4168 = vsel %vm4036, %v3333, 0.0
    %v4169 = vadd.f32 %v4167, %v4168
    %v4170 = vsel %vm4036, %v3334, 0.0
    %v4171 = vadd.f32 %v4169, %v4170
    %v4172 = vsel %vm4036, %v3335, 0.0
    %v4173 = vadd.f32 %v4171, %v4172
    %v4174 = vsel %vm4036, %v3336, 0.0
    %v4175 = vadd.f32 %v4173, %v4174
    %v4176 = vsel %vm4036, %v3337, 0.0
    %v4177 = vadd.f32 %v4175, %v4176
    %v4178 = vsel %vm4036, %v3338, 0.0
    %v4179 = vadd.f32 %v4177, %v4178
    %v4180 = vsel %vm4036, %v3339, 0.0
    %v4181 = vadd.f32 %v4179, %v4180
    %v4182 = vsel %vm4036, %v3340, 0.0
    %v4183 = vadd.f32 %v4181, %v4182
    %v4184 = vsel %vm4036, %v3341, 0.0
    %v4185 = vadd.f32 %v4183, %v4184
    %v4186 = vsel %vm4036, %v3342, 0.0
    %v4187 = vadd.f32 %v4185, %v4186
    %v4188 = vsel %vm4036, %v3343, 0.0
    %v4189 = vadd.f32 %v4187, %v4188
    %v4190 = vsel %vm4036, %v3344, 0.0
    %v4191 = vadd.f32 %v4189, %v4190
    %v4192 = vsel %vm4036, %v3345, 0.0
    %v4193 = vadd.f32 %v4191, %v4192
    %v4194 = vsel %vm4036, %v3346, 0.0
    %v4195 = vadd.f32 %v4193, %v4194
    %v4196 = vsel %vm4036, %v3347, 0.0
    %v4197 = vadd.f32 %v4195, %v4196
    %v4198 = vsel %vm4036, %v3348, 0.0
    %v4199 = vadd.f32 %v4197, %v4198
    %v4200 = vsel %vm4036, %v3349, 0.0
    %v4201 = vadd.f32 %v4199, %v4200
    %v4202 = vsel %vm4036, %v3350, 0.0
    %v4203 = vadd.f32 %v4201, %v4202
    %v4204 = vsel %vm4036, %v3351, 0.0
    %v4205 = vadd.f32 %v4203, %v4204
    %v4206 = vsel %vm4036, %v3352, 0.0
    %v4207 = vadd.f32 %v4205, %v4206
    %v4208 = vsel %vm4036, %v3353, 0.0
    %v4209 = vadd.f32 %v4207, %v4208
    %v4210 = vsel %vm4036, %v3354, 0.0
    %v4211 = vadd.f32 %v4209, %v4210
    %v4212 = vsel %vm4036, %v3355, 0.0
    %v4213 = vadd.f32 %v4211, %v4212
    %v4214 = vsel %vm4036, %v3356, 0.0
    %v4215 = vadd.f32 %v4213, %v4214
    %v4216 = vsel %vm4036, %v3357, 0.0
    %v4217 = vadd.f32 %v4215, %v4216
    %v4218 = vsel %vm4036, %v3358, 0.0
    %v4219 = vadd.f32 %v4217, %v4218
    %v4220 = vsel %vm4036, %v3359, 0.0
    %v4221 = vadd.f32 %v4219, %v4220
    %v4222 = vsel %vm4036, %v3360, 0.0
    %v4223 = vadd.f32 %v4221, %v4222
    %v4224 = vsel %vm4036, %v3361, 0.0
    %v4225 = vadd.f32 %v4223, %v4224
    %v4226 = vsel %vm4036, %v3362, 0.0
    %v4227 = vadd.f32 %v4225, %v4226
    %v4228 = vsel %vm4036, %v3363, 0.0
    %v4229 = vadd.f32 %v4227, %v4228
    %v4230 = vsel %vm4036, %v3364, 0.0
    %v4231 = vadd.f32 %v4229, %v4230
    %v4232 = vsel %vm4036, %v3365, 0.0
    %v4233 = vadd.f32 %v4231, %v4232
    %v4234 = vsel %vm4036, %v3366, 0.0
    %v4235 = vadd.f32 %v4233, %v4234
    %v4236 = vsel %vm4036, %v3367, 0.0
    %v4237 = vadd.f32 %v4235, %v4236
    %v4238 = vsel %vm4036, %v3368, 0.0
    %v4239 = vadd.f32 %v4237, %v4238
    %v4240 = vsel %vm4036, %v3369, 0.0
    %v4241 = vadd.f32 %v4239, %v4240
    %v4242 = vsel %vm4036, %v3370, 0.0
    %v4243 = vadd.f32 %v4241, %v4242
    %v4244 = vsel %vm4036, %v3371, 0.0
    %v4245 = vadd.f32 %v4243, %v4244
    %v4246 = vsel %vm4036, %v3372, 0.0
    %v4247 = vadd.f32 %v4245, %v4246
    %v4248 = vsel %vm4036, %v3373, 0.0
    %v4249 = vadd.f32 %v4247, %v4248
    %v4250 = vsel %vm4036, %v3374, 0.0
    %v4251 = vadd.f32 %v4249, %v4250
    %v4252 = vsel %vm4036, %v3375, 0.0
    %v4253 = vadd.f32 %v4251, %v4252
    %v4254 = vsel %vm4036, %v3376, 0.0
    %v4255 = vadd.f32 %v4253, %v4254
    %v4256 = vsel %vm4036, %v3377, 0.0
    %v4257 = vadd.f32 %v4255, %v4256
    %v4258 = vsel %vm4036, %v3378, 0.0
    %v4259 = vadd.f32 %v4257, %v4258
    %v4260 = vsel %vm4036, %v3379, 0.0
    %v4261 = vadd.f32 %v4259, %v4260
    %v4262 = vsel %vm4036, %v3380, 0.0
    %v4263 = vadd.f32 %v4261, %v4262
    %v4264 = vsel %vm4036, %v3381, 0.0
    %v4265 = vadd.f32 %v4263, %v4264
    %v4266 = vsel %vm4036, %v3382, 0.0
    %v4267 = vadd.f32 %v4265, %v4266
    %v4268 = vsel %vm4036, %v3383, 0.0
    %v4269 = vadd.f32 %v4267, %v4268
    %v4270 = vsel %vm4036, %v3384, 0.0
    %v4271 = vadd.f32 %v4269, %v4270
    %v4272 = vsel %vm4036, %v3385, 0.0
    %v4273 = vadd.f32 %v4271, %v4272
    %v4274 = vsel %vm4036, %v3386, 0.0
    %v4275 = vadd.f32 %v4273, %v4274
    %v4276 = vsel %vm4036, %v3387, 0.0
    %v4277 = vadd.f32 %v4275, %v4276
    %v4278 = vsel %vm4036, %v3388, 0.0
    %v4279 = vadd.f32 %v4277, %v4278
    %v4280 = vsel %vm4036, %v3389, 0.0
    %v4281 = vadd.f32 %v4279, %v4280
    %v4282 = vsel %vm4036, %v3390, 0.0
    %v4283 = vadd.f32 %v4281, %v4282
    %v4284 = vsel %vm4036, %v3391, 0.0
    %v4285 = vadd.f32 %v4283, %v4284
    %v4286 = vsel %vm4036, %v3392, 0.0
    %v4287 = vadd.f32 %v4285, %v4286
    %v4288 = vsel %vm4036, %v3393, 0.0
    %v4289 = vadd.f32 %v4287, %v4288
    %v4290 = vsel %vm4036, %v3394, 0.0
    %v4291 = vadd.f32 %v4289, %v4290
    %v4292 = vsel %vm4036, %v3395, 0.0
    %v4293 = vadd.f32 %v4291, %v4292
    %v4294 = vsel %vm4036, %v3396, 0.0
    %v4295 = vadd.f32 %v4293, %v4294
    %v4296 = vsel %vm4036, %v3397, 0.0
    %v4297 = vadd.f32 %v4295, %v4296
    %v4298 = vsel %vm4036, %v3398, 0.0
    %v4299 = vadd.f32 %v4297, %v4298
    %v4300 = vsel %vm4036, %v3399, 0.0
    %v4301 = vadd.f32 %v4299, %v4300
    %v4302 = vsel %vm4036, %v3400, 0.0
    %v4303 = vadd.f32 %v4301, %v4302
    %v4304 = vsel %vm4036, %v3401, 0.0
    %v4305 = vadd.f32 %v4303, %v4304
    %v4306 = vsel %vm4036, %v3402, 0.0
    %v4307 = vadd.f32 %v4305, %v4306
    %v4308 = vsel %vm4036, %v3403, 0.0
    %v4309 = vadd.f32 %v4307, %v4308
    %v4310 = vsel %vm4036, %v3404, 0.0
    %v4311 = vadd.f32 %v4309, %v4310
    %v4312 = vsel %vm4036, %v3405, 0.0
    %v4313 = vadd.f32 %v4311, %v4312
    %v4314 = vsel %vm4036, %v3406, 0.0
    %v4315 = vadd.f32 %v4313, %v4314
    %v4316 = vsel %vm4036, %v3407, 0.0
    %v4317 = vadd.f32 %v4315, %v4316
    %v4318 = vsel %vm4036, %v3408, 0.0
    %v4319 = vadd.f32 %v4317, %v4318
    %v4320 = vsel %vm4036, %v3409, 0.0
    %v4321 = vadd.f32 %v4319, %v4320
    %v4322 = vsel %vm4036, %v3410, 0.0
    %v4323 = vadd.f32 %v4321, %v4322
    %v4324 = vsel %vm4036, %v3411, 0.0
    %v4325 = vadd.f32 %v4323, %v4324
    %v4326 = vsel %vm4036, %v3412, 0.0
    %v4327 = vadd.f32 %v4325, %v4326
    %v4328 = vsel %vm4036, %v3413, 0.0
    %v4329 = vadd.f32 %v4327, %v4328
    %v4330 = vsel %vm4036, %v3414, 0.0
    %v4331 = vadd.f32 %v4329, %v4330
    %v4332 = vsel %vm4036, %v3415, 0.0
    %v4333 = vadd.f32 %v4331, %v4332
    %v4334 = vsel %vm4036, %v3416, 0.0
    %v4335 = vadd.f32 %v4333, %v4334
    %v4336 = vsel %vm4036, %v3417, 0.0
    %v4337 = vadd.f32 %v4335, %v4336
    %v4338 = vsel %vm4036, %v3418, 0.0
    %v4339 = vadd.f32 %v4337, %v4338
    %v4340 = vsel %vm4036, %v3419, 0.0
    %v4341 = vadd.f32 %v4339, %v4340
    %v4342 = vsel %vm4036, %v3420, 0.0
    %v4343 = vadd.f32 %v4341, %v4342
    %v4344 = vsel %vm4036, %v3421, 0.0
    %v4345 = vadd.f32 %v4343, %v4344
    %v4346 = vsel %vm4036, %v3422, 0.0
    %v4347 = vadd.f32 %v4345, %v4346
    %v4348 = vsel %vm4036, %v3423, 0.0
    %v4349 = vadd.f32 %v4347, %v4348
    %v4350 = vsel %vm4036, %v3424, 0.0
    %v4351 = vadd.f32 %v4349, %v4350
    %v4352 = vsel %vm4036, %v3425, 0.0
    %v4353 = vadd.f32 %v4351, %v4352
    %v4354 = vsel %vm4036, %v3426, 0.0
    %v4355 = vadd.f32 %v4353, %v4354
    %v4356 = vsel %vm4036, %v3427, 0.0
    %v4357 = vadd.f32 %v4355, %v4356
    %v4358 = vsel %vm4036, %v3428, 0.0
    %v4359 = vadd.f32 %v4357, %v4358
    %v4360 = vsel %vm4036, %v3429, 0.0
    %v4361 = vadd.f32 %v4359, %v4360
    %v4362 = vsel %vm4036, %v3430, 0.0
    %v4363 = vadd.f32 %v4361, %v4362
    %v4364 = vsel %vm4036, %v3431, 0.0
    %v4365 = vadd.f32 %v4363, %v4364
    %v4366 = vsel %vm4036, %v3432, 0.0
    %v4367 = vadd.f32 %v4365, %v4366
    %v4368 = vsel %vm4036, %v3433, 0.0
    %v4369 = vadd.f32 %v4367, %v4368
    %v4370 = vsel %vm4036, %v3434, 0.0
    %v4371 = vadd.f32 %v4369, %v4370
    %v4372 = vsel %vm4036, %v3435, 0.0
    %v4373 = vadd.f32 %v4371, %v4372
    %v4374 = vsel %vm4036, %v3436, 0.0
    %v4375 = vadd.f32 %v4373, %v4374
    %v4376 = vsel %vm4036, %v3437, 0.0
    %v4377 = vadd.f32 %v4375, %v4376
    %v4378 = vsel %vm4036, %v3438, 0.0
    %v4379 = vadd.f32 %v4377, %v4378
    %v4380 = vsel %vm4036, %v3439, 0.0
    %v4381 = vadd.f32 %v4379, %v4380
    %v4382 = vsel %vm4036, %v3440, 0.0
    %v4383 = vadd.f32 %v4381, %v4382
    %v4384 = vsel %vm4036, %v3441, 0.0
    %v4385 = vadd.f32 %v4383, %v4384
    %v4386 = vsel %vm4036, %v3442, 0.0
    %v4387 = vadd.f32 %v4385, %v4386
    %v4388 = vsel %vm4036, %v3443, 0.0
    %v4389 = vadd.f32 %v4387, %v4388
    %v4390 = vsel %vm4036, %v3444, 0.0
    %v4391 = vadd.f32 %v4389, %v4390
    %v4392 = vsel %vm4036, %v3445, 0.0
    %v4393 = vadd.f32 %v4391, %v4392
    %v4394 = vsel %vm4036, %v3446, 0.0
    %v4395 = vadd.f32 %v4393, %v4394
    %v4396 = vsel %vm4036, %v3447, 0.0
    %v4397 = vadd.f32 %v4395, %v4396
    %v4398 = vsel %vm4036, %v3448, 0.0
    %v4399 = vadd.f32 %v4397, %v4398
    %v4400 = vsel %vm4036, %v3449, 0.0
    %v4401 = vadd.f32 %v4399, %v4400
    %v4402 = vsel %vm4036, %v3450, 0.0
    %v4403 = vadd.f32 %v4401, %v4402
    %v4404 = vsel %vm4036, %v3451, 0.0
    %v4405 = vadd.f32 %v4403, %v4404
    %v4406 = vsel %vm4036, %v3452, 0.0
    %v4407 = vadd.f32 %v4405, %v4406
    %v4408 = vsel %vm4036, %v3453, 0.0
    %v4409 = vadd.f32 %v4407, %v4408
    %v4410 = vsel %vm4036, %v3454, 0.0
    %v4411 = vadd.f32 %v4409, %v4410
    %v4412 = vsel %vm4036, %v3455, 0.0
    %v4413 = vadd.f32 %v4411, %v4412
    %v4414 = vsel %vm4036, %v3456, 0.0
    %v4415 = vadd.f32 %v4413, %v4414
    %v4416 = vsel %vm4036, %v3457, 0.0
    %v4417 = vadd.f32 %v4415, %v4416
    %v4418 = vsel %vm4036, %v3458, 0.0
    %v4419 = vadd.f32 %v4417, %v4418
    %v4420 = vsel %vm4036, %v3459, 0.0
    %v4421 = vadd.f32 %v4419, %v4420
    %v4422 = vsel %vm4036, %v3460, 0.0
    %v4423 = vadd.f32 %v4421, %v4422
    %v4424 = vsel %vm4036, %v3461, 0.0
    %v4425 = vadd.f32 %v4423, %v4424
    %v4426 = vsel %vm4036, %v3462, 0.0
    %v4427 = vadd.f32 %v4425, %v4426
    %v4428 = vsel %vm4036, %v3463, 0.0
    %v4429 = vadd.f32 %v4427, %v4428
    %v4430 = vsel %vm4036, %v3464, 0.0
    %v4431 = vadd.f32 %v4429, %v4430
    %v4432 = vsel %vm4036, %v3465, 0.0
    %v4433 = vadd.f32 %v4431, %v4432
    %v4434 = vsel %vm4036, %v3466, 0.0
    %v4435 = vadd.f32 %v4433, %v4434
    %v4436 = vsel %vm4036, %v3467, 0.0
    %v4437 = vadd.f32 %v4435, %v4436
    %v4438 = vsel %vm4036, %v3468, 0.0
    %v4439 = vadd.f32 %v4437, %v4438
    %v4440 = vsel %vm4036, %v3469, 0.0
    %v4441 = vadd.f32 %v4439, %v4440
    %v4442 = vsel %vm4036, %v3470, 0.0
    %v4443 = vadd.f32 %v4441, %v4442
    %v4444 = vsel %vm4036, %v3471, 0.0
    %v4445 = vadd.f32 %v4443, %v4444
    %v4446 = vsel %vm4036, %v3472, 0.0
    %v4447 = vadd.f32 %v4445, %v4446
    %v4448 = vsel %vm4036, %v3473, 0.0
    %v4449 = vadd.f32 %v4447, %v4448
    %v4450 = vsel %vm4036, %v3474, 0.0
    %v4451 = vadd.f32 %v4449, %v4450
    %v4452 = vsel %vm4036, %v3475, 0.0
    %v4453 = vadd.f32 %v4451, %v4452
    %v4454 = vsel %vm4036, %v3476, 0.0
    %v4455 = vadd.f32 %v4453, %v4454
    %v4456 = vsel %vm4036, %v3477, 0.0
    %v4457 = vadd.f32 %v4455, %v4456
    %v4458 = vsel %vm4036, %v3478, 0.0
    %v4459 = vadd.f32 %v4457, %v4458
    %v4460 = vsel %vm4036, %v3479, 0.0
    %v4461 = vadd.f32 %v4459, %v4460
    %v4462 = vsel %vm4036, %v3480, 0.0
    %v4463 = vadd.f32 %v4461, %v4462
    %v4464 = vsel %vm4036, %v3481, 0.0
    %v4465 = vadd.f32 %v4463, %v4464
    %v4466 = vsel %vm4036, %v3482, 0.0
    %v4467 = vadd.f32 %v4465, %v4466
    %v4468 = vsel %vm4036, %v3483, 0.0
    %v4469 = vadd.f32 %v4467, %v4468
    %v4470 = vsel %vm4036, %v3484, 0.0
    %v4471 = vadd.f32 %v4469, %v4470
    %v4472 = vsel %vm4036, %v3485, 0.0
    %v4473 = vadd.f32 %v4471, %v4472
    %v4474 = vsel %vm4036, %v3486, 0.0
    %v4475 = vadd.f32 %v4473, %v4474
    %v4476 = vsel %vm4036, %v3487, 0.0
    %v4477 = vadd.f32 %v4475, %v4476
    %v4478 = vsel %vm4036, %v3488, 0.0
    %v4479 = vadd.f32 %v4477, %v4478
    %v4480 = vsel %vm4036, %v3489, 0.0
    %v4481 = vadd.f32 %v4479, %v4480
    %v4482 = vsel %vm4036, %v3490, 0.0
    %v4483 = vadd.f32 %v4481, %v4482
    %v4484 = vsel %vm4036, %v3491, 0.0
    %v4485 = vadd.f32 %v4483, %v4484
    %v4486 = vsel %vm4036, %v3492, 0.0
    %v4487 = vadd.f32 %v4485, %v4486
    %v4488 = vsel %vm4036, %v3493, 0.0
    %v4489 = vadd.f32 %v4487, %v4488
    %v4490 = vsel %vm4036, %v3494, 0.0
    %v4491 = vadd.f32 %v4489, %v4490
    %v4492 = vsel %vm4036, %v3495, 0.0
    %v4493 = vadd.f32 %v4491, %v4492
    %v4494 = vsel %vm4036, %v3496, 0.0
    %v4495 = vadd.f32 %v4493, %v4494
    %v4496 = vsel %vm4036, %v3497, 0.0
    %v4497 = vadd.f32 %v4495, %v4496
    %v4498 = vsel %vm4036, %v3498, 0.0
    %v4499 = vadd.f32 %v4497, %v4498
    %v4500 = vsel %vm4036, %v3499, 0.0
    %v4501 = vadd.f32 %v4499, %v4500
    %v4502 = vsel %vm4036, %v3500, 0.0
    %v4503 = vadd.f32 %v4501, %v4502
    %v4504 = vsel %vm4036, %v3501, 0.0
    %v4505 = vadd.f32 %v4503, %v4504
    %v4506 = vsel %vm4036, %v3502, 0.0
    %v4507 = vadd.f32 %v4505, %v4506
    %v4508 = vsel %vm4036, %v3503, 0.0
    %v4509 = vadd.f32 %v4507, %v4508
    %v4510 = vsel %vm4036, %v3504, 0.0
    %v4511 = vadd.f32 %v4509, %v4510
    %v4512 = vsel %vm4036, %v3505, 0.0
    %v4513 = vadd.f32 %v4511, %v4512
    %v4514 = vsel %vm4036, %v3506, 0.0
    %v4515 = vadd.f32 %v4513, %v4514
    %v4516 = vsel %vm4036, %v3507, 0.0
    %v4517 = vadd.f32 %v4515, %v4516
    %v4518 = vsel %vm4036, %v3508, 0.0
    %v4519 = vadd.f32 %v4517, %v4518
    %v4520 = vsel %vm4036, %v3509, 0.0
    %v4521 = vadd.f32 %v4519, %v4520
    %v4522 = vsel %vm4036, %v3510, 0.0
    %v4523 = vadd.f32 %v4521, %v4522
    %v4524 = vsel %vm4036, %v3511, 0.0
    %v4525 = vadd.f32 %v4523, %v4524
    %v4526 = vsel %vm4036, %v3512, 0.0
    %v4527 = vadd.f32 %v4525, %v4526
    %v4528 = vsel %vm4036, %v3513, 0.0
    %v4529 = vadd.f32 %v4527, %v4528
    %v4530 = vsel %vm4036, %v3514, 0.0
    %v4531 = vadd.f32 %v4529, %v4530
    %v4532 = vsel %vm4036, %v3515, 0.0
    %v4533 = vadd.f32 %v4531, %v4532
    %v4534 = vsel %vm4036, %v3516, 0.0
    %v4535 = vadd.f32 %v4533, %v4534
    %v4536 = vsel %vm4036, %v3517, 0.0
    %v4537 = vadd.f32 %v4535, %v4536
    %v4538 = vsel %vm4036, %v3518, 0.0
    %v4539 = vadd.f32 %v4537, %v4538
    %v4540 = vsel %vm4036, %v3519, 0.0
    %v4541 = vadd.f32 %v4539, %v4540
    %v4542 = vsel %vm4036, %v3520, 0.0
    %v4543 = vadd.f32 %v4541, %v4542
    %v4544 = vsel %vm4036, %v3521, 0.0
    %v4545 = vadd.f32 %v4543, %v4544
    %v4546 = vsel %vm4036, %v3522, 0.0
    %v4547 = vadd.f32 %v4545, %v4546
    %v4548 = vsel %vm4036, %v3523, 0.0
    %v4549 = vadd.f32 %v4547, %v4548
    %v4550 = vsel %vm4036, %v3524, 0.0
    %v4551 = vadd.f32 %v4549, %v4550
    %v4552 = vsel %vm4036, %v3525, 0.0
    %v4553 = vadd.f32 %v4551, %v4552
    %v4554 = vsel %vm4036, %v3526, 0.0
    %v4555 = vadd.f32 %v4553, %v4554
    %v4556 = vsel %vm4036, %v3527, 0.0
    %v4557 = vadd.f32 %v4555, %v4556
    %v4558 = vsel %vm4036, %v3528, 0.0
    %v4559 = vadd.f32 %v4557, %v4558
    %v4560 = vsel %vm4036, %v3529, 0.0
    %v4561 = vadd.f32 %v4559, %v4560
    %v4562 = vsel %vm4036, %v3530, 0.0
    %v4563 = vadd.f32 %v4561, %v4562
    %v4564 = vsel %vm4036, %v3531, 0.0
    %v4565 = vadd.f32 %v4563, %v4564
    %v4566 = vsel %vm4036, %v3532, 0.0
    %v4567 = vadd.f32 %v4565, %v4566
    %v4568 = vsel %vm4036, %v3533, 0.0
    %v4569 = vadd.f32 %v4567, %v4568
    %v4570 = vsel %vm4036, %v3534, 0.0
    %v4571 = vadd.f32 %v4569, %v4570
    %v4572 = vsel %vm4036, %v3535, 0.0
    %v4573 = vadd.f32 %v4571, %v4572
    %v4574 = vsel %vm4036, %v3536, 0.0
    %v4575 = vadd.f32 %v4573, %v4574
    %v4576 = vsel %vm4036, %v3537, 0.0
    %v4577 = vadd.f32 %v4575, %v4576
    %v4578 = vsel %vm4036, %v3538, 0.0
    %v4579 = vadd.f32 %v4577, %v4578
    %v4580 = vsel %vm4036, %v3539, 0.0
    %v4581 = vadd.f32 %v4579, %v4580
    %v4582 = vsel %vm4036, %v3540, 0.0
    %v4583 = vadd.f32 %v4581, %v4582
    %v4584 = vsel %vm4036, %v3541, 0.0
    %v4585 = vadd.f32 %v4583, %v4584
    %v4586 = vsel %vm4036, %v3542, 0.0
    %v4587 = vadd.f32 %v4585, %v4586
    %v4588 = vsel %vm4036, %v3543, 0.0
    %v4589 = vadd.f32 %v4587, %v4588
    %v4590 = vsel %vm4036, %v3544, 0.0
    %v4591 = vadd.f32 %v4589, %v4590
    %v4592 = vsel %vm4036, %v3545, 0.0
    %v4593 = vadd.f32 %v4591, %v4592
    %v4594 = vsel %vm4036, %v3546, 0.0
    %v4595 = vadd.f32 %v4593, %v4594
    %v4596 = vsel %vm4036, %v3547, 0.0
    %v4597 = vadd.f32 %v4595, %v4596
    %v4598 = vsel %vm4036, %v3548, 0.0
    %v4599 = vadd.f32 %v4597, %v4598
    %v4600 = vsel %vm4036, %v3549, 0.0
    %v4601 = vadd.f32 %v4599, %v4600
    %v4602 = vsel %vm4036, %v3550, 0.0
    %v4603 = vadd.f32 %v4601, %v4602
    %v4604 = vsel %vm4036, %v3551, 0.0
    %v4605 = vadd.f32 %v4603, %v4604
    %v4606 = vsel %vm4036, %v3552, 0.0
    %v4607 = vadd.f32 %v4605, %v4606
    %v4608 = vsel %vm4036, %v3553, 0.0
    %v4609 = vadd.f32 %v4607, %v4608
    %v4610 = vsel %vm4036, %v3554, 0.0
    %v4611 = vadd.f32 %v4609, %v4610
    %v4612 = vsel %vm4036, %v3555, 0.0
    %v4613 = vadd.f32 %v4611, %v4612
    %v4614 = vsel %vm4036, %v3556, 0.0
    %v4615 = vadd.f32 %v4613, %v4614
    %v4616 = vsel %vm4036, %v3557, 0.0
    %v4617 = vadd.f32 %v4615, %v4616
    %v4618 = vsel %vm4036, %v3558, 0.0
    %v4619 = vadd.f32 %v4617, %v4618
    %v4620 = vsel %vm4036, %v3559, 0.0
    %v4621 = vadd.f32 %v4619, %v4620
    %v4622 = vsel %vm4036, %v3560, 0.0
    %v4623 = vadd.f32 %v4621, %v4622
    %v4624 = vsel %vm4036, %v3561, 0.0
    %v4625 = vadd.f32 %v4623, %v4624
    %v4626 = vsel %vm4036, %v3562, 0.0
    %v4627 = vadd.f32 %v4625, %v4626
    %v4628 = vsel %vm4036, %v3563, 0.0
    %v4629 = vadd.f32 %v4627, %v4628
    %v4630 = vsel %vm4036, %v3564, 0.0
    %v4631 = vadd.f32 %v4629, %v4630
    %v4632 = vsel %vm4036, %v3565, 0.0
    %v4633 = vadd.f32 %v4631, %v4632
    %v4634 = vsel %vm4036, %v3566, 0.0
    %v4635 = vadd.f32 %v4633, %v4634
    %v4636 = vsel %vm4036, %v3567, 0.0
    %v4637 = vadd.f32 %v4635, %v4636
    %v4638 = vsel %vm4036, %v3568, 0.0
    %v4639 = vadd.f32 %v4637, %v4638
    %v4640 = vsel %vm4036, %v3569, 0.0
    %v4641 = vadd.f32 %v4639, %v4640
    %v4642 = vsel %vm4036, %v3570, 0.0
    %v4643 = vadd.f32 %v4641, %v4642
    %v4644 = vsel %vm4036, %v3571, 0.0
    %v4645 = vadd.f32 %v4643, %v4644
    %v4646 = vsel %vm4036, %v3572, 0.0
    %v4647 = vadd.f32 %v4645, %v4646
    %v4648 = vsel %vm4036, %v3573, 0.0
    %v4649 = vadd.f32 %v4647, %v4648
    %v4650 = vsel %vm4036, %v3574, 0.0
    %v4651 = vadd.f32 %v4649, %v4650
    %v4652 = vsel %vm4036, %v3575, 0.0
    %v4653 = vadd.f32 %v4651, %v4652
    %v4654 = vsel %vm4036, %v3576, 0.0
    %v4655 = vadd.f32 %v4653, %v4654
    %v4656 = vsel %vm4036, %v3577, 0.0
    %v4657 = vadd.f32 %v4655, %v4656
    %v4658 = vsel %vm4036, %v3578, 0.0
    %v4659 = vadd.f32 %v4657, %v4658
    %v4660 = vsel %vm4036, %v3579, 0.0
    %v4661 = vadd.f32 %v4659, %v4660
    %v4662 = vsel %vm4036, %v3580, 0.0
    %v4663 = vadd.f32 %v4661, %v4662
    %v4664 = vsel %vm4036, %v3581, 0.0
    %v4665 = vadd.f32 %v4663, %v4664
    %v4666 = vsel %vm4036, %v3582, 0.0
    %v4667 = vadd.f32 %v4665, %v4666
    %v4668 = vsel %vm4036, %v3583, 0.0
    %v4669 = vadd.f32 %v4667, %v4668
    %v4670 = vsel %vm4036, %v3584, 0.0
    %v4671 = vadd.f32 %v4669, %v4670
    %v4672 = vsel %vm4036, %v3585, 0.0
    %v4673 = vadd.f32 %v4671, %v4672
    %v4674 = vsel %vm4036, %v3586, 0.0
    %v4675 = vadd.f32 %v4673, %v4674
    %v4676 = vsel %vm4036, %v3587, 0.0
    %v4677 = vadd.f32 %v4675, %v4676
    %v4678 = vsel %vm4036, %v3588, 0.0
    %v4679 = vadd.f32 %v4677, %v4678
    %v4680 = vsel %vm4036, %v3589, 0.0
    %v4681 = vadd.f32 %v4679, %v4680
    %v4682 = vsel %vm4036, %v3590, 0.0
    %v4683 = vadd.f32 %v4681, %v4682
    %v4684 = vsel %vm4036, %v3591, 0.0
    %v4685 = vadd.f32 %v4683, %v4684
    %v4686 = vsel %vm4036, %v3592, 0.0
    %v4687 = vadd.f32 %v4685, %v4686
    %v4688 = vsel %vm4036, %v3593, 0.0
    %v4689 = vadd.f32 %v4687, %v4688
    %v4690 = vsel %vm4036, %v3594, 0.0
    %v4691 = vadd.f32 %v4689, %v4690
    %v4692 = vsel %vm4036, %v3595, 0.0
    %v4693 = vadd.f32 %v4691, %v4692
    %v4694 = vsel %vm4036, %v3596, 0.0
    %v4695 = vadd.f32 %v4693, %v4694
    %v4696 = vsel %vm4036, %v3597, 0.0
    %v4697 = vadd.f32 %v4695, %v4696
    %v4698 = vsel %vm4036, %v3598, 0.0
    %v4699 = vadd.f32 %v4697, %v4698
    %v4700 = vsel %vm4036, %v3599, 0.0
    %v4701 = vadd.f32 %v4699, %v4700
    %v4702 = vsel %vm4036, %v3600, 0.0
    %v4703 = vadd.f32 %v4701, %v4702
    %v4704 = vsel %vm4036, %v3601, 0.0
    %v4705 = vadd.f32 %v4703, %v4704
    %v4706 = vsel %vm4036, %v3602, 0.0
    %v4707 = vadd.f32 %v4705, %v4706
    %v4708 = vsel %vm4036, %v3603, 0.0
    %v4709 = vadd.f32 %v4707, %v4708
    %v4710 = vsel %vm4036, %v3604, 0.0
    %v4711 = vadd.f32 %v4709, %v4710
    %v4712 = vsel %vm4036, %v3605, 0.0
    %v4713 = vadd.f32 %v4711, %v4712
    %v4714 = vsel %vm4036, %v3606, 0.0
    %v4715 = vadd.f32 %v4713, %v4714
    %v4716 = vsel %vm4036, %v3607, 0.0
    %v4717 = vadd.f32 %v4715, %v4716
    %v4718 = vsel %vm4036, %v3608, 0.0
    %v4719 = vadd.f32 %v4717, %v4718
    %v4720 = vsel %vm4036, %v3609, 0.0
    %v4721 = vadd.f32 %v4719, %v4720
    %v4722 = vsel %vm4036, %v3610, 0.0
    %v4723 = vadd.f32 %v4721, %v4722
    %v4724 = vsel %vm4036, %v3611, 0.0
    %v4725 = vadd.f32 %v4723, %v4724
    %v4726 = vsel %vm4036, %v3612, 0.0
    %v4727 = vadd.f32 %v4725, %v4726
    %v4728 = vsel %vm4036, %v3613, 0.0
    %v4729 = vadd.f32 %v4727, %v4728
    %v4730 = vsel %vm4036, %v3614, 0.0
    %v4731 = vadd.f32 %v4729, %v4730
    %v4732 = vsel %vm4036, %v3615, 0.0
    %v4733 = vadd.f32 %v4731, %v4732
    %v4734 = vsel %vm4036, %v3616, 0.0
    %v4735 = vadd.f32 %v4733, %v4734
    %v4736 = vsel %vm4036, %v3617, 0.0
    %v4737 = vadd.f32 %v4735, %v4736
    %v4738 = vsel %vm4036, %v3618, 0.0
    %v4739 = vadd.f32 %v4737, %v4738
    %v4740 = vsel %vm4036, %v3619, 0.0
    %v4741 = vadd.f32 %v4739, %v4740
    %v4742 = vsel %vm4036, %v3620, 0.0
    %v4743 = vadd.f32 %v4741, %v4742
    %v4744 = vsel %vm4036, %v3621, 0.0
    %v4745 = vadd.f32 %v4743, %v4744
    %v4746 = vsel %vm4036, %v3622, 0.0
    %v4747 = vadd.f32 %v4745, %v4746
    %v4748 = vsel %vm4036, %v3623, 0.0
    %v4749 = vadd.f32 %v4747, %v4748
    %v4750 = vsel %vm4036, %v3624, 0.0
    %v4751 = vadd.f32 %v4749, %v4750
    %v4752 = vsel %vm4036, %v3625, 0.0
    %v4753 = vadd.f32 %v4751, %v4752
    %v4754 = vsel %vm4036, %v3626, 0.0
    %v4755 = vadd.f32 %v4753, %v4754
    %v4756 = vsel %vm4036, %v3627, 0.0
    %v4757 = vadd.f32 %v4755, %v4756
    %v4758 = vsel %vm4036, %v3628, 0.0
    %v4759 = vadd.f32 %v4757, %v4758
    %v4760 = vsel %vm4036, %v3629, 0.0
    %v4761 = vadd.f32 %v4759, %v4760
    %v4762 = vsel %vm4036, %v3630, 0.0
    %v4763 = vadd.f32 %v4761, %v4762
    %v4764 = vsel %vm4036, %v3631, 0.0
    %v4765 = vadd.f32 %v4763, %v4764
    %v4766 = vsel %vm4036, %v3632, 0.0
    %v4767 = vadd.f32 %v4765, %v4766
    %v4768 = vsel %vm4036, %v3633, 0.0
    %v4769 = vadd.f32 %v4767, %v4768
    %v4770 = vsel %vm4036, %v3634, 0.0
    %v4771 = vadd.f32 %v4769, %v4770
    %v4772 = vsel %vm4036, %v3635, 0.0
    %v4773 = vadd.f32 %v4771, %v4772
    %v4774 = vsel %vm4036, %v3636, 0.0
    %v4775 = vadd.f32 %v4773, %v4774
    %v4776 = vsel %vm4036, %v3637, 0.0
    %v4777 = vadd.f32 %v4775, %v4776
    %v4778 = vsel %vm4036, %v3638, 0.0
    %v4779 = vadd.f32 %v4777, %v4778
    %v4780 = vsel %vm4036, %v3639, 0.0
    %v4781 = vadd.f32 %v4779, %v4780
    %v4782 = vsel %vm4036, %v3640, 0.0
    %v4783 = vadd.f32 %v4781, %v4782
    %v4784 = vsel %vm4036, %v3641, 0.0
    %v4785 = vadd.f32 %v4783, %v4784
    %v4786 = vsel %vm4036, %v3642, 0.0
    %v4787 = vadd.f32 %v4785, %v4786
    %v4788 = vsel %vm4036, %v3643, 0.0
    %v4789 = vadd.f32 %v4787, %v4788
    %v4790 = vsel %vm4036, %v3644, 0.0
    %v4791 = vadd.f32 %v4789, %v4790
    %v4792 = vsel %vm4036, %v3645, 0.0
    %v4793 = vadd.f32 %v4791, %v4792
    %v4794 = vsel %vm4036, %v3646, 0.0
    %v4795 = vadd.f32 %v4793, %v4794
    %v4796 = vsel %vm4036, %v3647, 0.0
    %v4797 = vadd.f32 %v4795, %v4796
    %v4798 = vsel %vm4036, %v3648, 0.0
    %v4799 = vadd.f32 %v4797, %v4798
    %v4800 = vsel %vm4036, %v3649, 0.0
    %v4801 = vadd.f32 %v4799, %v4800
    %v4802 = vsel %vm4036, %v3650, 0.0
    %v4803 = vadd.f32 %v4801, %v4802
    %4804 = vadd.xlane.f32.xlu0 %v4803
    %v4805 = vpop.xlane.xlu0 %4804
    %s4806 = scalar_lea.vmem [#allocation2], 1
    %v4807 = vld [vmem:[%s4806] ss:$2 sm:$0xff]
    %s4808 = scalar_lea.vmem [#allocation2], 17
    %v4809 = vld [vmem:[%s4808] ss:$2 sm:$0xff]
    %s4810 = scalar_lea.vmem [#allocation2], 33
    %v4811 = vld [vmem:[%s4810] ss:$2 sm:$0xff]
    %s4812 = scalar_lea.vmem [#allocation2], 49
    %v4813 = vld [vmem:[%s4812] ss:$2 sm:$0xff]
    %s4814 = scalar_lea.vmem [#allocation2], 65
    %v4815 = vld [vmem:[%s4814] ss:$2 sm:$0xff]
    %s4816 = scalar_lea.vmem [#allocation2], 81
    %v4817 = vld [vmem:[%s4816] ss:$2 sm:$0xff]
    %s4818 = scalar_lea.vmem [#allocation2], 97
    %v4819 = vld [vmem:[%s4818] ss:$2 sm:$0xff]
    %s4820 = scalar_lea.vmem [#allocation2], 113
    %v4821 = vld [vmem:[%s4820] ss:$2 sm:$0xff]
    %s4822 = scalar_lea.vmem [#allocation2], 129
    %v4823 = vld [vmem:[%s4822] ss:$2 sm:$0xff]
    %s4824 = scalar_lea.vmem [#allocation2], 145
    %v4825 = vld [vmem:[%s4824] ss:$2 sm:$0xff]
    %s4826 = scalar_lea.vmem [#allocation2], 161
    %v4827 = vld [vmem:[%s4826] ss:$2 sm:$0xff]
    %s4828 = scalar_lea.vmem [#allocation2], 177
    %v4829 = vld [vmem:[%s4828] ss:$2 sm:$0xff]
    %s4830 = scalar_lea.vmem [#allocation2], 193
    %v4831 = vld [vmem:[%s4830] ss:$2 sm:$0xff]
    %s4832 = scalar_lea.vmem [#allocation2], 209
    %v4833 = vld [vmem:[%s4832] ss:$2 sm:$0xff]
    %s4834 = scalar_lea.vmem [#allocation2], 225
    %v4835 = vld [vmem:[%s4834] ss:$2 sm:$0xff]
    %s4836 = scalar_lea.vmem [#allocation2], 241
    %v4837 = vld [vmem:[%s4836] ss:$2 sm:$0xff]
    %s4838 = scalar_lea.vmem [#allocation2], 257
    %v4839 = vld [vmem:[%s4838] ss:$2 sm:$0xff]
    %s4840 = scalar_lea.vmem [#allocation2], 273
    %v4841 = vld [vmem:[%s4840] ss:$2 sm:$0xff]
    %s4842 = scalar_lea.vmem [#allocation2], 289
    %v4843 = vld [vmem:[%s4842] ss:$2 sm:$0xff]
    %s4844 = scalar_lea.vmem [#allocation2], 305
    %v4845 = vld [vmem:[%s4844] ss:$2 sm:$0xff]
    %s4846 = scalar_lea.vmem [#allocation2], 321
    %v4847 = vld [vmem:[%s4846] ss:$2 sm:$0xff]
    %s4848 = scalar_lea.vmem [#allocation2], 337
    %v4849 = vld [vmem:[%s4848] ss:$2 sm:$0xff]
    %s4850 = scalar_lea.vmem [#allocation2], 353
    %v4851 = vld [vmem:[%s4850] ss:$2 sm:$0xff]
    %s4852 = scalar_lea.vmem [#allocation2], 369
    %v4853 = vld [vmem:[%s4852] ss:$2 sm:$0xff]
    %s4854 = scalar_lea.vmem [#allocation2], 385
    %v4855 = vld [vmem:[%s4854] ss:$2 sm:$0xff]
    %s4856 = scalar_lea.vmem [#allocation2], 401
    %v4857 = vld [vmem:[%s4856] ss:$2 sm:$0xff]
    %s4858 = scalar_lea.vmem [#allocation2], 417
    %v4859 = vld [vmem:[%s4858] ss:$2 sm:$0xff]
    %s4860 = scalar_lea.vmem [#allocation2], 433
    %v4861 = vld [vmem:[%s4860] ss:$2 sm:$0xff]
    %s4862 = scalar_lea.vmem [#allocation2], 449
    %v4863 = vld [vmem:[%s4862] ss:$2 sm:$0xff]
    %s4864 = scalar_lea.vmem [#allocation2], 465
    %v4865 = vld [vmem:[%s4864] ss:$2 sm:$0xff]
    %s4866 = scalar_lea.vmem [#allocation2], 481
    %v4867 = vld [vmem:[%s4866] ss:$2 sm:$0xff]
    %s4868 = scalar_lea.vmem [#allocation2], 497
    %v4869 = vld [vmem:[%s4868] ss:$2 sm:$0xff]
    %s4870 = scalar_lea.vmem [#allocation2], 513
    %v4871 = vld [vmem:[%s4870] ss:$2 sm:$0xff]
    %s4872 = scalar_lea.vmem [#allocation2], 529
    %v4873 = vld [vmem:[%s4872] ss:$2 sm:$0xff]
    %s4874 = scalar_lea.vmem [#allocation2], 545
    %v4875 = vld [vmem:[%s4874] ss:$2 sm:$0xff]
    %s4876 = scalar_lea.vmem [#allocation2], 561
    %v4877 = vld [vmem:[%s4876] ss:$2 sm:$0xff]
    %s4878 = scalar_lea.vmem [#allocation2], 577
    %v4879 = vld [vmem:[%s4878] ss:$2 sm:$0xff]
    %s4880 = scalar_lea.vmem [#allocation2], 593
    %v4881 = vld [vmem:[%s4880] ss:$2 sm:$0xff]
    %s4882 = scalar_lea.vmem [#allocation2], 609
    %v4883 = vld [vmem:[%s4882] ss:$2 sm:$0xff]
    %s4884 = scalar_lea.vmem [#allocation2], 625
    %v4885 = vld [vmem:[%s4884] ss:$2 sm:$0xff]
    %s4886 = scalar_lea.vmem [#allocation2], 641
    %v4887 = vld [vmem:[%s4886] ss:$2 sm:$0xff]
    %s4888 = scalar_lea.vmem [#allocation2], 657
    %v4889 = vld [vmem:[%s4888] ss:$2 sm:$0xff]
    %s4890 = scalar_lea.vmem [#allocation2], 673
    %v4891 = vld [vmem:[%s4890] ss:$2 sm:$0xff]
    %s4892 = scalar_lea.vmem [#allocation2], 689
    %v4893 = vld [vmem:[%s4892] ss:$2 sm:$0xff]
    %s4894 = scalar_lea.vmem [#allocation2], 705
    %v4895 = vld [vmem:[%s4894] ss:$2 sm:$0xff]
    %s4896 = scalar_lea.vmem [#allocation2], 721
    %v4897 = vld [vmem:[%s4896] ss:$2 sm:$0xff]
    %s4898 = scalar_lea.vmem [#allocation2], 737
    %v4899 = vld [vmem:[%s4898] ss:$2 sm:$0xff]
    %s4900 = scalar_lea.vmem [#allocation2], 753
    %v4901 = vld [vmem:[%s4900] ss:$2 sm:$0xff]
    %v4950 = vlaneseq
    %v4951 = vshrl.u32 %v4950, 7
    %v4952 = vsub.s32 0, %v4951
    %v4953 = vrot.slane %v4807, %v4952
    %v4954 = vlaneseq
    %v4955 = vshrl.u32 %v4954, 7
    %v4956 = vsub.s32 1, %v4955
    %v4957 = vrot.slane %v4807, %v4956
    %v4958 = vlaneseq
    %v4959 = vshrl.u32 %v4958, 7
    %v4960 = vsub.s32 2, %v4959
    %v4961 = vrot.slane %v4807, %v4960
    %v4962 = vlaneseq
    %v4963 = vshrl.u32 %v4962, 7
    %v4964 = vsub.s32 3, %v4963
    %v4965 = vrot.slane %v4807, %v4964
    %v4966 = vlaneseq
    %v4967 = vshrl.u32 %v4966, 7
    %v4968 = vsub.s32 4, %v4967
    %v4969 = vrot.slane %v4807, %v4968
    %v4970 = vlaneseq
    %v4971 = vshrl.u32 %v4970, 7
    %v4972 = vsub.s32 5, %v4971
    %v4973 = vrot.slane %v4807, %v4972
    %v4974 = vlaneseq
    %v4975 = vshrl.u32 %v4974, 7
    %v4976 = vsub.s32 6, %v4975
    %v4977 = vrot.slane %v4807, %v4976
    %v4978 = vlaneseq
    %v4979 = vshrl.u32 %v4978, 7
    %v4980 = vsub.s32 7, %v4979
    %v4981 = vrot.slane %v4807, %v4980
    %v4982 = vlaneseq
    %v4983 = vshrl.u32 %v4982, 7
    %v4984 = vsub.s32 0, %v4983
    %v4985 = vrot.slane %v4809, %v4984
    %v4986 = vlaneseq
    %v4987 = vshrl.u32 %v4986, 7
    %v4988 = vsub.s32 1, %v4987
    %v4989 = vrot.slane %v4809, %v4988
    %v4990 = vlaneseq
    %v4991 = vshrl.u32 %v4990, 7
    %v4992 = vsub.s32 2, %v4991
    %v4993 = vrot.slane %v4809, %v4992
    %v4994 = vlaneseq
    %v4995 = vshrl.u32 %v4994, 7
    %v4996 = vsub.s32 3, %v4995
    %v4997 = vrot.slane %v4809, %v4996
    %v4998 = vlaneseq
    %v4999 = vshrl.u32 %v4998, 7
    %v5000 = vsub.s32 4, %v4999
    %v5001 = vrot.slane %v4809, %v5000
    %v5002 = vlaneseq
    %v5003 = vshrl.u32 %v5002, 7
    %v5004 = vsub.s32 5, %v5003
    %v5005 = vrot.slane %v4809, %v5004
    %v5006 = vlaneseq
    %v5007 = vshrl.u32 %v5006, 7
    %v5008 = vsub.s32 6, %v5007
    %v5009 = vrot.slane %v4809, %v5008
    %v5010 = vlaneseq
    %v5011 = vshrl.u32 %v5010, 7
    %v5012 = vsub.s32 7, %v5011
    %v5013 = vrot.slane %v4809, %v5012
    %v5014 = vlaneseq
    %v5015 = vshrl.u32 %v5014, 7
    %v5016 = vsub.s32 0, %v5015
    %v5017 = vrot.slane %v4811, %v5016
    %v5018 = vlaneseq
    %v5019 = vshrl.u32 %v5018, 7
    %v5020 = vsub.s32 1, %v5019
    %v5021 = vrot.slane %v4811, %v5020
    %v5022 = vlaneseq
    %v5023 = vshrl.u32 %v5022, 7
    %v5024 = vsub.s32 2, %v5023
    %v5025 = vrot.slane %v4811, %v5024
    %v5026 = vlaneseq
    %v5027 = vshrl.u32 %v5026, 7
    %v5028 = vsub.s32 3, %v5027
    %v5029 = vrot.slane %v4811, %v5028
    %v5030 = vlaneseq
    %v5031 = vshrl.u32 %v5030, 7
    %v5032 = vsub.s32 4, %v5031
    %v5033 = vrot.slane %v4811, %v5032
    %v5034 = vlaneseq
    %v5035 = vshrl.u32 %v5034, 7
    %v5036 = vsub.s32 5, %v5035
    %v5037 = vrot.slane %v4811, %v5036
    %v5038 = vlaneseq
    %v5039 = vshrl.u32 %v5038, 7
    %v5040 = vsub.s32 6, %v5039
    %v5041 = vrot.slane %v4811, %v5040
    %v5042 = vlaneseq
    %v5043 = vshrl.u32 %v5042, 7
    %v5044 = vsub.s32 7, %v5043
    %v5045 = vrot.slane %v4811, %v5044
    %v5046 = vlaneseq
    %v5047 = vshrl.u32 %v5046, 7
    %v5048 = vsub.s32 0, %v5047
    %v5049 = vrot.slane %v4813, %v5048
    %v5050 = vlaneseq
    %v5051 = vshrl.u32 %v5050, 7
    %v5052 = vsub.s32 1, %v5051
    %v5053 = vrot.slane %v4813, %v5052
    %v5054 = vlaneseq
    %v5055 = vshrl.u32 %v5054, 7
    %v5056 = vsub.s32 2, %v5055
    %v5057 = vrot.slane %v4813, %v5056
    %v5058 = vlaneseq
    %v5059 = vshrl.u32 %v5058, 7
    %v5060 = vsub.s32 3, %v5059
    %v5061 = vrot.slane %v4813, %v5060
    %v5062 = vlaneseq
    %v5063 = vshrl.u32 %v5062, 7
    %v5064 = vsub.s32 4, %v5063
    %v5065 = vrot.slane %v4813, %v5064
    %v5066 = vlaneseq
    %v5067 = vshrl.u32 %v5066, 7
    %v5068 = vsub.s32 5, %v5067
    %v5069 = vrot.slane %v4813, %v5068
    %v5070 = vlaneseq
    %v5071 = vshrl.u32 %v5070, 7
    %v5072 = vsub.s32 6, %v5071
    %v5073 = vrot.slane %v4813, %v5072
    %v5074 = vlaneseq
    %v5075 = vshrl.u32 %v5074, 7
    %v5076 = vsub.s32 7, %v5075
    %v5077 = vrot.slane %v4813, %v5076
    %v5078 = vlaneseq
    %v5079 = vshrl.u32 %v5078, 7
    %v5080 = vsub.s32 0, %v5079
    %v5081 = vrot.slane %v4815, %v5080
    %v5082 = vlaneseq
    %v5083 = vshrl.u32 %v5082, 7
    %v5084 = vsub.s32 1, %v5083
    %v5085 = vrot.slane %v4815, %v5084
    %v5086 = vlaneseq
    %v5087 = vshrl.u32 %v5086, 7
    %v5088 = vsub.s32 2, %v5087
    %v5089 = vrot.slane %v4815, %v5088
    %v5090 = vlaneseq
    %v5091 = vshrl.u32 %v5090, 7
    %v5092 = vsub.s32 3, %v5091
    %v5093 = vrot.slane %v4815, %v5092
    %v5094 = vlaneseq
    %v5095 = vshrl.u32 %v5094, 7
    %v5096 = vsub.s32 4, %v5095
    %v5097 = vrot.slane %v4815, %v5096
    %v5098 = vlaneseq
    %v5099 = vshrl.u32 %v5098, 7
    %v5100 = vsub.s32 5, %v5099
    %v5101 = vrot.slane %v4815, %v5100
    %v5102 = vlaneseq
    %v5103 = vshrl.u32 %v5102, 7
    %v5104 = vsub.s32 6, %v5103
    %v5105 = vrot.slane %v4815, %v5104
    %v5106 = vlaneseq
    %v5107 = vshrl.u32 %v5106, 7
    %v5108 = vsub.s32 7, %v5107
    %v5109 = vrot.slane %v4815, %v5108
    %v5110 = vlaneseq
    %v5111 = vshrl.u32 %v5110, 7
    %v5112 = vsub.s32 0, %v5111
    %v5113 = vrot.slane %v4817, %v5112
    %v5114 = vlaneseq
    %v5115 = vshrl.u32 %v5114, 7
    %v5116 = vsub.s32 1, %v5115
    %v5117 = vrot.slane %v4817, %v5116
    %v5118 = vlaneseq
    %v5119 = vshrl.u32 %v5118, 7
    %v5120 = vsub.s32 2, %v5119
    %v5121 = vrot.slane %v4817, %v5120
    %v5122 = vlaneseq
    %v5123 = vshrl.u32 %v5122, 7
    %v5124 = vsub.s32 3, %v5123
    %v5125 = vrot.slane %v4817, %v5124
    %v5126 = vlaneseq
    %v5127 = vshrl.u32 %v5126, 7
    %v5128 = vsub.s32 4, %v5127
    %v5129 = vrot.slane %v4817, %v5128
    %v5130 = vlaneseq
    %v5131 = vshrl.u32 %v5130, 7
    %v5132 = vsub.s32 5, %v5131
    %v5133 = vrot.slane %v4817, %v5132
    %v5134 = vlaneseq
    %v5135 = vshrl.u32 %v5134, 7
    %v5136 = vsub.s32 6, %v5135
    %v5137 = vrot.slane %v4817, %v5136
    %v5138 = vlaneseq
    %v5139 = vshrl.u32 %v5138, 7
    %v5140 = vsub.s32 7, %v5139
    %v5141 = vrot.slane %v4817, %v5140
    %v5142 = vlaneseq
    %v5143 = vshrl.u32 %v5142, 7
    %v5144 = vsub.s32 0, %v5143
    %v5145 = vrot.slane %v4819, %v5144
    %v5146 = vlaneseq
    %v5147 = vshrl.u32 %v5146, 7
    %v5148 = vsub.s32 1, %v5147
    %v5149 = vrot.slane %v4819, %v5148
    %v5150 = vlaneseq
    %v5151 = vshrl.u32 %v5150, 7
    %v5152 = vsub.s32 2, %v5151
    %v5153 = vrot.slane %v4819, %v5152
    %v5154 = vlaneseq
    %v5155 = vshrl.u32 %v5154, 7
    %v5156 = vsub.s32 3, %v5155
    %v5157 = vrot.slane %v4819, %v5156
    %v5158 = vlaneseq
    %v5159 = vshrl.u32 %v5158, 7
    %v5160 = vsub.s32 4, %v5159
    %v5161 = vrot.slane %v4819, %v5160
    %v5162 = vlaneseq
    %v5163 = vshrl.u32 %v5162, 7
    %v5164 = vsub.s32 5, %v5163
    %v5165 = vrot.slane %v4819, %v5164
    %v5166 = vlaneseq
    %v5167 = vshrl.u32 %v5166, 7
    %v5168 = vsub.s32 6, %v5167
    %v5169 = vrot.slane %v4819, %v5168
    %v5170 = vlaneseq
    %v5171 = vshrl.u32 %v5170, 7
    %v5172 = vsub.s32 7, %v5171
    %v5173 = vrot.slane %v4819, %v5172
    %v5174 = vlaneseq
    %v5175 = vshrl.u32 %v5174, 7
    %v5176 = vsub.s32 0, %v5175
    %v5177 = vrot.slane %v4821, %v5176
    %v5178 = vlaneseq
    %v5179 = vshrl.u32 %v5178, 7
    %v5180 = vsub.s32 1, %v5179
    %v5181 = vrot.slane %v4821, %v5180
    %v5182 = vlaneseq
    %v5183 = vshrl.u32 %v5182, 7
    %v5184 = vsub.s32 2, %v5183
    %v5185 = vrot.slane %v4821, %v5184
    %v5186 = vlaneseq
    %v5187 = vshrl.u32 %v5186, 7
    %v5188 = vsub.s32 3, %v5187
    %v5189 = vrot.slane %v4821, %v5188
    %v5190 = vlaneseq
    %v5191 = vshrl.u32 %v5190, 7
    %v5192 = vsub.s32 4, %v5191
    %v5193 = vrot.slane %v4821, %v5192
    %v5194 = vlaneseq
    %v5195 = vshrl.u32 %v5194, 7
    %v5196 = vsub.s32 5, %v5195
    %v5197 = vrot.slane %v4821, %v5196
    %v5198 = vlaneseq
    %v5199 = vshrl.u32 %v5198, 7
    %v5200 = vsub.s32 6, %v5199
    %v5201 = vrot.slane %v4821, %v5200
    %v5202 = vlaneseq
    %v5203 = vshrl.u32 %v5202, 7
    %v5204 = vsub.s32 7, %v5203
    %v5205 = vrot.slane %v4821, %v5204
    %v5206 = vlaneseq
    %v5207 = vshrl.u32 %v5206, 7
    %v5208 = vsub.s32 0, %v5207
    %v5209 = vrot.slane %v4823, %v5208
    %v5210 = vlaneseq
    %v5211 = vshrl.u32 %v5210, 7
    %v5212 = vsub.s32 1, %v5211
    %v5213 = vrot.slane %v4823, %v5212
    %v5214 = vlaneseq
    %v5215 = vshrl.u32 %v5214, 7
    %v5216 = vsub.s32 2, %v5215
    %v5217 = vrot.slane %v4823, %v5216
    %v5218 = vlaneseq
    %v5219 = vshrl.u32 %v5218, 7
    %v5220 = vsub.s32 3, %v5219
    %v5221 = vrot.slane %v4823, %v5220
    %v5222 = vlaneseq
    %v5223 = vshrl.u32 %v5222, 7
    %v5224 = vsub.s32 4, %v5223
    %v5225 = vrot.slane %v4823, %v5224
    %v5226 = vlaneseq
    %v5227 = vshrl.u32 %v5226, 7
    %v5228 = vsub.s32 5, %v5227
    %v5229 = vrot.slane %v4823, %v5228
    %v5230 = vlaneseq
    %v5231 = vshrl.u32 %v5230, 7
    %v5232 = vsub.s32 6, %v5231
    %v5233 = vrot.slane %v4823, %v5232
    %v5234 = vlaneseq
    %v5235 = vshrl.u32 %v5234, 7
    %v5236 = vsub.s32 7, %v5235
    %v5237 = vrot.slane %v4823, %v5236
    %v5238 = vlaneseq
    %v5239 = vshrl.u32 %v5238, 7
    %v5240 = vsub.s32 0, %v5239
    %v5241 = vrot.slane %v4825, %v5240
    %v5242 = vlaneseq
    %v5243 = vshrl.u32 %v5242, 7
    %v5244 = vsub.s32 1, %v5243
    %v5245 = vrot.slane %v4825, %v5244
    %v5246 = vlaneseq
    %v5247 = vshrl.u32 %v5246, 7
    %v5248 = vsub.s32 2, %v5247
    %v5249 = vrot.slane %v4825, %v5248
    %v5250 = vlaneseq
    %v5251 = vshrl.u32 %v5250, 7
    %v5252 = vsub.s32 3, %v5251
    %v5253 = vrot.slane %v4825, %v5252
    %v5254 = vlaneseq
    %v5255 = vshrl.u32 %v5254, 7
    %v5256 = vsub.s32 4, %v5255
    %v5257 = vrot.slane %v4825, %v5256
    %v5258 = vlaneseq
    %v5259 = vshrl.u32 %v5258, 7
    %v5260 = vsub.s32 5, %v5259
    %v5261 = vrot.slane %v4825, %v5260
    %v5262 = vlaneseq
    %v5263 = vshrl.u32 %v5262, 7
    %v5264 = vsub.s32 6, %v5263
    %v5265 = vrot.slane %v4825, %v5264
    %v5266 = vlaneseq
    %v5267 = vshrl.u32 %v5266, 7
    %v5268 = vsub.s32 7, %v5267
    %v5269 = vrot.slane %v4825, %v5268
    %v5270 = vlaneseq
    %v5271 = vshrl.u32 %v5270, 7
    %v5272 = vsub.s32 0, %v5271
    %v5273 = vrot.slane %v4827, %v5272
    %v5274 = vlaneseq
    %v5275 = vshrl.u32 %v5274, 7
    %v5276 = vsub.s32 1, %v5275
    %v5277 = vrot.slane %v4827, %v5276
    %v5278 = vlaneseq
    %v5279 = vshrl.u32 %v5278, 7
    %v5280 = vsub.s32 2, %v5279
    %v5281 = vrot.slane %v4827, %v5280
    %v5282 = vlaneseq
    %v5283 = vshrl.u32 %v5282, 7
    %v5284 = vsub.s32 3, %v5283
    %v5285 = vrot.slane %v4827, %v5284
    %v5286 = vlaneseq
    %v5287 = vshrl.u32 %v5286, 7
    %v5288 = vsub.s32 4, %v5287
    %v5289 = vrot.slane %v4827, %v5288
    %v5290 = vlaneseq
    %v5291 = vshrl.u32 %v5290, 7
    %v5292 = vsub.s32 5, %v5291
    %v5293 = vrot.slane %v4827, %v5292
    %v5294 = vlaneseq
    %v5295 = vshrl.u32 %v5294, 7
    %v5296 = vsub.s32 6, %v5295
    %v5297 = vrot.slane %v4827, %v5296
    %v5298 = vlaneseq
    %v5299 = vshrl.u32 %v5298, 7
    %v5300 = vsub.s32 7, %v5299
    %v5301 = vrot.slane %v4827, %v5300
    %v5302 = vlaneseq
    %v5303 = vshrl.u32 %v5302, 7
    %v5304 = vsub.s32 0, %v5303
    %v5305 = vrot.slane %v4829, %v5304
    %v5306 = vlaneseq
    %v5307 = vshrl.u32 %v5306, 7
    %v5308 = vsub.s32 1, %v5307
    %v5309 = vrot.slane %v4829, %v5308
    %v5310 = vlaneseq
    %v5311 = vshrl.u32 %v5310, 7
    %v5312 = vsub.s32 2, %v5311
    %v5313 = vrot.slane %v4829, %v5312
    %v5314 = vlaneseq
    %v5315 = vshrl.u32 %v5314, 7
    %v5316 = vsub.s32 3, %v5315
    %v5317 = vrot.slane %v4829, %v5316
    %v5318 = vlaneseq
    %v5319 = vshrl.u32 %v5318, 7
    %v5320 = vsub.s32 4, %v5319
    %v5321 = vrot.slane %v4829, %v5320
    %v5322 = vlaneseq
    %v5323 = vshrl.u32 %v5322, 7
    %v5324 = vsub.s32 5, %v5323
    %v5325 = vrot.slane %v4829, %v5324
    %v5326 = vlaneseq
    %v5327 = vshrl.u32 %v5326, 7
    %v5328 = vsub.s32 6, %v5327
    %v5329 = vrot.slane %v4829, %v5328
    %v5330 = vlaneseq
    %v5331 = vshrl.u32 %v5330, 7
    %v5332 = vsub.s32 7, %v5331
    %v5333 = vrot.slane %v4829, %v5332
    %v5334 = vlaneseq
    %v5335 = vshrl.u32 %v5334, 7
    %v5336 = vsub.s32 0, %v5335
    %v5337 = vrot.slane %v4831, %v5336
    %v5338 = vlaneseq
    %v5339 = vshrl.u32 %v5338, 7
    %v5340 = vsub.s32 1, %v5339
    %v5341 = vrot.slane %v4831, %v5340
    %v5342 = vlaneseq
    %v5343 = vshrl.u32 %v5342, 7
    %v5344 = vsub.s32 2, %v5343
    %v5345 = vrot.slane %v4831, %v5344
    %v5346 = vlaneseq
    %v5347 = vshrl.u32 %v5346, 7
    %v5348 = vsub.s32 3, %v5347
    %v5349 = vrot.slane %v4831, %v5348
    %v5350 = vlaneseq
    %v5351 = vshrl.u32 %v5350, 7
    %v5352 = vsub.s32 4, %v5351
    %v5353 = vrot.slane %v4831, %v5352
    %v5354 = vlaneseq
    %v5355 = vshrl.u32 %v5354, 7
    %v5356 = vsub.s32 5, %v5355
    %v5357 = vrot.slane %v4831, %v5356
    %v5358 = vlaneseq
    %v5359 = vshrl.u32 %v5358, 7
    %v5360 = vsub.s32 6, %v5359
    %v5361 = vrot.slane %v4831, %v5360
    %v5362 = vlaneseq
    %v5363 = vshrl.u32 %v5362, 7
    %v5364 = vsub.s32 7, %v5363
    %v5365 = vrot.slane %v4831, %v5364
    %v5366 = vlaneseq
    %v5367 = vshrl.u32 %v5366, 7
    %v5368 = vsub.s32 0, %v5367
    %v5369 = vrot.slane %v4833, %v5368
    %v5370 = vlaneseq
    %v5371 = vshrl.u32 %v5370, 7
    %v5372 = vsub.s32 1, %v5371
    %v5373 = vrot.slane %v4833, %v5372
    %v5374 = vlaneseq
    %v5375 = vshrl.u32 %v5374, 7
    %v5376 = vsub.s32 2, %v5375
    %v5377 = vrot.slane %v4833, %v5376
    %v5378 = vlaneseq
    %v5379 = vshrl.u32 %v5378, 7
    %v5380 = vsub.s32 3, %v5379
    %v5381 = vrot.slane %v4833, %v5380
    %v5382 = vlaneseq
    %v5383 = vshrl.u32 %v5382, 7
    %v5384 = vsub.s32 4, %v5383
    %v5385 = vrot.slane %v4833, %v5384
    %v5386 = vlaneseq
    %v5387 = vshrl.u32 %v5386, 7
    %v5388 = vsub.s32 5, %v5387
    %v5389 = vrot.slane %v4833, %v5388
    %v5390 = vlaneseq
    %v5391 = vshrl.u32 %v5390, 7
    %v5392 = vsub.s32 6, %v5391
    %v5393 = vrot.slane %v4833, %v5392
    %v5394 = vlaneseq
    %v5395 = vshrl.u32 %v5394, 7
    %v5396 = vsub.s32 7, %v5395
    %v5397 = vrot.slane %v4833, %v5396
    %v5398 = vlaneseq
    %v5399 = vshrl.u32 %v5398, 7
    %v5400 = vsub.s32 0, %v5399
    %v5401 = vrot.slane %v4835, %v5400
    %v5402 = vlaneseq
    %v5403 = vshrl.u32 %v5402, 7
    %v5404 = vsub.s32 1, %v5403
    %v5405 = vrot.slane %v4835, %v5404
    %v5406 = vlaneseq
    %v5407 = vshrl.u32 %v5406, 7
    %v5408 = vsub.s32 2, %v5407
    %v5409 = vrot.slane %v4835, %v5408
    %v5410 = vlaneseq
    %v5411 = vshrl.u32 %v5410, 7
    %v5412 = vsub.s32 3, %v5411
    %v5413 = vrot.slane %v4835, %v5412
    %v5414 = vlaneseq
    %v5415 = vshrl.u32 %v5414, 7
    %v5416 = vsub.s32 4, %v5415
    %v5417 = vrot.slane %v4835, %v5416
    %v5418 = vlaneseq
    %v5419 = vshrl.u32 %v5418, 7
    %v5420 = vsub.s32 5, %v5419
    %v5421 = vrot.slane %v4835, %v5420
    %v5422 = vlaneseq
    %v5423 = vshrl.u32 %v5422, 7
    %v5424 = vsub.s32 6, %v5423
    %v5425 = vrot.slane %v4835, %v5424
    %v5426 = vlaneseq
    %v5427 = vshrl.u32 %v5426, 7
    %v5428 = vsub.s32 7, %v5427
    %v5429 = vrot.slane %v4835, %v5428
    %v5430 = vlaneseq
    %v5431 = vshrl.u32 %v5430, 7
    %v5432 = vsub.s32 0, %v5431
    %v5433 = vrot.slane %v4837, %v5432
    %v5434 = vlaneseq
    %v5435 = vshrl.u32 %v5434, 7
    %v5436 = vsub.s32 1, %v5435
    %v5437 = vrot.slane %v4837, %v5436
    %v5438 = vlaneseq
    %v5439 = vshrl.u32 %v5438, 7
    %v5440 = vsub.s32 2, %v5439
    %v5441 = vrot.slane %v4837, %v5440
    %v5442 = vlaneseq
    %v5443 = vshrl.u32 %v5442, 7
    %v5444 = vsub.s32 3, %v5443
    %v5445 = vrot.slane %v4837, %v5444
    %v5446 = vlaneseq
    %v5447 = vshrl.u32 %v5446, 7
    %v5448 = vsub.s32 4, %v5447
    %v5449 = vrot.slane %v4837, %v5448
    %v5450 = vlaneseq
    %v5451 = vshrl.u32 %v5450, 7
    %v5452 = vsub.s32 5, %v5451
    %v5453 = vrot.slane %v4837, %v5452
    %v5454 = vlaneseq
    %v5455 = vshrl.u32 %v5454, 7
    %v5456 = vsub.s32 6, %v5455
    %v5457 = vrot.slane %v4837, %v5456
    %v5458 = vlaneseq
    %v5459 = vshrl.u32 %v5458, 7
    %v5460 = vsub.s32 7, %v5459
    %v5461 = vrot.slane %v4837, %v5460
    %v5462 = vlaneseq
    %v5463 = vshrl.u32 %v5462, 7
    %v5464 = vsub.s32 0, %v5463
    %v5465 = vrot.slane %v4839, %v5464
    %v5466 = vlaneseq
    %v5467 = vshrl.u32 %v5466, 7
    %v5468 = vsub.s32 1, %v5467
    %v5469 = vrot.slane %v4839, %v5468
    %v5470 = vlaneseq
    %v5471 = vshrl.u32 %v5470, 7
    %v5472 = vsub.s32 2, %v5471
    %v5473 = vrot.slane %v4839, %v5472
    %v5474 = vlaneseq
    %v5475 = vshrl.u32 %v5474, 7
    %v5476 = vsub.s32 3, %v5475
    %v5477 = vrot.slane %v4839, %v5476
    %v5478 = vlaneseq
    %v5479 = vshrl.u32 %v5478, 7
    %v5480 = vsub.s32 4, %v5479
    %v5481 = vrot.slane %v4839, %v5480
    %v5482 = vlaneseq
    %v5483 = vshrl.u32 %v5482, 7
    %v5484 = vsub.s32 5, %v5483
    %v5485 = vrot.slane %v4839, %v5484
    %v5486 = vlaneseq
    %v5487 = vshrl.u32 %v5486, 7
    %v5488 = vsub.s32 6, %v5487
    %v5489 = vrot.slane %v4839, %v5488
    %v5490 = vlaneseq
    %v5491 = vshrl.u32 %v5490, 7
    %v5492 = vsub.s32 7, %v5491
    %v5493 = vrot.slane %v4839, %v5492
    %v5494 = vlaneseq
    %v5495 = vshrl.u32 %v5494, 7
    %v5496 = vsub.s32 0, %v5495
    %v5497 = vrot.slane %v4841, %v5496
    %v5498 = vlaneseq
    %v5499 = vshrl.u32 %v5498, 7
    %v5500 = vsub.s32 1, %v5499
    %v5501 = vrot.slane %v4841, %v5500
    %v5502 = vlaneseq
    %v5503 = vshrl.u32 %v5502, 7
    %v5504 = vsub.s32 2, %v5503
    %v5505 = vrot.slane %v4841, %v5504
    %v5506 = vlaneseq
    %v5507 = vshrl.u32 %v5506, 7
    %v5508 = vsub.s32 3, %v5507
    %v5509 = vrot.slane %v4841, %v5508
    %v5510 = vlaneseq
    %v5511 = vshrl.u32 %v5510, 7
    %v5512 = vsub.s32 4, %v5511
    %v5513 = vrot.slane %v4841, %v5512
    %v5514 = vlaneseq
    %v5515 = vshrl.u32 %v5514, 7
    %v5516 = vsub.s32 5, %v5515
    %v5517 = vrot.slane %v4841, %v5516
    %v5518 = vlaneseq
    %v5519 = vshrl.u32 %v5518, 7
    %v5520 = vsub.s32 6, %v5519
    %v5521 = vrot.slane %v4841, %v5520
    %v5522 = vlaneseq
    %v5523 = vshrl.u32 %v5522, 7
    %v5524 = vsub.s32 7, %v5523
    %v5525 = vrot.slane %v4841, %v5524
    %v5526 = vlaneseq
    %v5527 = vshrl.u32 %v5526, 7
    %v5528 = vsub.s32 0, %v5527
    %v5529 = vrot.slane %v4843, %v5528
    %v5530 = vlaneseq
    %v5531 = vshrl.u32 %v5530, 7
    %v5532 = vsub.s32 1, %v5531
    %v5533 = vrot.slane %v4843, %v5532
    %v5534 = vlaneseq
    %v5535 = vshrl.u32 %v5534, 7
    %v5536 = vsub.s32 2, %v5535
    %v5537 = vrot.slane %v4843, %v5536
    %v5538 = vlaneseq
    %v5539 = vshrl.u32 %v5538, 7
    %v5540 = vsub.s32 3, %v5539
    %v5541 = vrot.slane %v4843, %v5540
    %v5542 = vlaneseq
    %v5543 = vshrl.u32 %v5542, 7
    %v5544 = vsub.s32 4, %v5543
    %v5545 = vrot.slane %v4843, %v5544
    %v5546 = vlaneseq
    %v5547 = vshrl.u32 %v5546, 7
    %v5548 = vsub.s32 5, %v5547
    %v5549 = vrot.slane %v4843, %v5548
    %v5550 = vlaneseq
    %v5551 = vshrl.u32 %v5550, 7
    %v5552 = vsub.s32 6, %v5551
    %v5553 = vrot.slane %v4843, %v5552
    %v5554 = vlaneseq
    %v5555 = vshrl.u32 %v5554, 7
    %v5556 = vsub.s32 7, %v5555
    %v5557 = vrot.slane %v4843, %v5556
    %v5558 = vlaneseq
    %v5559 = vshrl.u32 %v5558, 7
    %v5560 = vsub.s32 0, %v5559
    %v5561 = vrot.slane %v4845, %v5560
    %v5562 = vlaneseq
    %v5563 = vshrl.u32 %v5562, 7
    %v5564 = vsub.s32 1, %v5563
    %v5565 = vrot.slane %v4845, %v5564
    %v5566 = vlaneseq
    %v5567 = vshrl.u32 %v5566, 7
    %v5568 = vsub.s32 2, %v5567
    %v5569 = vrot.slane %v4845, %v5568
    %v5570 = vlaneseq
    %v5571 = vshrl.u32 %v5570, 7
    %v5572 = vsub.s32 3, %v5571
    %v5573 = vrot.slane %v4845, %v5572
    %v5574 = vlaneseq
    %v5575 = vshrl.u32 %v5574, 7
    %v5576 = vsub.s32 4, %v5575
    %v5577 = vrot.slane %v4845, %v5576
    %v5578 = vlaneseq
    %v5579 = vshrl.u32 %v5578, 7
    %v5580 = vsub.s32 5, %v5579
    %v5581 = vrot.slane %v4845, %v5580
    %v5582 = vlaneseq
    %v5583 = vshrl.u32 %v5582, 7
    %v5584 = vsub.s32 6, %v5583
    %v5585 = vrot.slane %v4845, %v5584
    %v5586 = vlaneseq
    %v5587 = vshrl.u32 %v5586, 7
    %v5588 = vsub.s32 7, %v5587
    %v5589 = vrot.slane %v4845, %v5588
    %v5590 = vlaneseq
    %v5591 = vshrl.u32 %v5590, 7
    %v5592 = vsub.s32 0, %v5591
    %v5593 = vrot.slane %v4847, %v5592
    %v5594 = vlaneseq
    %v5595 = vshrl.u32 %v5594, 7
    %v5596 = vsub.s32 1, %v5595
    %v5597 = vrot.slane %v4847, %v5596
    %v5598 = vlaneseq
    %v5599 = vshrl.u32 %v5598, 7
    %v5600 = vsub.s32 2, %v5599
    %v5601 = vrot.slane %v4847, %v5600
    %v5602 = vlaneseq
    %v5603 = vshrl.u32 %v5602, 7
    %v5604 = vsub.s32 3, %v5603
    %v5605 = vrot.slane %v4847, %v5604
    %v5606 = vlaneseq
    %v5607 = vshrl.u32 %v5606, 7
    %v5608 = vsub.s32 4, %v5607
    %v5609 = vrot.slane %v4847, %v5608
    %v5610 = vlaneseq
    %v5611 = vshrl.u32 %v5610, 7
    %v5612 = vsub.s32 5, %v5611
    %v5613 = vrot.slane %v4847, %v5612
    %v5614 = vlaneseq
    %v5615 = vshrl.u32 %v5614, 7
    %v5616 = vsub.s32 6, %v5615
    %v5617 = vrot.slane %v4847, %v5616
    %v5618 = vlaneseq
    %v5619 = vshrl.u32 %v5618, 7
    %v5620 = vsub.s32 7, %v5619
    %v5621 = vrot.slane %v4847, %v5620
    %v5622 = vlaneseq
    %v5623 = vshrl.u32 %v5622, 7
    %v5624 = vsub.s32 0, %v5623
    %v5625 = vrot.slane %v4849, %v5624
    %v5626 = vlaneseq
    %v5627 = vshrl.u32 %v5626, 7
    %v5628 = vsub.s32 1, %v5627
    %v5629 = vrot.slane %v4849, %v5628
    %v5630 = vlaneseq
    %v5631 = vshrl.u32 %v5630, 7
    %v5632 = vsub.s32 2, %v5631
    %v5633 = vrot.slane %v4849, %v5632
    %v5634 = vlaneseq
    %v5635 = vshrl.u32 %v5634, 7
    %v5636 = vsub.s32 3, %v5635
    %v5637 = vrot.slane %v4849, %v5636
    %v5638 = vlaneseq
    %v5639 = vshrl.u32 %v5638, 7
    %v5640 = vsub.s32 4, %v5639
    %v5641 = vrot.slane %v4849, %v5640
    %v5642 = vlaneseq
    %v5643 = vshrl.u32 %v5642, 7
    %v5644 = vsub.s32 5, %v5643
    %v5645 = vrot.slane %v4849, %v5644
    %v5646 = vlaneseq
    %v5647 = vshrl.u32 %v5646, 7
    %v5648 = vsub.s32 6, %v5647
    %v5649 = vrot.slane %v4849, %v5648
    %v5650 = vlaneseq
    %v5651 = vshrl.u32 %v5650, 7
    %v5652 = vsub.s32 7, %v5651
    %v5653 = vrot.slane %v4849, %v5652
    %v5654 = vlaneseq
    %v5655 = vshrl.u32 %v5654, 7
    %v5656 = vsub.s32 0, %v5655
    %v5657 = vrot.slane %v4851, %v5656
    %v5658 = vlaneseq
    %v5659 = vshrl.u32 %v5658, 7
    %v5660 = vsub.s32 1, %v5659
    %v5661 = vrot.slane %v4851, %v5660
    %v5662 = vlaneseq
    %v5663 = vshrl.u32 %v5662, 7
    %v5664 = vsub.s32 2, %v5663
    %v5665 = vrot.slane %v4851, %v5664
    %v5666 = vlaneseq
    %v5667 = vshrl.u32 %v5666, 7
    %v5668 = vsub.s32 3, %v5667
    %v5669 = vrot.slane %v4851, %v5668
    %v5670 = vlaneseq
    %v5671 = vshrl.u32 %v5670, 7
    %v5672 = vsub.s32 4, %v5671
    %v5673 = vrot.slane %v4851, %v5672
    %v5674 = vlaneseq
    %v5675 = vshrl.u32 %v5674, 7
    %v5676 = vsub.s32 5, %v5675
    %v5677 = vrot.slane %v4851, %v5676
    %v5678 = vlaneseq
    %v5679 = vshrl.u32 %v5678, 7
    %v5680 = vsub.s32 6, %v5679
    %v5681 = vrot.slane %v4851, %v5680
    %v5682 = vlaneseq
    %v5683 = vshrl.u32 %v5682, 7
    %v5684 = vsub.s32 7, %v5683
    %v5685 = vrot.slane %v4851, %v5684
    %v5686 = vlaneseq
    %v5687 = vshrl.u32 %v5686, 7
    %v5688 = vsub.s32 0, %v5687
    %v5689 = vrot.slane %v4853, %v5688
    %v5690 = vlaneseq
    %v5691 = vshrl.u32 %v5690, 7
    %v5692 = vsub.s32 1, %v5691
    %v5693 = vrot.slane %v4853, %v5692
    %v5694 = vlaneseq
    %v5695 = vshrl.u32 %v5694, 7
    %v5696 = vsub.s32 2, %v5695
    %v5697 = vrot.slane %v4853, %v5696
    %v5698 = vlaneseq
    %v5699 = vshrl.u32 %v5698, 7
    %v5700 = vsub.s32 3, %v5699
    %v5701 = vrot.slane %v4853, %v5700
    %v5702 = vlaneseq
    %v5703 = vshrl.u32 %v5702, 7
    %v5704 = vsub.s32 4, %v5703
    %v5705 = vrot.slane %v4853, %v5704
    %v5706 = vlaneseq
    %v5707 = vshrl.u32 %v5706, 7
    %v5708 = vsub.s32 5, %v5707
    %v5709 = vrot.slane %v4853, %v5708
    %v5710 = vlaneseq
    %v5711 = vshrl.u32 %v5710, 7
    %v5712 = vsub.s32 6, %v5711
    %v5713 = vrot.slane %v4853, %v5712
    %v5714 = vlaneseq
    %v5715 = vshrl.u32 %v5714, 7
    %v5716 = vsub.s32 7, %v5715
    %v5717 = vrot.slane %v4853, %v5716
    %v5718 = vlaneseq
    %v5719 = vshrl.u32 %v5718, 7
    %v5720 = vsub.s32 0, %v5719
    %v5721 = vrot.slane %v4855, %v5720
    %v5722 = vlaneseq
    %v5723 = vshrl.u32 %v5722, 7
    %v5724 = vsub.s32 1, %v5723
    %v5725 = vrot.slane %v4855, %v5724
    %v5726 = vlaneseq
    %v5727 = vshrl.u32 %v5726, 7
    %v5728 = vsub.s32 2, %v5727
    %v5729 = vrot.slane %v4855, %v5728
    %v5730 = vlaneseq
    %v5731 = vshrl.u32 %v5730, 7
    %v5732 = vsub.s32 3, %v5731
    %v5733 = vrot.slane %v4855, %v5732
    %v5734 = vlaneseq
    %v5735 = vshrl.u32 %v5734, 7
    %v5736 = vsub.s32 4, %v5735
    %v5737 = vrot.slane %v4855, %v5736
    %v5738 = vlaneseq
    %v5739 = vshrl.u32 %v5738, 7
    %v5740 = vsub.s32 5, %v5739
    %v5741 = vrot.slane %v4855, %v5740
    %v5742 = vlaneseq
    %v5743 = vshrl.u32 %v5742, 7
    %v5744 = vsub.s32 6, %v5743
    %v5745 = vrot.slane %v4855, %v5744
    %v5746 = vlaneseq
    %v5747 = vshrl.u32 %v5746, 7
    %v5748 = vsub.s32 7, %v5747
    %v5749 = vrot.slane %v4855, %v5748
    %v5750 = vlaneseq
    %v5751 = vshrl.u32 %v5750, 7
    %v5752 = vsub.s32 0, %v5751
    %v5753 = vrot.slane %v4857, %v5752
    %v5754 = vlaneseq
    %v5755 = vshrl.u32 %v5754, 7
    %v5756 = vsub.s32 1, %v5755
    %v5757 = vrot.slane %v4857, %v5756
    %v5758 = vlaneseq
    %v5759 = vshrl.u32 %v5758, 7
    %v5760 = vsub.s32 2, %v5759
    %v5761 = vrot.slane %v4857, %v5760
    %v5762 = vlaneseq
    %v5763 = vshrl.u32 %v5762, 7
    %v5764 = vsub.s32 3, %v5763
    %v5765 = vrot.slane %v4857, %v5764
    %v5766 = vlaneseq
    %v5767 = vshrl.u32 %v5766, 7
    %v5768 = vsub.s32 4, %v5767
    %v5769 = vrot.slane %v4857, %v5768
    %v5770 = vlaneseq
    %v5771 = vshrl.u32 %v5770, 7
    %v5772 = vsub.s32 5, %v5771
    %v5773 = vrot.slane %v4857, %v5772
    %v5774 = vlaneseq
    %v5775 = vshrl.u32 %v5774, 7
    %v5776 = vsub.s32 6, %v5775
    %v5777 = vrot.slane %v4857, %v5776
    %v5778 = vlaneseq
    %v5779 = vshrl.u32 %v5778, 7
    %v5780 = vsub.s32 7, %v5779
    %v5781 = vrot.slane %v4857, %v5780
    %v5782 = vlaneseq
    %v5783 = vshrl.u32 %v5782, 7
    %v5784 = vsub.s32 0, %v5783
    %v5785 = vrot.slane %v4859, %v5784
    %v5786 = vlaneseq
    %v5787 = vshrl.u32 %v5786, 7
    %v5788 = vsub.s32 1, %v5787
    %v5789 = vrot.slane %v4859, %v5788
    %v5790 = vlaneseq
    %v5791 = vshrl.u32 %v5790, 7
    %v5792 = vsub.s32 2, %v5791
    %v5793 = vrot.slane %v4859, %v5792
    %v5794 = vlaneseq
    %v5795 = vshrl.u32 %v5794, 7
    %v5796 = vsub.s32 3, %v5795
    %v5797 = vrot.slane %v4859, %v5796
    %v5798 = vlaneseq
    %v5799 = vshrl.u32 %v5798, 7
    %v5800 = vsub.s32 4, %v5799
    %v5801 = vrot.slane %v4859, %v5800
    %v5802 = vlaneseq
    %v5803 = vshrl.u32 %v5802, 7
    %v5804 = vsub.s32 5, %v5803
    %v5805 = vrot.slane %v4859, %v5804
    %v5806 = vlaneseq
    %v5807 = vshrl.u32 %v5806, 7
    %v5808 = vsub.s32 6, %v5807
    %v5809 = vrot.slane %v4859, %v5808
    %v5810 = vlaneseq
    %v5811 = vshrl.u32 %v5810, 7
    %v5812 = vsub.s32 7, %v5811
    %v5813 = vrot.slane %v4859, %v5812
    %v5814 = vlaneseq
    %v5815 = vshrl.u32 %v5814, 7
    %v5816 = vsub.s32 0, %v5815
    %v5817 = vrot.slane %v4861, %v5816
    %v5818 = vlaneseq
    %v5819 = vshrl.u32 %v5818, 7
    %v5820 = vsub.s32 1, %v5819
    %v5821 = vrot.slane %v4861, %v5820
    %v5822 = vlaneseq
    %v5823 = vshrl.u32 %v5822, 7
    %v5824 = vsub.s32 2, %v5823
    %v5825 = vrot.slane %v4861, %v5824
    %v5826 = vlaneseq
    %v5827 = vshrl.u32 %v5826, 7
    %v5828 = vsub.s32 3, %v5827
    %v5829 = vrot.slane %v4861, %v5828
    %v5830 = vlaneseq
    %v5831 = vshrl.u32 %v5830, 7
    %v5832 = vsub.s32 4, %v5831
    %v5833 = vrot.slane %v4861, %v5832
    %v5834 = vlaneseq
    %v5835 = vshrl.u32 %v5834, 7
    %v5836 = vsub.s32 5, %v5835
    %v5837 = vrot.slane %v4861, %v5836
    %v5838 = vlaneseq
    %v5839 = vshrl.u32 %v5838, 7
    %v5840 = vsub.s32 6, %v5839
    %v5841 = vrot.slane %v4861, %v5840
    %v5842 = vlaneseq
    %v5843 = vshrl.u32 %v5842, 7
    %v5844 = vsub.s32 7, %v5843
    %v5845 = vrot.slane %v4861, %v5844
    %v5846 = vlaneseq
    %v5847 = vshrl.u32 %v5846, 7
    %v5848 = vsub.s32 0, %v5847
    %v5849 = vrot.slane %v4863, %v5848
    %v5850 = vlaneseq
    %v5851 = vshrl.u32 %v5850, 7
    %v5852 = vsub.s32 1, %v5851
    %v5853 = vrot.slane %v4863, %v5852
    %v5854 = vlaneseq
    %v5855 = vshrl.u32 %v5854, 7
    %v5856 = vsub.s32 2, %v5855
    %v5857 = vrot.slane %v4863, %v5856
    %v5858 = vlaneseq
    %v5859 = vshrl.u32 %v5858, 7
    %v5860 = vsub.s32 3, %v5859
    %v5861 = vrot.slane %v4863, %v5860
    %v5862 = vlaneseq
    %v5863 = vshrl.u32 %v5862, 7
    %v5864 = vsub.s32 4, %v5863
    %v5865 = vrot.slane %v4863, %v5864
    %v5866 = vlaneseq
    %v5867 = vshrl.u32 %v5866, 7
    %v5868 = vsub.s32 5, %v5867
    %v5869 = vrot.slane %v4863, %v5868
    %v5870 = vlaneseq
    %v5871 = vshrl.u32 %v5870, 7
    %v5872 = vsub.s32 6, %v5871
    %v5873 = vrot.slane %v4863, %v5872
    %v5874 = vlaneseq
    %v5875 = vshrl.u32 %v5874, 7
    %v5876 = vsub.s32 7, %v5875
    %v5877 = vrot.slane %v4863, %v5876
    %v5878 = vlaneseq
    %v5879 = vshrl.u32 %v5878, 7
    %v5880 = vsub.s32 0, %v5879
    %v5881 = vrot.slane %v4865, %v5880
    %v5882 = vlaneseq
    %v5883 = vshrl.u32 %v5882, 7
    %v5884 = vsub.s32 1, %v5883
    %v5885 = vrot.slane %v4865, %v5884
    %v5886 = vlaneseq
    %v5887 = vshrl.u32 %v5886, 7
    %v5888 = vsub.s32 2, %v5887
    %v5889 = vrot.slane %v4865, %v5888
    %v5890 = vlaneseq
    %v5891 = vshrl.u32 %v5890, 7
    %v5892 = vsub.s32 3, %v5891
    %v5893 = vrot.slane %v4865, %v5892
    %v5894 = vlaneseq
    %v5895 = vshrl.u32 %v5894, 7
    %v5896 = vsub.s32 4, %v5895
    %v5897 = vrot.slane %v4865, %v5896
    %v5898 = vlaneseq
    %v5899 = vshrl.u32 %v5898, 7
    %v5900 = vsub.s32 5, %v5899
    %v5901 = vrot.slane %v4865, %v5900
    %v5902 = vlaneseq
    %v5903 = vshrl.u32 %v5902, 7
    %v5904 = vsub.s32 6, %v5903
    %v5905 = vrot.slane %v4865, %v5904
    %v5906 = vlaneseq
    %v5907 = vshrl.u32 %v5906, 7
    %v5908 = vsub.s32 7, %v5907
    %v5909 = vrot.slane %v4865, %v5908
    %v5910 = vlaneseq
    %v5911 = vshrl.u32 %v5910, 7
    %v5912 = vsub.s32 0, %v5911
    %v5913 = vrot.slane %v4867, %v5912
    %v5914 = vlaneseq
    %v5915 = vshrl.u32 %v5914, 7
    %v5916 = vsub.s32 1, %v5915
    %v5917 = vrot.slane %v4867, %v5916
    %v5918 = vlaneseq
    %v5919 = vshrl.u32 %v5918, 7
    %v5920 = vsub.s32 2, %v5919
    %v5921 = vrot.slane %v4867, %v5920
    %v5922 = vlaneseq
    %v5923 = vshrl.u32 %v5922, 7
    %v5924 = vsub.s32 3, %v5923
    %v5925 = vrot.slane %v4867, %v5924
    %v5926 = vlaneseq
    %v5927 = vshrl.u32 %v5926, 7
    %v5928 = vsub.s32 4, %v5927
    %v5929 = vrot.slane %v4867, %v5928
    %v5930 = vlaneseq
    %v5931 = vshrl.u32 %v5930, 7
    %v5932 = vsub.s32 5, %v5931
    %v5933 = vrot.slane %v4867, %v5932
    %v5934 = vlaneseq
    %v5935 = vshrl.u32 %v5934, 7
    %v5936 = vsub.s32 6, %v5935
    %v5937 = vrot.slane %v4867, %v5936
    %v5938 = vlaneseq
    %v5939 = vshrl.u32 %v5938, 7
    %v5940 = vsub.s32 7, %v5939
    %v5941 = vrot.slane %v4867, %v5940
    %v5942 = vlaneseq
    %v5943 = vshrl.u32 %v5942, 7
    %v5944 = vsub.s32 0, %v5943
    %v5945 = vrot.slane %v4869, %v5944
    %v5946 = vlaneseq
    %v5947 = vshrl.u32 %v5946, 7
    %v5948 = vsub.s32 1, %v5947
    %v5949 = vrot.slane %v4869, %v5948
    %v5950 = vlaneseq
    %v5951 = vshrl.u32 %v5950, 7
    %v5952 = vsub.s32 2, %v5951
    %v5953 = vrot.slane %v4869, %v5952
    %v5954 = vlaneseq
    %v5955 = vshrl.u32 %v5954, 7
    %v5956 = vsub.s32 3, %v5955
    %v5957 = vrot.slane %v4869, %v5956
    %v5958 = vlaneseq
    %v5959 = vshrl.u32 %v5958, 7
    %v5960 = vsub.s32 4, %v5959
    %v5961 = vrot.slane %v4869, %v5960
    %v5962 = vlaneseq
    %v5963 = vshrl.u32 %v5962, 7
    %v5964 = vsub.s32 5, %v5963
    %v5965 = vrot.slane %v4869, %v5964
    %v5966 = vlaneseq
    %v5967 = vshrl.u32 %v5966, 7
    %v5968 = vsub.s32 6, %v5967
    %v5969 = vrot.slane %v4869, %v5968
    %v5970 = vlaneseq
    %v5971 = vshrl.u32 %v5970, 7
    %v5972 = vsub.s32 7, %v5971
    %v5973 = vrot.slane %v4869, %v5972
    %v5974 = vlaneseq
    %v5975 = vshrl.u32 %v5974, 7
    %v5976 = vsub.s32 0, %v5975
    %v5977 = vrot.slane %v4871, %v5976
    %v5978 = vlaneseq
    %v5979 = vshrl.u32 %v5978, 7
    %v5980 = vsub.s32 1, %v5979
    %v5981 = vrot.slane %v4871, %v5980
    %v5982 = vlaneseq
    %v5983 = vshrl.u32 %v5982, 7
    %v5984 = vsub.s32 2, %v5983
    %v5985 = vrot.slane %v4871, %v5984
    %v5986 = vlaneseq
    %v5987 = vshrl.u32 %v5986, 7
    %v5988 = vsub.s32 3, %v5987
    %v5989 = vrot.slane %v4871, %v5988
    %v5990 = vlaneseq
    %v5991 = vshrl.u32 %v5990, 7
    %v5992 = vsub.s32 4, %v5991
    %v5993 = vrot.slane %v4871, %v5992
    %v5994 = vlaneseq
    %v5995 = vshrl.u32 %v5994, 7
    %v5996 = vsub.s32 5, %v5995
    %v5997 = vrot.slane %v4871, %v5996
    %v5998 = vlaneseq
    %v5999 = vshrl.u32 %v5998, 7
    %v6000 = vsub.s32 6, %v5999
    %v6001 = vrot.slane %v4871, %v6000
    %v6002 = vlaneseq
    %v6003 = vshrl.u32 %v6002, 7
    %v6004 = vsub.s32 7, %v6003
    %v6005 = vrot.slane %v4871, %v6004
    %v6006 = vlaneseq
    %v6007 = vshrl.u32 %v6006, 7
    %v6008 = vsub.s32 0, %v6007
    %v6009 = vrot.slane %v4873, %v6008
    %v6010 = vlaneseq
    %v6011 = vshrl.u32 %v6010, 7
    %v6012 = vsub.s32 1, %v6011
    %v6013 = vrot.slane %v4873, %v6012
    %v6014 = vlaneseq
    %v6015 = vshrl.u32 %v6014, 7
    %v6016 = vsub.s32 2, %v6015
    %v6017 = vrot.slane %v4873, %v6016
    %v6018 = vlaneseq
    %v6019 = vshrl.u32 %v6018, 7
    %v6020 = vsub.s32 3, %v6019
    %v6021 = vrot.slane %v4873, %v6020
    %v6022 = vlaneseq
    %v6023 = vshrl.u32 %v6022, 7
    %v6024 = vsub.s32 4, %v6023
    %v6025 = vrot.slane %v4873, %v6024
    %v6026 = vlaneseq
    %v6027 = vshrl.u32 %v6026, 7
    %v6028 = vsub.s32 5, %v6027
    %v6029 = vrot.slane %v4873, %v6028
    %v6030 = vlaneseq
    %v6031 = vshrl.u32 %v6030, 7
    %v6032 = vsub.s32 6, %v6031
    %v6033 = vrot.slane %v4873, %v6032
    %v6034 = vlaneseq
    %v6035 = vshrl.u32 %v6034, 7
    %v6036 = vsub.s32 7, %v6035
    %v6037 = vrot.slane %v4873, %v6036
    %v6038 = vlaneseq
    %v6039 = vshrl.u32 %v6038, 7
    %v6040 = vsub.s32 0, %v6039
    %v6041 = vrot.slane %v4875, %v6040
    %v6042 = vlaneseq
    %v6043 = vshrl.u32 %v6042, 7
    %v6044 = vsub.s32 1, %v6043
    %v6045 = vrot.slane %v4875, %v6044
    %v6046 = vlaneseq
    %v6047 = vshrl.u32 %v6046, 7
    %v6048 = vsub.s32 2, %v6047
    %v6049 = vrot.slane %v4875, %v6048
    %v6050 = vlaneseq
    %v6051 = vshrl.u32 %v6050, 7
    %v6052 = vsub.s32 3, %v6051
    %v6053 = vrot.slane %v4875, %v6052
    %v6054 = vlaneseq
    %v6055 = vshrl.u32 %v6054, 7
    %v6056 = vsub.s32 4, %v6055
    %v6057 = vrot.slane %v4875, %v6056
    %v6058 = vlaneseq
    %v6059 = vshrl.u32 %v6058, 7
    %v6060 = vsub.s32 5, %v6059
    %v6061 = vrot.slane %v4875, %v6060
    %v6062 = vlaneseq
    %v6063 = vshrl.u32 %v6062, 7
    %v6064 = vsub.s32 6, %v6063
    %v6065 = vrot.slane %v4875, %v6064
    %v6066 = vlaneseq
    %v6067 = vshrl.u32 %v6066, 7
    %v6068 = vsub.s32 7, %v6067
    %v6069 = vrot.slane %v4875, %v6068
    %v6070 = vlaneseq
    %v6071 = vshrl.u32 %v6070, 7
    %v6072 = vsub.s32 0, %v6071
    %v6073 = vrot.slane %v4877, %v6072
    %v6074 = vlaneseq
    %v6075 = vshrl.u32 %v6074, 7
    %v6076 = vsub.s32 1, %v6075
    %v6077 = vrot.slane %v4877, %v6076
    %v6078 = vlaneseq
    %v6079 = vshrl.u32 %v6078, 7
    %v6080 = vsub.s32 2, %v6079
    %v6081 = vrot.slane %v4877, %v6080
    %v6082 = vlaneseq
    %v6083 = vshrl.u32 %v6082, 7
    %v6084 = vsub.s32 3, %v6083
    %v6085 = vrot.slane %v4877, %v6084
    %v6086 = vlaneseq
    %v6087 = vshrl.u32 %v6086, 7
    %v6088 = vsub.s32 4, %v6087
    %v6089 = vrot.slane %v4877, %v6088
    %v6090 = vlaneseq
    %v6091 = vshrl.u32 %v6090, 7
    %v6092 = vsub.s32 5, %v6091
    %v6093 = vrot.slane %v4877, %v6092
    %v6094 = vlaneseq
    %v6095 = vshrl.u32 %v6094, 7
    %v6096 = vsub.s32 6, %v6095
    %v6097 = vrot.slane %v4877, %v6096
    %v6098 = vlaneseq
    %v6099 = vshrl.u32 %v6098, 7
    %v6100 = vsub.s32 7, %v6099
    %v6101 = vrot.slane %v4877, %v6100
    %v6102 = vlaneseq
    %v6103 = vshrl.u32 %v6102, 7
    %v6104 = vsub.s32 0, %v6103
    %v6105 = vrot.slane %v4879, %v6104
    %v6106 = vlaneseq
    %v6107 = vshrl.u32 %v6106, 7
    %v6108 = vsub.s32 1, %v6107
    %v6109 = vrot.slane %v4879, %v6108
    %v6110 = vlaneseq
    %v6111 = vshrl.u32 %v6110, 7
    %v6112 = vsub.s32 2, %v6111
    %v6113 = vrot.slane %v4879, %v6112
    %v6114 = vlaneseq
    %v6115 = vshrl.u32 %v6114, 7
    %v6116 = vsub.s32 3, %v6115
    %v6117 = vrot.slane %v4879, %v6116
    %v6118 = vlaneseq
    %v6119 = vshrl.u32 %v6118, 7
    %v6120 = vsub.s32 4, %v6119
    %v6121 = vrot.slane %v4879, %v6120
    %v6122 = vlaneseq
    %v6123 = vshrl.u32 %v6122, 7
    %v6124 = vsub.s32 5, %v6123
    %v6125 = vrot.slane %v4879, %v6124
    %v6126 = vlaneseq
    %v6127 = vshrl.u32 %v6126, 7
    %v6128 = vsub.s32 6, %v6127
    %v6129 = vrot.slane %v4879, %v6128
    %v6130 = vlaneseq
    %v6131 = vshrl.u32 %v6130, 7
    %v6132 = vsub.s32 7, %v6131
    %v6133 = vrot.slane %v4879, %v6132
    %v6134 = vlaneseq
    %v6135 = vshrl.u32 %v6134, 7
    %v6136 = vsub.s32 0, %v6135
    %v6137 = vrot.slane %v4881, %v6136
    %v6138 = vlaneseq
    %v6139 = vshrl.u32 %v6138, 7
    %v6140 = vsub.s32 1, %v6139
    %v6141 = vrot.slane %v4881, %v6140
    %v6142 = vlaneseq
    %v6143 = vshrl.u32 %v6142, 7
    %v6144 = vsub.s32 2, %v6143
    %v6145 = vrot.slane %v4881, %v6144
    %v6146 = vlaneseq
    %v6147 = vshrl.u32 %v6146, 7
    %v6148 = vsub.s32 3, %v6147
    %v6149 = vrot.slane %v4881, %v6148
    %v6150 = vlaneseq
    %v6151 = vshrl.u32 %v6150, 7
    %v6152 = vsub.s32 4, %v6151
    %v6153 = vrot.slane %v4881, %v6152
    %v6154 = vlaneseq
    %v6155 = vshrl.u32 %v6154, 7
    %v6156 = vsub.s32 5, %v6155
    %v6157 = vrot.slane %v4881, %v6156
    %v6158 = vlaneseq
    %v6159 = vshrl.u32 %v6158, 7
    %v6160 = vsub.s32 6, %v6159
    %v6161 = vrot.slane %v4881, %v6160
    %v6162 = vlaneseq
    %v6163 = vshrl.u32 %v6162, 7
    %v6164 = vsub.s32 7, %v6163
    %v6165 = vrot.slane %v4881, %v6164
    %v6166 = vlaneseq
    %v6167 = vshrl.u32 %v6166, 7
    %v6168 = vsub.s32 0, %v6167
    %v6169 = vrot.slane %v4883, %v6168
    %v6170 = vlaneseq
    %v6171 = vshrl.u32 %v6170, 7
    %v6172 = vsub.s32 1, %v6171
    %v6173 = vrot.slane %v4883, %v6172
    %v6174 = vlaneseq
    %v6175 = vshrl.u32 %v6174, 7
    %v6176 = vsub.s32 2, %v6175
    %v6177 = vrot.slane %v4883, %v6176
    %v6178 = vlaneseq
    %v6179 = vshrl.u32 %v6178, 7
    %v6180 = vsub.s32 3, %v6179
    %v6181 = vrot.slane %v4883, %v6180
    %v6182 = vlaneseq
    %v6183 = vshrl.u32 %v6182, 7
    %v6184 = vsub.s32 4, %v6183
    %v6185 = vrot.slane %v4883, %v6184
    %v6186 = vlaneseq
    %v6187 = vshrl.u32 %v6186, 7
    %v6188 = vsub.s32 5, %v6187
    %v6189 = vrot.slane %v4883, %v6188
    %v6190 = vlaneseq
    %v6191 = vshrl.u32 %v6190, 7
    %v6192 = vsub.s32 6, %v6191
    %v6193 = vrot.slane %v4883, %v6192
    %v6194 = vlaneseq
    %v6195 = vshrl.u32 %v6194, 7
    %v6196 = vsub.s32 7, %v6195
    %v6197 = vrot.slane %v4883, %v6196
    %v6198 = vlaneseq
    %v6199 = vshrl.u32 %v6198, 7
    %v6200 = vsub.s32 0, %v6199
    %v6201 = vrot.slane %v4885, %v6200
    %v6202 = vlaneseq
    %v6203 = vshrl.u32 %v6202, 7
    %v6204 = vsub.s32 1, %v6203
    %v6205 = vrot.slane %v4885, %v6204
    %v6206 = vlaneseq
    %v6207 = vshrl.u32 %v6206, 7
    %v6208 = vsub.s32 2, %v6207
    %v6209 = vrot.slane %v4885, %v6208
    %v6210 = vlaneseq
    %v6211 = vshrl.u32 %v6210, 7
    %v6212 = vsub.s32 3, %v6211
    %v6213 = vrot.slane %v4885, %v6212
    %v6214 = vlaneseq
    %v6215 = vshrl.u32 %v6214, 7
    %v6216 = vsub.s32 4, %v6215
    %v6217 = vrot.slane %v4885, %v6216
    %v6218 = vlaneseq
    %v6219 = vshrl.u32 %v6218, 7
    %v6220 = vsub.s32 5, %v6219
    %v6221 = vrot.slane %v4885, %v6220
    %v6222 = vlaneseq
    %v6223 = vshrl.u32 %v6222, 7
    %v6224 = vsub.s32 6, %v6223
    %v6225 = vrot.slane %v4885, %v6224
    %v6226 = vlaneseq
    %v6227 = vshrl.u32 %v6226, 7
    %v6228 = vsub.s32 7, %v6227
    %v6229 = vrot.slane %v4885, %v6228
    %v6230 = vlaneseq
    %v6231 = vshrl.u32 %v6230, 7
    %v6232 = vsub.s32 0, %v6231
    %v6233 = vrot.slane %v4887, %v6232
    %v6234 = vlaneseq
    %v6235 = vshrl.u32 %v6234, 7
    %v6236 = vsub.s32 1, %v6235
    %v6237 = vrot.slane %v4887, %v6236
    %v6238 = vlaneseq
    %v6239 = vshrl.u32 %v6238, 7
    %v6240 = vsub.s32 2, %v6239
    %v6241 = vrot.slane %v4887, %v6240
    %v6242 = vlaneseq
    %v6243 = vshrl.u32 %v6242, 7
    %v6244 = vsub.s32 3, %v6243
    %v6245 = vrot.slane %v4887, %v6244
    %v6246 = vlaneseq
    %v6247 = vshrl.u32 %v6246, 7
    %v6248 = vsub.s32 4, %v6247
    %v6249 = vrot.slane %v4887, %v6248
    %v6250 = vlaneseq
    %v6251 = vshrl.u32 %v6250, 7
    %v6252 = vsub.s32 5, %v6251
    %v6253 = vrot.slane %v4887, %v6252
    %v6254 = vlaneseq
    %v6255 = vshrl.u32 %v6254, 7
    %v6256 = vsub.s32 6, %v6255
    %v6257 = vrot.slane %v4887, %v6256
    %v6258 = vlaneseq
    %v6259 = vshrl.u32 %v6258, 7
    %v6260 = vsub.s32 7, %v6259
    %v6261 = vrot.slane %v4887, %v6260
    %v6262 = vlaneseq
    %v6263 = vshrl.u32 %v6262, 7
    %v6264 = vsub.s32 0, %v6263
    %v6265 = vrot.slane %v4889, %v6264
    %v6266 = vlaneseq
    %v6267 = vshrl.u32 %v6266, 7
    %v6268 = vsub.s32 1, %v6267
    %v6269 = vrot.slane %v4889, %v6268
    %v6270 = vlaneseq
    %v6271 = vshrl.u32 %v6270, 7
    %v6272 = vsub.s32 2, %v6271
    %v6273 = vrot.slane %v4889, %v6272
    %v6274 = vlaneseq
    %v6275 = vshrl.u32 %v6274, 7
    %v6276 = vsub.s32 3, %v6275
    %v6277 = vrot.slane %v4889, %v6276
    %v6278 = vlaneseq
    %v6279 = vshrl.u32 %v6278, 7
    %v6280 = vsub.s32 4, %v6279
    %v6281 = vrot.slane %v4889, %v6280
    %v6282 = vlaneseq
    %v6283 = vshrl.u32 %v6282, 7
    %v6284 = vsub.s32 5, %v6283
    %v6285 = vrot.slane %v4889, %v6284
    %v6286 = vlaneseq
    %v6287 = vshrl.u32 %v6286, 7
    %v6288 = vsub.s32 6, %v6287
    %v6289 = vrot.slane %v4889, %v6288
    %v6290 = vlaneseq
    %v6291 = vshrl.u32 %v6290, 7
    %v6292 = vsub.s32 7, %v6291
    %v6293 = vrot.slane %v4889, %v6292
    %v6294 = vlaneseq
    %v6295 = vshrl.u32 %v6294, 7
    %v6296 = vsub.s32 0, %v6295
    %v6297 = vrot.slane %v4891, %v6296
    %v6298 = vlaneseq
    %v6299 = vshrl.u32 %v6298, 7
    %v6300 = vsub.s32 1, %v6299
    %v6301 = vrot.slane %v4891, %v6300
    %v6302 = vlaneseq
    %v6303 = vshrl.u32 %v6302, 7
    %v6304 = vsub.s32 2, %v6303
    %v6305 = vrot.slane %v4891, %v6304
    %v6306 = vlaneseq
    %v6307 = vshrl.u32 %v6306, 7
    %v6308 = vsub.s32 3, %v6307
    %v6309 = vrot.slane %v4891, %v6308
    %v6310 = vlaneseq
    %v6311 = vshrl.u32 %v6310, 7
    %v6312 = vsub.s32 4, %v6311
    %v6313 = vrot.slane %v4891, %v6312
    %v6314 = vlaneseq
    %v6315 = vshrl.u32 %v6314, 7
    %v6316 = vsub.s32 5, %v6315
    %v6317 = vrot.slane %v4891, %v6316
    %v6318 = vlaneseq
    %v6319 = vshrl.u32 %v6318, 7
    %v6320 = vsub.s32 6, %v6319
    %v6321 = vrot.slane %v4891, %v6320
    %v6322 = vlaneseq
    %v6323 = vshrl.u32 %v6322, 7
    %v6324 = vsub.s32 7, %v6323
    %v6325 = vrot.slane %v4891, %v6324
    %v6326 = vlaneseq
    %v6327 = vshrl.u32 %v6326, 7
    %v6328 = vsub.s32 0, %v6327
    %v6329 = vrot.slane %v4893, %v6328
    %v6330 = vlaneseq
    %v6331 = vshrl.u32 %v6330, 7
    %v6332 = vsub.s32 1, %v6331
    %v6333 = vrot.slane %v4893, %v6332
    %v6334 = vlaneseq
    %v6335 = vshrl.u32 %v6334, 7
    %v6336 = vsub.s32 2, %v6335
    %v6337 = vrot.slane %v4893, %v6336
    %v6338 = vlaneseq
    %v6339 = vshrl.u32 %v6338, 7
    %v6340 = vsub.s32 3, %v6339
    %v6341 = vrot.slane %v4893, %v6340
    %v6342 = vlaneseq
    %v6343 = vshrl.u32 %v6342, 7
    %v6344 = vsub.s32 4, %v6343
    %v6345 = vrot.slane %v4893, %v6344
    %v6346 = vlaneseq
    %v6347 = vshrl.u32 %v6346, 7
    %v6348 = vsub.s32 5, %v6347
    %v6349 = vrot.slane %v4893, %v6348
    %v6350 = vlaneseq
    %v6351 = vshrl.u32 %v6350, 7
    %v6352 = vsub.s32 6, %v6351
    %v6353 = vrot.slane %v4893, %v6352
    %v6354 = vlaneseq
    %v6355 = vshrl.u32 %v6354, 7
    %v6356 = vsub.s32 7, %v6355
    %v6357 = vrot.slane %v4893, %v6356
    %v6358 = vlaneseq
    %v6359 = vshrl.u32 %v6358, 7
    %v6360 = vsub.s32 0, %v6359
    %v6361 = vrot.slane %v4895, %v6360
    %v6362 = vlaneseq
    %v6363 = vshrl.u32 %v6362, 7
    %v6364 = vsub.s32 1, %v6363
    %v6365 = vrot.slane %v4895, %v6364
    %v6366 = vlaneseq
    %v6367 = vshrl.u32 %v6366, 7
    %v6368 = vsub.s32 2, %v6367
    %v6369 = vrot.slane %v4895, %v6368
    %v6370 = vlaneseq
    %v6371 = vshrl.u32 %v6370, 7
    %v6372 = vsub.s32 3, %v6371
    %v6373 = vrot.slane %v4895, %v6372
    %v6374 = vlaneseq
    %v6375 = vshrl.u32 %v6374, 7
    %v6376 = vsub.s32 4, %v6375
    %v6377 = vrot.slane %v4895, %v6376
    %v6378 = vlaneseq
    %v6379 = vshrl.u32 %v6378, 7
    %v6380 = vsub.s32 5, %v6379
    %v6381 = vrot.slane %v4895, %v6380
    %v6382 = vlaneseq
    %v6383 = vshrl.u32 %v6382, 7
    %v6384 = vsub.s32 6, %v6383
    %v6385 = vrot.slane %v4895, %v6384
    %v6386 = vlaneseq
    %v6387 = vshrl.u32 %v6386, 7
    %v6388 = vsub.s32 7, %v6387
    %v6389 = vrot.slane %v4895, %v6388
    %v6390 = vlaneseq
    %v6391 = vshrl.u32 %v6390, 7
    %v6392 = vsub.s32 0, %v6391
    %v6393 = vrot.slane %v4897, %v6392
    %v6394 = vlaneseq
    %v6395 = vshrl.u32 %v6394, 7
    %v6396 = vsub.s32 1, %v6395
    %v6397 = vrot.slane %v4897, %v6396
    %v6398 = vlaneseq
    %v6399 = vshrl.u32 %v6398, 7
    %v6400 = vsub.s32 2, %v6399
    %v6401 = vrot.slane %v4897, %v6400
    %v6402 = vlaneseq
    %v6403 = vshrl.u32 %v6402, 7
    %v6404 = vsub.s32 3, %v6403
    %v6405 = vrot.slane %v4897, %v6404
    %v6406 = vlaneseq
    %v6407 = vshrl.u32 %v6406, 7
    %v6408 = vsub.s32 4, %v6407
    %v6409 = vrot.slane %v4897, %v6408
    %v6410 = vlaneseq
    %v6411 = vshrl.u32 %v6410, 7
    %v6412 = vsub.s32 5, %v6411
    %v6413 = vrot.slane %v4897, %v6412
    %v6414 = vlaneseq
    %v6415 = vshrl.u32 %v6414, 7
    %v6416 = vsub.s32 6, %v6415
    %v6417 = vrot.slane %v4897, %v6416
    %v6418 = vlaneseq
    %v6419 = vshrl.u32 %v6418, 7
    %v6420 = vsub.s32 7, %v6419
    %v6421 = vrot.slane %v4897, %v6420
    %v6422 = vlaneseq
    %v6423 = vshrl.u32 %v6422, 7
    %v6424 = vsub.s32 0, %v6423
    %v6425 = vrot.slane %v4899, %v6424
    %v6426 = vlaneseq
    %v6427 = vshrl.u32 %v6426, 7
    %v6428 = vsub.s32 1, %v6427
    %v6429 = vrot.slane %v4899, %v6428
    %v6430 = vlaneseq
    %v6431 = vshrl.u32 %v6430, 7
    %v6432 = vsub.s32 2, %v6431
    %v6433 = vrot.slane %v4899, %v6432
    %v6434 = vlaneseq
    %v6435 = vshrl.u32 %v6434, 7
    %v6436 = vsub.s32 3, %v6435
    %v6437 = vrot.slane %v4899, %v6436
    %v6438 = vlaneseq
    %v6439 = vshrl.u32 %v6438, 7
    %v6440 = vsub.s32 4, %v6439
    %v6441 = vrot.slane %v4899, %v6440
    %v6442 = vlaneseq
    %v6443 = vshrl.u32 %v6442, 7
    %v6444 = vsub.s32 5, %v6443
    %v6445 = vrot.slane %v4899, %v6444
    %v6446 = vlaneseq
    %v6447 = vshrl.u32 %v6446, 7
    %v6448 = vsub.s32 6, %v6447
    %v6449 = vrot.slane %v4899, %v6448
    %v6450 = vlaneseq
    %v6451 = vshrl.u32 %v6450, 7
    %v6452 = vsub.s32 7, %v6451
    %v6453 = vrot.slane %v4899, %v6452
    %v6454 = vlaneseq
    %v6455 = vshrl.u32 %v6454, 7
    %v6456 = vsub.s32 0, %v6455
    %v6457 = vrot.slane %v4901, %v6456
    %v6458 = vlaneseq
    %v6459 = vshrl.u32 %v6458, 7
    %v6460 = vsub.s32 1, %v6459
    %v6461 = vrot.slane %v4901, %v6460
    %v6462 = vlaneseq
    %v6463 = vshrl.u32 %v6462, 7
    %v6464 = vsub.s32 2, %v6463
    %v6465 = vrot.slane %v4901, %v6464
    %v6466 = vlaneseq
    %v6467 = vshrl.u32 %v6466, 7
    %v6468 = vsub.s32 3, %v6467
    %v6469 = vrot.slane %v4901, %v6468
    %v6470 = vlaneseq
    %v6471 = vshrl.u32 %v6470, 7
    %v6472 = vsub.s32 4, %v6471
    %v6473 = vrot.slane %v4901, %v6472
    %v6474 = vlaneseq
    %v6475 = vshrl.u32 %v6474, 7
    %v6476 = vsub.s32 5, %v6475
    %v6477 = vrot.slane %v4901, %v6476
    %v6478 = vlaneseq
    %v6479 = vshrl.u32 %v6478, 7
    %v6480 = vsub.s32 6, %v6479
    %v6481 = vrot.slane %v4901, %v6480
    %v6482 = vlaneseq
    %v6483 = vshrl.u32 %v6482, 7
    %v6484 = vsub.s32 7, %v6483
    %v6485 = vrot.slane %v4901, %v6484
    %v6870 = vmul.f32 %v52, %v4953
    %v6871 = vmul.f32 %v53, %v4957
    %v6872 = vmul.f32 %v54, %v4961
    %v6873 = vmul.f32 %v55, %v4965
    %v6874 = vmul.f32 %v56, %v4969
    %v6875 = vmul.f32 %v57, %v4973
    %v6876 = vmul.f32 %v58, %v4977
    %v6877 = vmul.f32 %v59, %v4981
    %v6878 = vmul.f32 %v60, %v4985
    %v6879 = vmul.f32 %v61, %v4989
    %v6880 = vmul.f32 %v62, %v4993
    %v6881 = vmul.f32 %v63, %v4997
    %v6882 = vmul.f32 %v64, %v5001
    %v6883 = vmul.f32 %v65, %v5005
    %v6884 = vmul.f32 %v66, %v5009
    %v6885 = vmul.f32 %v67, %v5013
    %v6886 = vmul.f32 %v68, %v5017
    %v6887 = vmul.f32 %v69, %v5021
    %v6888 = vmul.f32 %v70, %v5025
    %v6889 = vmul.f32 %v71, %v5029
    %v6890 = vmul.f32 %v72, %v5033
    %v6891 = vmul.f32 %v73, %v5037
    %v6892 = vmul.f32 %v74, %v5041
    %v6893 = vmul.f32 %v75, %v5045
    %v6894 = vmul.f32 %v76, %v5049
    %v6895 = vmul.f32 %v77, %v5053
    %v6896 = vmul.f32 %v78, %v5057
    %v6897 = vmul.f32 %v79, %v5061
    %v6898 = vmul.f32 %v80, %v5065
    %v6899 = vmul.f32 %v81, %v5069
    %v6900 = vmul.f32 %v82, %v5073
    %v6901 = vmul.f32 %v83, %v5077
    %v6902 = vmul.f32 %v84, %v5081
    %v6903 = vmul.f32 %v85, %v5085
    %v6904 = vmul.f32 %v86, %v5089
    %v6905 = vmul.f32 %v87, %v5093
    %v6906 = vmul.f32 %v88, %v5097
    %v6907 = vmul.f32 %v89, %v5101
    %v6908 = vmul.f32 %v90, %v5105
    %v6909 = vmul.f32 %v91, %v5109
    %v6910 = vmul.f32 %v92, %v5113
    %v6911 = vmul.f32 %v93, %v5117
    %v6912 = vmul.f32 %v94, %v5121
    %v6913 = vmul.f32 %v95, %v5125
    %v6914 = vmul.f32 %v96, %v5129
    %v6915 = vmul.f32 %v97, %v5133
    %v6916 = vmul.f32 %v98, %v5137
    %v6917 = vmul.f32 %v99, %v5141
    %v6918 = vmul.f32 %v100, %v5145
    %v6919 = vmul.f32 %v101, %v5149
    %v6920 = vmul.f32 %v102, %v5153
    %v6921 = vmul.f32 %v103, %v5157
    %v6922 = vmul.f32 %v104, %v5161
    %v6923 = vmul.f32 %v105, %v5165
    %v6924 = vmul.f32 %v106, %v5169
    %v6925 = vmul.f32 %v107, %v5173
    %v6926 = vmul.f32 %v108, %v5177
    %v6927 = vmul.f32 %v109, %v5181
    %v6928 = vmul.f32 %v110, %v5185
    %v6929 = vmul.f32 %v111, %v5189
    %v6930 = vmul.f32 %v112, %v5193
    %v6931 = vmul.f32 %v113, %v5197
    %v6932 = vmul.f32 %v114, %v5201
    %v6933 = vmul.f32 %v115, %v5205
    %v6934 = vmul.f32 %v116, %v5209
    %v6935 = vmul.f32 %v117, %v5213
    %v6936 = vmul.f32 %v118, %v5217
    %v6937 = vmul.f32 %v119, %v5221
    %v6938 = vmul.f32 %v120, %v5225
    %v6939 = vmul.f32 %v121, %v5229
    %v6940 = vmul.f32 %v122, %v5233
    %v6941 = vmul.f32 %v123, %v5237
    %v6942 = vmul.f32 %v124, %v5241
    %v6943 = vmul.f32 %v125, %v5245
    %v6944 = vmul.f32 %v126, %v5249
    %v6945 = vmul.f32 %v127, %v5253
    %v6946 = vmul.f32 %v128, %v5257
    %v6947 = vmul.f32 %v129, %v5261
    %v6948 = vmul.f32 %v130, %v5265
    %v6949 = vmul.f32 %v131, %v5269
    %v6950 = vmul.f32 %v132, %v5273
    %v6951 = vmul.f32 %v133, %v5277
    %v6952 = vmul.f32 %v134, %v5281
    %v6953 = vmul.f32 %v135, %v5285
    %v6954 = vmul.f32 %v136, %v5289
    %v6955 = vmul.f32 %v137, %v5293
    %v6956 = vmul.f32 %v138, %v5297
    %v6957 = vmul.f32 %v139, %v5301
    %v6958 = vmul.f32 %v140, %v5305
    %v6959 = vmul.f32 %v141, %v5309
    %v6960 = vmul.f32 %v142, %v5313
    %v6961 = vmul.f32 %v143, %v5317
    %v6962 = vmul.f32 %v144, %v5321
    %v6963 = vmul.f32 %v145, %v5325
    %v6964 = vmul.f32 %v146, %v5329
    %v6965 = vmul.f32 %v147, %v5333
    %v6966 = vmul.f32 %v148, %v5337
    %v6967 = vmul.f32 %v149, %v5341
    %v6968 = vmul.f32 %v150, %v5345
    %v6969 = vmul.f32 %v151, %v5349
    %v6970 = vmul.f32 %v152, %v5353
    %v6971 = vmul.f32 %v153, %v5357
    %v6972 = vmul.f32 %v154, %v5361
    %v6973 = vmul.f32 %v155, %v5365
    %v6974 = vmul.f32 %v156, %v5369
    %v6975 = vmul.f32 %v157, %v5373
    %v6976 = vmul.f32 %v158, %v5377
    %v6977 = vmul.f32 %v159, %v5381
    %v6978 = vmul.f32 %v160, %v5385
    %v6979 = vmul.f32 %v161, %v5389
    %v6980 = vmul.f32 %v162, %v5393
    %v6981 = vmul.f32 %v163, %v5397
    %v6982 = vmul.f32 %v164, %v5401
    %v6983 = vmul.f32 %v165, %v5405
    %v6984 = vmul.f32 %v166, %v5409
    %v6985 = vmul.f32 %v167, %v5413
    %v6986 = vmul.f32 %v168, %v5417
    %v6987 = vmul.f32 %v169, %v5421
    %v6988 = vmul.f32 %v170, %v5425
    %v6989 = vmul.f32 %v171, %v5429
    %v6990 = vmul.f32 %v172, %v5433
    %v6991 = vmul.f32 %v173, %v5437
    %v6992 = vmul.f32 %v174, %v5441
    %v6993 = vmul.f32 %v175, %v5445
    %v6994 = vmul.f32 %v176, %v5449
    %v6995 = vmul.f32 %v177, %v5453
    %v6996 = vmul.f32 %v178, %v5457
    %v6997 = vmul.f32 %v179, %v5461
    %v6998 = vmul.f32 %v180, %v5465
    %v6999 = vmul.f32 %v181, %v5469
    %v7000 = vmul.f32 %v182, %v5473
    %v7001 = vmul.f32 %v183, %v5477
    %v7002 = vmul.f32 %v184, %v5481
    %v7003 = vmul.f32 %v185, %v5485
    %v7004 = vmul.f32 %v186, %v5489
    %v7005 = vmul.f32 %v187, %v5493
    %v7006 = vmul.f32 %v188, %v5497
    %v7007 = vmul.f32 %v189, %v5501
    %v7008 = vmul.f32 %v190, %v5505
    %v7009 = vmul.f32 %v191, %v5509
    %v7010 = vmul.f32 %v192, %v5513
    %v7011 = vmul.f32 %v193, %v5517
    %v7012 = vmul.f32 %v194, %v5521
    %v7013 = vmul.f32 %v195, %v5525
    %v7014 = vmul.f32 %v196, %v5529
    %v7015 = vmul.f32 %v197, %v5533
    %v7016 = vmul.f32 %v198, %v5537
    %v7017 = vmul.f32 %v199, %v5541
    %v7018 = vmul.f32 %v200, %v5545
    %v7019 = vmul.f32 %v201, %v5549
    %v7020 = vmul.f32 %v202, %v5553
    %v7021 = vmul.f32 %v203, %v5557
    %v7022 = vmul.f32 %v204, %v5561
    %v7023 = vmul.f32 %v205, %v5565
    %v7024 = vmul.f32 %v206, %v5569
    %v7025 = vmul.f32 %v207, %v5573
    %v7026 = vmul.f32 %v208, %v5577
    %v7027 = vmul.f32 %v209, %v5581
    %v7028 = vmul.f32 %v210, %v5585
    %v7029 = vmul.f32 %v211, %v5589
    %v7030 = vmul.f32 %v212, %v5593
    %v7031 = vmul.f32 %v213, %v5597
    %v7032 = vmul.f32 %v214, %v5601
    %v7033 = vmul.f32 %v215, %v5605
    %v7034 = vmul.f32 %v216, %v5609
    %v7035 = vmul.f32 %v217, %v5613
    %v7036 = vmul.f32 %v218, %v5617
    %v7037 = vmul.f32 %v219, %v5621
    %v7038 = vmul.f32 %v220, %v5625
    %v7039 = vmul.f32 %v221, %v5629
    %v7040 = vmul.f32 %v222, %v5633
    %v7041 = vmul.f32 %v223, %v5637
    %v7042 = vmul.f32 %v224, %v5641
    %v7043 = vmul.f32 %v225, %v5645
    %v7044 = vmul.f32 %v226, %v5649
    %v7045 = vmul.f32 %v227, %v5653
    %v7046 = vmul.f32 %v228, %v5657
    %v7047 = vmul.f32 %v229, %v5661
    %v7048 = vmul.f32 %v230, %v5665
    %v7049 = vmul.f32 %v231, %v5669
    %v7050 = vmul.f32 %v232, %v5673
    %v7051 = vmul.f32 %v233, %v5677
    %v7052 = vmul.f32 %v234, %v5681
    %v7053 = vmul.f32 %v235, %v5685
    %v7054 = vmul.f32 %v236, %v5689
    %v7055 = vmul.f32 %v237, %v5693
    %v7056 = vmul.f32 %v238, %v5697
    %v7057 = vmul.f32 %v239, %v5701
    %v7058 = vmul.f32 %v240, %v5705
    %v7059 = vmul.f32 %v241, %v5709
    %v7060 = vmul.f32 %v242, %v5713
    %v7061 = vmul.f32 %v243, %v5717
    %v7062 = vmul.f32 %v244, %v5721
    %v7063 = vmul.f32 %v245, %v5725
    %v7064 = vmul.f32 %v246, %v5729
    %v7065 = vmul.f32 %v247, %v5733
    %v7066 = vmul.f32 %v248, %v5737
    %v7067 = vmul.f32 %v249, %v5741
    %v7068 = vmul.f32 %v250, %v5745
    %v7069 = vmul.f32 %v251, %v5749
    %v7070 = vmul.f32 %v252, %v5753
    %v7071 = vmul.f32 %v253, %v5757
    %v7072 = vmul.f32 %v254, %v5761
    %v7073 = vmul.f32 %v255, %v5765
    %v7074 = vmul.f32 %v256, %v5769
    %v7075 = vmul.f32 %v257, %v5773
    %v7076 = vmul.f32 %v258, %v5777
    %v7077 = vmul.f32 %v259, %v5781
    %v7078 = vmul.f32 %v260, %v5785
    %v7079 = vmul.f32 %v261, %v5789
    %v7080 = vmul.f32 %v262, %v5793
    %v7081 = vmul.f32 %v263, %v5797
    %v7082 = vmul.f32 %v264, %v5801
    %v7083 = vmul.f32 %v265, %v5805
    %v7084 = vmul.f32 %v266, %v5809
    %v7085 = vmul.f32 %v267, %v5813
    %v7086 = vmul.f32 %v268, %v5817
    %v7087 = vmul.f32 %v269, %v5821
    %v7088 = vmul.f32 %v270, %v5825
    %v7089 = vmul.f32 %v271, %v5829
    %v7090 = vmul.f32 %v272, %v5833
    %v7091 = vmul.f32 %v273, %v5837
    %v7092 = vmul.f32 %v274, %v5841
    %v7093 = vmul.f32 %v275, %v5845
    %v7094 = vmul.f32 %v276, %v5849
    %v7095 = vmul.f32 %v277, %v5853
    %v7096 = vmul.f32 %v278, %v5857
    %v7097 = vmul.f32 %v279, %v5861
    %v7098 = vmul.f32 %v280, %v5865
    %v7099 = vmul.f32 %v281, %v5869
    %v7100 = vmul.f32 %v282, %v5873
    %v7101 = vmul.f32 %v283, %v5877
    %v7102 = vmul.f32 %v284, %v5881
    %v7103 = vmul.f32 %v285, %v5885
    %v7104 = vmul.f32 %v286, %v5889
    %v7105 = vmul.f32 %v287, %v5893
    %v7106 = vmul.f32 %v288, %v5897
    %v7107 = vmul.f32 %v289, %v5901
    %v7108 = vmul.f32 %v290, %v5905
    %v7109 = vmul.f32 %v291, %v5909
    %v7110 = vmul.f32 %v292, %v5913
    %v7111 = vmul.f32 %v293, %v5917
    %v7112 = vmul.f32 %v294, %v5921
    %v7113 = vmul.f32 %v295, %v5925
    %v7114 = vmul.f32 %v296, %v5929
    %v7115 = vmul.f32 %v297, %v5933
    %v7116 = vmul.f32 %v298, %v5937
    %v7117 = vmul.f32 %v299, %v5941
    %v7118 = vmul.f32 %v300, %v5945
    %v7119 = vmul.f32 %v301, %v5949
    %v7120 = vmul.f32 %v302, %v5953
    %v7121 = vmul.f32 %v303, %v5957
    %v7122 = vmul.f32 %v304, %v5961
    %v7123 = vmul.f32 %v305, %v5965
    %v7124 = vmul.f32 %v306, %v5969
    %v7125 = vmul.f32 %v307, %v5973
    %v7126 = vmul.f32 %v308, %v5977
    %v7127 = vmul.f32 %v309, %v5981
    %v7128 = vmul.f32 %v310, %v5985
    %v7129 = vmul.f32 %v311, %v5989
    %v7130 = vmul.f32 %v312, %v5993
    %v7131 = vmul.f32 %v313, %v5997
    %v7132 = vmul.f32 %v314, %v6001
    %v7133 = vmul.f32 %v315, %v6005
    %v7134 = vmul.f32 %v316, %v6009
    %v7135 = vmul.f32 %v317, %v6013
    %v7136 = vmul.f32 %v318, %v6017
    %v7137 = vmul.f32 %v319, %v6021
    %v7138 = vmul.f32 %v320, %v6025
    %v7139 = vmul.f32 %v321, %v6029
    %v7140 = vmul.f32 %v322, %v6033
    %v7141 = vmul.f32 %v323, %v6037
    %v7142 = vmul.f32 %v324, %v6041
    %v7143 = vmul.f32 %v325, %v6045
    %v7144 = vmul.f32 %v326, %v6049
    %v7145 = vmul.f32 %v327, %v6053
    %v7146 = vmul.f32 %v328, %v6057
    %v7147 = vmul.f32 %v329, %v6061
    %v7148 = vmul.f32 %v330, %v6065
    %v7149 = vmul.f32 %v331, %v6069
    %v7150 = vmul.f32 %v332, %v6073
    %v7151 = vmul.f32 %v333, %v6077
    %v7152 = vmul.f32 %v334, %v6081
    %v7153 = vmul.f32 %v335, %v6085
    %v7154 = vmul.f32 %v336, %v6089
    %v7155 = vmul.f32 %v337, %v6093
    %v7156 = vmul.f32 %v338, %v6097
    %v7157 = vmul.f32 %v339, %v6101
    %v7158 = vmul.f32 %v340, %v6105
    %v7159 = vmul.f32 %v341, %v6109
    %v7160 = vmul.f32 %v342, %v6113
    %v7161 = vmul.f32 %v343, %v6117
    %v7162 = vmul.f32 %v344, %v6121
    %v7163 = vmul.f32 %v345, %v6125
    %v7164 = vmul.f32 %v346, %v6129
    %v7165 = vmul.f32 %v347, %v6133
    %v7166 = vmul.f32 %v348, %v6137
    %v7167 = vmul.f32 %v349, %v6141
    %v7168 = vmul.f32 %v350, %v6145
    %v7169 = vmul.f32 %v351, %v6149
    %v7170 = vmul.f32 %v352, %v6153
    %v7171 = vmul.f32 %v353, %v6157
    %v7172 = vmul.f32 %v354, %v6161
    %v7173 = vmul.f32 %v355, %v6165
    %v7174 = vmul.f32 %v356, %v6169
    %v7175 = vmul.f32 %v357, %v6173
    %v7176 = vmul.f32 %v358, %v6177
    %v7177 = vmul.f32 %v359, %v6181
    %v7178 = vmul.f32 %v360, %v6185
    %v7179 = vmul.f32 %v361, %v6189
    %v7180 = vmul.f32 %v362, %v6193
    %v7181 = vmul.f32 %v363, %v6197
    %v7182 = vmul.f32 %v364, %v6201
    %v7183 = vmul.f32 %v365, %v6205
    %v7184 = vmul.f32 %v366, %v6209
    %v7185 = vmul.f32 %v367, %v6213
    %v7186 = vmul.f32 %v368, %v6217
    %v7187 = vmul.f32 %v369, %v6221
    %v7188 = vmul.f32 %v370, %v6225
    %v7189 = vmul.f32 %v371, %v6229
    %v7190 = vmul.f32 %v372, %v6233
    %v7191 = vmul.f32 %v373, %v6237
    %v7192 = vmul.f32 %v374, %v6241
    %v7193 = vmul.f32 %v375, %v6245
    %v7194 = vmul.f32 %v376, %v6249
    %v7195 = vmul.f32 %v377, %v6253
    %v7196 = vmul.f32 %v378, %v6257
    %v7197 = vmul.f32 %v379, %v6261
    %v7198 = vmul.f32 %v380, %v6265
    %v7199 = vmul.f32 %v381, %v6269
    %v7200 = vmul.f32 %v382, %v6273
    %v7201 = vmul.f32 %v383, %v6277
    %v7202 = vmul.f32 %v384, %v6281
    %v7203 = vmul.f32 %v385, %v6285
    %v7204 = vmul.f32 %v386, %v6289
    %v7205 = vmul.f32 %v387, %v6293
    %v7206 = vmul.f32 %v388, %v6297
    %v7207 = vmul.f32 %v389, %v6301
    %v7208 = vmul.f32 %v390, %v6305
    %v7209 = vmul.f32 %v391, %v6309
    %v7210 = vmul.f32 %v392, %v6313
    %v7211 = vmul.f32 %v393, %v6317
    %v7212 = vmul.f32 %v394, %v6321
    %v7213 = vmul.f32 %v395, %v6325
    %v7214 = vmul.f32 %v396, %v6329
    %v7215 = vmul.f32 %v397, %v6333
    %v7216 = vmul.f32 %v398, %v6337
    %v7217 = vmul.f32 %v399, %v6341
    %v7218 = vmul.f32 %v400, %v6345
    %v7219 = vmul.f32 %v401, %v6349
    %v7220 = vmul.f32 %v402, %v6353
    %v7221 = vmul.f32 %v403, %v6357
    %v7222 = vmul.f32 %v404, %v6361
    %v7223 = vmul.f32 %v405, %v6365
    %v7224 = vmul.f32 %v406, %v6369
    %v7225 = vmul.f32 %v407, %v6373
    %v7226 = vmul.f32 %v408, %v6377
    %v7227 = vmul.f32 %v409, %v6381
    %v7228 = vmul.f32 %v410, %v6385
    %v7229 = vmul.f32 %v411, %v6389
    %v7230 = vmul.f32 %v412, %v6393
    %v7231 = vmul.f32 %v413, %v6397
    %v7232 = vmul.f32 %v414, %v6401
    %v7233 = vmul.f32 %v415, %v6405
    %v7234 = vmul.f32 %v416, %v6409
    %v7235 = vmul.f32 %v417, %v6413
    %v7236 = vmul.f32 %v418, %v6417
    %v7237 = vmul.f32 %v419, %v6421
    %v7238 = vmul.f32 %v420, %v6425
    %v7239 = vmul.f32 %v421, %v6429
    %v7240 = vmul.f32 %v422, %v6433
    %v7241 = vmul.f32 %v423, %v6437
    %v7242 = vmul.f32 %v424, %v6441
    %v7243 = vmul.f32 %v425, %v6445
    %v7244 = vmul.f32 %v426, %v6449
    %v7245 = vmul.f32 %v427, %v6453
    %v7246 = vmul.f32 %v428, %v6457
    %v7247 = vmul.f32 %v429, %v6461
    %v7248 = vmul.f32 %v430, %v6465
    %v7249 = vmul.f32 %v431, %v6469
    %v7250 = vmul.f32 %v432, %v6473
    %v7251 = vmul.f32 %v433, %v6477
    %v7252 = vmul.f32 %v434, %v6481
    %v7253 = vmul.f32 %v435, %v6485
    %v7254 = vmul.f32 %v436, %v4953
    %v7255 = vmul.f32 %v437, %v4957
    %v7256 = vmul.f32 %v438, %v4961
    %v7257 = vmul.f32 %v439, %v4965
    %v7258 = vmul.f32 %v440, %v4969
    %v7259 = vmul.f32 %v441, %v4973
    %v7260 = vmul.f32 %v442, %v4977
    %v7261 = vmul.f32 %v443, %v4981
    %v7262 = vmul.f32 %v444, %v4985
    %v7263 = vmul.f32 %v445, %v4989
    %v7264 = vmul.f32 %v446, %v4993
    %v7265 = vmul.f32 %v447, %v4997
    %v7266 = vmul.f32 %v448, %v5001
    %v7267 = vmul.f32 %v449, %v5005
    %v7268 = vmul.f32 %v450, %v5009
    %v7269 = vmul.f32 %v451, %v5013
    %v7270 = vmul.f32 %v452, %v5017
    %v7271 = vmul.f32 %v453, %v5021
    %v7272 = vmul.f32 %v454, %v5025
    %v7273 = vmul.f32 %v455, %v5029
    %v7274 = vmul.f32 %v456, %v5033
    %v7275 = vmul.f32 %v457, %v5037
    %v7276 = vmul.f32 %v458, %v5041
    %v7277 = vmul.f32 %v459, %v5045
    %v7278 = vmul.f32 %v460, %v5049
    %v7279 = vmul.f32 %v461, %v5053
    %v7280 = vmul.f32 %v462, %v5057
    %v7281 = vmul.f32 %v463, %v5061
    %v7282 = vmul.f32 %v464, %v5065
    %v7283 = vmul.f32 %v465, %v5069
    %v7284 = vmul.f32 %v466, %v5073
    %v7285 = vmul.f32 %v467, %v5077
    %v7286 = vmul.f32 %v468, %v5081
    %v7287 = vmul.f32 %v469, %v5085
    %v7288 = vmul.f32 %v470, %v5089
    %v7289 = vmul.f32 %v471, %v5093
    %v7290 = vmul.f32 %v472, %v5097
    %v7291 = vmul.f32 %v473, %v5101
    %v7292 = vmul.f32 %v474, %v5105
    %v7293 = vmul.f32 %v475, %v5109
    %v7294 = vmul.f32 %v476, %v5113
    %v7295 = vmul.f32 %v477, %v5117
    %v7296 = vmul.f32 %v478, %v5121
    %v7297 = vmul.f32 %v479, %v5125
    %v7298 = vmul.f32 %v480, %v5129
    %v7299 = vmul.f32 %v481, %v5133
    %v7300 = vmul.f32 %v482, %v5137
    %v7301 = vmul.f32 %v483, %v5141
    %v7302 = vmul.f32 %v484, %v5145
    %v7303 = vmul.f32 %v485, %v5149
    %v7304 = vmul.f32 %v486, %v5153
    %v7305 = vmul.f32 %v487, %v5157
    %v7306 = vmul.f32 %v488, %v5161
    %v7307 = vmul.f32 %v489, %v5165
    %v7308 = vmul.f32 %v490, %v5169
    %v7309 = vmul.f32 %v491, %v5173
    %v7310 = vmul.f32 %v492, %v5177
    %v7311 = vmul.f32 %v493, %v5181
    %v7312 = vmul.f32 %v494, %v5185
    %v7313 = vmul.f32 %v495, %v5189
    %v7314 = vmul.f32 %v496, %v5193
    %v7315 = vmul.f32 %v497, %v5197
    %v7316 = vmul.f32 %v498, %v5201
    %v7317 = vmul.f32 %v499, %v5205
    %v7318 = vmul.f32 %v500, %v5209
    %v7319 = vmul.f32 %v501, %v5213
    %v7320 = vmul.f32 %v502, %v5217
    %v7321 = vmul.f32 %v503, %v5221
    %v7322 = vmul.f32 %v504, %v5225
    %v7323 = vmul.f32 %v505, %v5229
    %v7324 = vmul.f32 %v506, %v5233
    %v7325 = vmul.f32 %v507, %v5237
    %v7326 = vmul.f32 %v508, %v5241
    %v7327 = vmul.f32 %v509, %v5245
    %v7328 = vmul.f32 %v510, %v5249
    %v7329 = vmul.f32 %v511, %v5253
    %v7330 = vmul.f32 %v512, %v5257
    %v7331 = vmul.f32 %v513, %v5261
    %v7332 = vmul.f32 %v514, %v5265
    %v7333 = vmul.f32 %v515, %v5269
    %v7334 = vmul.f32 %v516, %v5273
    %v7335 = vmul.f32 %v517, %v5277
    %v7336 = vmul.f32 %v518, %v5281
    %v7337 = vmul.f32 %v519, %v5285
    %v7338 = vmul.f32 %v520, %v5289
    %v7339 = vmul.f32 %v521, %v5293
    %v7340 = vmul.f32 %v522, %v5297
    %v7341 = vmul.f32 %v523, %v5301
    %v7342 = vmul.f32 %v524, %v5305
    %v7343 = vmul.f32 %v525, %v5309
    %v7344 = vmul.f32 %v526, %v5313
    %v7345 = vmul.f32 %v527, %v5317
    %v7346 = vmul.f32 %v528, %v5321
    %v7347 = vmul.f32 %v529, %v5325
    %v7348 = vmul.f32 %v530, %v5329
    %v7349 = vmul.f32 %v531, %v5333
    %v7350 = vmul.f32 %v532, %v5337
    %v7351 = vmul.f32 %v533, %v5341
    %v7352 = vmul.f32 %v534, %v5345
    %v7353 = vmul.f32 %v535, %v5349
    %v7354 = vmul.f32 %v536, %v5353
    %v7355 = vmul.f32 %v537, %v5357
    %v7356 = vmul.f32 %v538, %v5361
    %v7357 = vmul.f32 %v539, %v5365
    %v7358 = vmul.f32 %v540, %v5369
    %v7359 = vmul.f32 %v541, %v5373
    %v7360 = vmul.f32 %v542, %v5377
    %v7361 = vmul.f32 %v543, %v5381
    %v7362 = vmul.f32 %v544, %v5385
    %v7363 = vmul.f32 %v545, %v5389
    %v7364 = vmul.f32 %v546, %v5393
    %v7365 = vmul.f32 %v547, %v5397
    %v7366 = vmul.f32 %v548, %v5401
    %v7367 = vmul.f32 %v549, %v5405
    %v7368 = vmul.f32 %v550, %v5409
    %v7369 = vmul.f32 %v551, %v5413
    %v7370 = vmul.f32 %v552, %v5417
    %v7371 = vmul.f32 %v553, %v5421
    %v7372 = vmul.f32 %v554, %v5425
    %v7373 = vmul.f32 %v555, %v5429
    %v7374 = vmul.f32 %v556, %v5433
    %v7375 = vmul.f32 %v557, %v5437
    %v7376 = vmul.f32 %v558, %v5441
    %v7377 = vmul.f32 %v559, %v5445
    %v7378 = vmul.f32 %v560, %v5449
    %v7379 = vmul.f32 %v561, %v5453
    %v7380 = vmul.f32 %v562, %v5457
    %v7381 = vmul.f32 %v563, %v5461
    %v7382 = vmul.f32 %v564, %v5465
    %v7383 = vmul.f32 %v565, %v5469
    %v7384 = vmul.f32 %v566, %v5473
    %v7385 = vmul.f32 %v567, %v5477
    %v7386 = vmul.f32 %v568, %v5481
    %v7387 = vmul.f32 %v569, %v5485
    %v7388 = vmul.f32 %v570, %v5489
    %v7389 = vmul.f32 %v571, %v5493
    %v7390 = vmul.f32 %v572, %v5497
    %v7391 = vmul.f32 %v573, %v5501
    %v7392 = vmul.f32 %v574, %v5505
    %v7393 = vmul.f32 %v575, %v5509
    %v7394 = vmul.f32 %v576, %v5513
    %v7395 = vmul.f32 %v577, %v5517
    %v7396 = vmul.f32 %v578, %v5521
    %v7397 = vmul.f32 %v579, %v5525
    %v7398 = vmul.f32 %v580, %v5529
    %v7399 = vmul.f32 %v581, %v5533
    %v7400 = vmul.f32 %v582, %v5537
    %v7401 = vmul.f32 %v583, %v5541
    %v7402 = vmul.f32 %v584, %v5545
    %v7403 = vmul.f32 %v585, %v5549
    %v7404 = vmul.f32 %v586, %v5553
    %v7405 = vmul.f32 %v587, %v5557
    %v7406 = vmul.f32 %v588, %v5561
    %v7407 = vmul.f32 %v589, %v5565
    %v7408 = vmul.f32 %v590, %v5569
    %v7409 = vmul.f32 %v591, %v5573
    %v7410 = vmul.f32 %v592, %v5577
    %v7411 = vmul.f32 %v593, %v5581
    %v7412 = vmul.f32 %v594, %v5585
    %v7413 = vmul.f32 %v595, %v5589
    %v7414 = vmul.f32 %v596, %v5593
    %v7415 = vmul.f32 %v597, %v5597
    %v7416 = vmul.f32 %v598, %v5601
    %v7417 = vmul.f32 %v599, %v5605
    %v7418 = vmul.f32 %v600, %v5609
    %v7419 = vmul.f32 %v601, %v5613
    %v7420 = vmul.f32 %v602, %v5617
    %v7421 = vmul.f32 %v603, %v5621
    %v7422 = vmul.f32 %v604, %v5625
    %v7423 = vmul.f32 %v605, %v5629
    %v7424 = vmul.f32 %v606, %v5633
    %v7425 = vmul.f32 %v607, %v5637
    %v7426 = vmul.f32 %v608, %v5641
    %v7427 = vmul.f32 %v609, %v5645
    %v7428 = vmul.f32 %v610, %v5649
    %v7429 = vmul.f32 %v611, %v5653
    %v7430 = vmul.f32 %v612, %v5657
    %v7431 = vmul.f32 %v613, %v5661
    %v7432 = vmul.f32 %v614, %v5665
    %v7433 = vmul.f32 %v615, %v5669
    %v7434 = vmul.f32 %v616, %v5673
    %v7435 = vmul.f32 %v617, %v5677
    %v7436 = vmul.f32 %v618, %v5681
    %v7437 = vmul.f32 %v619, %v5685
    %v7438 = vmul.f32 %v620, %v5689
    %v7439 = vmul.f32 %v621, %v5693
    %v7440 = vmul.f32 %v622, %v5697
    %v7441 = vmul.f32 %v623, %v5701
    %v7442 = vmul.f32 %v624, %v5705
    %v7443 = vmul.f32 %v625, %v5709
    %v7444 = vmul.f32 %v626, %v5713
    %v7445 = vmul.f32 %v627, %v5717
    %v7446 = vmul.f32 %v628, %v5721
    %v7447 = vmul.f32 %v629, %v5725
    %v7448 = vmul.f32 %v630, %v5729
    %v7449 = vmul.f32 %v631, %v5733
    %v7450 = vmul.f32 %v632, %v5737
    %v7451 = vmul.f32 %v633, %v5741
    %v7452 = vmul.f32 %v634, %v5745
    %v7453 = vmul.f32 %v635, %v5749
    %v7454 = vmul.f32 %v636, %v5753
    %v7455 = vmul.f32 %v637, %v5757
    %v7456 = vmul.f32 %v638, %v5761
    %v7457 = vmul.f32 %v639, %v5765
    %v7458 = vmul.f32 %v640, %v5769
    %v7459 = vmul.f32 %v641, %v5773
    %v7460 = vmul.f32 %v642, %v5777
    %v7461 = vmul.f32 %v643, %v5781
    %v7462 = vmul.f32 %v644, %v5785
    %v7463 = vmul.f32 %v645, %v5789
    %v7464 = vmul.f32 %v646, %v5793
    %v7465 = vmul.f32 %v647, %v5797
    %v7466 = vmul.f32 %v648, %v5801
    %v7467 = vmul.f32 %v649, %v5805
    %v7468 = vmul.f32 %v650, %v5809
    %v7469 = vmul.f32 %v651, %v5813
    %v7470 = vmul.f32 %v652, %v5817
    %v7471 = vmul.f32 %v653, %v5821
    %v7472 = vmul.f32 %v654, %v5825
    %v7473 = vmul.f32 %v655, %v5829
    %v7474 = vmul.f32 %v656, %v5833
    %v7475 = vmul.f32 %v657, %v5837
    %v7476 = vmul.f32 %v658, %v5841
    %v7477 = vmul.f32 %v659, %v5845
    %v7478 = vmul.f32 %v660, %v5849
    %v7479 = vmul.f32 %v661, %v5853
    %v7480 = vmul.f32 %v662, %v5857
    %v7481 = vmul.f32 %v663, %v5861
    %v7482 = vmul.f32 %v664, %v5865
    %v7483 = vmul.f32 %v665, %v5869
    %v7484 = vmul.f32 %v666, %v5873
    %v7485 = vmul.f32 %v667, %v5877
    %v7486 = vmul.f32 %v668, %v5881
    %v7487 = vmul.f32 %v669, %v5885
    %v7488 = vmul.f32 %v670, %v5889
    %v7489 = vmul.f32 %v671, %v5893
    %v7490 = vmul.f32 %v672, %v5897
    %v7491 = vmul.f32 %v673, %v5901
    %v7492 = vmul.f32 %v674, %v5905
    %v7493 = vmul.f32 %v675, %v5909
    %v7494 = vmul.f32 %v676, %v5913
    %v7495 = vmul.f32 %v677, %v5917
    %v7496 = vmul.f32 %v678, %v5921
    %v7497 = vmul.f32 %v679, %v5925
    %v7498 = vmul.f32 %v680, %v5929
    %v7499 = vmul.f32 %v681, %v5933
    %v7500 = vmul.f32 %v682, %v5937
    %v7501 = vmul.f32 %v683, %v5941
    %v7502 = vmul.f32 %v684, %v5945
    %v7503 = vmul.f32 %v685, %v5949
    %v7504 = vmul.f32 %v686, %v5953
    %v7505 = vmul.f32 %v687, %v5957
    %v7506 = vmul.f32 %v688, %v5961
    %v7507 = vmul.f32 %v689, %v5965
    %v7508 = vmul.f32 %v690, %v5969
    %v7509 = vmul.f32 %v691, %v5973
    %v7510 = vmul.f32 %v692, %v5977
    %v7511 = vmul.f32 %v693, %v5981
    %v7512 = vmul.f32 %v694, %v5985
    %v7513 = vmul.f32 %v695, %v5989
    %v7514 = vmul.f32 %v696, %v5993
    %v7515 = vmul.f32 %v697, %v5997
    %v7516 = vmul.f32 %v698, %v6001
    %v7517 = vmul.f32 %v699, %v6005
    %v7518 = vmul.f32 %v700, %v6009
    %v7519 = vmul.f32 %v701, %v6013
    %v7520 = vmul.f32 %v702, %v6017
    %v7521 = vmul.f32 %v703, %v6021
    %v7522 = vmul.f32 %v704, %v6025
    %v7523 = vmul.f32 %v705, %v6029
    %v7524 = vmul.f32 %v706, %v6033
    %v7525 = vmul.f32 %v707, %v6037
    %v7526 = vmul.f32 %v708, %v6041
    %v7527 = vmul.f32 %v709, %v6045
    %v7528 = vmul.f32 %v710, %v6049
    %v7529 = vmul.f32 %v711, %v6053
    %v7530 = vmul.f32 %v712, %v6057
    %v7531 = vmul.f32 %v713, %v6061
    %v7532 = vmul.f32 %v714, %v6065
    %v7533 = vmul.f32 %v715, %v6069
    %v7534 = vmul.f32 %v716, %v6073
    %v7535 = vmul.f32 %v717, %v6077
    %v7536 = vmul.f32 %v718, %v6081
    %v7537 = vmul.f32 %v719, %v6085
    %v7538 = vmul.f32 %v720, %v6089
    %v7539 = vmul.f32 %v721, %v6093
    %v7540 = vmul.f32 %v722, %v6097
    %v7541 = vmul.f32 %v723, %v6101
    %v7542 = vmul.f32 %v724, %v6105
    %v7543 = vmul.f32 %v725, %v6109
    %v7544 = vmul.f32 %v726, %v6113
    %v7545 = vmul.f32 %v727, %v6117
    %v7546 = vmul.f32 %v728, %v6121
    %v7547 = vmul.f32 %v729, %v6125
    %v7548 = vmul.f32 %v730, %v6129
    %v7549 = vmul.f32 %v731, %v6133
    %v7550 = vmul.f32 %v732, %v6137
    %v7551 = vmul.f32 %v733, %v6141
    %v7552 = vmul.f32 %v734, %v6145
    %v7553 = vmul.f32 %v735, %v6149
    %v7554 = vmul.f32 %v736, %v6153
    %v7555 = vmul.f32 %v737, %v6157
    %v7556 = vmul.f32 %v738, %v6161
    %v7557 = vmul.f32 %v739, %v6165
    %v7558 = vmul.f32 %v740, %v6169
    %v7559 = vmul.f32 %v741, %v6173
    %v7560 = vmul.f32 %v742, %v6177
    %v7561 = vmul.f32 %v743, %v6181
    %v7562 = vmul.f32 %v744, %v6185
    %v7563 = vmul.f32 %v745, %v6189
    %v7564 = vmul.f32 %v746, %v6193
    %v7565 = vmul.f32 %v747, %v6197
    %v7566 = vmul.f32 %v748, %v6201
    %v7567 = vmul.f32 %v749, %v6205
    %v7568 = vmul.f32 %v750, %v6209
    %v7569 = vmul.f32 %v751, %v6213
    %v7570 = vmul.f32 %v752, %v6217
    %v7571 = vmul.f32 %v753, %v6221
    %v7572 = vmul.f32 %v754, %v6225
    %v7573 = vmul.f32 %v755, %v6229
    %v7574 = vmul.f32 %v756, %v6233
    %v7575 = vmul.f32 %v757, %v6237
    %v7576 = vmul.f32 %v758, %v6241
    %v7577 = vmul.f32 %v759, %v6245
    %v7578 = vmul.f32 %v760, %v6249
    %v7579 = vmul.f32 %v761, %v6253
    %v7580 = vmul.f32 %v762, %v6257
    %v7581 = vmul.f32 %v763, %v6261
    %v7582 = vmul.f32 %v764, %v6265
    %v7583 = vmul.f32 %v765, %v6269
    %v7584 = vmul.f32 %v766, %v6273
    %v7585 = vmul.f32 %v767, %v6277
    %v7586 = vmul.f32 %v768, %v6281
    %v7587 = vmul.f32 %v769, %v6285
    %v7588 = vmul.f32 %v770, %v6289
    %v7589 = vmul.f32 %v771, %v6293
    %v7590 = vmul.f32 %v772, %v6297
    %v7591 = vmul.f32 %v773, %v6301
    %v7592 = vmul.f32 %v774, %v6305
    %v7593 = vmul.f32 %v775, %v6309
    %v7594 = vmul.f32 %v776, %v6313
    %v7595 = vmul.f32 %v777, %v6317
    %v7596 = vmul.f32 %v778, %v6321
    %v7597 = vmul.f32 %v779, %v6325
    %v7598 = vmul.f32 %v780, %v6329
    %v7599 = vmul.f32 %v781, %v6333
    %v7600 = vmul.f32 %v782, %v6337
    %v7601 = vmul.f32 %v783, %v6341
    %v7602 = vmul.f32 %v784, %v6345
    %v7603 = vmul.f32 %v785, %v6349
    %v7604 = vmul.f32 %v786, %v6353
    %v7605 = vmul.f32 %v787, %v6357
    %v7606 = vmul.f32 %v788, %v6361
    %v7607 = vmul.f32 %v789, %v6365
    %v7608 = vmul.f32 %v790, %v6369
    %v7609 = vmul.f32 %v791, %v6373
    %v7610 = vmul.f32 %v792, %v6377
    %v7611 = vmul.f32 %v793, %v6381
    %v7612 = vmul.f32 %v794, %v6385
    %v7613 = vmul.f32 %v795, %v6389
    %v7614 = vmul.f32 %v796, %v6393
    %v7615 = vmul.f32 %v797, %v6397
    %v7616 = vmul.f32 %v798, %v6401
    %v7617 = vmul.f32 %v799, %v6405
    %v7618 = vmul.f32 %v800, %v6409
    %v7619 = vmul.f32 %v801, %v6413
    %v7620 = vmul.f32 %v802, %v6417
    %v7621 = vmul.f32 %v803, %v6421
    %v7622 = vmul.f32 %v804, %v6425
    %v7623 = vmul.f32 %v805, %v6429
    %v7624 = vmul.f32 %v806, %v6433
    %v7625 = vmul.f32 %v807, %v6437
    %v7626 = vmul.f32 %v808, %v6441
    %v7627 = vmul.f32 %v809, %v6445
    %v7628 = vmul.f32 %v810, %v6449
    %v7629 = vmul.f32 %v811, %v6453
    %v7630 = vmul.f32 %v812, %v6457
    %v7631 = vmul.f32 %v813, %v6461
    %v7632 = vmul.f32 %v814, %v6465
    %v7633 = vmul.f32 %v815, %v6469
    %v7634 = vmul.f32 %v816, %v6473
    %v7635 = vmul.f32 %v817, %v6477
    %v7636 = vmul.f32 %v818, %v6481
    %v7637 = vmul.f32 %v819, %v6485
    %v7638 = vadd.f32 %v6870, %v6871
    %v7639 = vadd.f32 %v7638, %v6872
    %v7640 = vadd.f32 %v7639, %v6873
    %v7641 = vadd.f32 %v7640, %v6874
    %v7642 = vadd.f32 %v7641, %v6875
    %v7643 = vadd.f32 %v7642, %v6876
    %v7644 = vadd.f32 %v7643, %v6877
    %v7645 = vadd.f32 %v7644, %v6878
    %v7646 = vadd.f32 %v7645, %v6879
    %v7647 = vadd.f32 %v7646, %v6880
    %v7648 = vadd.f32 %v7647, %v6881
    %v7649 = vadd.f32 %v7648, %v6882
    %v7650 = vadd.f32 %v7649, %v6883
    %v7651 = vadd.f32 %v7650, %v6884
    %v7652 = vadd.f32 %v7651, %v6885
    %v7653 = vadd.f32 %v7652, %v6886
    %v7654 = vadd.f32 %v7653, %v6887
    %v7655 = vadd.f32 %v7654, %v6888
    %v7656 = vadd.f32 %v7655, %v6889
    %v7657 = vadd.f32 %v7656, %v6890
    %v7658 = vadd.f32 %v7657, %v6891
    %v7659 = vadd.f32 %v7658, %v6892
    %v7660 = vadd.f32 %v7659, %v6893
    %v7661 = vadd.f32 %v7660, %v6894
    %v7662 = vadd.f32 %v7661, %v6895
    %v7663 = vadd.f32 %v7662, %v6896
    %v7664 = vadd.f32 %v7663, %v6897
    %v7665 = vadd.f32 %v7664, %v6898
    %v7666 = vadd.f32 %v7665, %v6899
    %v7667 = vadd.f32 %v7666, %v6900
    %v7668 = vadd.f32 %v7667, %v6901
    %v7669 = vadd.f32 %v7668, %v6902
    %v7670 = vadd.f32 %v7669, %v6903
    %v7671 = vadd.f32 %v7670, %v6904
    %v7672 = vadd.f32 %v7671, %v6905
    %v7673 = vadd.f32 %v7672, %v6906
    %v7674 = vadd.f32 %v7673, %v6907
    %v7675 = vadd.f32 %v7674, %v6908
    %v7676 = vadd.f32 %v7675, %v6909
    %v7677 = vadd.f32 %v7676, %v6910
    %v7678 = vadd.f32 %v7677, %v6911
    %v7679 = vadd.f32 %v7678, %v6912
    %v7680 = vadd.f32 %v7679, %v6913
    %v7681 = vadd.f32 %v7680, %v6914
    %v7682 = vadd.f32 %v7681, %v6915
    %v7683 = vadd.f32 %v7682, %v6916
    %v7684 = vadd.f32 %v7683, %v6917
    %v7685 = vadd.f32 %v7684, %v6918
    %v7686 = vadd.f32 %v7685, %v6919
    %v7687 = vadd.f32 %v7686, %v6920
    %v7688 = vadd.f32 %v7687, %v6921
    %v7689 = vadd.f32 %v7688, %v6922
    %v7690 = vadd.f32 %v7689, %v6923
    %v7691 = vadd.f32 %v7690, %v6924
    %v7692 = vadd.f32 %v7691, %v6925
    %v7693 = vadd.f32 %v7692, %v6926
    %v7694 = vadd.f32 %v7693, %v6927
    %v7695 = vadd.f32 %v7694, %v6928
    %v7696 = vadd.f32 %v7695, %v6929
    %v7697 = vadd.f32 %v7696, %v6930
    %v7698 = vadd.f32 %v7697, %v6931
    %v7699 = vadd.f32 %v7698, %v6932
    %v7700 = vadd.f32 %v7699, %v6933
    %v7701 = vadd.f32 %v7700, %v6934
    %v7702 = vadd.f32 %v7701, %v6935
    %v7703 = vadd.f32 %v7702, %v6936
    %v7704 = vadd.f32 %v7703, %v6937
    %v7705 = vadd.f32 %v7704, %v6938
    %v7706 = vadd.f32 %v7705, %v6939
    %v7707 = vadd.f32 %v7706, %v6940
    %v7708 = vadd.f32 %v7707, %v6941
    %v7709 = vadd.f32 %v7708, %v6942
    %v7710 = vadd.f32 %v7709, %v6943
    %v7711 = vadd.f32 %v7710, %v6944
    %v7712 = vadd.f32 %v7711, %v6945
    %v7713 = vadd.f32 %v7712, %v6946
    %v7714 = vadd.f32 %v7713, %v6947
    %v7715 = vadd.f32 %v7714, %v6948
    %v7716 = vadd.f32 %v7715, %v6949
    %v7717 = vadd.f32 %v7716, %v6950
    %v7718 = vadd.f32 %v7717, %v6951
    %v7719 = vadd.f32 %v7718, %v6952
    %v7720 = vadd.f32 %v7719, %v6953
    %v7721 = vadd.f32 %v7720, %v6954
    %v7722 = vadd.f32 %v7721, %v6955
    %v7723 = vadd.f32 %v7722, %v6956
    %v7724 = vadd.f32 %v7723, %v6957
    %v7725 = vadd.f32 %v7724, %v6958
    %v7726 = vadd.f32 %v7725, %v6959
    %v7727 = vadd.f32 %v7726, %v6960
    %v7728 = vadd.f32 %v7727, %v6961
    %v7729 = vadd.f32 %v7728, %v6962
    %v7730 = vadd.f32 %v7729, %v6963
    %v7731 = vadd.f32 %v7730, %v6964
    %v7732 = vadd.f32 %v7731, %v6965
    %v7733 = vadd.f32 %v7732, %v6966
    %v7734 = vadd.f32 %v7733, %v6967
    %v7735 = vadd.f32 %v7734, %v6968
    %v7736 = vadd.f32 %v7735, %v6969
    %v7737 = vadd.f32 %v7736, %v6970
    %v7738 = vadd.f32 %v7737, %v6971
    %v7739 = vadd.f32 %v7738, %v6972
    %v7740 = vadd.f32 %v7739, %v6973
    %v7741 = vadd.f32 %v7740, %v6974
    %v7742 = vadd.f32 %v7741, %v6975
    %v7743 = vadd.f32 %v7742, %v6976
    %v7744 = vadd.f32 %v7743, %v6977
    %v7745 = vadd.f32 %v7744, %v6978
    %v7746 = vadd.f32 %v7745, %v6979
    %v7747 = vadd.f32 %v7746, %v6980
    %v7748 = vadd.f32 %v7747, %v6981
    %v7749 = vadd.f32 %v7748, %v6982
    %v7750 = vadd.f32 %v7749, %v6983
    %v7751 = vadd.f32 %v7750, %v6984
    %v7752 = vadd.f32 %v7751, %v6985
    %v7753 = vadd.f32 %v7752, %v6986
    %v7754 = vadd.f32 %v7753, %v6987
    %v7755 = vadd.f32 %v7754, %v6988
    %v7756 = vadd.f32 %v7755, %v6989
    %v7757 = vadd.f32 %v7756, %v6990
    %v7758 = vadd.f32 %v7757, %v6991
    %v7759 = vadd.f32 %v7758, %v6992
    %v7760 = vadd.f32 %v7759, %v6993
    %v7761 = vadd.f32 %v7760, %v6994
    %v7762 = vadd.f32 %v7761, %v6995
    %v7763 = vadd.f32 %v7762, %v6996
    %v7764 = vadd.f32 %v7763, %v6997
    %v7765 = vadd.f32 %v7764, %v6998
    %v7766 = vadd.f32 %v7765, %v6999
    %v7767 = vadd.f32 %v7766, %v7000
    %v7768 = vadd.f32 %v7767, %v7001
    %v7769 = vadd.f32 %v7768, %v7002
    %v7770 = vadd.f32 %v7769, %v7003
    %v7771 = vadd.f32 %v7770, %v7004
    %v7772 = vadd.f32 %v7771, %v7005
    %v7773 = vadd.f32 %v7772, %v7006
    %v7774 = vadd.f32 %v7773, %v7007
    %v7775 = vadd.f32 %v7774, %v7008
    %v7776 = vadd.f32 %v7775, %v7009
    %v7777 = vadd.f32 %v7776, %v7010
    %v7778 = vadd.f32 %v7777, %v7011
    %v7779 = vadd.f32 %v7778, %v7012
    %v7780 = vadd.f32 %v7779, %v7013
    %v7781 = vadd.f32 %v7780, %v7014
    %v7782 = vadd.f32 %v7781, %v7015
    %v7783 = vadd.f32 %v7782, %v7016
    %v7784 = vadd.f32 %v7783, %v7017
    %v7785 = vadd.f32 %v7784, %v7018
    %v7786 = vadd.f32 %v7785, %v7019
    %v7787 = vadd.f32 %v7786, %v7020
    %v7788 = vadd.f32 %v7787, %v7021
    %v7789 = vadd.f32 %v7788, %v7022
    %v7790 = vadd.f32 %v7789, %v7023
    %v7791 = vadd.f32 %v7790, %v7024
    %v7792 = vadd.f32 %v7791, %v7025
    %v7793 = vadd.f32 %v7792, %v7026
    %v7794 = vadd.f32 %v7793, %v7027
    %v7795 = vadd.f32 %v7794, %v7028
    %v7796 = vadd.f32 %v7795, %v7029
    %v7797 = vadd.f32 %v7796, %v7030
    %v7798 = vadd.f32 %v7797, %v7031
    %v7799 = vadd.f32 %v7798, %v7032
    %v7800 = vadd.f32 %v7799, %v7033
    %v7801 = vadd.f32 %v7800, %v7034
    %v7802 = vadd.f32 %v7801, %v7035
    %v7803 = vadd.f32 %v7802, %v7036
    %v7804 = vadd.f32 %v7803, %v7037
    %v7805 = vadd.f32 %v7804, %v7038
    %v7806 = vadd.f32 %v7805, %v7039
    %v7807 = vadd.f32 %v7806, %v7040
    %v7808 = vadd.f32 %v7807, %v7041
    %v7809 = vadd.f32 %v7808, %v7042
    %v7810 = vadd.f32 %v7809, %v7043
    %v7811 = vadd.f32 %v7810, %v7044
    %v7812 = vadd.f32 %v7811, %v7045
    %v7813 = vadd.f32 %v7812, %v7046
    %v7814 = vadd.f32 %v7813, %v7047
    %v7815 = vadd.f32 %v7814, %v7048
    %v7816 = vadd.f32 %v7815, %v7049
    %v7817 = vadd.f32 %v7816, %v7050
    %v7818 = vadd.f32 %v7817, %v7051
    %v7819 = vadd.f32 %v7818, %v7052
    %v7820 = vadd.f32 %v7819, %v7053
    %v7821 = vadd.f32 %v7820, %v7054
    %v7822 = vadd.f32 %v7821, %v7055
    %v7823 = vadd.f32 %v7822, %v7056
    %v7824 = vadd.f32 %v7823, %v7057
    %v7825 = vadd.f32 %v7824, %v7058
    %v7826 = vadd.f32 %v7825, %v7059
    %v7827 = vadd.f32 %v7826, %v7060
    %v7828 = vadd.f32 %v7827, %v7061
    %v7829 = vadd.f32 %v7828, %v7062
    %v7830 = vadd.f32 %v7829, %v7063
    %v7831 = vadd.f32 %v7830, %v7064
    %v7832 = vadd.f32 %v7831, %v7065
    %v7833 = vadd.f32 %v7832, %v7066
    %v7834 = vadd.f32 %v7833, %v7067
    %v7835 = vadd.f32 %v7834, %v7068
    %v7836 = vadd.f32 %v7835, %v7069
    %v7837 = vadd.f32 %v7836, %v7070
    %v7838 = vadd.f32 %v7837, %v7071
    %v7839 = vadd.f32 %v7838, %v7072
    %v7840 = vadd.f32 %v7839, %v7073
    %v7841 = vadd.f32 %v7840, %v7074
    %v7842 = vadd.f32 %v7841, %v7075
    %v7843 = vadd.f32 %v7842, %v7076
    %v7844 = vadd.f32 %v7843, %v7077
    %v7845 = vadd.f32 %v7844, %v7078
    %v7846 = vadd.f32 %v7845, %v7079
    %v7847 = vadd.f32 %v7846, %v7080
    %v7848 = vadd.f32 %v7847, %v7081
    %v7849 = vadd.f32 %v7848, %v7082
    %v7850 = vadd.f32 %v7849, %v7083
    %v7851 = vadd.f32 %v7850, %v7084
    %v7852 = vadd.f32 %v7851, %v7085
    %v7853 = vadd.f32 %v7852, %v7086
    %v7854 = vadd.f32 %v7853, %v7087
    %v7855 = vadd.f32 %v7854, %v7088
    %v7856 = vadd.f32 %v7855, %v7089
    %v7857 = vadd.f32 %v7856, %v7090
    %v7858 = vadd.f32 %v7857, %v7091
    %v7859 = vadd.f32 %v7858, %v7092
    %v7860 = vadd.f32 %v7859, %v7093
    %v7861 = vadd.f32 %v7860, %v7094
    %v7862 = vadd.f32 %v7861, %v7095
    %v7863 = vadd.f32 %v7862, %v7096
    %v7864 = vadd.f32 %v7863, %v7097
    %v7865 = vadd.f32 %v7864, %v7098
    %v7866 = vadd.f32 %v7865, %v7099
    %v7867 = vadd.f32 %v7866, %v7100
    %v7868 = vadd.f32 %v7867, %v7101
    %v7869 = vadd.f32 %v7868, %v7102
    %v7870 = vadd.f32 %v7869, %v7103
    %v7871 = vadd.f32 %v7870, %v7104
    %v7872 = vadd.f32 %v7871, %v7105
    %v7873 = vadd.f32 %v7872, %v7106
    %v7874 = vadd.f32 %v7873, %v7107
    %v7875 = vadd.f32 %v7874, %v7108
    %v7876 = vadd.f32 %v7875, %v7109
    %v7877 = vadd.f32 %v7876, %v7110
    %v7878 = vadd.f32 %v7877, %v7111
    %v7879 = vadd.f32 %v7878, %v7112
    %v7880 = vadd.f32 %v7879, %v7113
    %v7881 = vadd.f32 %v7880, %v7114
    %v7882 = vadd.f32 %v7881, %v7115
    %v7883 = vadd.f32 %v7882, %v7116
    %v7884 = vadd.f32 %v7883, %v7117
    %v7885 = vadd.f32 %v7884, %v7118
    %v7886 = vadd.f32 %v7885, %v7119
    %v7887 = vadd.f32 %v7886, %v7120
    %v7888 = vadd.f32 %v7887, %v7121
    %v7889 = vadd.f32 %v7888, %v7122
    %v7890 = vadd.f32 %v7889, %v7123
    %v7891 = vadd.f32 %v7890, %v7124
    %v7892 = vadd.f32 %v7891, %v7125
    %v7893 = vadd.f32 %v7892, %v7126
    %v7894 = vadd.f32 %v7893, %v7127
    %v7895 = vadd.f32 %v7894, %v7128
    %v7896 = vadd.f32 %v7895, %v7129
    %v7897 = vadd.f32 %v7896, %v7130
    %v7898 = vadd.f32 %v7897, %v7131
    %v7899 = vadd.f32 %v7898, %v7132
    %v7900 = vadd.f32 %v7899, %v7133
    %v7901 = vadd.f32 %v7900, %v7134
    %v7902 = vadd.f32 %v7901, %v7135
    %v7903 = vadd.f32 %v7902, %v7136
    %v7904 = vadd.f32 %v7903, %v7137
    %v7905 = vadd.f32 %v7904, %v7138
    %v7906 = vadd.f32 %v7905, %v7139
    %v7907 = vadd.f32 %v7906, %v7140
    %v7908 = vadd.f32 %v7907, %v7141
    %v7909 = vadd.f32 %v7908, %v7142
    %v7910 = vadd.f32 %v7909, %v7143
    %v7911 = vadd.f32 %v7910, %v7144
    %v7912 = vadd.f32 %v7911, %v7145
    %v7913 = vadd.f32 %v7912, %v7146
    %v7914 = vadd.f32 %v7913, %v7147
    %v7915 = vadd.f32 %v7914, %v7148
    %v7916 = vadd.f32 %v7915, %v7149
    %v7917 = vadd.f32 %v7916, %v7150
    %v7918 = vadd.f32 %v7917, %v7151
    %v7919 = vadd.f32 %v7918, %v7152
    %v7920 = vadd.f32 %v7919, %v7153
    %v7921 = vadd.f32 %v7920, %v7154
    %v7922 = vadd.f32 %v7921, %v7155
    %v7923 = vadd.f32 %v7922, %v7156
    %v7924 = vadd.f32 %v7923, %v7157
    %v7925 = vadd.f32 %v7924, %v7158
    %v7926 = vadd.f32 %v7925, %v7159
    %v7927 = vadd.f32 %v7926, %v7160
    %v7928 = vadd.f32 %v7927, %v7161
    %v7929 = vadd.f32 %v7928, %v7162
    %v7930 = vadd.f32 %v7929, %v7163
    %v7931 = vadd.f32 %v7930, %v7164
    %v7932 = vadd.f32 %v7931, %v7165
    %v7933 = vadd.f32 %v7932, %v7166
    %v7934 = vadd.f32 %v7933, %v7167
    %v7935 = vadd.f32 %v7934, %v7168
    %v7936 = vadd.f32 %v7935, %v7169
    %v7937 = vadd.f32 %v7936, %v7170
    %v7938 = vadd.f32 %v7937, %v7171
    %v7939 = vadd.f32 %v7938, %v7172
    %v7940 = vadd.f32 %v7939, %v7173
    %v7941 = vadd.f32 %v7940, %v7174
    %v7942 = vadd.f32 %v7941, %v7175
    %v7943 = vadd.f32 %v7942, %v7176
    %v7944 = vadd.f32 %v7943, %v7177
    %v7945 = vadd.f32 %v7944, %v7178
    %v7946 = vadd.f32 %v7945, %v7179
    %v7947 = vadd.f32 %v7946, %v7180
    %v7948 = vadd.f32 %v7947, %v7181
    %v7949 = vadd.f32 %v7948, %v7182
    %v7950 = vadd.f32 %v7949, %v7183
    %v7951 = vadd.f32 %v7950, %v7184
    %v7952 = vadd.f32 %v7951, %v7185
    %v7953 = vadd.f32 %v7952, %v7186
    %v7954 = vadd.f32 %v7953, %v7187
    %v7955 = vadd.f32 %v7954, %v7188
    %v7956 = vadd.f32 %v7955, %v7189
    %v7957 = vadd.f32 %v7956, %v7190
    %v7958 = vadd.f32 %v7957, %v7191
    %v7959 = vadd.f32 %v7958, %v7192
    %v7960 = vadd.f32 %v7959, %v7193
    %v7961 = vadd.f32 %v7960, %v7194
    %v7962 = vadd.f32 %v7961, %v7195
    %v7963 = vadd.f32 %v7962, %v7196
    %v7964 = vadd.f32 %v7963, %v7197
    %v7965 = vadd.f32 %v7964, %v7198
    %v7966 = vadd.f32 %v7965, %v7199
    %v7967 = vadd.f32 %v7966, %v7200
    %v7968 = vadd.f32 %v7967, %v7201
    %v7969 = vadd.f32 %v7968, %v7202
    %v7970 = vadd.f32 %v7969, %v7203
    %v7971 = vadd.f32 %v7970, %v7204
    %v7972 = vadd.f32 %v7971, %v7205
    %v7973 = vadd.f32 %v7972, %v7206
    %v7974 = vadd.f32 %v7973, %v7207
    %v7975 = vadd.f32 %v7974, %v7208
    %v7976 = vadd.f32 %v7975, %v7209
    %v7977 = vadd.f32 %v7976, %v7210
    %v7978 = vadd.f32 %v7977, %v7211
    %v7979 = vadd.f32 %v7978, %v7212
    %v7980 = vadd.f32 %v7979, %v7213
    %v7981 = vadd.f32 %v7980, %v7214
    %v7982 = vadd.f32 %v7981, %v7215
    %v7983 = vadd.f32 %v7982, %v7216
    %v7984 = vadd.f32 %v7983, %v7217
    %v7985 = vadd.f32 %v7984, %v7218
    %v7986 = vadd.f32 %v7985, %v7219
    %v7987 = vadd.f32 %v7986, %v7220
    %v7988 = vadd.f32 %v7987, %v7221
    %v7989 = vadd.f32 %v7988, %v7222
    %v7990 = vadd.f32 %v7989, %v7223
    %v7991 = vadd.f32 %v7990, %v7224
    %v7992 = vadd.f32 %v7991, %v7225
    %v7993 = vadd.f32 %v7992, %v7226
    %v7994 = vadd.f32 %v7993, %v7227
    %v7995 = vadd.f32 %v7994, %v7228
    %v7996 = vadd.f32 %v7995, %v7229
    %v7997 = vadd.f32 %v7996, %v7230
    %v7998 = vadd.f32 %v7997, %v7231
    %v7999 = vadd.f32 %v7998, %v7232
    %v8000 = vadd.f32 %v7999, %v7233
    %v8001 = vadd.f32 %v8000, %v7234
    %v8002 = vadd.f32 %v8001, %v7235
    %v8003 = vadd.f32 %v8002, %v7236
    %v8004 = vadd.f32 %v8003, %v7237
    %v8005 = vadd.f32 %v8004, %v7238
    %v8006 = vadd.f32 %v8005, %v7239
    %v8007 = vadd.f32 %v8006, %v7240
    %v8008 = vadd.f32 %v8007, %v7241
    %v8009 = vadd.f32 %v8008, %v7242
    %v8010 = vadd.f32 %v8009, %v7243
    %v8011 = vadd.f32 %v8010, %v7244
    %v8012 = vadd.f32 %v8011, %v7245
    %v8013 = vadd.f32 %v8012, %v7246
    %v8014 = vadd.f32 %v8013, %v7247
    %v8015 = vadd.f32 %v8014, %v7248
    %v8016 = vadd.f32 %v8015, %v7249
    %v8017 = vadd.f32 %v8016, %v7250
    %v8018 = vadd.f32 %v8017, %v7251
    %v8019 = vadd.f32 %v8018, %v7252
    %v8020 = vadd.f32 %v8019, %v7253
    %8021 = vadd.xlane.f32.xlu0 %v8020
    %v8022 = vpop.xlane.xlu0 %8021
    %v8023 = vsel %vm4036, %v7254, 0.0
    %v8024 = vsel %vm4036, %v7255, 0.0
    %v8025 = vadd.f32 %v8023, %v8024
    %v8026 = vsel %vm4036, %v7256, 0.0
    %v8027 = vadd.f32 %v8025, %v8026
    %v8028 = vsel %vm4036, %v7257, 0.0
    %v8029 = vadd.f32 %v8027, %v8028
    %v8030 = vsel %vm4036, %v7258, 0.0
    %v8031 = vadd.f32 %v8029, %v8030
    %v8032 = vsel %vm4036, %v7259, 0.0
    %v8033 = vadd.f32 %v8031, %v8032
    %v8034 = vsel %vm4036, %v7260, 0.0
    %v8035 = vadd.f32 %v8033, %v8034
    %v8036 = vsel %vm4036, %v7261, 0.0
    %v8037 = vadd.f32 %v8035, %v8036
    %v8038 = vsel %vm4036, %v7262, 0.0
    %v8039 = vadd.f32 %v8037, %v8038
    %v8040 = vsel %vm4036, %v7263, 0.0
    %v8041 = vadd.f32 %v8039, %v8040
    %v8042 = vsel %vm4036, %v7264, 0.0
    %v8043 = vadd.f32 %v8041, %v8042
    %v8044 = vsel %vm4036, %v7265, 0.0
    %v8045 = vadd.f32 %v8043, %v8044
    %v8046 = vsel %vm4036, %v7266, 0.0
    %v8047 = vadd.f32 %v8045, %v8046
    %v8048 = vsel %vm4036, %v7267, 0.0
    %v8049 = vadd.f32 %v8047, %v8048
    %v8050 = vsel %vm4036, %v7268, 0.0
    %v8051 = vadd.f32 %v8049, %v8050
    %v8052 = vsel %vm4036, %v7269, 0.0
    %v8053 = vadd.f32 %v8051, %v8052
    %v8054 = vsel %vm4036, %v7270, 0.0
    %v8055 = vadd.f32 %v8053, %v8054
    %v8056 = vsel %vm4036, %v7271, 0.0
    %v8057 = vadd.f32 %v8055, %v8056
    %v8058 = vsel %vm4036, %v7272, 0.0
    %v8059 = vadd.f32 %v8057, %v8058
    %v8060 = vsel %vm4036, %v7273, 0.0
    %v8061 = vadd.f32 %v8059, %v8060
    %v8062 = vsel %vm4036, %v7274, 0.0
    %v8063 = vadd.f32 %v8061, %v8062
    %v8064 = vsel %vm4036, %v7275, 0.0
    %v8065 = vadd.f32 %v8063, %v8064
    %v8066 = vsel %vm4036, %v7276, 0.0
    %v8067 = vadd.f32 %v8065, %v8066
    %v8068 = vsel %vm4036, %v7277, 0.0
    %v8069 = vadd.f32 %v8067, %v8068
    %v8070 = vsel %vm4036, %v7278, 0.0
    %v8071 = vadd.f32 %v8069, %v8070
    %v8072 = vsel %vm4036, %v7279, 0.0
    %v8073 = vadd.f32 %v8071, %v8072
    %v8074 = vsel %vm4036, %v7280, 0.0
    %v8075 = vadd.f32 %v8073, %v8074
    %v8076 = vsel %vm4036, %v7281, 0.0
    %v8077 = vadd.f32 %v8075, %v8076
    %v8078 = vsel %vm4036, %v7282, 0.0
    %v8079 = vadd.f32 %v8077, %v8078
    %v8080 = vsel %vm4036, %v7283, 0.0
    %v8081 = vadd.f32 %v8079, %v8080
    %v8082 = vsel %vm4036, %v7284, 0.0
    %v8083 = vadd.f32 %v8081, %v8082
    %v8084 = vsel %vm4036, %v7285, 0.0
    %v8085 = vadd.f32 %v8083, %v8084
    %v8086 = vsel %vm4036, %v7286, 0.0
    %v8087 = vadd.f32 %v8085, %v8086
    %v8088 = vsel %vm4036, %v7287, 0.0
    %v8089 = vadd.f32 %v8087, %v8088
    %v8090 = vsel %vm4036, %v7288, 0.0
    %v8091 = vadd.f32 %v8089, %v8090
    %v8092 = vsel %vm4036, %v7289, 0.0
    %v8093 = vadd.f32 %v8091, %v8092
    %v8094 = vsel %vm4036, %v7290, 0.0
    %v8095 = vadd.f32 %v8093, %v8094
    %v8096 = vsel %vm4036, %v7291, 0.0
    %v8097 = vadd.f32 %v8095, %v8096
    %v8098 = vsel %vm4036, %v7292, 0.0
    %v8099 = vadd.f32 %v8097, %v8098
    %v8100 = vsel %vm4036, %v7293, 0.0
    %v8101 = vadd.f32 %v8099, %v8100
    %v8102 = vsel %vm4036, %v7294, 0.0
    %v8103 = vadd.f32 %v8101, %v8102
    %v8104 = vsel %vm4036, %v7295, 0.0
    %v8105 = vadd.f32 %v8103, %v8104
    %v8106 = vsel %vm4036, %v7296, 0.0
    %v8107 = vadd.f32 %v8105, %v8106
    %v8108 = vsel %vm4036, %v7297, 0.0
    %v8109 = vadd.f32 %v8107, %v8108
    %v8110 = vsel %vm4036, %v7298, 0.0
    %v8111 = vadd.f32 %v8109, %v8110
    %v8112 = vsel %vm4036, %v7299, 0.0
    %v8113 = vadd.f32 %v8111, %v8112
    %v8114 = vsel %vm4036, %v7300, 0.0
    %v8115 = vadd.f32 %v8113, %v8114
    %v8116 = vsel %vm4036, %v7301, 0.0
    %v8117 = vadd.f32 %v8115, %v8116
    %v8118 = vsel %vm4036, %v7302, 0.0
    %v8119 = vadd.f32 %v8117, %v8118
    %v8120 = vsel %vm4036, %v7303, 0.0
    %v8121 = vadd.f32 %v8119, %v8120
    %v8122 = vsel %vm4036, %v7304, 0.0
    %v8123 = vadd.f32 %v8121, %v8122
    %v8124 = vsel %vm4036, %v7305, 0.0
    %v8125 = vadd.f32 %v8123, %v8124
    %v8126 = vsel %vm4036, %v7306, 0.0
    %v8127 = vadd.f32 %v8125, %v8126
    %v8128 = vsel %vm4036, %v7307, 0.0
    %v8129 = vadd.f32 %v8127, %v8128
    %v8130 = vsel %vm4036, %v7308, 0.0
    %v8131 = vadd.f32 %v8129, %v8130
    %v8132 = vsel %vm4036, %v7309, 0.0
    %v8133 = vadd.f32 %v8131, %v8132
    %v8134 = vsel %vm4036, %v7310, 0.0
    %v8135 = vadd.f32 %v8133, %v8134
    %v8136 = vsel %vm4036, %v7311, 0.0
    %v8137 = vadd.f32 %v8135, %v8136
    %v8138 = vsel %vm4036, %v7312, 0.0
    %v8139 = vadd.f32 %v8137, %v8138
    %v8140 = vsel %vm4036, %v7313, 0.0
    %v8141 = vadd.f32 %v8139, %v8140
    %v8142 = vsel %vm4036, %v7314, 0.0
    %v8143 = vadd.f32 %v8141, %v8142
    %v8144 = vsel %vm4036, %v7315, 0.0
    %v8145 = vadd.f32 %v8143, %v8144
    %v8146 = vsel %vm4036, %v7316, 0.0
    %v8147 = vadd.f32 %v8145, %v8146
    %v8148 = vsel %vm4036, %v7317, 0.0
    %v8149 = vadd.f32 %v8147, %v8148
    %v8150 = vsel %vm4036, %v7318, 0.0
    %v8151 = vadd.f32 %v8149, %v8150
    %v8152 = vsel %vm4036, %v7319, 0.0
    %v8153 = vadd.f32 %v8151, %v8152
    %v8154 = vsel %vm4036, %v7320, 0.0
    %v8155 = vadd.f32 %v8153, %v8154
    %v8156 = vsel %vm4036, %v7321, 0.0
    %v8157 = vadd.f32 %v8155, %v8156
    %v8158 = vsel %vm4036, %v7322, 0.0
    %v8159 = vadd.f32 %v8157, %v8158
    %v8160 = vsel %vm4036, %v7323, 0.0
    %v8161 = vadd.f32 %v8159, %v8160
    %v8162 = vsel %vm4036, %v7324, 0.0
    %v8163 = vadd.f32 %v8161, %v8162
    %v8164 = vsel %vm4036, %v7325, 0.0
    %v8165 = vadd.f32 %v8163, %v8164
    %v8166 = vsel %vm4036, %v7326, 0.0
    %v8167 = vadd.f32 %v8165, %v8166
    %v8168 = vsel %vm4036, %v7327, 0.0
    %v8169 = vadd.f32 %v8167, %v8168
    %v8170 = vsel %vm4036, %v7328, 0.0
    %v8171 = vadd.f32 %v8169, %v8170
    %v8172 = vsel %vm4036, %v7329, 0.0
    %v8173 = vadd.f32 %v8171, %v8172
    %v8174 = vsel %vm4036, %v7330, 0.0
    %v8175 = vadd.f32 %v8173, %v8174
    %v8176 = vsel %vm4036, %v7331, 0.0
    %v8177 = vadd.f32 %v8175, %v8176
    %v8178 = vsel %vm4036, %v7332, 0.0
    %v8179 = vadd.f32 %v8177, %v8178
    %v8180 = vsel %vm4036, %v7333, 0.0
    %v8181 = vadd.f32 %v8179, %v8180
    %v8182 = vsel %vm4036, %v7334, 0.0
    %v8183 = vadd.f32 %v8181, %v8182
    %v8184 = vsel %vm4036, %v7335, 0.0
    %v8185 = vadd.f32 %v8183, %v8184
    %v8186 = vsel %vm4036, %v7336, 0.0
    %v8187 = vadd.f32 %v8185, %v8186
    %v8188 = vsel %vm4036, %v7337, 0.0
    %v8189 = vadd.f32 %v8187, %v8188
    %v8190 = vsel %vm4036, %v7338, 0.0
    %v8191 = vadd.f32 %v8189, %v8190
    %v8192 = vsel %vm4036, %v7339, 0.0
    %v8193 = vadd.f32 %v8191, %v8192
    %v8194 = vsel %vm4036, %v7340, 0.0
    %v8195 = vadd.f32 %v8193, %v8194
    %v8196 = vsel %vm4036, %v7341, 0.0
    %v8197 = vadd.f32 %v8195, %v8196
    %v8198 = vsel %vm4036, %v7342, 0.0
    %v8199 = vadd.f32 %v8197, %v8198
    %v8200 = vsel %vm4036, %v7343, 0.0
    %v8201 = vadd.f32 %v8199, %v8200
    %v8202 = vsel %vm4036, %v7344, 0.0
    %v8203 = vadd.f32 %v8201, %v8202
    %v8204 = vsel %vm4036, %v7345, 0.0
    %v8205 = vadd.f32 %v8203, %v8204
    %v8206 = vsel %vm4036, %v7346, 0.0
    %v8207 = vadd.f32 %v8205, %v8206
    %v8208 = vsel %vm4036, %v7347, 0.0
    %v8209 = vadd.f32 %v8207, %v8208
    %v8210 = vsel %vm4036, %v7348, 0.0
    %v8211 = vadd.f32 %v8209, %v8210
    %v8212 = vsel %vm4036, %v7349, 0.0
    %v8213 = vadd.f32 %v8211, %v8212
    %v8214 = vsel %vm4036, %v7350, 0.0
    %v8215 = vadd.f32 %v8213, %v8214
    %v8216 = vsel %vm4036, %v7351, 0.0
    %v8217 = vadd.f32 %v8215, %v8216
    %v8218 = vsel %vm4036, %v7352, 0.0
    %v8219 = vadd.f32 %v8217, %v8218
    %v8220 = vsel %vm4036, %v7353, 0.0
    %v8221 = vadd.f32 %v8219, %v8220
    %v8222 = vsel %vm4036, %v7354, 0.0
    %v8223 = vadd.f32 %v8221, %v8222
    %v8224 = vsel %vm4036, %v7355, 0.0
    %v8225 = vadd.f32 %v8223, %v8224
    %v8226 = vsel %vm4036, %v7356, 0.0
    %v8227 = vadd.f32 %v8225, %v8226
    %v8228 = vsel %vm4036, %v7357, 0.0
    %v8229 = vadd.f32 %v8227, %v8228
    %v8230 = vsel %vm4036, %v7358, 0.0
    %v8231 = vadd.f32 %v8229, %v8230
    %v8232 = vsel %vm4036, %v7359, 0.0
    %v8233 = vadd.f32 %v8231, %v8232
    %v8234 = vsel %vm4036, %v7360, 0.0
    %v8235 = vadd.f32 %v8233, %v8234
    %v8236 = vsel %vm4036, %v7361, 0.0
    %v8237 = vadd.f32 %v8235, %v8236
    %v8238 = vsel %vm4036, %v7362, 0.0
    %v8239 = vadd.f32 %v8237, %v8238
    %v8240 = vsel %vm4036, %v7363, 0.0
    %v8241 = vadd.f32 %v8239, %v8240
    %v8242 = vsel %vm4036, %v7364, 0.0
    %v8243 = vadd.f32 %v8241, %v8242
    %v8244 = vsel %vm4036, %v7365, 0.0
    %v8245 = vadd.f32 %v8243, %v8244
    %v8246 = vsel %vm4036, %v7366, 0.0
    %v8247 = vadd.f32 %v8245, %v8246
    %v8248 = vsel %vm4036, %v7367, 0.0
    %v8249 = vadd.f32 %v8247, %v8248
    %v8250 = vsel %vm4036, %v7368, 0.0
    %v8251 = vadd.f32 %v8249, %v8250
    %v8252 = vsel %vm4036, %v7369, 0.0
    %v8253 = vadd.f32 %v8251, %v8252
    %v8254 = vsel %vm4036, %v7370, 0.0
    %v8255 = vadd.f32 %v8253, %v8254
    %v8256 = vsel %vm4036, %v7371, 0.0
    %v8257 = vadd.f32 %v8255, %v8256
    %v8258 = vsel %vm4036, %v7372, 0.0
    %v8259 = vadd.f32 %v8257, %v8258
    %v8260 = vsel %vm4036, %v7373, 0.0
    %v8261 = vadd.f32 %v8259, %v8260
    %v8262 = vsel %vm4036, %v7374, 0.0
    %v8263 = vadd.f32 %v8261, %v8262
    %v8264 = vsel %vm4036, %v7375, 0.0
    %v8265 = vadd.f32 %v8263, %v8264
    %v8266 = vsel %vm4036, %v7376, 0.0
    %v8267 = vadd.f32 %v8265, %v8266
    %v8268 = vsel %vm4036, %v7377, 0.0
    %v8269 = vadd.f32 %v8267, %v8268
    %v8270 = vsel %vm4036, %v7378, 0.0
    %v8271 = vadd.f32 %v8269, %v8270
    %v8272 = vsel %vm4036, %v7379, 0.0
    %v8273 = vadd.f32 %v8271, %v8272
    %v8274 = vsel %vm4036, %v7380, 0.0
    %v8275 = vadd.f32 %v8273, %v8274
    %v8276 = vsel %vm4036, %v7381, 0.0
    %v8277 = vadd.f32 %v8275, %v8276
    %v8278 = vsel %vm4036, %v7382, 0.0
    %v8279 = vadd.f32 %v8277, %v8278
    %v8280 = vsel %vm4036, %v7383, 0.0
    %v8281 = vadd.f32 %v8279, %v8280
    %v8282 = vsel %vm4036, %v7384, 0.0
    %v8283 = vadd.f32 %v8281, %v8282
    %v8284 = vsel %vm4036, %v7385, 0.0
    %v8285 = vadd.f32 %v8283, %v8284
    %v8286 = vsel %vm4036, %v7386, 0.0
    %v8287 = vadd.f32 %v8285, %v8286
    %v8288 = vsel %vm4036, %v7387, 0.0
    %v8289 = vadd.f32 %v8287, %v8288
    %v8290 = vsel %vm4036, %v7388, 0.0
    %v8291 = vadd.f32 %v8289, %v8290
    %v8292 = vsel %vm4036, %v7389, 0.0
    %v8293 = vadd.f32 %v8291, %v8292
    %v8294 = vsel %vm4036, %v7390, 0.0
    %v8295 = vadd.f32 %v8293, %v8294
    %v8296 = vsel %vm4036, %v7391, 0.0
    %v8297 = vadd.f32 %v8295, %v8296
    %v8298 = vsel %vm4036, %v7392, 0.0
    %v8299 = vadd.f32 %v8297, %v8298
    %v8300 = vsel %vm4036, %v7393, 0.0
    %v8301 = vadd.f32 %v8299, %v8300
    %v8302 = vsel %vm4036, %v7394, 0.0
    %v8303 = vadd.f32 %v8301, %v8302
    %v8304 = vsel %vm4036, %v7395, 0.0
    %v8305 = vadd.f32 %v8303, %v8304
    %v8306 = vsel %vm4036, %v7396, 0.0
    %v8307 = vadd.f32 %v8305, %v8306
    %v8308 = vsel %vm4036, %v7397, 0.0
    %v8309 = vadd.f32 %v8307, %v8308
    %v8310 = vsel %vm4036, %v7398, 0.0
    %v8311 = vadd.f32 %v8309, %v8310
    %v8312 = vsel %vm4036, %v7399, 0.0
    %v8313 = vadd.f32 %v8311, %v8312
    %v8314 = vsel %vm4036, %v7400, 0.0
    %v8315 = vadd.f32 %v8313, %v8314
    %v8316 = vsel %vm4036, %v7401, 0.0
    %v8317 = vadd.f32 %v8315, %v8316
    %v8318 = vsel %vm4036, %v7402, 0.0
    %v8319 = vadd.f32 %v8317, %v8318
    %v8320 = vsel %vm4036, %v7403, 0.0
    %v8321 = vadd.f32 %v8319, %v8320
    %v8322 = vsel %vm4036, %v7404, 0.0
    %v8323 = vadd.f32 %v8321, %v8322
    %v8324 = vsel %vm4036, %v7405, 0.0
    %v8325 = vadd.f32 %v8323, %v8324
    %v8326 = vsel %vm4036, %v7406, 0.0
    %v8327 = vadd.f32 %v8325, %v8326
    %v8328 = vsel %vm4036, %v7407, 0.0
    %v8329 = vadd.f32 %v8327, %v8328
    %v8330 = vsel %vm4036, %v7408, 0.0
    %v8331 = vadd.f32 %v8329, %v8330
    %v8332 = vsel %vm4036, %v7409, 0.0
    %v8333 = vadd.f32 %v8331, %v8332
    %v8334 = vsel %vm4036, %v7410, 0.0
    %v8335 = vadd.f32 %v8333, %v8334
    %v8336 = vsel %vm4036, %v7411, 0.0
    %v8337 = vadd.f32 %v8335, %v8336
    %v8338 = vsel %vm4036, %v7412, 0.0
    %v8339 = vadd.f32 %v8337, %v8338
    %v8340 = vsel %vm4036, %v7413, 0.0
    %v8341 = vadd.f32 %v8339, %v8340
    %v8342 = vsel %vm4036, %v7414, 0.0
    %v8343 = vadd.f32 %v8341, %v8342
    %v8344 = vsel %vm4036, %v7415, 0.0
    %v8345 = vadd.f32 %v8343, %v8344
    %v8346 = vsel %vm4036, %v7416, 0.0
    %v8347 = vadd.f32 %v8345, %v8346
    %v8348 = vsel %vm4036, %v7417, 0.0
    %v8349 = vadd.f32 %v8347, %v8348
    %v8350 = vsel %vm4036, %v7418, 0.0
    %v8351 = vadd.f32 %v8349, %v8350
    %v8352 = vsel %vm4036, %v7419, 0.0
    %v8353 = vadd.f32 %v8351, %v8352
    %v8354 = vsel %vm4036, %v7420, 0.0
    %v8355 = vadd.f32 %v8353, %v8354
    %v8356 = vsel %vm4036, %v7421, 0.0
    %v8357 = vadd.f32 %v8355, %v8356
    %v8358 = vsel %vm4036, %v7422, 0.0
    %v8359 = vadd.f32 %v8357, %v8358
    %v8360 = vsel %vm4036, %v7423, 0.0
    %v8361 = vadd.f32 %v8359, %v8360
    %v8362 = vsel %vm4036, %v7424, 0.0
    %v8363 = vadd.f32 %v8361, %v8362
    %v8364 = vsel %vm4036, %v7425, 0.0
    %v8365 = vadd.f32 %v8363, %v8364
    %v8366 = vsel %vm4036, %v7426, 0.0
    %v8367 = vadd.f32 %v8365, %v8366
    %v8368 = vsel %vm4036, %v7427, 0.0
    %v8369 = vadd.f32 %v8367, %v8368
    %v8370 = vsel %vm4036, %v7428, 0.0
    %v8371 = vadd.f32 %v8369, %v8370
    %v8372 = vsel %vm4036, %v7429, 0.0
    %v8373 = vadd.f32 %v8371, %v8372
    %v8374 = vsel %vm4036, %v7430, 0.0
    %v8375 = vadd.f32 %v8373, %v8374
    %v8376 = vsel %vm4036, %v7431, 0.0
    %v8377 = vadd.f32 %v8375, %v8376
    %v8378 = vsel %vm4036, %v7432, 0.0
    %v8379 = vadd.f32 %v8377, %v8378
    %v8380 = vsel %vm4036, %v7433, 0.0
    %v8381 = vadd.f32 %v8379, %v8380
    %v8382 = vsel %vm4036, %v7434, 0.0
    %v8383 = vadd.f32 %v8381, %v8382
    %v8384 = vsel %vm4036, %v7435, 0.0
    %v8385 = vadd.f32 %v8383, %v8384
    %v8386 = vsel %vm4036, %v7436, 0.0
    %v8387 = vadd.f32 %v8385, %v8386
    %v8388 = vsel %vm4036, %v7437, 0.0
    %v8389 = vadd.f32 %v8387, %v8388
    %v8390 = vsel %vm4036, %v7438, 0.0
    %v8391 = vadd.f32 %v8389, %v8390
    %v8392 = vsel %vm4036, %v7439, 0.0
    %v8393 = vadd.f32 %v8391, %v8392
    %v8394 = vsel %vm4036, %v7440, 0.0
    %v8395 = vadd.f32 %v8393, %v8394
    %v8396 = vsel %vm4036, %v7441, 0.0
    %v8397 = vadd.f32 %v8395, %v8396
    %v8398 = vsel %vm4036, %v7442, 0.0
    %v8399 = vadd.f32 %v8397, %v8398
    %v8400 = vsel %vm4036, %v7443, 0.0
    %v8401 = vadd.f32 %v8399, %v8400
    %v8402 = vsel %vm4036, %v7444, 0.0
    %v8403 = vadd.f32 %v8401, %v8402
    %v8404 = vsel %vm4036, %v7445, 0.0
    %v8405 = vadd.f32 %v8403, %v8404
    %v8406 = vsel %vm4036, %v7446, 0.0
    %v8407 = vadd.f32 %v8405, %v8406
    %v8408 = vsel %vm4036, %v7447, 0.0
    %v8409 = vadd.f32 %v8407, %v8408
    %v8410 = vsel %vm4036, %v7448, 0.0
    %v8411 = vadd.f32 %v8409, %v8410
    %v8412 = vsel %vm4036, %v7449, 0.0
    %v8413 = vadd.f32 %v8411, %v8412
    %v8414 = vsel %vm4036, %v7450, 0.0
    %v8415 = vadd.f32 %v8413, %v8414
    %v8416 = vsel %vm4036, %v7451, 0.0
    %v8417 = vadd.f32 %v8415, %v8416
    %v8418 = vsel %vm4036, %v7452, 0.0
    %v8419 = vadd.f32 %v8417, %v8418
    %v8420 = vsel %vm4036, %v7453, 0.0
    %v8421 = vadd.f32 %v8419, %v8420
    %v8422 = vsel %vm4036, %v7454, 0.0
    %v8423 = vadd.f32 %v8421, %v8422
    %v8424 = vsel %vm4036, %v7455, 0.0
    %v8425 = vadd.f32 %v8423, %v8424
    %v8426 = vsel %vm4036, %v7456, 0.0
    %v8427 = vadd.f32 %v8425, %v8426
    %v8428 = vsel %vm4036, %v7457, 0.0
    %v8429 = vadd.f32 %v8427, %v8428
    %v8430 = vsel %vm4036, %v7458, 0.0
    %v8431 = vadd.f32 %v8429, %v8430
    %v8432 = vsel %vm4036, %v7459, 0.0
    %v8433 = vadd.f32 %v8431, %v8432
    %v8434 = vsel %vm4036, %v7460, 0.0
    %v8435 = vadd.f32 %v8433, %v8434
    %v8436 = vsel %vm4036, %v7461, 0.0
    %v8437 = vadd.f32 %v8435, %v8436
    %v8438 = vsel %vm4036, %v7462, 0.0
    %v8439 = vadd.f32 %v8437, %v8438
    %v8440 = vsel %vm4036, %v7463, 0.0
    %v8441 = vadd.f32 %v8439, %v8440
    %v8442 = vsel %vm4036, %v7464, 0.0
    %v8443 = vadd.f32 %v8441, %v8442
    %v8444 = vsel %vm4036, %v7465, 0.0
    %v8445 = vadd.f32 %v8443, %v8444
    %v8446 = vsel %vm4036, %v7466, 0.0
    %v8447 = vadd.f32 %v8445, %v8446
    %v8448 = vsel %vm4036, %v7467, 0.0
    %v8449 = vadd.f32 %v8447, %v8448
    %v8450 = vsel %vm4036, %v7468, 0.0
    %v8451 = vadd.f32 %v8449, %v8450
    %v8452 = vsel %vm4036, %v7469, 0.0
    %v8453 = vadd.f32 %v8451, %v8452
    %v8454 = vsel %vm4036, %v7470, 0.0
    %v8455 = vadd.f32 %v8453, %v8454
    %v8456 = vsel %vm4036, %v7471, 0.0
    %v8457 = vadd.f32 %v8455, %v8456
    %v8458 = vsel %vm4036, %v7472, 0.0
    %v8459 = vadd.f32 %v8457, %v8458
    %v8460 = vsel %vm4036, %v7473, 0.0
    %v8461 = vadd.f32 %v8459, %v8460
    %v8462 = vsel %vm4036, %v7474, 0.0
    %v8463 = vadd.f32 %v8461, %v8462
    %v8464 = vsel %vm4036, %v7475, 0.0
    %v8465 = vadd.f32 %v8463, %v8464
    %v8466 = vsel %vm4036, %v7476, 0.0
    %v8467 = vadd.f32 %v8465, %v8466
    %v8468 = vsel %vm4036, %v7477, 0.0
    %v8469 = vadd.f32 %v8467, %v8468
    %v8470 = vsel %vm4036, %v7478, 0.0
    %v8471 = vadd.f32 %v8469, %v8470
    %v8472 = vsel %vm4036, %v7479, 0.0
    %v8473 = vadd.f32 %v8471, %v8472
    %v8474 = vsel %vm4036, %v7480, 0.0
    %v8475 = vadd.f32 %v8473, %v8474
    %v8476 = vsel %vm4036, %v7481, 0.0
    %v8477 = vadd.f32 %v8475, %v8476
    %v8478 = vsel %vm4036, %v7482, 0.0
    %v8479 = vadd.f32 %v8477, %v8478
    %v8480 = vsel %vm4036, %v7483, 0.0
    %v8481 = vadd.f32 %v8479, %v8480
    %v8482 = vsel %vm4036, %v7484, 0.0
    %v8483 = vadd.f32 %v8481, %v8482
    %v8484 = vsel %vm4036, %v7485, 0.0
    %v8485 = vadd.f32 %v8483, %v8484
    %v8486 = vsel %vm4036, %v7486, 0.0
    %v8487 = vadd.f32 %v8485, %v8486
    %v8488 = vsel %vm4036, %v7487, 0.0
    %v8489 = vadd.f32 %v8487, %v8488
    %v8490 = vsel %vm4036, %v7488, 0.0
    %v8491 = vadd.f32 %v8489, %v8490
    %v8492 = vsel %vm4036, %v7489, 0.0
    %v8493 = vadd.f32 %v8491, %v8492
    %v8494 = vsel %vm4036, %v7490, 0.0
    %v8495 = vadd.f32 %v8493, %v8494
    %v8496 = vsel %vm4036, %v7491, 0.0
    %v8497 = vadd.f32 %v8495, %v8496
    %v8498 = vsel %vm4036, %v7492, 0.0
    %v8499 = vadd.f32 %v8497, %v8498
    %v8500 = vsel %vm4036, %v7493, 0.0
    %v8501 = vadd.f32 %v8499, %v8500
    %v8502 = vsel %vm4036, %v7494, 0.0
    %v8503 = vadd.f32 %v8501, %v8502
    %v8504 = vsel %vm4036, %v7495, 0.0
    %v8505 = vadd.f32 %v8503, %v8504
    %v8506 = vsel %vm4036, %v7496, 0.0
    %v8507 = vadd.f32 %v8505, %v8506
    %v8508 = vsel %vm4036, %v7497, 0.0
    %v8509 = vadd.f32 %v8507, %v8508
    %v8510 = vsel %vm4036, %v7498, 0.0
    %v8511 = vadd.f32 %v8509, %v8510
    %v8512 = vsel %vm4036, %v7499, 0.0
    %v8513 = vadd.f32 %v8511, %v8512
    %v8514 = vsel %vm4036, %v7500, 0.0
    %v8515 = vadd.f32 %v8513, %v8514
    %v8516 = vsel %vm4036, %v7501, 0.0
    %v8517 = vadd.f32 %v8515, %v8516
    %v8518 = vsel %vm4036, %v7502, 0.0
    %v8519 = vadd.f32 %v8517, %v8518
    %v8520 = vsel %vm4036, %v7503, 0.0
    %v8521 = vadd.f32 %v8519, %v8520
    %v8522 = vsel %vm4036, %v7504, 0.0
    %v8523 = vadd.f32 %v8521, %v8522
    %v8524 = vsel %vm4036, %v7505, 0.0
    %v8525 = vadd.f32 %v8523, %v8524
    %v8526 = vsel %vm4036, %v7506, 0.0
    %v8527 = vadd.f32 %v8525, %v8526
    %v8528 = vsel %vm4036, %v7507, 0.0
    %v8529 = vadd.f32 %v8527, %v8528
    %v8530 = vsel %vm4036, %v7508, 0.0
    %v8531 = vadd.f32 %v8529, %v8530
    %v8532 = vsel %vm4036, %v7509, 0.0
    %v8533 = vadd.f32 %v8531, %v8532
    %v8534 = vsel %vm4036, %v7510, 0.0
    %v8535 = vadd.f32 %v8533, %v8534
    %v8536 = vsel %vm4036, %v7511, 0.0
    %v8537 = vadd.f32 %v8535, %v8536
    %v8538 = vsel %vm4036, %v7512, 0.0
    %v8539 = vadd.f32 %v8537, %v8538
    %v8540 = vsel %vm4036, %v7513, 0.0
    %v8541 = vadd.f32 %v8539, %v8540
    %v8542 = vsel %vm4036, %v7514, 0.0
    %v8543 = vadd.f32 %v8541, %v8542
    %v8544 = vsel %vm4036, %v7515, 0.0
    %v8545 = vadd.f32 %v8543, %v8544
    %v8546 = vsel %vm4036, %v7516, 0.0
    %v8547 = vadd.f32 %v8545, %v8546
    %v8548 = vsel %vm4036, %v7517, 0.0
    %v8549 = vadd.f32 %v8547, %v8548
    %v8550 = vsel %vm4036, %v7518, 0.0
    %v8551 = vadd.f32 %v8549, %v8550
    %v8552 = vsel %vm4036, %v7519, 0.0
    %v8553 = vadd.f32 %v8551, %v8552
    %v8554 = vsel %vm4036, %v7520, 0.0
    %v8555 = vadd.f32 %v8553, %v8554
    %v8556 = vsel %vm4036, %v7521, 0.0
    %v8557 = vadd.f32 %v8555, %v8556
    %v8558 = vsel %vm4036, %v7522, 0.0
    %v8559 = vadd.f32 %v8557, %v8558
    %v8560 = vsel %vm4036, %v7523, 0.0
    %v8561 = vadd.f32 %v8559, %v8560
    %v8562 = vsel %vm4036, %v7524, 0.0
    %v8563 = vadd.f32 %v8561, %v8562
    %v8564 = vsel %vm4036, %v7525, 0.0
    %v8565 = vadd.f32 %v8563, %v8564
    %v8566 = vsel %vm4036, %v7526, 0.0
    %v8567 = vadd.f32 %v8565, %v8566
    %v8568 = vsel %vm4036, %v7527, 0.0
    %v8569 = vadd.f32 %v8567, %v8568
    %v8570 = vsel %vm4036, %v7528, 0.0
    %v8571 = vadd.f32 %v8569, %v8570
    %v8572 = vsel %vm4036, %v7529, 0.0
    %v8573 = vadd.f32 %v8571, %v8572
    %v8574 = vsel %vm4036, %v7530, 0.0
    %v8575 = vadd.f32 %v8573, %v8574
    %v8576 = vsel %vm4036, %v7531, 0.0
    %v8577 = vadd.f32 %v8575, %v8576
    %v8578 = vsel %vm4036, %v7532, 0.0
    %v8579 = vadd.f32 %v8577, %v8578
    %v8580 = vsel %vm4036, %v7533, 0.0
    %v8581 = vadd.f32 %v8579, %v8580
    %v8582 = vsel %vm4036, %v7534, 0.0
    %v8583 = vadd.f32 %v8581, %v8582
    %v8584 = vsel %vm4036, %v7535, 0.0
    %v8585 = vadd.f32 %v8583, %v8584
    %v8586 = vsel %vm4036, %v7536, 0.0
    %v8587 = vadd.f32 %v8585, %v8586
    %v8588 = vsel %vm4036, %v7537, 0.0
    %v8589 = vadd.f32 %v8587, %v8588
    %v8590 = vsel %vm4036, %v7538, 0.0
    %v8591 = vadd.f32 %v8589, %v8590
    %v8592 = vsel %vm4036, %v7539, 0.0
    %v8593 = vadd.f32 %v8591, %v8592
    %v8594 = vsel %vm4036, %v7540, 0.0
    %v8595 = vadd.f32 %v8593, %v8594
    %v8596 = vsel %vm4036, %v7541, 0.0
    %v8597 = vadd.f32 %v8595, %v8596
    %v8598 = vsel %vm4036, %v7542, 0.0
    %v8599 = vadd.f32 %v8597, %v8598
    %v8600 = vsel %vm4036, %v7543, 0.0
    %v8601 = vadd.f32 %v8599, %v8600
    %v8602 = vsel %vm4036, %v7544, 0.0
    %v8603 = vadd.f32 %v8601, %v8602
    %v8604 = vsel %vm4036, %v7545, 0.0
    %v8605 = vadd.f32 %v8603, %v8604
    %v8606 = vsel %vm4036, %v7546, 0.0
    %v8607 = vadd.f32 %v8605, %v8606
    %v8608 = vsel %vm4036, %v7547, 0.0
    %v8609 = vadd.f32 %v8607, %v8608
    %v8610 = vsel %vm4036, %v7548, 0.0
    %v8611 = vadd.f32 %v8609, %v8610
    %v8612 = vsel %vm4036, %v7549, 0.0
    %v8613 = vadd.f32 %v8611, %v8612
    %v8614 = vsel %vm4036, %v7550, 0.0
    %v8615 = vadd.f32 %v8613, %v8614
    %v8616 = vsel %vm4036, %v7551, 0.0
    %v8617 = vadd.f32 %v8615, %v8616
    %v8618 = vsel %vm4036, %v7552, 0.0
    %v8619 = vadd.f32 %v8617, %v8618
    %v8620 = vsel %vm4036, %v7553, 0.0
    %v8621 = vadd.f32 %v8619, %v8620
    %v8622 = vsel %vm4036, %v7554, 0.0
    %v8623 = vadd.f32 %v8621, %v8622
    %v8624 = vsel %vm4036, %v7555, 0.0
    %v8625 = vadd.f32 %v8623, %v8624
    %v8626 = vsel %vm4036, %v7556, 0.0
    %v8627 = vadd.f32 %v8625, %v8626
    %v8628 = vsel %vm4036, %v7557, 0.0
    %v8629 = vadd.f32 %v8627, %v8628
    %v8630 = vsel %vm4036, %v7558, 0.0
    %v8631 = vadd.f32 %v8629, %v8630
    %v8632 = vsel %vm4036, %v7559, 0.0
    %v8633 = vadd.f32 %v8631, %v8632
    %v8634 = vsel %vm4036, %v7560, 0.0
    %v8635 = vadd.f32 %v8633, %v8634
    %v8636 = vsel %vm4036, %v7561, 0.0
    %v8637 = vadd.f32 %v8635, %v8636
    %v8638 = vsel %vm4036, %v7562, 0.0
    %v8639 = vadd.f32 %v8637, %v8638
    %v8640 = vsel %vm4036, %v7563, 0.0
    %v8641 = vadd.f32 %v8639, %v8640
    %v8642 = vsel %vm4036, %v7564, 0.0
    %v8643 = vadd.f32 %v8641, %v8642
    %v8644 = vsel %vm4036, %v7565, 0.0
    %v8645 = vadd.f32 %v8643, %v8644
    %v8646 = vsel %vm4036, %v7566, 0.0
    %v8647 = vadd.f32 %v8645, %v8646
    %v8648 = vsel %vm4036, %v7567, 0.0
    %v8649 = vadd.f32 %v8647, %v8648
    %v8650 = vsel %vm4036, %v7568, 0.0
    %v8651 = vadd.f32 %v8649, %v8650
    %v8652 = vsel %vm4036, %v7569, 0.0
    %v8653 = vadd.f32 %v8651, %v8652
    %v8654 = vsel %vm4036, %v7570, 0.0
    %v8655 = vadd.f32 %v8653, %v8654
    %v8656 = vsel %vm4036, %v7571, 0.0
    %v8657 = vadd.f32 %v8655, %v8656
    %v8658 = vsel %vm4036, %v7572, 0.0
    %v8659 = vadd.f32 %v8657, %v8658
    %v8660 = vsel %vm4036, %v7573, 0.0
    %v8661 = vadd.f32 %v8659, %v8660
    %v8662 = vsel %vm4036, %v7574, 0.0
    %v8663 = vadd.f32 %v8661, %v8662
    %v8664 = vsel %vm4036, %v7575, 0.0
    %v8665 = vadd.f32 %v8663, %v8664
    %v8666 = vsel %vm4036, %v7576, 0.0
    %v8667 = vadd.f32 %v8665, %v8666
    %v8668 = vsel %vm4036, %v7577, 0.0
    %v8669 = vadd.f32 %v8667, %v8668
    %v8670 = vsel %vm4036, %v7578, 0.0
    %v8671 = vadd.f32 %v8669, %v8670
    %v8672 = vsel %vm4036, %v7579, 0.0
    %v8673 = vadd.f32 %v8671, %v8672
    %v8674 = vsel %vm4036, %v7580, 0.0
    %v8675 = vadd.f32 %v8673, %v8674
    %v8676 = vsel %vm4036, %v7581, 0.0
    %v8677 = vadd.f32 %v8675, %v8676
    %v8678 = vsel %vm4036, %v7582, 0.0
    %v8679 = vadd.f32 %v8677, %v8678
    %v8680 = vsel %vm4036, %v7583, 0.0
    %v8681 = vadd.f32 %v8679, %v8680
    %v8682 = vsel %vm4036, %v7584, 0.0
    %v8683 = vadd.f32 %v8681, %v8682
    %v8684 = vsel %vm4036, %v7585, 0.0
    %v8685 = vadd.f32 %v8683, %v8684
    %v8686 = vsel %vm4036, %v7586, 0.0
    %v8687 = vadd.f32 %v8685, %v8686
    %v8688 = vsel %vm4036, %v7587, 0.0
    %v8689 = vadd.f32 %v8687, %v8688
    %v8690 = vsel %vm4036, %v7588, 0.0
    %v8691 = vadd.f32 %v8689, %v8690
    %v8692 = vsel %vm4036, %v7589, 0.0
    %v8693 = vadd.f32 %v8691, %v8692
    %v8694 = vsel %vm4036, %v7590, 0.0
    %v8695 = vadd.f32 %v8693, %v8694
    %v8696 = vsel %vm4036, %v7591, 0.0
    %v8697 = vadd.f32 %v8695, %v8696
    %v8698 = vsel %vm4036, %v7592, 0.0
    %v8699 = vadd.f32 %v8697, %v8698
    %v8700 = vsel %vm4036, %v7593, 0.0
    %v8701 = vadd.f32 %v8699, %v8700
    %v8702 = vsel %vm4036, %v7594, 0.0
    %v8703 = vadd.f32 %v8701, %v8702
    %v8704 = vsel %vm4036, %v7595, 0.0
    %v8705 = vadd.f32 %v8703, %v8704
    %v8706 = vsel %vm4036, %v7596, 0.0
    %v8707 = vadd.f32 %v8705, %v8706
    %v8708 = vsel %vm4036, %v7597, 0.0
    %v8709 = vadd.f32 %v8707, %v8708
    %v8710 = vsel %vm4036, %v7598, 0.0
    %v8711 = vadd.f32 %v8709, %v8710
    %v8712 = vsel %vm4036, %v7599, 0.0
    %v8713 = vadd.f32 %v8711, %v8712
    %v8714 = vsel %vm4036, %v7600, 0.0
    %v8715 = vadd.f32 %v8713, %v8714
    %v8716 = vsel %vm4036, %v7601, 0.0
    %v8717 = vadd.f32 %v8715, %v8716
    %v8718 = vsel %vm4036, %v7602, 0.0
    %v8719 = vadd.f32 %v8717, %v8718
    %v8720 = vsel %vm4036, %v7603, 0.0
    %v8721 = vadd.f32 %v8719, %v8720
    %v8722 = vsel %vm4036, %v7604, 0.0
    %v8723 = vadd.f32 %v8721, %v8722
    %v8724 = vsel %vm4036, %v7605, 0.0
    %v8725 = vadd.f32 %v8723, %v8724
    %v8726 = vsel %vm4036, %v7606, 0.0
    %v8727 = vadd.f32 %v8725, %v8726
    %v8728 = vsel %vm4036, %v7607, 0.0
    %v8729 = vadd.f32 %v8727, %v8728
    %v8730 = vsel %vm4036, %v7608, 0.0
    %v8731 = vadd.f32 %v8729, %v8730
    %v8732 = vsel %vm4036, %v7609, 0.0
    %v8733 = vadd.f32 %v8731, %v8732
    %v8734 = vsel %vm4036, %v7610, 0.0
    %v8735 = vadd.f32 %v8733, %v8734
    %v8736 = vsel %vm4036, %v7611, 0.0
    %v8737 = vadd.f32 %v8735, %v8736
    %v8738 = vsel %vm4036, %v7612, 0.0
    %v8739 = vadd.f32 %v8737, %v8738
    %v8740 = vsel %vm4036, %v7613, 0.0
    %v8741 = vadd.f32 %v8739, %v8740
    %v8742 = vsel %vm4036, %v7614, 0.0
    %v8743 = vadd.f32 %v8741, %v8742
    %v8744 = vsel %vm4036, %v7615, 0.0
    %v8745 = vadd.f32 %v8743, %v8744
    %v8746 = vsel %vm4036, %v7616, 0.0
    %v8747 = vadd.f32 %v8745, %v8746
    %v8748 = vsel %vm4036, %v7617, 0.0
    %v8749 = vadd.f32 %v8747, %v8748
    %v8750 = vsel %vm4036, %v7618, 0.0
    %v8751 = vadd.f32 %v8749, %v8750
    %v8752 = vsel %vm4036, %v7619, 0.0
    %v8753 = vadd.f32 %v8751, %v8752
    %v8754 = vsel %vm4036, %v7620, 0.0
    %v8755 = vadd.f32 %v8753, %v8754
    %v8756 = vsel %vm4036, %v7621, 0.0
    %v8757 = vadd.f32 %v8755, %v8756
    %v8758 = vsel %vm4036, %v7622, 0.0
    %v8759 = vadd.f32 %v8757, %v8758
    %v8760 = vsel %vm4036, %v7623, 0.0
    %v8761 = vadd.f32 %v8759, %v8760
    %v8762 = vsel %vm4036, %v7624, 0.0
    %v8763 = vadd.f32 %v8761, %v8762
    %v8764 = vsel %vm4036, %v7625, 0.0
    %v8765 = vadd.f32 %v8763, %v8764
    %v8766 = vsel %vm4036, %v7626, 0.0
    %v8767 = vadd.f32 %v8765, %v8766
    %v8768 = vsel %vm4036, %v7627, 0.0
    %v8769 = vadd.f32 %v8767, %v8768
    %v8770 = vsel %vm4036, %v7628, 0.0
    %v8771 = vadd.f32 %v8769, %v8770
    %v8772 = vsel %vm4036, %v7629, 0.0
    %v8773 = vadd.f32 %v8771, %v8772
    %v8774 = vsel %vm4036, %v7630, 0.0
    %v8775 = vadd.f32 %v8773, %v8774
    %v8776 = vsel %vm4036, %v7631, 0.0
    %v8777 = vadd.f32 %v8775, %v8776
    %v8778 = vsel %vm4036, %v7632, 0.0
    %v8779 = vadd.f32 %v8777, %v8778
    %v8780 = vsel %vm4036, %v7633, 0.0
    %v8781 = vadd.f32 %v8779, %v8780
    %v8782 = vsel %vm4036, %v7634, 0.0
    %v8783 = vadd.f32 %v8781, %v8782
    %v8784 = vsel %vm4036, %v7635, 0.0
    %v8785 = vadd.f32 %v8783, %v8784
    %v8786 = vsel %vm4036, %v7636, 0.0
    %v8787 = vadd.f32 %v8785, %v8786
    %v8788 = vsel %vm4036, %v7637, 0.0
    %v8789 = vadd.f32 %v8787, %v8788
    %8790 = vadd.xlane.f32.xlu0 %v8789
    %v8791 = vpop.xlane.xlu0 %8790
    %v8794 = vlaneseq
    %v8795 = vand.u32 %v8794, 127
    %v8796 = vlaneseq
    %v8797 = vshrl.u32 %v8796, 7
    %v8798 = vsub.s32 %v8795, %v8797
    %v8799 = vrot.slane %v4035, %v8798
    %v8800 = vadd.s32 %v8795, 4294967288
    %v8801 = vlaneseq
    %v8802 = vshrl.u32 %v8801, 7
    %v8803 = vsub.s32 %v8800, %v8802
    %v8804 = vrot.slane %v4805, %v8803
    %vm8805 = vcmask 130112
    %v8806 = vsel %vm8805, %v8804, %v8799
    %v8810 = vlaneseq
    %v8811 = vshrl.u32 %v8810, 7
    %v8812 = vsub.s32 %v8795, %v8811
    %v8813 = vrot.slane %v8022, %v8812
    %v8814 = vlaneseq
    %v8815 = vshrl.u32 %v8814, 7
    %v8816 = vsub.s32 %v8800, %v8815
    %v8817 = vrot.slane %v8791, %v8816
    %v8818 = vsel %vm8805, %v8817, %v8813
    %vm8820 = vcmask 1040384
    %v8821 = vsel %vm8820, %v8806, %v8818
    %v8822 = vld [vmem:[#allocation7] sm:$0x1]
    %v8824 = vlaneseq
    %v8825 = vshrl.u32 %v8824, 7
    %v8826 = vsub.s32 0, %v8825
    %v8827 = vrot.slane %v8822, %v8826
    %v8829 = vadd.f32 %v8821, %v8827
    %vm8830 = vcmask 74752
    %8831 = vst.msk [vmem:[#allocation8] sm:$0x3] %vm8830, %v8829
    // Predicated region
    $region26: #{tpu_custom_call.1} parent=1 // pred_check
      _
    $region27: #{tpu_custom_call.1} parent=1 // pred_check_branch
      %8833 = sbr.rel (0) target = $region29
    $region28: #{tpu_custom_call.1} parent=1 // pred_region
      %s8835 = ssub.s32 32, 32
      %8836 = vsyncadd [#allocation4], %s8835
      %s8838 = sshll.u32 [#allocation8], 4
      %s8839 = int_to_ptr.vmem [resolvable:$true] %s8838
      %8841 = dma.vmem_to_hbm [thread:$0]  %s8839, 32, %s3, [#allocation4]
    $region29: #{tpu_custom_call.1} parent=1 // pred_fallthru
      _
    // Predicated region
    $region30: #{tpu_custom_call.1} parent=1 // pred_check
      _
    $region31: #{tpu_custom_call.1} parent=1 // pred_check_branch
      %8843 = sbr.rel (0) target = $region33
    $region32: #{tpu_custom_call.1} parent=1 // pred_region
      %8844 = dma.done [#allocation4], 32
    $region33: #{tpu_custom_call.1} parent=1 // pred_fallthru
      _
    %8845 = vsyncpa [#allocation3], 1
    %8846 = vsyncpa [#allocation6], 1
    %8847 = vsyncpa [#allocation4], 1

</llo_original>
